<compile_context>
chip_gen: v7x
topology: tpu7x:2x2x1
jax: 0.10.0
libtpu: 0.0.40
codegen_flags: <defaults>
</compile_context>

<pallas_src>
import jax
import jax.numpy as jnp
from jax import lax
from jax.experimental import pallas as pl
from jax.experimental.pallas import tpu as pltpu

LANES = 128   # lane width / padded channel count
KSIZE = 3     # all convs in the module are 3x3


def _conv_out(size, k, s):
    return (size - k) // s + 1


def _geometry(H, W):
    H1, W1 = _conv_out(H, KSIZE, 1), _conv_out(W, KSIZE, 1)
    H2, W2 = _conv_out(H1, KSIZE, 2), _conv_out(W1, KSIZE, 2)
    H3, W3 = _conv_out(H2, KSIZE, 2), _conv_out(W2, KSIZE, 2)
    return (H1, W1), (H2, W2), (H3, W3)


# ----------------------------- parameter prep -------------------------------

def init_params(key, in_ch, num_classes, H, W):
    """Parameters in native PyTorch layout: conv (Cout,Cin,KH,KW), fc (C,F)."""
    (_, _), (_, _), (H3, W3) = _geometry(H, W)
    flattened = 128 * H3 * W3
    ks = jax.random.split(key, 8)
    s = 0.05
    return {
        "w1": jax.random.normal(ks[0], (32, in_ch, 3, 3), jnp.float32) * s,
        "b1": jax.random.normal(ks[1], (32,), jnp.float32) * s,
        "w2": jax.random.normal(ks[2], (64, 32, 3, 3), jnp.float32) * s,
        "b2": jax.random.normal(ks[3], (64,), jnp.float32) * s,
        "w3": jax.random.normal(ks[4], (128, 64, 3, 3), jnp.float32) * s,
        "b3": jax.random.normal(ks[5], (128,), jnp.float32) * s,
        "wfc": jax.random.normal(ks[6], (num_classes, flattened), jnp.float32) * s,
        "bfc": jax.random.normal(ks[7], (num_classes,), jnp.float32) * s,
    }


def prepare_params(params, num_classes, H, W):
    """One-time re-layout of the PyTorch-style weights for the fused kernel."""
    (_, _), (_, _), (H3, W3) = _geometry(H, W)

    def prep_conv(w, b):
        cout, cin = w.shape[0], w.shape[1]
        # (Cout,Cin,KH,KW) -> (KH,KW,Cin,Cout) -> (9, Cin, Cout), zero-pad to 128
        taps = jnp.transpose(w, (2, 3, 1, 0)).reshape(KSIZE * KSIZE, cin, cout)
        taps = jnp.pad(taps, ((0, 0), (0, LANES - cin), (0, LANES - cout)))
        bias = jnp.pad(b, (0, LANES - cout)).reshape(1, LANES).astype(jnp.float32)
        return taps.astype(jnp.bfloat16), bias

    w1, b1 = prep_conv(params["w1"], params["b1"])
    w2, b2 = prep_conv(params["w2"], params["b2"])
    w3, b3 = prep_conv(params["w3"], params["b3"])

    # FC: torch flatten order is (c, oy, ox).  Regroup per spatial position so
    # the kernel can consume channel-rows directly (folds away the pre-flatten
    # transpose).  Pad class dim to 128 lanes; padded classes get bias -1e9 so
    # they contribute exp(-inf)=0 to the softmax denominator.
    c3 = params["w3"].shape[0]                      # 128
    wfc = params["wfc"].T.reshape(c3, H3, W3, num_classes)      # [c, oy, ox, k]
    wfc = jnp.transpose(wfc, (1, 2, 0, 3)).reshape(H3 * W3, c3, num_classes)
    wfc = jnp.pad(wfc, ((0, 0), (0, LANES - c3), (0, LANES - num_classes)))
    wfc = wfc.astype(jnp.bfloat16)
    bfc = jnp.full((1, LANES), -1e9, jnp.float32)
    bfc = bfc.at[0, :num_classes].set(params["bfc"].astype(jnp.float32))

    return dict(w1=w1, b1=b1, w2=w2, b2=b2, w3=w3, b3=b3, wfc=wfc, bfc=bfc)


# ------------------------------ fused kernel --------------------------------

def build_forward(batch, in_ch, H, W, num_classes):
    (H1, W1), (H2, W2), (H3, W3) = _geometry(H, W)
    P = W  # storage row-width for every activation (valid cols <= P everywhere)
    assert W1 <= P and W2 <= P and W3 <= P

    layers = [
        dict(stride=1, in_block=H * P,  out_block=H1 * P, T=(H1 - 1) * P + W1),
        dict(stride=2, in_block=H1 * P, out_block=H2 * P, T=(H2 - 1) * P + W2),
        dict(stride=2, in_block=H2 * P, out_block=H3 * P, T=(H3 - 1) * P + W3),
    ]
    # every strided tap read must stay inside the producer buffer
    for lyr in layers:
        base_max = (batch - 1) * lyr["in_block"] + (KSIZE - 1) * P + (KSIZE - 1)
        assert base_max + lyr["stride"] * (lyr["T"] - 1) < batch * lyr["in_block"]

    n_pos = H3 * W3

    def kernel(x_ref, w1_ref, b1_ref, w2_ref, b2_ref, w3_ref, b3_ref,
               wfc_ref, bfc_ref, out_ref, a1_ref, a2_ref, a3_ref):
        # wipe activation scratch so never-read junk rows stay finite
        a1_ref[...] = jnp.zeros_like(a1_ref)
        a2_ref[...] = jnp.zeros_like(a2_ref)
        a3_ref[...] = jnp.zeros_like(a3_ref)

        def conv_layer(in_ref, w_ref, b_ref, dst_ref, lyr):
            s, T = lyr["stride"], lyr["T"]
            bias = b_ref[...]                                   # (1, 128) f32
            for n in range(batch):
                acc = jnp.zeros((T, LANES), jnp.float32)
                for ky in range(KSIZE):
                    for kx in range(KSIZE):
                        base = n * lyr["in_block"] + ky * P + kx
                        sl = pl.ds(base, T) if s == 1 else pl.ds(base, T, s)
                        x_tap = in_ref[sl, :].astype(jnp.bfloat16)
                        acc = acc + jnp.dot(x_tap, w_ref[ky * KSIZE + kx],
                                            preferred_element_type=jnp.float32)
                y = jnp.maximum(acc + bias, 0.0)
                dst_ref[pl.ds(n * lyr["out_block"], T), :] = y.astype(dst_ref.dtype)

        conv_layer(x_ref,  w1_ref, b1_ref, a1_ref, layers[0])
        conv_layer(a1_ref, w2_ref, b2_ref, a2_ref, layers[1])
        conv_layer(a2_ref, w3_ref, b3_ref, a3_ref, layers[2])

        # FC over the H3*W3 valid spatial positions (weights pre-permuted so the
        # torch NCHW-flatten ordering is honored), then masked softmax.
        logits = jnp.zeros((batch, LANES), jnp.float32)
        blk3 = layers[2]["out_block"]
        for oy in range(H3):
            for ox in range(W3):
                feats = a3_ref[pl.ds(oy * P + ox, batch, blk3), :]   # (batch,128)
                logits = logits + jnp.dot(feats.astype(jnp.bfloat16),
                                          wfc_ref[oy * W3 + ox],
                                          preferred_element_type=jnp.float32)
        logits = logits + bfc_ref[...]            # padded classes get -1e9 bias
        m = jnp.max(logits, axis=-1, keepdims=True)
        e = jnp.exp(logits - m)
        denom = jnp.sum(e, axis=-1, keepdims=True)
        inv = pl.reciprocal(denom, approx=True)   # EUP; 1 Newton step for accuracy
        inv = inv * (2.0 - denom * inv)
        out_ref[...] = e * inv

    grid_spec = pltpu.PrefetchScalarGridSpec(
        num_scalar_prefetch=0,
        grid=(1,),
        in_specs=[
            pl.BlockSpec((batch * H * P, LANES), lambda i: (0, 0)),
            pl.BlockSpec((KSIZE * KSIZE, LANES, LANES), lambda i: (0, 0, 0)),
            pl.BlockSpec((1, LANES), lambda i: (0, 0)),
            pl.BlockSpec((KSIZE * KSIZE, LANES, LANES), lambda i: (0, 0, 0)),
            pl.BlockSpec((1, LANES), lambda i: (0, 0)),
            pl.BlockSpec((KSIZE * KSIZE, LANES, LANES), lambda i: (0, 0, 0)),
            pl.BlockSpec((1, LANES), lambda i: (0, 0)),
            pl.BlockSpec((n_pos, LANES, LANES), lambda i: (0, 0, 0)),
            pl.BlockSpec((1, LANES), lambda i: (0, 0)),
        ],
        out_specs=pl.BlockSpec((batch, LANES), lambda i: (0, 0)),
        scratch_shapes=[
            pltpu.VMEM((batch * H1 * P, LANES), jnp.float32),   # conv1 activations
            pltpu.VMEM((batch * H2 * P, LANES), jnp.float32),   # conv2 activations
            pltpu.VMEM((batch * H3 * P, LANES), jnp.float32),   # conv3 activations
        ],
    )

    fused = pl.pallas_call(
        kernel,
        out_shape=jax.ShapeDtypeStruct((batch, LANES), jnp.float32),
        grid_spec=grid_spec,
        compiler_params=pltpu.CompilerParams(
            dimension_semantics=("arbitrary",)),
    )

    @jax.jit
    def forward(prep, x_nchw):
        # layout plumbing only: NCHW -> (n*h*w, c) rows, zero-pad channels to 128
        x_rows = jnp.transpose(x_nchw, (0, 2, 3, 1)).reshape(batch * H * W, in_ch)
        x_rows = jnp.pad(x_rows, ((0, 0), (0, LANES - in_ch))).astype(jnp.float32)
        probs = fused(x_rows, prep["w1"], prep["b1"], prep["w2"], prep["b2"],
                      prep["w3"], prep["b3"], prep["wfc"], prep["bfc"])
        return probs[:, :num_classes]

    return forward


# ---------------------------- pure-JAX reference ----------------------------

def reference_forward(params, x):
    dn = ("NCHW", "OIHW", "NCHW")
    def conv(x, w, b, s):
        y = lax.conv_general_dilated(x, w, (s, s), "VALID", dimension_numbers=dn)
        return jnp.maximum(y + b[None, :, None, None], 0.0)
    x = conv(x, params["w1"], params["b1"], 1)
    x = conv(x, params["w2"], params["b2"], 2)
    x = conv(x, params["w3"], params["b3"], 2)
    x = x.reshape(x.shape[0], -1)
    logits = x @ params["wfc"].T + params["bfc"]
    return jax.nn.softmax(logits, axis=-1)


# ----------------------------------- main ------------------------------------

if __name__ == "__main__":
    batch, in_ch, H, W = 2, 3, 16, 16
    num_classes = 10

    key = jax.random.PRNGKey(0)
    kp, kx = jax.random.split(key)
    params = init_params(kp, in_ch, num_classes, H, W)
    x = jax.random.normal(kx, (batch, in_ch, H, W), jnp.float32)

    forward = build_forward(batch, in_ch, H, W, num_classes)
    prep = prepare_params(params, num_classes, H, W)

    y = jax.block_until_ready(forward(prep, x))
    y_ref = jax.block_until_ready(reference_forward(params, x))

    assert y.shape == (batch, num_classes)
    # softmax rows must sum to ~1
    assert bool(jnp.allclose(jnp.sum(y, axis=1), 1.0, atol=1e-2))
    # match the f32 reference (bf16 MXU operands -> loose tolerance)
    assert float(jnp.max(jnp.abs(y - y_ref))) < 5e-2
    print("KERNEL_OK")
</pallas_src>

<mosaic_0001>
module attributes {stable_mosaic.version = 11 : i64} {
  func.func @kernel(%arg0: i32, %arg1: memref<512x128xf32, #tpu.memory_space<vmem>>, %arg2: memref<9x128x128xbf16, #tpu.memory_space<vmem>>, %arg3: memref<1x128xf32, #tpu.memory_space<vmem>>, %arg4: memref<9x128x128xbf16, #tpu.memory_space<vmem>>, %arg5: memref<1x128xf32, #tpu.memory_space<vmem>>, %arg6: memref<9x128x128xbf16, #tpu.memory_space<vmem>>, %arg7: memref<1x128xf32, #tpu.memory_space<vmem>>, %arg8: memref<4x128x128xbf16, #tpu.memory_space<vmem>>, %arg9: memref<1x128xf32, #tpu.memory_space<vmem>>, %arg10: memref<2x128xf32, #tpu.memory_space<vmem>>, %arg11: memref<448x128xf32, #tpu.memory_space<vmem>>, %arg12: memref<192x128xf32, #tpu.memory_space<vmem>>, %arg13: memref<64x128xf32, #tpu.memory_space<vmem>>) attributes {dimension_semantics = [#tpu.dimension_semantics<arbitrary>], iteration_bounds = array<i64: 1>, scalar_prefetch = 0 : i64, scratch_operands = 3 : i64, tpu.core_type = #tpu.core_type<tc>, window_params = [{pipeline_mode = #tpu.pipeline_mode<synchronous>, transform_indices = @transform_0, window_bounds = array<i64: 512, 128>}, {pipeline_mode = #tpu.pipeline_mode<synchronous>, transform_indices = @transform_1, window_bounds = array<i64: 9, 128, 128>}, {pipeline_mode = #tpu.pipeline_mode<synchronous>, transform_indices = @transform_2, window_bounds = array<i64: 1, 128>}, {pipeline_mode = #tpu.pipeline_mode<synchronous>, transform_indices = @transform_3, window_bounds = array<i64: 9, 128, 128>}, {pipeline_mode = #tpu.pipeline_mode<synchronous>, transform_indices = @transform_4, window_bounds = array<i64: 1, 128>}, {pipeline_mode = #tpu.pipeline_mode<synchronous>, transform_indices = @transform_5, window_bounds = array<i64: 9, 128, 128>}, {pipeline_mode = #tpu.pipeline_mode<synchronous>, transform_indices = @transform_6, window_bounds = array<i64: 1, 128>}, {pipeline_mode = #tpu.pipeline_mode<synchronous>, transform_indices = @transform_7, window_bounds = array<i64: 4, 128, 128>}, {pipeline_mode = #tpu.pipeline_mode<synchronous>, transform_indices = @transform_8, window_bounds = array<i64: 1, 128>}, {pipeline_mode = #tpu.pipeline_mode<synchronous>, transform_indices = @transform_9, window_bounds = array<i64: 2, 128>}]} {
    %cst = arith.constant 0.000000e+00 : f32
    %0 = vector.broadcast %cst : f32 to vector<448x128xf32>
    %c0 = arith.constant 0 : index
    %c0_0 = arith.constant 0 : index
    %1 = vector.load %arg11[%c0, %c0_0] : memref<448x128xf32, #tpu.memory_space<vmem>>, vector<448x128xf32>
    tpu.vector_store %arg11[%c0, %c0_0], %0 {strides = array<i32>} : memref<448x128xf32, #tpu.memory_space<vmem>>, vector<448x128xf32>,
    %cst_1 = arith.constant 0.000000e+00 : f32
    %2 = vector.broadcast %cst_1 : f32 to vector<192x128xf32>
    %c0_2 = arith.constant 0 : index
    %c0_3 = arith.constant 0 : index
    %3 = vector.load %arg12[%c0_2, %c0_3] : memref<192x128xf32, #tpu.memory_space<vmem>>, vector<192x128xf32>
    tpu.vector_store %arg12[%c0_2, %c0_3], %2 {strides = array<i32>} : memref<192x128xf32, #tpu.memory_space<vmem>>, vector<192x128xf32>,
    %cst_4 = arith.constant 0.000000e+00 : f32
    %4 = vector.broadcast %cst_4 : f32 to vector<64x128xf32>
    %c0_5 = arith.constant 0 : index
    %c0_6 = arith.constant 0 : index
    %5 = vector.load %arg13[%c0_5, %c0_6] : memref<64x128xf32, #tpu.memory_space<vmem>>, vector<64x128xf32>
    tpu.vector_store %arg13[%c0_5, %c0_6], %4 {strides = array<i32>} : memref<64x128xf32, #tpu.memory_space<vmem>>, vector<64x128xf32>,
    %c0_7 = arith.constant 0 : index
    %c0_8 = arith.constant 0 : index
    %6 = vector.load %arg3[%c0_7, %c0_8] : memref<1x128xf32, #tpu.memory_space<vmem>>, vector<1x128xf32>
    %cst_9 = arith.constant 0.000000e+00 : f32
    %7 = vector.broadcast %cst_9 : f32 to vector<222x128xf32>
    %c0_10 = arith.constant 0 : index
    %c0_11 = arith.constant 0 : index
    %8 = vector.load %arg1[%c0_10, %c0_11] : memref<512x128xf32, #tpu.memory_space<vmem>>, vector<222x128xf32>
    %9 = arith.truncf %8 : vector<222x128xf32> to vector<222x128xbf16>
    %c0_12 = arith.constant 0 : index
    %c0_13 = arith.constant 0 : index
    %c0_14 = arith.constant 0 : index
    %10 = vector.load %arg2[%c0_12, %c0_13, %c0_14] : memref<9x128x128xbf16, #tpu.memory_space<vmem>>, vector<1x128x128xbf16>
    %11 = vector.shape_cast %10 : vector<1x128x128xbf16> to vector<128x128xbf16>
    %cst_15 = arith.constant dense<0.000000e+00> : vector<222x128xf32>
    %12 = tpu.matmul %9, %11, %cst_15 {dimension_numbers = #tpu.dot_dimension_numbers<[1], [0], [0], [1], [0, 0, 1, 1], [], []>} : vector<222x128xbf16>, vector<128x128xbf16>, vector<222x128xf32> -> vector<222x128xf32>
    %13 = arith.addf %7, %12 : vector<222x128xf32>
    %c1 = arith.constant 1 : index
    %c0_16 = arith.constant 0 : index
    %14 = vector.load %arg1[%c1, %c0_16] : memref<512x128xf32, #tpu.memory_space<vmem>>, vector<222x128xf32>
    %15 = arith.truncf %14 : vector<222x128xf32> to vector<222x128xbf16>
    %c1_17 = arith.constant 1 : index
    %c0_18 = arith.constant 0 : index
    %c0_19 = arith.constant 0 : index
    %16 = vector.load %arg2[%c1_17, %c0_18, %c0_19] : memref<9x128x128xbf16, #tpu.memory_space<vmem>>, vector<1x128x128xbf16>
    %17 = vector.shape_cast %16 : vector<1x128x128xbf16> to vector<128x128xbf16>
    %cst_20 = arith.constant dense<0.000000e+00> : vector<222x128xf32>
    %18 = tpu.matmul %15, %17, %cst_20 {dimension_numbers = #tpu.dot_dimension_numbers<[1], [0], [0], [1], [0, 0, 1, 1], [], []>} : vector<222x128xbf16>, vector<128x128xbf16>, vector<222x128xf32> -> vector<222x128xf32>
    %19 = arith.addf %13, %18 : vector<222x128xf32>
    %c2 = arith.constant 2 : index
    %c0_21 = arith.constant 0 : index
    %20 = vector.load %arg1[%c2, %c0_21] : memref<512x128xf32, #tpu.memory_space<vmem>>, vector<222x128xf32>
    %21 = arith.truncf %20 : vector<222x128xf32> to vector<222x128xbf16>
    %c2_22 = arith.constant 2 : index
    %c0_23 = arith.constant 0 : index
    %c0_24 = arith.constant 0 : index
    %22 = vector.load %arg2[%c2_22, %c0_23, %c0_24] : memref<9x128x128xbf16, #tpu.memory_space<vmem>>, vector<1x128x128xbf16>
    %23 = vector.shape_cast %22 : vector<1x128x128xbf16> to vector<128x128xbf16>
    %cst_25 = arith.constant dense<0.000000e+00> : vector<222x128xf32>
    %24 = tpu.matmul %21, %23, %cst_25 {dimension_numbers = #tpu.dot_dimension_numbers<[1], [0], [0], [1], [0, 0, 1, 1], [], []>} : vector<222x128xbf16>, vector<128x128xbf16>, vector<222x128xf32> -> vector<222x128xf32>
    %25 = arith.addf %19, %24 : vector<222x128xf32>
    %c16 = arith.constant 16 : index
    %c0_26 = arith.constant 0 : index
    %26 = vector.load %arg1[%c16, %c0_26] : memref<512x128xf32, #tpu.memory_space<vmem>>, vector<222x128xf32>
    %27 = arith.truncf %26 : vector<222x128xf32> to vector<222x128xbf16>
    %c3 = arith.constant 3 : index
    %c0_27 = arith.constant 0 : index
    %c0_28 = arith.constant 0 : index
    %28 = vector.load %arg2[%c3, %c0_27, %c0_28] : memref<9x128x128xbf16, #tpu.memory_space<vmem>>, vector<1x128x128xbf16>
    %29 = vector.shape_cast %28 : vector<1x128x128xbf16> to vector<128x128xbf16>
    %cst_29 = arith.constant dense<0.000000e+00> : vector<222x128xf32>
    %30 = tpu.matmul %27, %29, %cst_29 {dimension_numbers = #tpu.dot_dimension_numbers<[1], [0], [0], [1], [0, 0, 1, 1], [], []>} : vector<222x128xbf16>, vector<128x128xbf16>, vector<222x128xf32> -> vector<222x128xf32>
    %31 = arith.addf %25, %30 : vector<222x128xf32>
    %c17 = arith.constant 17 : index
    %c0_30 = arith.constant 0 : index
    %32 = vector.load %arg1[%c17, %c0_30] : memref<512x128xf32, #tpu.memory_space<vmem>>, vector<222x128xf32>
    %33 = arith.truncf %32 : vector<222x128xf32> to vector<222x128xbf16>
    %c4 = arith.constant 4 : index
    %c0_31 = arith.constant 0 : index
    %c0_32 = arith.constant 0 : index
    %34 = vector.load %arg2[%c4, %c0_31, %c0_32] : memref<9x128x128xbf16, #tpu.memory_space<vmem>>, vector<1x128x128xbf16>
    %35 = vector.shape_cast %34 : vector<1x128x128xbf16> to vector<128x128xbf16>
    %cst_33 = arith.constant dense<0.000000e+00> : vector<222x128xf32>
    %36 = tpu.matmul %33, %35, %cst_33 {dimension_numbers = #tpu.dot_dimension_numbers<[1], [0], [0], [1], [0, 0, 1, 1], [], []>} : vector<222x128xbf16>, vector<128x128xbf16>, vector<222x128xf32> -> vector<222x128xf32>
    %37 = arith.addf %31, %36 : vector<222x128xf32>
    %c18 = arith.constant 18 : index
    %c0_34 = arith.constant 0 : index
    %38 = vector.load %arg1[%c18, %c0_34] : memref<512x128xf32, #tpu.memory_space<vmem>>, vector<222x128xf32>
    %39 = arith.truncf %38 : vector<222x128xf32> to vector<222x128xbf16>
    %c5 = arith.constant 5 : index
    %c0_35 = arith.constant 0 : index
    %c0_36 = arith.constant 0 : index
    %40 = vector.load %arg2[%c5, %c0_35, %c0_36] : memref<9x128x128xbf16, #tpu.memory_space<vmem>>, vector<1x128x128xbf16>
    %41 = vector.shape_cast %40 : vector<1x128x128xbf16> to vector<128x128xbf16>
    %cst_37 = arith.constant dense<0.000000e+00> : vector<222x128xf32>
    %42 = tpu.matmul %39, %41, %cst_37 {dimension_numbers = #tpu.dot_dimension_numbers<[1], [0], [0], [1], [0, 0, 1, 1], [], []>} : vector<222x128xbf16>, vector<128x128xbf16>, vector<222x128xf32> -> vector<222x128xf32>
    %43 = arith.addf %37, %42 : vector<222x128xf32>
    %c32 = arith.constant 32 : index
    %c0_38 = arith.constant 0 : index
    %44 = vector.load %arg1[%c32, %c0_38] : memref<512x128xf32, #tpu.memory_space<vmem>>, vector<222x128xf32>
    %45 = arith.truncf %44 : vector<222x128xf32> to vector<222x128xbf16>
    %c6 = arith.constant 6 : index
    %c0_39 = arith.constant 0 : index
    %c0_40 = arith.constant 0 : index
    %46 = vector.load %arg2[%c6, %c0_39, %c0_40] : memref<9x128x128xbf16, #tpu.memory_space<vmem>>, vector<1x128x128xbf16>
    %47 = vector.shape_cast %46 : vector<1x128x128xbf16> to vector<128x128xbf16>
    %cst_41 = arith.constant dense<0.000000e+00> : vector<222x128xf32>
    %48 = tpu.matmul %45, %47, %cst_41 {dimension_numbers = #tpu.dot_dimension_numbers<[1], [0], [0], [1], [0, 0, 1, 1], [], []>} : vector<222x128xbf16>, vector<128x128xbf16>, vector<222x128xf32> -> vector<222x128xf32>
    %49 = arith.addf %43, %48 : vector<222x128xf32>
    %c33 = arith.constant 33 : index
    %c0_42 = arith.constant 0 : index
    %50 = vector.load %arg1[%c33, %c0_42] : memref<512x128xf32, #tpu.memory_space<vmem>>, vector<222x128xf32>
    %51 = arith.truncf %50 : vector<222x128xf32> to vector<222x128xbf16>
    %c7 = arith.constant 7 : index
    %c0_43 = arith.constant 0 : index
    %c0_44 = arith.constant 0 : index
    %52 = vector.load %arg2[%c7, %c0_43, %c0_44] : memref<9x128x128xbf16, #tpu.memory_space<vmem>>, vector<1x128x128xbf16>
    %53 = vector.shape_cast %52 : vector<1x128x128xbf16> to vector<128x128xbf16>
    %cst_45 = arith.constant dense<0.000000e+00> : vector<222x128xf32>
    %54 = tpu.matmul %51, %53, %cst_45 {dimension_numbers = #tpu.dot_dimension_numbers<[1], [0], [0], [1], [0, 0, 1, 1], [], []>} : vector<222x128xbf16>, vector<128x128xbf16>, vector<222x128xf32> -> vector<222x128xf32>
    %55 = arith.addf %49, %54 : vector<222x128xf32>
    %c34 = arith.constant 34 : index
    %c0_46 = arith.constant 0 : index
    %56 = vector.load %arg1[%c34, %c0_46] : memref<512x128xf32, #tpu.memory_space<vmem>>, vector<222x128xf32>
    %57 = arith.truncf %56 : vector<222x128xf32> to vector<222x128xbf16>
    %c8 = arith.constant 8 : index
    %c0_47 = arith.constant 0 : index
    %c0_48 = arith.constant 0 : index
    %58 = vector.load %arg2[%c8, %c0_47, %c0_48] : memref<9x128x128xbf16, #tpu.memory_space<vmem>>, vector<1x128x128xbf16>
    %59 = vector.shape_cast %58 : vector<1x128x128xbf16> to vector<128x128xbf16>
    %cst_49 = arith.constant dense<0.000000e+00> : vector<222x128xf32>
    %60 = tpu.matmul %57, %59, %cst_49 {dimension_numbers = #tpu.dot_dimension_numbers<[1], [0], [0], [1], [0, 0, 1, 1], [], []>} : vector<222x128xbf16>, vector<128x128xbf16>, vector<222x128xf32> -> vector<222x128xf32>
    %61 = arith.addf %55, %60 : vector<222x128xf32>
    %62 = vector.broadcast %6 : vector<1x128xf32> to vector<222x128xf32>
    %63 = arith.addf %61, %62 : vector<222x128xf32>
    %cst_50 = arith.constant 0.000000e+00 : f32
    %64 = vector.broadcast %cst_50 : f32 to vector<222x128xf32>
    %65 = arith.maximumf %63, %64 : vector<222x128xf32>
    %c0_51 = arith.constant 0 : index
    %c0_52 = arith.constant 0 : index
    %66 = vector.load %arg11[%c0_51, %c0_52] : memref<448x128xf32, #tpu.memory_space<vmem>>, vector<222x128xf32>
    tpu.vector_store %arg11[%c0_51, %c0_52], %65 {strides = array<i32>} : memref<448x128xf32, #tpu.memory_space<vmem>>, vector<222x128xf32>,
    %cst_53 = arith.constant 0.000000e+00 : f32
    %67 = vector.broadcast %cst_53 : f32 to vector<222x128xf32>
    %c256 = arith.constant 256 : index
    %c0_54 = arith.constant 0 : index
    %68 = vector.load %arg1[%c256, %c0_54] : memref<512x128xf32, #tpu.memory_space<vmem>>, vector<222x128xf32>
    %69 = arith.truncf %68 : vector<222x128xf32> to vector<222x128xbf16>
    %c0_55 = arith.constant 0 : index
    %c0_56 = arith.constant 0 : index
    %c0_57 = arith.constant 0 : index
    %70 = vector.load %arg2[%c0_55, %c0_56, %c0_57] : memref<9x128x128xbf16, #tpu.memory_space<vmem>>, vector<1x128x128xbf16>
    %71 = vector.shape_cast %70 : vector<1x128x128xbf16> to vector<128x128xbf16>
    %cst_58 = arith.constant dense<0.000000e+00> : vector<222x128xf32>
    %72 = tpu.matmul %69, %71, %cst_58 {dimension_numbers = #tpu.dot_dimension_numbers<[1], [0], [0], [1], [0, 0, 1, 1], [], []>} : vector<222x128xbf16>, vector<128x128xbf16>, vector<222x128xf32> -> vector<222x128xf32>
    %73 = arith.addf %67, %72 : vector<222x128xf32>
    %c257 = arith.constant 257 : index
    %c0_59 = arith.constant 0 : index
    %74 = vector.load %arg1[%c257, %c0_59] : memref<512x128xf32, #tpu.memory_space<vmem>>, vector<222x128xf32>
    %75 = arith.truncf %74 : vector<222x128xf32> to vector<222x128xbf16>
    %c1_60 = arith.constant 1 : index
    %c0_61 = arith.constant 0 : index
    %c0_62 = arith.constant 0 : index
    %76 = vector.load %arg2[%c1_60, %c0_61, %c0_62] : memref<9x128x128xbf16, #tpu.memory_space<vmem>>, vector<1x128x128xbf16>
    %77 = vector.shape_cast %76 : vector<1x128x128xbf16> to vector<128x128xbf16>
    %cst_63 = arith.constant dense<0.000000e+00> : vector<222x128xf32>
    %78 = tpu.matmul %75, %77, %cst_63 {dimension_numbers = #tpu.dot_dimension_numbers<[1], [0], [0], [1], [0, 0, 1, 1], [], []>} : vector<222x128xbf16>, vector<128x128xbf16>, vector<222x128xf32> -> vector<222x128xf32>
    %79 = arith.addf %73, %78 : vector<222x128xf32>
    %c258 = arith.constant 258 : index
    %c0_64 = arith.constant 0 : index
    %80 = vector.load %arg1[%c258, %c0_64] : memref<512x128xf32, #tpu.memory_space<vmem>>, vector<222x128xf32>
    %81 = arith.truncf %80 : vector<222x128xf32> to vector<222x128xbf16>
    %c2_65 = arith.constant 2 : index
    %c0_66 = arith.constant 0 : index
    %c0_67 = arith.constant 0 : index
    %82 = vector.load %arg2[%c2_65, %c0_66, %c0_67] : memref<9x128x128xbf16, #tpu.memory_space<vmem>>, vector<1x128x128xbf16>
    %83 = vector.shape_cast %82 : vector<1x128x128xbf16> to vector<128x128xbf16>
    %cst_68 = arith.constant dense<0.000000e+00> : vector<222x128xf32>
    %84 = tpu.matmul %81, %83, %cst_68 {dimension_numbers = #tpu.dot_dimension_numbers<[1], [0], [0], [1], [0, 0, 1, 1], [], []>} : vector<222x128xbf16>, vector<128x128xbf16>, vector<222x128xf32> -> vector<222x128xf32>
    %85 = arith.addf %79, %84 : vector<222x128xf32>
    %c272 = arith.constant 272 : index
    %c0_69 = arith.constant 0 : index
    %86 = vector.load %arg1[%c272, %c0_69] : memref<512x128xf32, #tpu.memory_space<vmem>>, vector<222x128xf32>
    %87 = arith.truncf %86 : vector<222x128xf32> to vector<222x128xbf16>
    %c3_70 = arith.constant 3 : index
    %c0_71 = arith.constant 0 : index
    %c0_72 = arith.constant 0 : index
    %88 = vector.load %arg2[%c3_70, %c0_71, %c0_72] : memref<9x128x128xbf16, #tpu.memory_space<vmem>>, vector<1x128x128xbf16>
    %89 = vector.shape_cast %88 : vector<1x128x128xbf16> to vector<128x128xbf16>
    %cst_73 = arith.constant dense<0.000000e+00> : vector<222x128xf32>
    %90 = tpu.matmul %87, %89, %cst_73 {dimension_numbers = #tpu.dot_dimension_numbers<[1], [0], [0], [1], [0, 0, 1, 1], [], []>} : vector<222x128xbf16>, vector<128x128xbf16>, vector<222x128xf32> -> vector<222x128xf32>
    %91 = arith.addf %85, %90 : vector<222x128xf32>
    %c273 = arith.constant 273 : index
    %c0_74 = arith.constant 0 : index
    %92 = vector.load %arg1[%c273, %c0_74] : memref<512x128xf32, #tpu.memory_space<vmem>>, vector<222x128xf32>
    %93 = arith.truncf %92 : vector<222x128xf32> to vector<222x128xbf16>
    %c4_75 = arith.constant 4 : index
    %c0_76 = arith.constant 0 : index
    %c0_77 = arith.constant 0 : index
    %94 = vector.load %arg2[%c4_75, %c0_76, %c0_77] : memref<9x128x128xbf16, #tpu.memory_space<vmem>>, vector<1x128x128xbf16>
    %95 = vector.shape_cast %94 : vector<1x128x128xbf16> to vector<128x128xbf16>
    %cst_78 = arith.constant dense<0.000000e+00> : vector<222x128xf32>
    %96 = tpu.matmul %93, %95, %cst_78 {dimension_numbers = #tpu.dot_dimension_numbers<[1], [0], [0], [1], [0, 0, 1, 1], [], []>} : vector<222x128xbf16>, vector<128x128xbf16>, vector<222x128xf32> -> vector<222x128xf32>
    %97 = arith.addf %91, %96 : vector<222x128xf32>
    %c274 = arith.constant 274 : index
    %c0_79 = arith.constant 0 : index
    %98 = vector.load %arg1[%c274, %c0_79] : memref<512x128xf32, #tpu.memory_space<vmem>>, vector<222x128xf32>
    %99 = arith.truncf %98 : vector<222x128xf32> to vector<222x128xbf16>
    %c5_80 = arith.constant 5 : index
    %c0_81 = arith.constant 0 : index
    %c0_82 = arith.constant 0 : index
    %100 = vector.load %arg2[%c5_80, %c0_81, %c0_82] : memref<9x128x128xbf16, #tpu.memory_space<vmem>>, vector<1x128x128xbf16>
    %101 = vector.shape_cast %100 : vector<1x128x128xbf16> to vector<128x128xbf16>
    %cst_83 = arith.constant dense<0.000000e+00> : vector<222x128xf32>
    %102 = tpu.matmul %99, %101, %cst_83 {dimension_numbers = #tpu.dot_dimension_numbers<[1], [0], [0], [1], [0, 0, 1, 1], [], []>} : vector<222x128xbf16>, vector<128x128xbf16>, vector<222x128xf32> -> vector<222x128xf32>
    %103 = arith.addf %97, %102 : vector<222x128xf32>
    %c288 = arith.constant 288 : index
    %c0_84 = arith.constant 0 : index
    %104 = vector.load %arg1[%c288, %c0_84] : memref<512x128xf32, #tpu.memory_space<vmem>>, vector<222x128xf32>
    %105 = arith.truncf %104 : vector<222x128xf32> to vector<222x128xbf16>
    %c6_85 = arith.constant 6 : index
    %c0_86 = arith.constant 0 : index
    %c0_87 = arith.constant 0 : index
    %106 = vector.load %arg2[%c6_85, %c0_86, %c0_87] : memref<9x128x128xbf16, #tpu.memory_space<vmem>>, vector<1x128x128xbf16>
    %107 = vector.shape_cast %106 : vector<1x128x128xbf16> to vector<128x128xbf16>
    %cst_88 = arith.constant dense<0.000000e+00> : vector<222x128xf32>
    %108 = tpu.matmul %105, %107, %cst_88 {dimension_numbers = #tpu.dot_dimension_numbers<[1], [0], [0], [1], [0, 0, 1, 1], [], []>} : vector<222x128xbf16>, vector<128x128xbf16>, vector<222x128xf32> -> vector<222x128xf32>
    %109 = arith.addf %103, %108 : vector<222x128xf32>
    %c289 = arith.constant 289 : index
    %c0_89 = arith.constant 0 : index
    %110 = vector.load %arg1[%c289, %c0_89] : memref<512x128xf32, #tpu.memory_space<vmem>>, vector<222x128xf32>
    %111 = arith.truncf %110 : vector<222x128xf32> to vector<222x128xbf16>
    %c7_90 = arith.constant 7 : index
    %c0_91 = arith.constant 0 : index
    %c0_92 = arith.constant 0 : index
    %112 = vector.load %arg2[%c7_90, %c0_91, %c0_92] : memref<9x128x128xbf16, #tpu.memory_space<vmem>>, vector<1x128x128xbf16>
    %113 = vector.shape_cast %112 : vector<1x128x128xbf16> to vector<128x128xbf16>
    %cst_93 = arith.constant dense<0.000000e+00> : vector<222x128xf32>
    %114 = tpu.matmul %111, %113, %cst_93 {dimension_numbers = #tpu.dot_dimension_numbers<[1], [0], [0], [1], [0, 0, 1, 1], [], []>} : vector<222x128xbf16>, vector<128x128xbf16>, vector<222x128xf32> -> vector<222x128xf32>
    %115 = arith.addf %109, %114 : vector<222x128xf32>
    %c290 = arith.constant 290 : index
    %c0_94 = arith.constant 0 : index
    %116 = vector.load %arg1[%c290, %c0_94] : memref<512x128xf32, #tpu.memory_space<vmem>>, vector<222x128xf32>
    %117 = arith.truncf %116 : vector<222x128xf32> to vector<222x128xbf16>
    %c8_95 = arith.constant 8 : index
    %c0_96 = arith.constant 0 : index
    %c0_97 = arith.constant 0 : index
    %118 = vector.load %arg2[%c8_95, %c0_96, %c0_97] : memref<9x128x128xbf16, #tpu.memory_space<vmem>>, vector<1x128x128xbf16>
    %119 = vector.shape_cast %118 : vector<1x128x128xbf16> to vector<128x128xbf16>
    %cst_98 = arith.constant dense<0.000000e+00> : vector<222x128xf32>
    %120 = tpu.matmul %117, %119, %cst_98 {dimension_numbers = #tpu.dot_dimension_numbers<[1], [0], [0], [1], [0, 0, 1, 1], [], []>} : vector<222x128xbf16>, vector<128x128xbf16>, vector<222x128xf32> -> vector<222x128xf32>
    %121 = arith.addf %115, %120 : vector<222x128xf32>
    %122 = vector.broadcast %6 : vector<1x128xf32> to vector<222x128xf32>
    %123 = arith.addf %121, %122 : vector<222x128xf32>
    %cst_99 = arith.constant 0.000000e+00 : f32
    %124 = vector.broadcast %cst_99 : f32 to vector<222x128xf32>
    %125 = arith.maximumf %123, %124 : vector<222x128xf32>
    %c224 = arith.constant 224 : index
    %c0_100 = arith.constant 0 : index
    %126 = vector.load %arg11[%c224, %c0_100] : memref<448x128xf32, #tpu.memory_space<vmem>>, vector<222x128xf32>
    tpu.vector_store %arg11[%c224, %c0_100], %125 {strides = array<i32>} : memref<448x128xf32, #tpu.memory_space<vmem>>, vector<222x128xf32>,
    %c0_101 = arith.constant 0 : index
    %c0_102 = arith.constant 0 : index
    %127 = vector.load %arg5[%c0_101, %c0_102] : memref<1x128xf32, #tpu.memory_space<vmem>>, vector<1x128xf32>
    %cst_103 = arith.constant 0.000000e+00 : f32
    %128 = vector.broadcast %cst_103 : f32 to vector<86x128xf32>
    %c0_104 = arith.constant 0 : index
    %c0_105 = arith.constant 0 : index
    %129 = tpu.strided_load %arg11[%c0_104, %c0_105] {strides = array<i32: 2, 1>} : memref<448x128xf32, #tpu.memory_space<vmem>>, vector<86x128xf32>
    %130 = arith.truncf %129 : vector<86x128xf32> to vector<86x128xbf16>
    %c0_106 = arith.constant 0 : index
    %c0_107 = arith.constant 0 : index
    %c0_108 = arith.constant 0 : index
    %131 = vector.load %arg4[%c0_106, %c0_107, %c0_108] : memref<9x128x128xbf16, #tpu.memory_space<vmem>>, vector<1x128x128xbf16>
    %132 = vector.shape_cast %131 : vector<1x128x128xbf16> to vector<128x128xbf16>
    %cst_109 = arith.constant dense<0.000000e+00> : vector<86x128xf32>
    %133 = tpu.matmul %130, %132, %cst_109 {dimension_numbers = #tpu.dot_dimension_numbers<[1], [0], [0], [1], [0, 0, 1, 1], [], []>} : vector<86x128xbf16>, vector<128x128xbf16>, vector<86x128xf32> -> vector<86x128xf32>
    %134 = arith.addf %128, %133 : vector<86x128xf32>
    %c1_110 = arith.constant 1 : index
    %c0_111 = arith.constant 0 : index
    %135 = tpu.strided_load %arg11[%c1_110, %c0_111] {strides = array<i32: 2, 1>} : memref<448x128xf32, #tpu.memory_space<vmem>>, vector<86x128xf32>
    %136 = arith.truncf %135 : vector<86x128xf32> to vector<86x128xbf16>
    %c1_112 = arith.constant 1 : index
    %c0_113 = arith.constant 0 : index
    %c0_114 = arith.constant 0 : index
    %137 = vector.load %arg4[%c1_112, %c0_113, %c0_114] : memref<9x128x128xbf16, #tpu.memory_space<vmem>>, vector<1x128x128xbf16>
    %138 = vector.shape_cast %137 : vector<1x128x128xbf16> to vector<128x128xbf16>
    %cst_115 = arith.constant dense<0.000000e+00> : vector<86x128xf32>
    %139 = tpu.matmul %136, %138, %cst_115 {dimension_numbers = #tpu.dot_dimension_numbers<[1], [0], [0], [1], [0, 0, 1, 1], [], []>} : vector<86x128xbf16>, vector<128x128xbf16>, vector<86x128xf32> -> vector<86x128xf32>
    %140 = arith.addf %134, %139 : vector<86x128xf32>
    %c2_116 = arith.constant 2 : index
    %c0_117 = arith.constant 0 : index
    %141 = tpu.strided_load %arg11[%c2_116, %c0_117] {strides = array<i32: 2, 1>} : memref<448x128xf32, #tpu.memory_space<vmem>>, vector<86x128xf32>
    %142 = arith.truncf %141 : vector<86x128xf32> to vector<86x128xbf16>
    %c2_118 = arith.constant 2 : index
    %c0_119 = arith.constant 0 : index
    %c0_120 = arith.constant 0 : index
    %143 = vector.load %arg4[%c2_118, %c0_119, %c0_120] : memref<9x128x128xbf16, #tpu.memory_space<vmem>>, vector<1x128x128xbf16>
    %144 = vector.shape_cast %143 : vector<1x128x128xbf16> to vector<128x128xbf16>
    %cst_121 = arith.constant dense<0.000000e+00> : vector<86x128xf32>
    %145 = tpu.matmul %142, %144, %cst_121 {dimension_numbers = #tpu.dot_dimension_numbers<[1], [0], [0], [1], [0, 0, 1, 1], [], []>} : vector<86x128xbf16>, vector<128x128xbf16>, vector<86x128xf32> -> vector<86x128xf32>
    %146 = arith.addf %140, %145 : vector<86x128xf32>
    %c16_122 = arith.constant 16 : index
    %c0_123 = arith.constant 0 : index
    %147 = tpu.strided_load %arg11[%c16_122, %c0_123] {strides = array<i32: 2, 1>} : memref<448x128xf32, #tpu.memory_space<vmem>>, vector<86x128xf32>
    %148 = arith.truncf %147 : vector<86x128xf32> to vector<86x128xbf16>
    %c3_124 = arith.constant 3 : index
    %c0_125 = arith.constant 0 : index
    %c0_126 = arith.constant 0 : index
    %149 = vector.load %arg4[%c3_124, %c0_125, %c0_126] : memref<9x128x128xbf16, #tpu.memory_space<vmem>>, vector<1x128x128xbf16>
    %150 = vector.shape_cast %149 : vector<1x128x128xbf16> to vector<128x128xbf16>
    %cst_127 = arith.constant dense<0.000000e+00> : vector<86x128xf32>
    %151 = tpu.matmul %148, %150, %cst_127 {dimension_numbers = #tpu.dot_dimension_numbers<[1], [0], [0], [1], [0, 0, 1, 1], [], []>} : vector<86x128xbf16>, vector<128x128xbf16>, vector<86x128xf32> -> vector<86x128xf32>
    %152 = arith.addf %146, %151 : vector<86x128xf32>
    %c17_128 = arith.constant 17 : index
    %c0_129 = arith.constant 0 : index
    %153 = tpu.strided_load %arg11[%c17_128, %c0_129] {strides = array<i32: 2, 1>} : memref<448x128xf32, #tpu.memory_space<vmem>>, vector<86x128xf32>
    %154 = arith.truncf %153 : vector<86x128xf32> to vector<86x128xbf16>
    %c4_130 = arith.constant 4 : index
    %c0_131 = arith.constant 0 : index
    %c0_132 = arith.constant 0 : index
    %155 = vector.load %arg4[%c4_130, %c0_131, %c0_132] : memref<9x128x128xbf16, #tpu.memory_space<vmem>>, vector<1x128x128xbf16>
    %156 = vector.shape_cast %155 : vector<1x128x128xbf16> to vector<128x128xbf16>
    %cst_133 = arith.constant dense<0.000000e+00> : vector<86x128xf32>
    %157 = tpu.matmul %154, %156, %cst_133 {dimension_numbers = #tpu.dot_dimension_numbers<[1], [0], [0], [1], [0, 0, 1, 1], [], []>} : vector<86x128xbf16>, vector<128x128xbf16>, vector<86x128xf32> -> vector<86x128xf32>
    %158 = arith.addf %152, %157 : vector<86x128xf32>
    %c18_134 = arith.constant 18 : index
    %c0_135 = arith.constant 0 : index
    %159 = tpu.strided_load %arg11[%c18_134, %c0_135] {strides = array<i32: 2, 1>} : memref<448x128xf32, #tpu.memory_space<vmem>>, vector<86x128xf32>
    %160 = arith.truncf %159 : vector<86x128xf32> to vector<86x128xbf16>
    %c5_136 = arith.constant 5 : index
    %c0_137 = arith.constant 0 : index
    %c0_138 = arith.constant 0 : index
    %161 = vector.load %arg4[%c5_136, %c0_137, %c0_138] : memref<9x128x128xbf16, #tpu.memory_space<vmem>>, vector<1x128x128xbf16>
    %162 = vector.shape_cast %161 : vector<1x128x128xbf16> to vector<128x128xbf16>
    %cst_139 = arith.constant dense<0.000000e+00> : vector<86x128xf32>
    %163 = tpu.matmul %160, %162, %cst_139 {dimension_numbers = #tpu.dot_dimension_numbers<[1], [0], [0], [1], [0, 0, 1, 1], [], []>} : vector<86x128xbf16>, vector<128x128xbf16>, vector<86x128xf32> -> vector<86x128xf32>
    %164 = arith.addf %158, %163 : vector<86x128xf32>
    %c32_140 = arith.constant 32 : index
    %c0_141 = arith.constant 0 : index
    %165 = tpu.strided_load %arg11[%c32_140, %c0_141] {strides = array<i32: 2, 1>} : memref<448x128xf32, #tpu.memory_space<vmem>>, vector<86x128xf32>
    %166 = arith.truncf %165 : vector<86x128xf32> to vector<86x128xbf16>
    %c6_142 = arith.constant 6 : index
    %c0_143 = arith.constant 0 : index
    %c0_144 = arith.constant 0 : index
    %167 = vector.load %arg4[%c6_142, %c0_143, %c0_144] : memref<9x128x128xbf16, #tpu.memory_space<vmem>>, vector<1x128x128xbf16>
    %168 = vector.shape_cast %167 : vector<1x128x128xbf16> to vector<128x128xbf16>
    %cst_145 = arith.constant dense<0.000000e+00> : vector<86x128xf32>
    %169 = tpu.matmul %166, %168, %cst_145 {dimension_numbers = #tpu.dot_dimension_numbers<[1], [0], [0], [1], [0, 0, 1, 1], [], []>} : vector<86x128xbf16>, vector<128x128xbf16>, vector<86x128xf32> -> vector<86x128xf32>
    %170 = arith.addf %164, %169 : vector<86x128xf32>
    %c33_146 = arith.constant 33 : index
    %c0_147 = arith.constant 0 : index
    %171 = tpu.strided_load %arg11[%c33_146, %c0_147] {strides = array<i32: 2, 1>} : memref<448x128xf32, #tpu.memory_space<vmem>>, vector<86x128xf32>
    %172 = arith.truncf %171 : vector<86x128xf32> to vector<86x128xbf16>
    %c7_148 = arith.constant 7 : index
    %c0_149 = arith.constant 0 : index
    %c0_150 = arith.constant 0 : index
    %173 = vector.load %arg4[%c7_148, %c0_149, %c0_150] : memref<9x128x128xbf16, #tpu.memory_space<vmem>>, vector<1x128x128xbf16>
    %174 = vector.shape_cast %173 : vector<1x128x128xbf16> to vector<128x128xbf16>
    %cst_151 = arith.constant dense<0.000000e+00> : vector<86x128xf32>
    %175 = tpu.matmul %172, %174, %cst_151 {dimension_numbers = #tpu.dot_dimension_numbers<[1], [0], [0], [1], [0, 0, 1, 1], [], []>} : vector<86x128xbf16>, vector<128x128xbf16>, vector<86x128xf32> -> vector<86x128xf32>
    %176 = arith.addf %170, %175 : vector<86x128xf32>
    %c34_152 = arith.constant 34 : index
    %c0_153 = arith.constant 0 : index
    %177 = tpu.strided_load %arg11[%c34_152, %c0_153] {strides = array<i32: 2, 1>} : memref<448x128xf32, #tpu.memory_space<vmem>>, vector<86x128xf32>
    %178 = arith.truncf %177 : vector<86x128xf32> to vector<86x128xbf16>
    %c8_154 = arith.constant 8 : index
    %c0_155 = arith.constant 0 : index
    %c0_156 = arith.constant 0 : index
    %179 = vector.load %arg4[%c8_154, %c0_155, %c0_156] : memref<9x128x128xbf16, #tpu.memory_space<vmem>>, vector<1x128x128xbf16>
    %180 = vector.shape_cast %179 : vector<1x128x128xbf16> to vector<128x128xbf16>
    %cst_157 = arith.constant dense<0.000000e+00> : vector<86x128xf32>
    %181 = tpu.matmul %178, %180, %cst_157 {dimension_numbers = #tpu.dot_dimension_numbers<[1], [0], [0], [1], [0, 0, 1, 1], [], []>} : vector<86x128xbf16>, vector<128x128xbf16>, vector<86x128xf32> -> vector<86x128xf32>
    %182 = arith.addf %176, %181 : vector<86x128xf32>
    %183 = vector.broadcast %127 : vector<1x128xf32> to vector<86x128xf32>
    %184 = arith.addf %182, %183 : vector<86x128xf32>
    %cst_158 = arith.constant 0.000000e+00 : f32
    %185 = vector.broadcast %cst_158 : f32 to vector<86x128xf32>
    %186 = arith.maximumf %184, %185 : vector<86x128xf32>
    %c0_159 = arith.constant 0 : index
    %c0_160 = arith.constant 0 : index
    %187 = vector.load %arg12[%c0_159, %c0_160] : memref<192x128xf32, #tpu.memory_space<vmem>>, vector<86x128xf32>
    tpu.vector_store %arg12[%c0_159, %c0_160], %186 {strides = array<i32>} : memref<192x128xf32, #tpu.memory_space<vmem>>, vector<86x128xf32>,
    %cst_161 = arith.constant 0.000000e+00 : f32
    %188 = vector.broadcast %cst_161 : f32 to vector<86x128xf32>
    %c224_162 = arith.constant 224 : index
    %c0_163 = arith.constant 0 : index
    %189 = tpu.strided_load %arg11[%c224_162, %c0_163] {strides = array<i32: 2, 1>} : memref<448x128xf32, #tpu.memory_space<vmem>>, vector<86x128xf32>
    %190 = arith.truncf %189 : vector<86x128xf32> to vector<86x128xbf16>
    %c0_164 = arith.constant 0 : index
    %c0_165 = arith.constant 0 : index
    %c0_166 = arith.constant 0 : index
    %191 = vector.load %arg4[%c0_164, %c0_165, %c0_166] : memref<9x128x128xbf16, #tpu.memory_space<vmem>>, vector<1x128x128xbf16>
    %192 = vector.shape_cast %191 : vector<1x128x128xbf16> to vector<128x128xbf16>
    %cst_167 = arith.constant dense<0.000000e+00> : vector<86x128xf32>
    %193 = tpu.matmul %190, %192, %cst_167 {dimension_numbers = #tpu.dot_dimension_numbers<[1], [0], [0], [1], [0, 0, 1, 1], [], []>} : vector<86x128xbf16>, vector<128x128xbf16>, vector<86x128xf32> -> vector<86x128xf32>
    %194 = arith.addf %188, %193 : vector<86x128xf32>
    %c225 = arith.constant 225 : index
    %c0_168 = arith.constant 0 : index
    %195 = tpu.strided_load %arg11[%c225, %c0_168] {strides = array<i32: 2, 1>} : memref<448x128xf32, #tpu.memory_space<vmem>>, vector<86x128xf32>
    %196 = arith.truncf %195 : vector<86x128xf32> to vector<86x128xbf16>
    %c1_169 = arith.constant 1 : index
    %c0_170 = arith.constant 0 : index
    %c0_171 = arith.constant 0 : index
    %197 = vector.load %arg4[%c1_169, %c0_170, %c0_171] : memref<9x128x128xbf16, #tpu.memory_space<vmem>>, vector<1x128x128xbf16>
    %198 = vector.shape_cast %197 : vector<1x128x128xbf16> to vector<128x128xbf16>
    %cst_172 = arith.constant dense<0.000000e+00> : vector<86x128xf32>
    %199 = tpu.matmul %196, %198, %cst_172 {dimension_numbers = #tpu.dot_dimension_numbers<[1], [0], [0], [1], [0, 0, 1, 1], [], []>} : vector<86x128xbf16>, vector<128x128xbf16>, vector<86x128xf32> -> vector<86x128xf32>
    %200 = arith.addf %194, %199 : vector<86x128xf32>
    %c226 = arith.constant 226 : index
    %c0_173 = arith.constant 0 : index
    %201 = tpu.strided_load %arg11[%c226, %c0_173] {strides = array<i32: 2, 1>} : memref<448x128xf32, #tpu.memory_space<vmem>>, vector<86x128xf32>
    %202 = arith.truncf %201 : vector<86x128xf32> to vector<86x128xbf16>
    %c2_174 = arith.constant 2 : index
    %c0_175 = arith.constant 0 : index
    %c0_176 = arith.constant 0 : index
    %203 = vector.load %arg4[%c2_174, %c0_175, %c0_176] : memref<9x128x128xbf16, #tpu.memory_space<vmem>>, vector<1x128x128xbf16>
    %204 = vector.shape_cast %203 : vector<1x128x128xbf16> to vector<128x128xbf16>
    %cst_177 = arith.constant dense<0.000000e+00> : vector<86x128xf32>
    %205 = tpu.matmul %202, %204, %cst_177 {dimension_numbers = #tpu.dot_dimension_numbers<[1], [0], [0], [1], [0, 0, 1, 1], [], []>} : vector<86x128xbf16>, vector<128x128xbf16>, vector<86x128xf32> -> vector<86x128xf32>
    %206 = arith.addf %200, %205 : vector<86x128xf32>
    %c240 = arith.constant 240 : index
    %c0_178 = arith.constant 0 : index
    %207 = tpu.strided_load %arg11[%c240, %c0_178] {strides = array<i32: 2, 1>} : memref<448x128xf32, #tpu.memory_space<vmem>>, vector<86x128xf32>
    %208 = arith.truncf %207 : vector<86x128xf32> to vector<86x128xbf16>
    %c3_179 = arith.constant 3 : index
    %c0_180 = arith.constant 0 : index
    %c0_181 = arith.constant 0 : index
    %209 = vector.load %arg4[%c3_179, %c0_180, %c0_181] : memref<9x128x128xbf16, #tpu.memory_space<vmem>>, vector<1x128x128xbf16>
    %210 = vector.shape_cast %209 : vector<1x128x128xbf16> to vector<128x128xbf16>
    %cst_182 = arith.constant dense<0.000000e+00> : vector<86x128xf32>
    %211 = tpu.matmul %208, %210, %cst_182 {dimension_numbers = #tpu.dot_dimension_numbers<[1], [0], [0], [1], [0, 0, 1, 1], [], []>} : vector<86x128xbf16>, vector<128x128xbf16>, vector<86x128xf32> -> vector<86x128xf32>
    %212 = arith.addf %206, %211 : vector<86x128xf32>
    %c241 = arith.constant 241 : index
    %c0_183 = arith.constant 0 : index
    %213 = tpu.strided_load %arg11[%c241, %c0_183] {strides = array<i32: 2, 1>} : memref<448x128xf32, #tpu.memory_space<vmem>>, vector<86x128xf32>
    %214 = arith.truncf %213 : vector<86x128xf32> to vector<86x128xbf16>
    %c4_184 = arith.constant 4 : index
    %c0_185 = arith.constant 0 : index
    %c0_186 = arith.constant 0 : index
    %215 = vector.load %arg4[%c4_184, %c0_185, %c0_186] : memref<9x128x128xbf16, #tpu.memory_space<vmem>>, vector<1x128x128xbf16>
    %216 = vector.shape_cast %215 : vector<1x128x128xbf16> to vector<128x128xbf16>
    %cst_187 = arith.constant dense<0.000000e+00> : vector<86x128xf32>
    %217 = tpu.matmul %214, %216, %cst_187 {dimension_numbers = #tpu.dot_dimension_numbers<[1], [0], [0], [1], [0, 0, 1, 1], [], []>} : vector<86x128xbf16>, vector<128x128xbf16>, vector<86x128xf32> -> vector<86x128xf32>
    %218 = arith.addf %212, %217 : vector<86x128xf32>
    %c242 = arith.constant 242 : index
    %c0_188 = arith.constant 0 : index
    %219 = tpu.strided_load %arg11[%c242, %c0_188] {strides = array<i32: 2, 1>} : memref<448x128xf32, #tpu.memory_space<vmem>>, vector<86x128xf32>
    %220 = arith.truncf %219 : vector<86x128xf32> to vector<86x128xbf16>
    %c5_189 = arith.constant 5 : index
    %c0_190 = arith.constant 0 : index
    %c0_191 = arith.constant 0 : index
    %221 = vector.load %arg4[%c5_189, %c0_190, %c0_191] : memref<9x128x128xbf16, #tpu.memory_space<vmem>>, vector<1x128x128xbf16>
    %222 = vector.shape_cast %221 : vector<1x128x128xbf16> to vector<128x128xbf16>
    %cst_192 = arith.constant dense<0.000000e+00> : vector<86x128xf32>
    %223 = tpu.matmul %220, %222, %cst_192 {dimension_numbers = #tpu.dot_dimension_numbers<[1], [0], [0], [1], [0, 0, 1, 1], [], []>} : vector<86x128xbf16>, vector<128x128xbf16>, vector<86x128xf32> -> vector<86x128xf32>
    %224 = arith.addf %218, %223 : vector<86x128xf32>
    %c256_193 = arith.constant 256 : index
    %c0_194 = arith.constant 0 : index
    %225 = tpu.strided_load %arg11[%c256_193, %c0_194] {strides = array<i32: 2, 1>} : memref<448x128xf32, #tpu.memory_space<vmem>>, vector<86x128xf32>
    %226 = arith.truncf %225 : vector<86x128xf32> to vector<86x128xbf16>
    %c6_195 = arith.constant 6 : index
    %c0_196 = arith.constant 0 : index
    %c0_197 = arith.constant 0 : index
    %227 = vector.load %arg4[%c6_195, %c0_196, %c0_197] : memref<9x128x128xbf16, #tpu.memory_space<vmem>>, vector<1x128x128xbf16>
    %228 = vector.shape_cast %227 : vector<1x128x128xbf16> to vector<128x128xbf16>
    %cst_198 = arith.constant dense<0.000000e+00> : vector<86x128xf32>
    %229 = tpu.matmul %226, %228, %cst_198 {dimension_numbers = #tpu.dot_dimension_numbers<[1], [0], [0], [1], [0, 0, 1, 1], [], []>} : vector<86x128xbf16>, vector<128x128xbf16>, vector<86x128xf32> -> vector<86x128xf32>
    %230 = arith.addf %224, %229 : vector<86x128xf32>
    %c257_199 = arith.constant 257 : index
    %c0_200 = arith.constant 0 : index
    %231 = tpu.strided_load %arg11[%c257_199, %c0_200] {strides = array<i32: 2, 1>} : memref<448x128xf32, #tpu.memory_space<vmem>>, vector<86x128xf32>
    %232 = arith.truncf %231 : vector<86x128xf32> to vector<86x128xbf16>
    %c7_201 = arith.constant 7 : index
    %c0_202 = arith.constant 0 : index
    %c0_203 = arith.constant 0 : index
    %233 = vector.load %arg4[%c7_201, %c0_202, %c0_203] : memref<9x128x128xbf16, #tpu.memory_space<vmem>>, vector<1x128x128xbf16>
    %234 = vector.shape_cast %233 : vector<1x128x128xbf16> to vector<128x128xbf16>
    %cst_204 = arith.constant dense<0.000000e+00> : vector<86x128xf32>
    %235 = tpu.matmul %232, %234, %cst_204 {dimension_numbers = #tpu.dot_dimension_numbers<[1], [0], [0], [1], [0, 0, 1, 1], [], []>} : vector<86x128xbf16>, vector<128x128xbf16>, vector<86x128xf32> -> vector<86x128xf32>
    %236 = arith.addf %230, %235 : vector<86x128xf32>
    %c258_205 = arith.constant 258 : index
    %c0_206 = arith.constant 0 : index
    %237 = tpu.strided_load %arg11[%c258_205, %c0_206] {strides = array<i32: 2, 1>} : memref<448x128xf32, #tpu.memory_space<vmem>>, vector<86x128xf32>
    %238 = arith.truncf %237 : vector<86x128xf32> to vector<86x128xbf16>
    %c8_207 = arith.constant 8 : index
    %c0_208 = arith.constant 0 : index
    %c0_209 = arith.constant 0 : index
    %239 = vector.load %arg4[%c8_207, %c0_208, %c0_209] : memref<9x128x128xbf16, #tpu.memory_space<vmem>>, vector<1x128x128xbf16>
    %240 = vector.shape_cast %239 : vector<1x128x128xbf16> to vector<128x128xbf16>
    %cst_210 = arith.constant dense<0.000000e+00> : vector<86x128xf32>
    %241 = tpu.matmul %238, %240, %cst_210 {dimension_numbers = #tpu.dot_dimension_numbers<[1], [0], [0], [1], [0, 0, 1, 1], [], []>} : vector<86x128xbf16>, vector<128x128xbf16>, vector<86x128xf32> -> vector<86x128xf32>
    %242 = arith.addf %236, %241 : vector<86x128xf32>
    %243 = vector.broadcast %127 : vector<1x128xf32> to vector<86x128xf32>
    %244 = arith.addf %242, %243 : vector<86x128xf32>
    %cst_211 = arith.constant 0.000000e+00 : f32
    %245 = vector.broadcast %cst_211 : f32 to vector<86x128xf32>
    %246 = arith.maximumf %244, %245 : vector<86x128xf32>
    %c96 = arith.constant 96 : index
    %c0_212 = arith.constant 0 : index
    %247 = vector.load %arg12[%c96, %c0_212] : memref<192x128xf32, #tpu.memory_space<vmem>>, vector<86x128xf32>
    tpu.vector_store %arg12[%c96, %c0_212], %246 {strides = array<i32>} : memref<192x128xf32, #tpu.memory_space<vmem>>, vector<86x128xf32>,
    %c0_213 = arith.constant 0 : index
    %c0_214 = arith.constant 0 : index
    %248 = vector.load %arg7[%c0_213, %c0_214] : memref<1x128xf32, #tpu.memory_space<vmem>>, vector<1x128xf32>
    %cst_215 = arith.constant 0.000000e+00 : f32
    %249 = vector.broadcast %cst_215 : f32 to vector<18x128xf32>
    %c0_216 = arith.constant 0 : index
    %c0_217 = arith.constant 0 : index
    %250 = tpu.strided_load %arg12[%c0_216, %c0_217] {strides = array<i32: 2, 1>} : memref<192x128xf32, #tpu.memory_space<vmem>>, vector<18x128xf32>
    %251 = arith.truncf %250 : vector<18x128xf32> to vector<18x128xbf16>
    %c0_218 = arith.constant 0 : index
    %c0_219 = arith.constant 0 : index
    %c0_220 = arith.constant 0 : index
    %252 = vector.load %arg6[%c0_218, %c0_219, %c0_220] : memref<9x128x128xbf16, #tpu.memory_space<vmem>>, vector<1x128x128xbf16>
    %253 = vector.shape_cast %252 : vector<1x128x128xbf16> to vector<128x128xbf16>
    %cst_221 = arith.constant dense<0.000000e+00> : vector<18x128xf32>
    %254 = tpu.matmul %251, %253, %cst_221 {dimension_numbers = #tpu.dot_dimension_numbers<[1], [0], [0], [1], [0, 0, 1, 1], [], []>} : vector<18x128xbf16>, vector<128x128xbf16>, vector<18x128xf32> -> vector<18x128xf32>
    %255 = arith.addf %249, %254 : vector<18x128xf32>
    %c1_222 = arith.constant 1 : index
    %c0_223 = arith.constant 0 : index
    %256 = tpu.strided_load %arg12[%c1_222, %c0_223] {strides = array<i32: 2, 1>} : memref<192x128xf32, #tpu.memory_space<vmem>>, vector<18x128xf32>
    %257 = arith.truncf %256 : vector<18x128xf32> to vector<18x128xbf16>
    %c1_224 = arith.constant 1 : index
    %c0_225 = arith.constant 0 : index
    %c0_226 = arith.constant 0 : index
    %258 = vector.load %arg6[%c1_224, %c0_225, %c0_226] : memref<9x128x128xbf16, #tpu.memory_space<vmem>>, vector<1x128x128xbf16>
    %259 = vector.shape_cast %258 : vector<1x128x128xbf16> to vector<128x128xbf16>
    %cst_227 = arith.constant dense<0.000000e+00> : vector<18x128xf32>
    %260 = tpu.matmul %257, %259, %cst_227 {dimension_numbers = #tpu.dot_dimension_numbers<[1], [0], [0], [1], [0, 0, 1, 1], [], []>} : vector<18x128xbf16>, vector<128x128xbf16>, vector<18x128xf32> -> vector<18x128xf32>
    %261 = arith.addf %255, %260 : vector<18x128xf32>
    %c2_228 = arith.constant 2 : index
    %c0_229 = arith.constant 0 : index
    %262 = tpu.strided_load %arg12[%c2_228, %c0_229] {strides = array<i32: 2, 1>} : memref<192x128xf32, #tpu.memory_space<vmem>>, vector<18x128xf32>
    %263 = arith.truncf %262 : vector<18x128xf32> to vector<18x128xbf16>
    %c2_230 = arith.constant 2 : index
    %c0_231 = arith.constant 0 : index
    %c0_232 = arith.constant 0 : index
    %264 = vector.load %arg6[%c2_230, %c0_231, %c0_232] : memref<9x128x128xbf16, #tpu.memory_space<vmem>>, vector<1x128x128xbf16>
    %265 = vector.shape_cast %264 : vector<1x128x128xbf16> to vector<128x128xbf16>
    %cst_233 = arith.constant dense<0.000000e+00> : vector<18x128xf32>
    %266 = tpu.matmul %263, %265, %cst_233 {dimension_numbers = #tpu.dot_dimension_numbers<[1], [0], [0], [1], [0, 0, 1, 1], [], []>} : vector<18x128xbf16>, vector<128x128xbf16>, vector<18x128xf32> -> vector<18x128xf32>
    %267 = arith.addf %261, %266 : vector<18x128xf32>
    %c16_234 = arith.constant 16 : index
    %c0_235 = arith.constant 0 : index
    %268 = tpu.strided_load %arg12[%c16_234, %c0_235] {strides = array<i32: 2, 1>} : memref<192x128xf32, #tpu.memory_space<vmem>>, vector<18x128xf32>
    %269 = arith.truncf %268 : vector<18x128xf32> to vector<18x128xbf16>
    %c3_236 = arith.constant 3 : index
    %c0_237 = arith.constant 0 : index
    %c0_238 = arith.constant 0 : index
    %270 = vector.load %arg6[%c3_236, %c0_237, %c0_238] : memref<9x128x128xbf16, #tpu.memory_space<vmem>>, vector<1x128x128xbf16>
    %271 = vector.shape_cast %270 : vector<1x128x128xbf16> to vector<128x128xbf16>
    %cst_239 = arith.constant dense<0.000000e+00> : vector<18x128xf32>
    %272 = tpu.matmul %269, %271, %cst_239 {dimension_numbers = #tpu.dot_dimension_numbers<[1], [0], [0], [1], [0, 0, 1, 1], [], []>} : vector<18x128xbf16>, vector<128x128xbf16>, vector<18x128xf32> -> vector<18x128xf32>
    %273 = arith.addf %267, %272 : vector<18x128xf32>
    %c17_240 = arith.constant 17 : index
    %c0_241 = arith.constant 0 : index
    %274 = tpu.strided_load %arg12[%c17_240, %c0_241] {strides = array<i32: 2, 1>} : memref<192x128xf32, #tpu.memory_space<vmem>>, vector<18x128xf32>
    %275 = arith.truncf %274 : vector<18x128xf32> to vector<18x128xbf16>
    %c4_242 = arith.constant 4 : index
    %c0_243 = arith.constant 0 : index
    %c0_244 = arith.constant 0 : index
    %276 = vector.load %arg6[%c4_242, %c0_243, %c0_244] : memref<9x128x128xbf16, #tpu.memory_space<vmem>>, vector<1x128x128xbf16>
    %277 = vector.shape_cast %276 : vector<1x128x128xbf16> to vector<128x128xbf16>
    %cst_245 = arith.constant dense<0.000000e+00> : vector<18x128xf32>
    %278 = tpu.matmul %275, %277, %cst_245 {dimension_numbers = #tpu.dot_dimension_numbers<[1], [0], [0], [1], [0, 0, 1, 1], [], []>} : vector<18x128xbf16>, vector<128x128xbf16>, vector<18x128xf32> -> vector<18x128xf32>
    %279 = arith.addf %273, %278 : vector<18x128xf32>
    %c18_246 = arith.constant 18 : index
    %c0_247 = arith.constant 0 : index
    %280 = tpu.strided_load %arg12[%c18_246, %c0_247] {strides = array<i32: 2, 1>} : memref<192x128xf32, #tpu.memory_space<vmem>>, vector<18x128xf32>
    %281 = arith.truncf %280 : vector<18x128xf32> to vector<18x128xbf16>
    %c5_248 = arith.constant 5 : index
    %c0_249 = arith.constant 0 : index
    %c0_250 = arith.constant 0 : index
    %282 = vector.load %arg6[%c5_248, %c0_249, %c0_250] : memref<9x128x128xbf16, #tpu.memory_space<vmem>>, vector<1x128x128xbf16>
    %283 = vector.shape_cast %282 : vector<1x128x128xbf16> to vector<128x128xbf16>
    %cst_251 = arith.constant dense<0.000000e+00> : vector<18x128xf32>
    %284 = tpu.matmul %281, %283, %cst_251 {dimension_numbers = #tpu.dot_dimension_numbers<[1], [0], [0], [1], [0, 0, 1, 1], [], []>} : vector<18x128xbf16>, vector<128x128xbf16>, vector<18x128xf32> -> vector<18x128xf32>
    %285 = arith.addf %279, %284 : vector<18x128xf32>
    %c32_252 = arith.constant 32 : index
    %c0_253 = arith.constant 0 : index
    %286 = tpu.strided_load %arg12[%c32_252, %c0_253] {strides = array<i32: 2, 1>} : memref<192x128xf32, #tpu.memory_space<vmem>>, vector<18x128xf32>
    %287 = arith.truncf %286 : vector<18x128xf32> to vector<18x128xbf16>
    %c6_254 = arith.constant 6 : index
    %c0_255 = arith.constant 0 : index
    %c0_256 = arith.constant 0 : index
    %288 = vector.load %arg6[%c6_254, %c0_255, %c0_256] : memref<9x128x128xbf16, #tpu.memory_space<vmem>>, vector<1x128x128xbf16>
    %289 = vector.shape_cast %288 : vector<1x128x128xbf16> to vector<128x128xbf16>
    %cst_257 = arith.constant dense<0.000000e+00> : vector<18x128xf32>
    %290 = tpu.matmul %287, %289, %cst_257 {dimension_numbers = #tpu.dot_dimension_numbers<[1], [0], [0], [1], [0, 0, 1, 1], [], []>} : vector<18x128xbf16>, vector<128x128xbf16>, vector<18x128xf32> -> vector<18x128xf32>
    %291 = arith.addf %285, %290 : vector<18x128xf32>
    %c33_258 = arith.constant 33 : index
    %c0_259 = arith.constant 0 : index
    %292 = tpu.strided_load %arg12[%c33_258, %c0_259] {strides = array<i32: 2, 1>} : memref<192x128xf32, #tpu.memory_space<vmem>>, vector<18x128xf32>
    %293 = arith.truncf %292 : vector<18x128xf32> to vector<18x128xbf16>
    %c7_260 = arith.constant 7 : index
    %c0_261 = arith.constant 0 : index
    %c0_262 = arith.constant 0 : index
    %294 = vector.load %arg6[%c7_260, %c0_261, %c0_262] : memref<9x128x128xbf16, #tpu.memory_space<vmem>>, vector<1x128x128xbf16>
    %295 = vector.shape_cast %294 : vector<1x128x128xbf16> to vector<128x128xbf16>
    %cst_263 = arith.constant dense<0.000000e+00> : vector<18x128xf32>
    %296 = tpu.matmul %293, %295, %cst_263 {dimension_numbers = #tpu.dot_dimension_numbers<[1], [0], [0], [1], [0, 0, 1, 1], [], []>} : vector<18x128xbf16>, vector<128x128xbf16>, vector<18x128xf32> -> vector<18x128xf32>
    %297 = arith.addf %291, %296 : vector<18x128xf32>
    %c34_264 = arith.constant 34 : index
    %c0_265 = arith.constant 0 : index
    %298 = tpu.strided_load %arg12[%c34_264, %c0_265] {strides = array<i32: 2, 1>} : memref<192x128xf32, #tpu.memory_space<vmem>>, vector<18x128xf32>
    %299 = arith.truncf %298 : vector<18x128xf32> to vector<18x128xbf16>
    %c8_266 = arith.constant 8 : index
    %c0_267 = arith.constant 0 : index
    %c0_268 = arith.constant 0 : index
    %300 = vector.load %arg6[%c8_266, %c0_267, %c0_268] : memref<9x128x128xbf16, #tpu.memory_space<vmem>>, vector<1x128x128xbf16>
    %301 = vector.shape_cast %300 : vector<1x128x128xbf16> to vector<128x128xbf16>
    %cst_269 = arith.constant dense<0.000000e+00> : vector<18x128xf32>
    %302 = tpu.matmul %299, %301, %cst_269 {dimension_numbers = #tpu.dot_dimension_numbers<[1], [0], [0], [1], [0, 0, 1, 1], [], []>} : vector<18x128xbf16>, vector<128x128xbf16>, vector<18x128xf32> -> vector<18x128xf32>
    %303 = arith.addf %297, %302 : vector<18x128xf32>
    %304 = vector.broadcast %248 : vector<1x128xf32> to vector<18x128xf32>
    %305 = arith.addf %303, %304 : vector<18x128xf32>
    %cst_270 = arith.constant 0.000000e+00 : f32
    %306 = vector.broadcast %cst_270 : f32 to vector<18x128xf32>
    %307 = arith.maximumf %305, %306 : vector<18x128xf32>
    %c0_271 = arith.constant 0 : index
    %c0_272 = arith.constant 0 : index
    %308 = vector.load %arg13[%c0_271, %c0_272] : memref<64x128xf32, #tpu.memory_space<vmem>>, vector<18x128xf32>
    tpu.vector_store %arg13[%c0_271, %c0_272], %307 {strides = array<i32>} : memref<64x128xf32, #tpu.memory_space<vmem>>, vector<18x128xf32>,
    %cst_273 = arith.constant 0.000000e+00 : f32
    %309 = vector.broadcast %cst_273 : f32 to vector<18x128xf32>
    %c96_274 = arith.constant 96 : index
    %c0_275 = arith.constant 0 : index
    %310 = tpu.strided_load %arg12[%c96_274, %c0_275] {strides = array<i32: 2, 1>} : memref<192x128xf32, #tpu.memory_space<vmem>>, vector<18x128xf32>
    %311 = arith.truncf %310 : vector<18x128xf32> to vector<18x128xbf16>
    %c0_276 = arith.constant 0 : index
    %c0_277 = arith.constant 0 : index
    %c0_278 = arith.constant 0 : index
    %312 = vector.load %arg6[%c0_276, %c0_277, %c0_278] : memref<9x128x128xbf16, #tpu.memory_space<vmem>>, vector<1x128x128xbf16>
    %313 = vector.shape_cast %312 : vector<1x128x128xbf16> to vector<128x128xbf16>
    %cst_279 = arith.constant dense<0.000000e+00> : vector<18x128xf32>
    %314 = tpu.matmul %311, %313, %cst_279 {dimension_numbers = #tpu.dot_dimension_numbers<[1], [0], [0], [1], [0, 0, 1, 1], [], []>} : vector<18x128xbf16>, vector<128x128xbf16>, vector<18x128xf32> -> vector<18x128xf32>
    %315 = arith.addf %309, %314 : vector<18x128xf32>
    %c97 = arith.constant 97 : index
    %c0_280 = arith.constant 0 : index
    %316 = tpu.strided_load %arg12[%c97, %c0_280] {strides = array<i32: 2, 1>} : memref<192x128xf32, #tpu.memory_space<vmem>>, vector<18x128xf32>
    %317 = arith.truncf %316 : vector<18x128xf32> to vector<18x128xbf16>
    %c1_281 = arith.constant 1 : index
    %c0_282 = arith.constant 0 : index
    %c0_283 = arith.constant 0 : index
    %318 = vector.load %arg6[%c1_281, %c0_282, %c0_283] : memref<9x128x128xbf16, #tpu.memory_space<vmem>>, vector<1x128x128xbf16>
    %319 = vector.shape_cast %318 : vector<1x128x128xbf16> to vector<128x128xbf16>
    %cst_284 = arith.constant dense<0.000000e+00> : vector<18x128xf32>
    %320 = tpu.matmul %317, %319, %cst_284 {dimension_numbers = #tpu.dot_dimension_numbers<[1], [0], [0], [1], [0, 0, 1, 1], [], []>} : vector<18x128xbf16>, vector<128x128xbf16>, vector<18x128xf32> -> vector<18x128xf32>
    %321 = arith.addf %315, %320 : vector<18x128xf32>
    %c98 = arith.constant 98 : index
    %c0_285 = arith.constant 0 : index
    %322 = tpu.strided_load %arg12[%c98, %c0_285] {strides = array<i32: 2, 1>} : memref<192x128xf32, #tpu.memory_space<vmem>>, vector<18x128xf32>
    %323 = arith.truncf %322 : vector<18x128xf32> to vector<18x128xbf16>
    %c2_286 = arith.constant 2 : index
    %c0_287 = arith.constant 0 : index
    %c0_288 = arith.constant 0 : index
    %324 = vector.load %arg6[%c2_286, %c0_287, %c0_288] : memref<9x128x128xbf16, #tpu.memory_space<vmem>>, vector<1x128x128xbf16>
    %325 = vector.shape_cast %324 : vector<1x128x128xbf16> to vector<128x128xbf16>
    %cst_289 = arith.constant dense<0.000000e+00> : vector<18x128xf32>
    %326 = tpu.matmul %323, %325, %cst_289 {dimension_numbers = #tpu.dot_dimension_numbers<[1], [0], [0], [1], [0, 0, 1, 1], [], []>} : vector<18x128xbf16>, vector<128x128xbf16>, vector<18x128xf32> -> vector<18x128xf32>
    %327 = arith.addf %321, %326 : vector<18x128xf32>
    %c112 = arith.constant 112 : index
    %c0_290 = arith.constant 0 : index
    %328 = tpu.strided_load %arg12[%c112, %c0_290] {strides = array<i32: 2, 1>} : memref<192x128xf32, #tpu.memory_space<vmem>>, vector<18x128xf32>
    %329 = arith.truncf %328 : vector<18x128xf32> to vector<18x128xbf16>
    %c3_291 = arith.constant 3 : index
    %c0_292 = arith.constant 0 : index
    %c0_293 = arith.constant 0 : index
    %330 = vector.load %arg6[%c3_291, %c0_292, %c0_293] : memref<9x128x128xbf16, #tpu.memory_space<vmem>>, vector<1x128x128xbf16>
    %331 = vector.shape_cast %330 : vector<1x128x128xbf16> to vector<128x128xbf16>
    %cst_294 = arith.constant dense<0.000000e+00> : vector<18x128xf32>
    %332 = tpu.matmul %329, %331, %cst_294 {dimension_numbers = #tpu.dot_dimension_numbers<[1], [0], [0], [1], [0, 0, 1, 1], [], []>} : vector<18x128xbf16>, vector<128x128xbf16>, vector<18x128xf32> -> vector<18x128xf32>
    %333 = arith.addf %327, %332 : vector<18x128xf32>
    %c113 = arith.constant 113 : index
    %c0_295 = arith.constant 0 : index
    %334 = tpu.strided_load %arg12[%c113, %c0_295] {strides = array<i32: 2, 1>} : memref<192x128xf32, #tpu.memory_space<vmem>>, vector<18x128xf32>
    %335 = arith.truncf %334 : vector<18x128xf32> to vector<18x128xbf16>
    %c4_296 = arith.constant 4 : index
    %c0_297 = arith.constant 0 : index
    %c0_298 = arith.constant 0 : index
    %336 = vector.load %arg6[%c4_296, %c0_297, %c0_298] : memref<9x128x128xbf16, #tpu.memory_space<vmem>>, vector<1x128x128xbf16>
    %337 = vector.shape_cast %336 : vector<1x128x128xbf16> to vector<128x128xbf16>
    %cst_299 = arith.constant dense<0.000000e+00> : vector<18x128xf32>
    %338 = tpu.matmul %335, %337, %cst_299 {dimension_numbers = #tpu.dot_dimension_numbers<[1], [0], [0], [1], [0, 0, 1, 1], [], []>} : vector<18x128xbf16>, vector<128x128xbf16>, vector<18x128xf32> -> vector<18x128xf32>
    %339 = arith.addf %333, %338 : vector<18x128xf32>
    %c114 = arith.constant 114 : index
    %c0_300 = arith.constant 0 : index
    %340 = tpu.strided_load %arg12[%c114, %c0_300] {strides = array<i32: 2, 1>} : memref<192x128xf32, #tpu.memory_space<vmem>>, vector<18x128xf32>
    %341 = arith.truncf %340 : vector<18x128xf32> to vector<18x128xbf16>
    %c5_301 = arith.constant 5 : index
    %c0_302 = arith.constant 0 : index
    %c0_303 = arith.constant 0 : index
    %342 = vector.load %arg6[%c5_301, %c0_302, %c0_303] : memref<9x128x128xbf16, #tpu.memory_space<vmem>>, vector<1x128x128xbf16>
    %343 = vector.shape_cast %342 : vector<1x128x128xbf16> to vector<128x128xbf16>
    %cst_304 = arith.constant dense<0.000000e+00> : vector<18x128xf32>
    %344 = tpu.matmul %341, %343, %cst_304 {dimension_numbers = #tpu.dot_dimension_numbers<[1], [0], [0], [1], [0, 0, 1, 1], [], []>} : vector<18x128xbf16>, vector<128x128xbf16>, vector<18x128xf32> -> vector<18x128xf32>
    %345 = arith.addf %339, %344 : vector<18x128xf32>
    %c128 = arith.constant 128 : index
    %c0_305 = arith.constant 0 : index
    %346 = tpu.strided_load %arg12[%c128, %c0_305] {strides = array<i32: 2, 1>} : memref<192x128xf32, #tpu.memory_space<vmem>>, vector<18x128xf32>
    %347 = arith.truncf %346 : vector<18x128xf32> to vector<18x128xbf16>
    %c6_306 = arith.constant 6 : index
    %c0_307 = arith.constant 0 : index
    %c0_308 = arith.constant 0 : index
    %348 = vector.load %arg6[%c6_306, %c0_307, %c0_308] : memref<9x128x128xbf16, #tpu.memory_space<vmem>>, vector<1x128x128xbf16>
    %349 = vector.shape_cast %348 : vector<1x128x128xbf16> to vector<128x128xbf16>
    %cst_309 = arith.constant dense<0.000000e+00> : vector<18x128xf32>
    %350 = tpu.matmul %347, %349, %cst_309 {dimension_numbers = #tpu.dot_dimension_numbers<[1], [0], [0], [1], [0, 0, 1, 1], [], []>} : vector<18x128xbf16>, vector<128x128xbf16>, vector<18x128xf32> -> vector<18x128xf32>
    %351 = arith.addf %345, %350 : vector<18x128xf32>
    %c129 = arith.constant 129 : index
    %c0_310 = arith.constant 0 : index
    %352 = tpu.strided_load %arg12[%c129, %c0_310] {strides = array<i32: 2, 1>} : memref<192x128xf32, #tpu.memory_space<vmem>>, vector<18x128xf32>
    %353 = arith.truncf %352 : vector<18x128xf32> to vector<18x128xbf16>
    %c7_311 = arith.constant 7 : index
    %c0_312 = arith.constant 0 : index
    %c0_313 = arith.constant 0 : index
    %354 = vector.load %arg6[%c7_311, %c0_312, %c0_313] : memref<9x128x128xbf16, #tpu.memory_space<vmem>>, vector<1x128x128xbf16>
    %355 = vector.shape_cast %354 : vector<1x128x128xbf16> to vector<128x128xbf16>
    %cst_314 = arith.constant dense<0.000000e+00> : vector<18x128xf32>
    %356 = tpu.matmul %353, %355, %cst_314 {dimension_numbers = #tpu.dot_dimension_numbers<[1], [0], [0], [1], [0, 0, 1, 1], [], []>} : vector<18x128xbf16>, vector<128x128xbf16>, vector<18x128xf32> -> vector<18x128xf32>
    %357 = arith.addf %351, %356 : vector<18x128xf32>
    %c130 = arith.constant 130 : index
    %c0_315 = arith.constant 0 : index
    %358 = tpu.strided_load %arg12[%c130, %c0_315] {strides = array<i32: 2, 1>} : memref<192x128xf32, #tpu.memory_space<vmem>>, vector<18x128xf32>
    %359 = arith.truncf %358 : vector<18x128xf32> to vector<18x128xbf16>
    %c8_316 = arith.constant 8 : index
    %c0_317 = arith.constant 0 : index
    %c0_318 = arith.constant 0 : index
    %360 = vector.load %arg6[%c8_316, %c0_317, %c0_318] : memref<9x128x128xbf16, #tpu.memory_space<vmem>>, vector<1x128x128xbf16>
    %361 = vector.shape_cast %360 : vector<1x128x128xbf16> to vector<128x128xbf16>
    %cst_319 = arith.constant dense<0.000000e+00> : vector<18x128xf32>
    %362 = tpu.matmul %359, %361, %cst_319 {dimension_numbers = #tpu.dot_dimension_numbers<[1], [0], [0], [1], [0, 0, 1, 1], [], []>} : vector<18x128xbf16>, vector<128x128xbf16>, vector<18x128xf32> -> vector<18x128xf32>
    %363 = arith.addf %357, %362 : vector<18x128xf32>
    %364 = vector.broadcast %248 : vector<1x128xf32> to vector<18x128xf32>
    %365 = arith.addf %363, %364 : vector<18x128xf32>
    %cst_320 = arith.constant 0.000000e+00 : f32
    %366 = vector.broadcast %cst_320 : f32 to vector<18x128xf32>
    %367 = arith.maximumf %365, %366 : vector<18x128xf32>
    %c32_321 = arith.constant 32 : index
    %c0_322 = arith.constant 0 : index
    %368 = vector.load %arg13[%c32_321, %c0_322] : memref<64x128xf32, #tpu.memory_space<vmem>>, vector<18x128xf32>
    tpu.vector_store %arg13[%c32_321, %c0_322], %367 {strides = array<i32>} : memref<64x128xf32, #tpu.memory_space<vmem>>, vector<18x128xf32>,
    %cst_323 = arith.constant 0.000000e+00 : f32
    %369 = vector.broadcast %cst_323 : f32 to vector<2x128xf32>
    %c0_324 = arith.constant 0 : index
    %c0_325 = arith.constant 0 : index
    %370 = tpu.strided_load %arg13[%c0_324, %c0_325] {strides = array<i32: 32, 1>} : memref<64x128xf32, #tpu.memory_space<vmem>>, vector<2x128xf32>
    %371 = arith.truncf %370 : vector<2x128xf32> to vector<2x128xbf16>
    %c0_326 = arith.constant 0 : index
    %c0_327 = arith.constant 0 : index
    %c0_328 = arith.constant 0 : index
    %372 = vector.load %arg8[%c0_326, %c0_327, %c0_328] : memref<4x128x128xbf16, #tpu.memory_space<vmem>>, vector<1x128x128xbf16>
    %373 = vector.shape_cast %372 : vector<1x128x128xbf16> to vector<128x128xbf16>
    %cst_329 = arith.constant dense<0.000000e+00> : vector<2x128xf32>
    %374 = tpu.matmul %371, %373, %cst_329 {dimension_numbers = #tpu.dot_dimension_numbers<[1], [0], [0], [1], [0, 0, 1, 1], [], []>} : vector<2x128xbf16>, vector<128x128xbf16>, vector<2x128xf32> -> vector<2x128xf32>
    %375 = arith.addf %369, %374 : vector<2x128xf32>
    %c1_330 = arith.constant 1 : index
    %c0_331 = arith.constant 0 : index
    %376 = tpu.strided_load %arg13[%c1_330, %c0_331] {strides = array<i32: 32, 1>} : memref<64x128xf32, #tpu.memory_space<vmem>>, vector<2x128xf32>
    %377 = arith.truncf %376 : vector<2x128xf32> to vector<2x128xbf16>
    %c1_332 = arith.constant 1 : index
    %c0_333 = arith.constant 0 : index
    %c0_334 = arith.constant 0 : index
    %378 = vector.load %arg8[%c1_332, %c0_333, %c0_334] : memref<4x128x128xbf16, #tpu.memory_space<vmem>>, vector<1x128x128xbf16>
    %379 = vector.shape_cast %378 : vector<1x128x128xbf16> to vector<128x128xbf16>
    %cst_335 = arith.constant dense<0.000000e+00> : vector<2x128xf32>
    %380 = tpu.matmul %377, %379, %cst_335 {dimension_numbers = #tpu.dot_dimension_numbers<[1], [0], [0], [1], [0, 0, 1, 1], [], []>} : vector<2x128xbf16>, vector<128x128xbf16>, vector<2x128xf32> -> vector<2x128xf32>
    %381 = arith.addf %375, %380 : vector<2x128xf32>
    %c16_336 = arith.constant 16 : index
    %c0_337 = arith.constant 0 : index
    %382 = tpu.strided_load %arg13[%c16_336, %c0_337] {strides = array<i32: 32, 1>} : memref<64x128xf32, #tpu.memory_space<vmem>>, vector<2x128xf32>
    %383 = arith.truncf %382 : vector<2x128xf32> to vector<2x128xbf16>
    %c2_338 = arith.constant 2 : index
    %c0_339 = arith.constant 0 : index
    %c0_340 = arith.constant 0 : index
    %384 = vector.load %arg8[%c2_338, %c0_339, %c0_340] : memref<4x128x128xbf16, #tpu.memory_space<vmem>>, vector<1x128x128xbf16>
    %385 = vector.shape_cast %384 : vector<1x128x128xbf16> to vector<128x128xbf16>
    %cst_341 = arith.constant dense<0.000000e+00> : vector<2x128xf32>
    %386 = tpu.matmul %383, %385, %cst_341 {dimension_numbers = #tpu.dot_dimension_numbers<[1], [0], [0], [1], [0, 0, 1, 1], [], []>} : vector<2x128xbf16>, vector<128x128xbf16>, vector<2x128xf32> -> vector<2x128xf32>
    %387 = arith.addf %381, %386 : vector<2x128xf32>
    %c17_342 = arith.constant 17 : index
    %c0_343 = arith.constant 0 : index
    %388 = tpu.strided_load %arg13[%c17_342, %c0_343] {strides = array<i32: 32, 1>} : memref<64x128xf32, #tpu.memory_space<vmem>>, vector<2x128xf32>
    %389 = arith.truncf %388 : vector<2x128xf32> to vector<2x128xbf16>
    %c3_344 = arith.constant 3 : index
    %c0_345 = arith.constant 0 : index
    %c0_346 = arith.constant 0 : index
    %390 = vector.load %arg8[%c3_344, %c0_345, %c0_346] : memref<4x128x128xbf16, #tpu.memory_space<vmem>>, vector<1x128x128xbf16>
    %391 = vector.shape_cast %390 : vector<1x128x128xbf16> to vector<128x128xbf16>
    %cst_347 = arith.constant dense<0.000000e+00> : vector<2x128xf32>
    %392 = tpu.matmul %389, %391, %cst_347 {dimension_numbers = #tpu.dot_dimension_numbers<[1], [0], [0], [1], [0, 0, 1, 1], [], []>} : vector<2x128xbf16>, vector<128x128xbf16>, vector<2x128xf32> -> vector<2x128xf32>
    %393 = arith.addf %387, %392 : vector<2x128xf32>
    %c0_348 = arith.constant 0 : index
    %c0_349 = arith.constant 0 : index
    %394 = vector.load %arg9[%c0_348, %c0_349] : memref<1x128xf32, #tpu.memory_space<vmem>>, vector<1x128xf32>
    %395 = vector.broadcast %394 : vector<1x128xf32> to vector<2x128xf32>
    %396 = arith.addf %393, %395 : vector<2x128xf32>
    %cst_350 = arith.constant dense<0xFF800000> : vector<2xf32>
    %397 = vector.multi_reduction <maximumf>, %396, %cst_350 [1] : vector<2x128xf32> to vector<2xf32>
    %398 = vector.shape_cast %397 : vector<2xf32> to vector<2x1xf32>
    %399 = vector.broadcast %398 : vector<2x1xf32> to vector<2x128xf32>
    %400 = arith.subf %396, %399 : vector<2x128xf32>
    %401 = math.exp %400 : vector<2x128xf32>
    %cst_351 = arith.constant dense<0.000000e+00> : vector<2xf32>
    %402 = vector.multi_reduction <add>, %401, %cst_351 [1] : vector<2x128xf32> to vector<2xf32>
    %403 = vector.shape_cast %402 : vector<2xf32> to vector<2x1xf32>
    %404 = tpu.reciprocal %403 {approx = true} : vector<2x1xf32> -> vector<2x1xf32>
    %405 = arith.mulf %403, %404 : vector<2x1xf32>
    %cst_352 = arith.constant 2.000000e+00 : f32
    %406 = vector.broadcast %cst_352 : f32 to vector<2x1xf32>
    %407 = arith.subf %406, %405 : vector<2x1xf32>
    %408 = arith.mulf %404, %407 : vector<2x1xf32>
    %409 = vector.broadcast %408 : vector<2x1xf32> to vector<2x128xf32>
    %410 = arith.mulf %401, %409 : vector<2x128xf32>
    %c0_353 = arith.constant 0 : index
    %c0_354 = arith.constant 0 : index
    %411 = vector.load %arg10[%c0_353, %c0_354] : memref<2x128xf32, #tpu.memory_space<vmem>>, vector<2x128xf32>
    tpu.vector_store %arg10[%c0_353, %c0_354], %410 {strides = array<i32>} : memref<2x128xf32, #tpu.memory_space<vmem>>, vector<2x128xf32>,
    return
  }
  func.func @transform_0(%arg0: i32) -> (i32, i32) {
    %c0_i32 = arith.constant 0 : i32
    %c0_i32_0 = arith.constant 0 : i32
    %c0_i32_1 = arith.constant 0 : i32
    return %c0_i32, %c0_i32_0 : i32, i32
  }
  func.func @transform_1(%arg0: i32) -> (i32, i32, i32) {
    %c0_i32 = arith.constant 0 : i32
    %c0_i32_0 = arith.constant 0 : i32
    %c0_i32_1 = arith.constant 0 : i32
    %c0_i32_2 = arith.constant 0 : i32
    return %c0_i32, %c0_i32_0, %c0_i32_1 : i32, i32, i32
  }
  func.func @transform_2(%arg0: i32) -> (i32, i32) {
    %c0_i32 = arith.constant 0 : i32
    %c0_i32_0 = arith.constant 0 : i32
    %c0_i32_1 = arith.constant 0 : i32
    return %c0_i32, %c0_i32_0 : i32, i32
  }
  func.func @transform_3(%arg0: i32) -> (i32, i32, i32) {
    %c0_i32 = arith.constant 0 : i32
    %c0_i32_0 = arith.constant 0 : i32
    %c0_i32_1 = arith.constant 0 : i32
    %c0_i32_2 = arith.constant 0 : i32
    return %c0_i32, %c0_i32_0, %c0_i32_1 : i32, i32, i32
  }
  func.func @transform_4(%arg0: i32) -> (i32, i32) {
    %c0_i32 = arith.constant 0 : i32
    %c0_i32_0 = arith.constant 0 : i32
    %c0_i32_1 = arith.constant 0 : i32
    return %c0_i32, %c0_i32_0 : i32, i32
  }
  func.func @transform_5(%arg0: i32) -> (i32, i32, i32) {
    %c0_i32 = arith.constant 0 : i32
    %c0_i32_0 = arith.constant 0 : i32
    %c0_i32_1 = arith.constant 0 : i32
    %c0_i32_2 = arith.constant 0 : i32
    return %c0_i32, %c0_i32_0, %c0_i32_1 : i32, i32, i32
  }
  func.func @transform_6(%arg0: i32) -> (i32, i32) {
    %c0_i32 = arith.constant 0 : i32
    %c0_i32_0 = arith.constant 0 : i32
    %c0_i32_1 = arith.constant 0 : i32
    return %c0_i32, %c0_i32_0 : i32, i32
  }
  func.func @transform_7(%arg0: i32) -> (i32, i32, i32) {
    %c0_i32 = arith.constant 0 : i32
    %c0_i32_0 = arith.constant 0 : i32
    %c0_i32_1 = arith.constant 0 : i32
    %c0_i32_2 = arith.constant 0 : i32
    return %c0_i32, %c0_i32_0, %c0_i32_1 : i32, i32, i32
  }
  func.func @transform_8(%arg0: i32) -> (i32, i32) {
    %c0_i32 = arith.constant 0 : i32
    %c0_i32_0 = arith.constant 0 : i32
    %c0_i32_1 = arith.constant 0 : i32
    return %c0_i32, %c0_i32_0 : i32, i32
  }
  func.func @transform_9(%arg0: i32) -> (i32, i32) {
    %c0_i32 = arith.constant 0 : i32
    %c0_i32_0 = arith.constant 0 : i32
    %c0_i32_1 = arith.constant 0 : i32
    return %c0_i32, %c0_i32_0 : i32, i32
  }
}

</mosaic_0001>

<llo_original>
// kernel: forward.1
$region0: #{forward.1}
  #allocation0 [shape = 'u32[]', space=smem, size = 0x4, offset = 0x4, fixed_abs, tag = 'smem constant byte address 0x4 - core index']
  #allocation1 [shape = 'u32[144,128]{1,0:T(1,128)}', space=vmem, size = 0x12000, scoped, tag = 'internal scratch']
  #allocation2 [shape = 'f32[448,128]{1,0:T(8,128)}', space=vmem, size = 0x38000, scoped, tag = 'scratch operand']
  #allocation3 [shape = 'f32[192,128]{1,0:T(8,128)}', space=vmem, size = 0x18000, scoped, tag = 'scratch operand']
  #allocation4 [shape = 'f32[64,128]{1,0:T(8,128)}', space=vmem, size = 0x8000, scoped, tag = 'scratch operand']
  %s0 = inlined_call_operand.vmem [shape: f32[512,128], index: 0, kind: input, shape index: {}]
  %s1 = inlined_call_operand.vmem [shape: bf16[9,128,128], index: 1, kind: input, shape index: {}]
  %s2 = inlined_call_operand.vmem [shape: f32[1,128], index: 2, kind: input, shape index: {}]
  %s3 = inlined_call_operand.vmem [shape: bf16[9,128,128], index: 3, kind: input, shape index: {}]
  %s4 = inlined_call_operand.vmem [shape: f32[1,128], index: 4, kind: input, shape index: {}]
  %s5 = inlined_call_operand.hbm [shape: bf16[9,128,128], index: 5, kind: input, shape index: {}]
  %s6 = inlined_call_operand.vmem [shape: f32[1,128], index: 6, kind: input, shape index: {}]
  %s7 = inlined_call_operand.vmem [shape: bf16[4,128,128], index: 7, kind: input, shape index: {}]
  %s8 = inlined_call_operand.vmem [shape: f32[1,128], index: 8, kind: input, shape index: {}]
  %s9 = inlined_call_operand.hbm [shape: f32[2,128], index: 9, kind: output, shape index: {}]
  %s10 = sld [smem:[#allocation0]]
  $region50: #{forward.1} parent=0
    _
  %s12 = ssub.s32 1, %s10
  %s13 = scalar_select 0, %s12, %s10
  $region1: #{forward.1} parent=0
    #allocation5 [shape = 'u8[294912]{0}', space=vmem, size = 0x48000, scoped, tag = 'input window, operand 5, single buffered']
    #allocation6 [shape = 's32[1]{0}', space=sflag, size = 0x4, scoped, tag = 'scoped memory for forward.1']
    #allocation7 [shape = 's32[1]{0}', space=sflag, size = 0x4, scoped, tag = 'scoped memory for forward.1']
    #allocation8 [shape = 'u8[1024]{0}', space=vmem, size = 0x400, scoped, tag = 'output window, operand 0, single buffered']
    %14 = vsyncpa [#allocation6], 0
    %15 = vsyncpa [#allocation7], 0
    // Predicated region
    $region2: #{forward.1} parent=1 // pred_check
      _
    $region3: #{forward.1} parent=1 // pred_check_branch
      %17 = sbr.rel (0) target = $region5
    $region4: #{forward.1} parent=1 // pred_region
      _
    $region5: #{forward.1} parent=1 // pred_fallthru
      _
    // Predicated region
    $region6: #{forward.1} parent=1 // pred_check
      _
    $region7: #{forward.1} parent=1 // pred_check_branch
      %19 = sbr.rel (0) target = $region9
    $region8: #{forward.1} parent=1 // pred_region
      _
    $region9: #{forward.1} parent=1 // pred_fallthru
      _
    // Predicated region
    $region10: #{forward.1} parent=1 // pred_check
      _
    $region11: #{forward.1} parent=1 // pred_check_branch
      %21 = sbr.rel (0) target = $region13
    $region12: #{forward.1} parent=1 // pred_region
      _
    $region13: #{forward.1} parent=1 // pred_fallthru
      _
    // Predicated region
    $region14: #{forward.1} parent=1 // pred_check
      _
    $region15: #{forward.1} parent=1 // pred_check_branch
      %23 = sbr.rel (0) target = $region17
    $region16: #{forward.1} parent=1 // pred_region
      _
    $region17: #{forward.1} parent=1 // pred_fallthru
      _
    // Predicated region
    $region18: #{forward.1} parent=1 // pred_check
      _
    $region19: #{forward.1} parent=1 // pred_check_branch
      %25 = sbr.rel (0) target = $region21
    $region20: #{forward.1} parent=1 // pred_region
      _
    $region21: #{forward.1} parent=1 // pred_fallthru
      _
    // Predicated region
    $region22: #{forward.1} parent=1 // pred_check
      _
    $region23: #{forward.1} parent=1 // pred_check_branch
      %27 = sbr.rel (0) target = $region25
    $region24: #{forward.1} parent=1 // pred_region
      %s29 = ssub.s32 9216, 9216
      %30 = vsyncadd [#allocation6], %s29
      %s31 = sshll.u32 [#allocation5], 4
      %s32 = int_to_ptr.vmem [resolvable:$true] %s31
      %37 = dma.hbm_to_vmem [thread:$0]  %s5, 9216, %s32, [#allocation6], 64, 64, 4
    $region25: #{forward.1} parent=1 // pred_fallthru
      _
    // Predicated region
    $region26: #{forward.1} parent=1 // pred_check
      _
    $region27: #{forward.1} parent=1 // pred_check_branch
      %39 = sbr.rel (0) target = $region29
    $region28: #{forward.1} parent=1 // pred_region
      _
    $region29: #{forward.1} parent=1 // pred_fallthru
      _
    // Predicated region
    $region30: #{forward.1} parent=1 // pred_check
      _
    $region31: #{forward.1} parent=1 // pred_check_branch
      %41 = sbr.rel (0) target = $region33
    $region32: #{forward.1} parent=1 // pred_region
      _
    $region33: #{forward.1} parent=1 // pred_fallthru
      _
    // Predicated region
    $region34: #{forward.1} parent=1 // pred_check
      _
    $region35: #{forward.1} parent=1 // pred_check_branch
      %43 = sbr.rel (0) target = $region37
    $region36: #{forward.1} parent=1 // pred_region
      _
    $region37: #{forward.1} parent=1 // pred_fallthru
      _
    // Predicated region
    $region38: #{forward.1} parent=1 // pred_check
      _
    $region39: #{forward.1} parent=1 // pred_check_branch
      %45 = sbr.rel (0) target = $region41
    $region40: #{forward.1} parent=1 // pred_region
      %46 = dma.done [#allocation6], 9216
    $region41: #{forward.1} parent=1 // pred_fallthru
      _
    %48 = vst [vmem:[#allocation2] sm:$0xff] 0.0
    %49 = vst [vmem:[#allocation2 + $0x8] sm:$0xff] 0.0
    %50 = vst [vmem:[#allocation2 + $0x10] sm:$0xff] 0.0
    %51 = vst [vmem:[#allocation2 + $0x18] sm:$0xff] 0.0
    %52 = vst [vmem:[#allocation2 + $0x20] sm:$0xff] 0.0
    %53 = vst [vmem:[#allocation2 + $0x28] sm:$0xff] 0.0
    %54 = vst [vmem:[#allocation2 + $0x30] sm:$0xff] 0.0
    %55 = vst [vmem:[#allocation2 + $0x38] sm:$0xff] 0.0
    %56 = vst [vmem:[#allocation2 + $0x40] sm:$0xff] 0.0
    %57 = vst [vmem:[#allocation2 + $0x48] sm:$0xff] 0.0
    %58 = vst [vmem:[#allocation2 + $0x50] sm:$0xff] 0.0
    %59 = vst [vmem:[#allocation2 + $0x58] sm:$0xff] 0.0
    %60 = vst [vmem:[#allocation2 + $0x60] sm:$0xff] 0.0
    %61 = vst [vmem:[#allocation2 + $0x68] sm:$0xff] 0.0
    %62 = vst [vmem:[#allocation2 + $0x70] sm:$0xff] 0.0
    %63 = vst [vmem:[#allocation2 + $0x78] sm:$0xff] 0.0
    %64 = vst [vmem:[#allocation2 + $0x80] sm:$0xff] 0.0
    %65 = vst [vmem:[#allocation2 + $0x88] sm:$0xff] 0.0
    %66 = vst [vmem:[#allocation2 + $0x90] sm:$0xff] 0.0
    %67 = vst [vmem:[#allocation2 + $0x98] sm:$0xff] 0.0
    %68 = vst [vmem:[#allocation2 + $0xa0] sm:$0xff] 0.0
    %69 = vst [vmem:[#allocation2 + $0xa8] sm:$0xff] 0.0
    %70 = vst [vmem:[#allocation2 + $0xb0] sm:$0xff] 0.0
    %71 = vst [vmem:[#allocation2 + $0xb8] sm:$0xff] 0.0
    %72 = vst [vmem:[#allocation2 + $0xc0] sm:$0xff] 0.0
    %73 = vst [vmem:[#allocation2 + $0xc8] sm:$0xff] 0.0
    %74 = vst [vmem:[#allocation2 + $0xd0] sm:$0xff] 0.0
    %75 = vst [vmem:[#allocation2 + $0xd8] sm:$0xff] 0.0
    %76 = vst [vmem:[#allocation2 + $0xe0] sm:$0xff] 0.0
    %77 = vst [vmem:[#allocation2 + $0xe8] sm:$0xff] 0.0
    %78 = vst [vmem:[#allocation2 + $0xf0] sm:$0xff] 0.0
    %79 = vst [vmem:[#allocation2 + $0xf8] sm:$0xff] 0.0
    %80 = vst [vmem:[#allocation2 + $0x100] sm:$0xff] 0.0
    %81 = vst [vmem:[#allocation2 + $0x108] sm:$0xff] 0.0
    %82 = vst [vmem:[#allocation2 + $0x110] sm:$0xff] 0.0
    %83 = vst [vmem:[#allocation2 + $0x118] sm:$0xff] 0.0
    %84 = vst [vmem:[#allocation2 + $0x120] sm:$0xff] 0.0
    %85 = vst [vmem:[#allocation2 + $0x128] sm:$0xff] 0.0
    %86 = vst [vmem:[#allocation2 + $0x130] sm:$0xff] 0.0
    %87 = vst [vmem:[#allocation2 + $0x138] sm:$0xff] 0.0
    %88 = vst [vmem:[#allocation2 + $0x140] sm:$0xff] 0.0
    %89 = vst [vmem:[#allocation2 + $0x148] sm:$0xff] 0.0
    %90 = vst [vmem:[#allocation2 + $0x150] sm:$0xff] 0.0
    %91 = vst [vmem:[#allocation2 + $0x158] sm:$0xff] 0.0
    %92 = vst [vmem:[#allocation2 + $0x160] sm:$0xff] 0.0
    %93 = vst [vmem:[#allocation2 + $0x168] sm:$0xff] 0.0
    %94 = vst [vmem:[#allocation2 + $0x170] sm:$0xff] 0.0
    %95 = vst [vmem:[#allocation2 + $0x178] sm:$0xff] 0.0
    %96 = vst [vmem:[#allocation2 + $0x180] sm:$0xff] 0.0
    %97 = vst [vmem:[#allocation2 + $0x188] sm:$0xff] 0.0
    %98 = vst [vmem:[#allocation2 + $0x190] sm:$0xff] 0.0
    %99 = vst [vmem:[#allocation2 + $0x198] sm:$0xff] 0.0
    %100 = vst [vmem:[#allocation2 + $0x1a0] sm:$0xff] 0.0
    %101 = vst [vmem:[#allocation2 + $0x1a8] sm:$0xff] 0.0
    %102 = vst [vmem:[#allocation2 + $0x1b0] sm:$0xff] 0.0
    %103 = vst [vmem:[#allocation2 + $0x1b8] sm:$0xff] 0.0
    %104 = vst [vmem:[#allocation3] sm:$0xff] 0.0
    %105 = vst [vmem:[#allocation3 + $0x8] sm:$0xff] 0.0
    %106 = vst [vmem:[#allocation3 + $0x10] sm:$0xff] 0.0
    %107 = vst [vmem:[#allocation3 + $0x18] sm:$0xff] 0.0
    %108 = vst [vmem:[#allocation3 + $0x20] sm:$0xff] 0.0
    %109 = vst [vmem:[#allocation3 + $0x28] sm:$0xff] 0.0
    %110 = vst [vmem:[#allocation3 + $0x30] sm:$0xff] 0.0
    %111 = vst [vmem:[#allocation3 + $0x38] sm:$0xff] 0.0
    %112 = vst [vmem:[#allocation3 + $0x40] sm:$0xff] 0.0
    %113 = vst [vmem:[#allocation3 + $0x48] sm:$0xff] 0.0
    %114 = vst [vmem:[#allocation3 + $0x50] sm:$0xff] 0.0
    %115 = vst [vmem:[#allocation3 + $0x58] sm:$0xff] 0.0
    %116 = vst [vmem:[#allocation3 + $0x60] sm:$0xff] 0.0
    %117 = vst [vmem:[#allocation3 + $0x68] sm:$0xff] 0.0
    %118 = vst [vmem:[#allocation3 + $0x70] sm:$0xff] 0.0
    %119 = vst [vmem:[#allocation3 + $0x78] sm:$0xff] 0.0
    %120 = vst [vmem:[#allocation3 + $0x80] sm:$0xff] 0.0
    %121 = vst [vmem:[#allocation3 + $0x88] sm:$0xff] 0.0
    %122 = vst [vmem:[#allocation3 + $0x90] sm:$0xff] 0.0
    %123 = vst [vmem:[#allocation3 + $0x98] sm:$0xff] 0.0
    %124 = vst [vmem:[#allocation3 + $0xa0] sm:$0xff] 0.0
    %125 = vst [vmem:[#allocation3 + $0xa8] sm:$0xff] 0.0
    %126 = vst [vmem:[#allocation3 + $0xb0] sm:$0xff] 0.0
    %127 = vst [vmem:[#allocation3 + $0xb8] sm:$0xff] 0.0
    %128 = vst [vmem:[#allocation4] sm:$0xff] 0.0
    %129 = vst [vmem:[#allocation4 + $0x8] sm:$0xff] 0.0
    %130 = vst [vmem:[#allocation4 + $0x10] sm:$0xff] 0.0
    %131 = vst [vmem:[#allocation4 + $0x18] sm:$0xff] 0.0
    %132 = vst [vmem:[#allocation4 + $0x20] sm:$0xff] 0.0
    %133 = vst [vmem:[#allocation4 + $0x28] sm:$0xff] 0.0
    %134 = vst [vmem:[#allocation4 + $0x30] sm:$0xff] 0.0
    %135 = vst [vmem:[#allocation4 + $0x38] sm:$0xff] 0.0
    %v136 = vld [vmem:[%s2] sm:$0x1]
    %v137 = vld [vmem:[%s0] sm:$0xff]
    %v138 = vld [vmem:[%s0 + $0x8] sm:$0xff]
    %v139 = vld [vmem:[%s0 + $0x10] sm:$0xff]
    %v140 = vld [vmem:[%s0 + $0x18] sm:$0xff]
    %v141 = vld [vmem:[%s0 + $0x20] sm:$0xff]
    %v142 = vld [vmem:[%s0 + $0x28] sm:$0xff]
    %v143 = vld [vmem:[%s0 + $0x30] sm:$0xff]
    %v144 = vld [vmem:[%s0 + $0x38] sm:$0xff]
    %v145 = vld [vmem:[%s0 + $0x40] sm:$0xff]
    %v146 = vld [vmem:[%s0 + $0x48] sm:$0xff]
    %v147 = vld [vmem:[%s0 + $0x50] sm:$0xff]
    %v148 = vld [vmem:[%s0 + $0x58] sm:$0xff]
    %v149 = vld [vmem:[%s0 + $0x60] sm:$0xff]
    %v150 = vld [vmem:[%s0 + $0x68] sm:$0xff]
    %v151 = vld [vmem:[%s0 + $0x70] sm:$0xff]
    %v152 = vld [vmem:[%s0 + $0x78] sm:$0xff]
    %v153 = vld [vmem:[%s0 + $0x80] sm:$0xff]
    %v154 = vld [vmem:[%s0 + $0x88] sm:$0xff]
    %v155 = vld [vmem:[%s0 + $0x90] sm:$0xff]
    %v156 = vld [vmem:[%s0 + $0x98] sm:$0xff]
    %v157 = vld [vmem:[%s0 + $0xa0] sm:$0xff]
    %v158 = vld [vmem:[%s0 + $0xa8] sm:$0xff]
    %v159 = vld [vmem:[%s0 + $0xb0] sm:$0xff]
    %v160 = vld [vmem:[%s0 + $0xb8] sm:$0xff]
    %v161 = vld [vmem:[%s0 + $0xc0] sm:$0xff]
    %v162 = vld [vmem:[%s0 + $0xc8] sm:$0xff]
    %v163 = vld [vmem:[%s0 + $0xd0] sm:$0xff]
    %v164 = vld [vmem:[%s0 + $0xd8] sm:$0x3f]
    %v165 = vpack.c.bf16 %v138, %v137
    %v166 = vpack.c.bf16 %v140, %v139
    %v167 = vpack.c.bf16 %v142, %v141
    %v168 = vpack.c.bf16 %v144, %v143
    %v169 = vpack.c.bf16 %v146, %v145
    %v170 = vpack.c.bf16 %v148, %v147
    %v171 = vpack.c.bf16 %v150, %v149
    %v172 = vpack.c.bf16 %v152, %v151
    %v173 = vpack.c.bf16 %v154, %v153
    %v174 = vpack.c.bf16 %v156, %v155
    %v175 = vpack.c.bf16 %v158, %v157
    %v176 = vpack.c.bf16 %v160, %v159
    %v177 = vpack.c.bf16 %v162, %v161
    %v178 = vpack.c.bf16 %v164, %v163
    %v179 = vld [vmem:[%s1] sm:$0xf]
    %v180 = vld [vmem:[%s1 + $0x4] sm:$0xf]
    %v181 = vld [vmem:[%s1 + $0x8] sm:$0xf]
    %v182 = vld [vmem:[%s1 + $0xc] sm:$0xf]
    %v183 = vld [vmem:[%s1 + $0x10] sm:$0xf]
    %v184 = vld [vmem:[%s1 + $0x14] sm:$0xf]
    %v185 = vld [vmem:[%s1 + $0x18] sm:$0xf]
    %v186 = vld [vmem:[%s1 + $0x1c] sm:$0xf]
    %v187 = vld [vmem:[%s1 + $0x20] sm:$0xf]
    %v188 = vld [vmem:[%s1 + $0x24] sm:$0xf]
    %v189 = vld [vmem:[%s1 + $0x28] sm:$0xf]
    %v190 = vld [vmem:[%s1 + $0x2c] sm:$0xf]
    %v191 = vld [vmem:[%s1 + $0x30] sm:$0xf]
    %v192 = vld [vmem:[%s1 + $0x34] sm:$0xf]
    %v193 = vld [vmem:[%s1 + $0x38] sm:$0xf]
    %v194 = vld [vmem:[%s1 + $0x3c] sm:$0xf]
    %v195 = vld [vmem:[%s0 + $0x1] sm:$0xff]
    %v196 = vld [vmem:[%s0 + $0x9] sm:$0xff]
    %v197 = vld [vmem:[%s0 + $0x11] sm:$0xff]
    %v198 = vld [vmem:[%s0 + $0x19] sm:$0xff]
    %v199 = vld [vmem:[%s0 + $0x21] sm:$0xff]
    %v200 = vld [vmem:[%s0 + $0x29] sm:$0xff]
    %v201 = vld [vmem:[%s0 + $0x31] sm:$0xff]
    %v202 = vld [vmem:[%s0 + $0x39] sm:$0xff]
    %v203 = vld [vmem:[%s0 + $0x41] sm:$0xff]
    %v204 = vld [vmem:[%s0 + $0x49] sm:$0xff]
    %v205 = vld [vmem:[%s0 + $0x51] sm:$0xff]
    %v206 = vld [vmem:[%s0 + $0x59] sm:$0xff]
    %v207 = vld [vmem:[%s0 + $0x61] sm:$0xff]
    %v208 = vld [vmem:[%s0 + $0x69] sm:$0xff]
    %v209 = vld [vmem:[%s0 + $0x71] sm:$0xff]
    %v210 = vld [vmem:[%s0 + $0x79] sm:$0xff]
    %v211 = vld [vmem:[%s0 + $0x81] sm:$0xff]
    %v212 = vld [vmem:[%s0 + $0x89] sm:$0xff]
    %v213 = vld [vmem:[%s0 + $0x91] sm:$0xff]
    %v214 = vld [vmem:[%s0 + $0x99] sm:$0xff]
    %v215 = vld [vmem:[%s0 + $0xa1] sm:$0xff]
    %v216 = vld [vmem:[%s0 + $0xa9] sm:$0xff]
    %v217 = vld [vmem:[%s0 + $0xb1] sm:$0xff]
    %v218 = vld [vmem:[%s0 + $0xb9] sm:$0xff]
    %v219 = vld [vmem:[%s0 + $0xc1] sm:$0xff]
    %v220 = vld [vmem:[%s0 + $0xc9] sm:$0xff]
    %v221 = vld [vmem:[%s0 + $0xd1] sm:$0xff]
    %v222 = vld [vmem:[%s0 + $0xd9] sm:$0x3f]
    %v223 = vpack.c.bf16 %v196, %v195
    %v224 = vpack.c.bf16 %v198, %v197
    %v225 = vpack.c.bf16 %v200, %v199
    %v226 = vpack.c.bf16 %v202, %v201
    %v227 = vpack.c.bf16 %v204, %v203
    %v228 = vpack.c.bf16 %v206, %v205
    %v229 = vpack.c.bf16 %v208, %v207
    %v230 = vpack.c.bf16 %v210, %v209
    %v231 = vpack.c.bf16 %v212, %v211
    %v232 = vpack.c.bf16 %v214, %v213
    %v233 = vpack.c.bf16 %v216, %v215
    %v234 = vpack.c.bf16 %v218, %v217
    %v235 = vpack.c.bf16 %v220, %v219
    %v236 = vpack.c.bf16 %v222, %v221
    %s237 = scalar_lea.vmem %s1, 64
    %v238 = vld [vmem:[%s237] sm:$0xf]
    %v239 = vld [vmem:[%s237 + $0x4] sm:$0xf]
    %v240 = vld [vmem:[%s237 + $0x8] sm:$0xf]
    %v241 = vld [vmem:[%s237 + $0xc] sm:$0xf]
    %v242 = vld [vmem:[%s237 + $0x10] sm:$0xf]
    %v243 = vld [vmem:[%s237 + $0x14] sm:$0xf]
    %v244 = vld [vmem:[%s237 + $0x18] sm:$0xf]
    %v245 = vld [vmem:[%s237 + $0x1c] sm:$0xf]
    %v246 = vld [vmem:[%s237 + $0x20] sm:$0xf]
    %v247 = vld [vmem:[%s237 + $0x24] sm:$0xf]
    %v248 = vld [vmem:[%s237 + $0x28] sm:$0xf]
    %v249 = vld [vmem:[%s237 + $0x2c] sm:$0xf]
    %v250 = vld [vmem:[%s237 + $0x30] sm:$0xf]
    %v251 = vld [vmem:[%s237 + $0x34] sm:$0xf]
    %v252 = vld [vmem:[%s237 + $0x38] sm:$0xf]
    %v253 = vld [vmem:[%s237 + $0x3c] sm:$0xf]
    %v270 = vunpack.c.l.b16 %v238
    %v271 = vunpack.c.l.b16 %v239
    %v272 = vunpack.c.l.b16 %v240
    %v273 = vunpack.c.l.b16 %v241
    %v274 = vunpack.c.l.b16 %v242
    %v275 = vunpack.c.l.b16 %v243
    %v276 = vunpack.c.l.b16 %v244
    %v277 = vunpack.c.l.b16 %v245
    %v278 = vunpack.c.l.b16 %v246
    %v279 = vunpack.c.l.b16 %v247
    %v280 = vunpack.c.l.b16 %v248
    %v281 = vunpack.c.l.b16 %v249
    %v282 = vunpack.c.l.b16 %v250
    %v283 = vunpack.c.l.b16 %v251
    %v284 = vunpack.c.l.b16 %v252
    %v285 = vunpack.c.l.b16 %v253
    %v286 = vpack.c.b16 %v271, %v270
    %v287 = vpack.c.b16 %v273, %v272
    %v288 = vpack.c.b16 %v275, %v274
    %v289 = vpack.c.b16 %v277, %v276
    %v290 = vpack.c.b16 %v279, %v278
    %v291 = vpack.c.b16 %v281, %v280
    %v292 = vpack.c.b16 %v283, %v282
    %v293 = vpack.c.b16 %v285, %v284
    %302 = vmatprep.subr.bf16.mxu0 0
    %303 = vmatpush1.bf16.msra.mxu0 %v286
    %304 = vmatprep.subr.bf16.mxu0 0
    %305 = vmatpush1.bf16.msra.mxu0 %v287
    %306 = vmatprep.subr.bf16.mxu0 0
    %307 = vmatpush1.bf16.msra.mxu0 %v288
    %308 = vmatprep.subr.bf16.mxu0 0
    %309 = vmatpush1.bf16.msra.mxu0 %v289
    %310 = vmatprep.subr.bf16.mxu0 0
    %311 = vmatpush1.bf16.msra.mxu0 %v290
    %312 = vmatprep.subr.bf16.mxu0 0
    %313 = vmatpush1.bf16.msra.mxu0 %v291
    %314 = vmatprep.subr.bf16.mxu0 0
    %315 = vmatpush1.bf16.msra.mxu0 %v292
    %316 = vmatprep.subr.bf16.mxu0 0
    %317 = vmatpush1.bf16.msra.mxu0 %v293
    %318 = vmatprep.subr.bf16.mxu0 0
    %319 = vmatpush1.bf16.msra.mxu0 0
    %320 = vmatprep.subr.bf16.mxu0 0
    %321 = vmatpush1.bf16.msra.mxu0 0
    %322 = vmatprep.subr.bf16.mxu0 0
    %323 = vmatpush1.bf16.msra.mxu0 0
    %324 = vmatprep.subr.bf16.mxu0 0
    %325 = vmatpush1.bf16.msra.mxu0 0
    %326 = vmatprep.subr.bf16.mxu0 0
    %327 = vmatpush1.bf16.msra.mxu0 0
    %328 = vmatprep.subr.bf16.mxu0 0
    %329 = vmatpush1.bf16.msra.mxu0 0
    %330 = vmatprep.subr.bf16.mxu0 0
    %331 = vmatpush1.bf16.msra.mxu0 0
    %332 = vmatprep.subr.bf16.mxu0 0
    %333 = vmatpush1.bf16.msra.mxu0 0
    %334 = vmatprep.mubr.bf16.mxu0 0
    %335 = vmatmul.mubr.bf16.gmra.mrb[0].mxu0 %v223
    %v336 = vpop.f32.mrb[0].mxu0
    %v337 = vadd.f32 0.0, %v336
    %v338 = vpop.f32.mrb[0].mxu0
    %v339 = vpop.f32.mrb[0].mxu0
    %v340 = vadd.f32 0.0, %v339
    %v341 = vpop.f32.mrb[0].mxu0
    %342 = vmatprep.mubr.bf16.mxu0 0
    %343 = vmatmul.mubr.bf16.gmra.mrb[0].mxu0 %v224
    %v344 = vpop.f32.mrb[0].mxu0
    %v345 = vadd.f32 0.0, %v344
    %v346 = vpop.f32.mrb[0].mxu0
    %v347 = vpop.f32.mrb[0].mxu0
    %v348 = vadd.f32 0.0, %v347
    %v349 = vpop.f32.mrb[0].mxu0
    %350 = vmatprep.mubr.bf16.mxu0 0
    %351 = vmatmul.mubr.bf16.gmra.mrb[0].mxu0 %v225
    %v352 = vpop.f32.mrb[0].mxu0
    %v353 = vadd.f32 0.0, %v352
    %v354 = vpop.f32.mrb[0].mxu0
    %v355 = vpop.f32.mrb[0].mxu0
    %v356 = vadd.f32 0.0, %v355
    %v357 = vpop.f32.mrb[0].mxu0
    %358 = vmatprep.mubr.bf16.mxu0 0
    %359 = vmatmul.mubr.bf16.gmra.mrb[0].mxu0 %v226
    %v360 = vpop.f32.mrb[0].mxu0
    %v361 = vadd.f32 0.0, %v360
    %v362 = vpop.f32.mrb[0].mxu0
    %v363 = vpop.f32.mrb[0].mxu0
    %v364 = vadd.f32 0.0, %v363
    %v365 = vpop.f32.mrb[0].mxu0
    %366 = vmatprep.mubr.bf16.mxu0 0
    %367 = vmatmul.mubr.bf16.gmra.mrb[0].mxu0 %v227
    %v368 = vpop.f32.mrb[0].mxu0
    %v369 = vadd.f32 0.0, %v368
    %v370 = vpop.f32.mrb[0].mxu0
    %v371 = vpop.f32.mrb[0].mxu0
    %v372 = vadd.f32 0.0, %v371
    %v373 = vpop.f32.mrb[0].mxu0
    %374 = vmatprep.mubr.bf16.mxu0 0
    %375 = vmatmul.mubr.bf16.gmra.mrb[0].mxu0 %v228
    %v376 = vpop.f32.mrb[0].mxu0
    %v377 = vadd.f32 0.0, %v376
    %v378 = vpop.f32.mrb[0].mxu0
    %v379 = vpop.f32.mrb[0].mxu0
    %v380 = vadd.f32 0.0, %v379
    %v381 = vpop.f32.mrb[0].mxu0
    %382 = vmatprep.mubr.bf16.mxu0 0
    %383 = vmatmul.mubr.bf16.gmra.mrb[0].mxu0 %v229
    %v384 = vpop.f32.mrb[0].mxu0
    %v385 = vadd.f32 0.0, %v384
    %v386 = vpop.f32.mrb[0].mxu0
    %v387 = vpop.f32.mrb[0].mxu0
    %v388 = vadd.f32 0.0, %v387
    %v389 = vpop.f32.mrb[0].mxu0
    %390 = vmatprep.mubr.bf16.mxu0 0
    %391 = vmatmul.mubr.bf16.gmra.mrb[0].mxu0 %v230
    %v392 = vpop.f32.mrb[0].mxu0
    %v393 = vadd.f32 0.0, %v392
    %v394 = vpop.f32.mrb[0].mxu0
    %v395 = vpop.f32.mrb[0].mxu0
    %v396 = vadd.f32 0.0, %v395
    %v397 = vpop.f32.mrb[0].mxu0
    %398 = vmatprep.mubr.bf16.mxu0 0
    %399 = vmatmul.mubr.bf16.gmra.mrb[0].mxu0 %v231
    %v400 = vpop.f32.mrb[0].mxu0
    %v401 = vadd.f32 0.0, %v400
    %v402 = vpop.f32.mrb[0].mxu0
    %v403 = vpop.f32.mrb[0].mxu0
    %v404 = vadd.f32 0.0, %v403
    %v405 = vpop.f32.mrb[0].mxu0
    %406 = vmatprep.mubr.bf16.mxu0 0
    %407 = vmatmul.mubr.bf16.gmra.mrb[0].mxu0 %v232
    %v408 = vpop.f32.mrb[0].mxu0
    %v409 = vadd.f32 0.0, %v408
    %v410 = vpop.f32.mrb[0].mxu0
    %v411 = vpop.f32.mrb[0].mxu0
    %v412 = vadd.f32 0.0, %v411
    %v413 = vpop.f32.mrb[0].mxu0
    %414 = vmatprep.mubr.bf16.mxu0 0
    %415 = vmatmul.mubr.bf16.gmra.mrb[0].mxu0 %v233
    %v416 = vpop.f32.mrb[0].mxu0
    %v417 = vadd.f32 0.0, %v416
    %v418 = vpop.f32.mrb[0].mxu0
    %v419 = vpop.f32.mrb[0].mxu0
    %v420 = vadd.f32 0.0, %v419
    %v421 = vpop.f32.mrb[0].mxu0
    %422 = vmatprep.mubr.bf16.mxu0 0
    %423 = vmatmul.mubr.bf16.gmra.mrb[0].mxu0 %v234
    %v424 = vpop.f32.mrb[0].mxu0
    %v425 = vadd.f32 0.0, %v424
    %v426 = vpop.f32.mrb[0].mxu0
    %v427 = vpop.f32.mrb[0].mxu0
    %v428 = vadd.f32 0.0, %v427
    %v429 = vpop.f32.mrb[0].mxu0
    %430 = vmatprep.mubr.bf16.mxu0 0
    %431 = vmatmul.mubr.bf16.gmra.mrb[0].mxu0 %v235
    %v432 = vpop.f32.mrb[0].mxu0
    %v433 = vadd.f32 0.0, %v432
    %v434 = vpop.f32.mrb[0].mxu0
    %v435 = vpop.f32.mrb[0].mxu0
    %v436 = vadd.f32 0.0, %v435
    %v437 = vpop.f32.mrb[0].mxu0
    %438 = vmatprep.mubr.bf16.mxu0 0
    %439 = vmatmul.mubr.bf16.gmra.mrb[0].mxu0 %v236
    %v440 = vpop.f32.mrb[0].mxu0
    %v441 = vadd.f32 0.0, %v440
    %v442 = vpop.f32.mrb[0].mxu0
    %v443 = vpop.f32.mrb[0].mxu0
    %v444 = vadd.f32 0.0, %v443
    %v445 = vpop.f32.mrb[0].mxu0
    %446 = vdwg.mxu0
    %v463 = vunpack.c.l.b16 %v179
    %v464 = vunpack.c.l.b16 %v180
    %v465 = vunpack.c.l.b16 %v181
    %v466 = vunpack.c.l.b16 %v182
    %v467 = vunpack.c.l.b16 %v183
    %v468 = vunpack.c.l.b16 %v184
    %v469 = vunpack.c.l.b16 %v185
    %v470 = vunpack.c.l.b16 %v186
    %v471 = vunpack.c.l.b16 %v187
    %v472 = vunpack.c.l.b16 %v188
    %v473 = vunpack.c.l.b16 %v189
    %v474 = vunpack.c.l.b16 %v190
    %v475 = vunpack.c.l.b16 %v191
    %v476 = vunpack.c.l.b16 %v192
    %v477 = vunpack.c.l.b16 %v193
    %v478 = vunpack.c.l.b16 %v194
    %v479 = vpack.c.b16 %v464, %v463
    %v480 = vpack.c.b16 %v466, %v465
    %v481 = vpack.c.b16 %v468, %v467
    %v482 = vpack.c.b16 %v470, %v469
    %v483 = vpack.c.b16 %v472, %v471
    %v484 = vpack.c.b16 %v474, %v473
    %v485 = vpack.c.b16 %v476, %v475
    %v486 = vpack.c.b16 %v478, %v477
    %495 = vmatprep.subr.bf16.mxu0 0
    %496 = vmatpush1.bf16.msra.mxu0 %v479
    %497 = vmatprep.subr.bf16.mxu0 0
    %498 = vmatpush1.bf16.msra.mxu0 %v480
    %499 = vmatprep.subr.bf16.mxu0 0
    %500 = vmatpush1.bf16.msra.mxu0 %v481
    %501 = vmatprep.subr.bf16.mxu0 0
    %502 = vmatpush1.bf16.msra.mxu0 %v482
    %503 = vmatprep.subr.bf16.mxu0 0
    %504 = vmatpush1.bf16.msra.mxu0 %v483
    %505 = vmatprep.subr.bf16.mxu0 0
    %506 = vmatpush1.bf16.msra.mxu0 %v484
    %507 = vmatprep.subr.bf16.mxu0 0
    %508 = vmatpush1.bf16.msra.mxu0 %v485
    %509 = vmatprep.subr.bf16.mxu0 0
    %510 = vmatpush1.bf16.msra.mxu0 %v486
    %511 = vmatprep.subr.bf16.mxu0 0
    %512 = vmatpush1.bf16.msra.mxu0 0
    %513 = vmatprep.subr.bf16.mxu0 0
    %514 = vmatpush1.bf16.msra.mxu0 0
    %515 = vmatprep.subr.bf16.mxu0 0
    %516 = vmatpush1.bf16.msra.mxu0 0
    %517 = vmatprep.subr.bf16.mxu0 0
    %518 = vmatpush1.bf16.msra.mxu0 0
    %519 = vmatprep.subr.bf16.mxu0 0
    %520 = vmatpush1.bf16.msra.mxu0 0
    %521 = vmatprep.subr.bf16.mxu0 0
    %522 = vmatpush1.bf16.msra.mxu0 0
    %523 = vmatprep.subr.bf16.mxu0 0
    %524 = vmatpush1.bf16.msra.mxu0 0
    %525 = vmatprep.subr.bf16.mxu0 0
    %526 = vmatpush1.bf16.msra.mxu0 0
    %527 = vmatprep.mubr.bf16.mxu0 0
    %528 = vmatmul.mubr.bf16.gmra.mrb[0].mxu0 %v165
    %v529 = vpop.f32.mrb[0].mxu0
    %v530 = vadd.f32 %v337, %v529
    %v531 = vpop.f32.mrb[0].mxu0
    %v532 = vpop.f32.mrb[0].mxu0
    %v533 = vadd.f32 %v340, %v532
    %v534 = vpop.f32.mrb[0].mxu0
    %535 = vmatprep.mubr.bf16.mxu0 0
    %536 = vmatmul.mubr.bf16.gmra.mrb[0].mxu0 %v166
    %v537 = vpop.f32.mrb[0].mxu0
    %v538 = vadd.f32 %v345, %v537
    %v539 = vpop.f32.mrb[0].mxu0
    %v540 = vpop.f32.mrb[0].mxu0
    %v541 = vadd.f32 %v348, %v540
    %v542 = vpop.f32.mrb[0].mxu0
    %543 = vmatprep.mubr.bf16.mxu0 0
    %544 = vmatmul.mubr.bf16.gmra.mrb[0].mxu0 %v167
    %v545 = vpop.f32.mrb[0].mxu0
    %v546 = vadd.f32 %v353, %v545
    %v547 = vpop.f32.mrb[0].mxu0
    %v548 = vpop.f32.mrb[0].mxu0
    %v549 = vadd.f32 %v356, %v548
    %v550 = vpop.f32.mrb[0].mxu0
    %551 = vmatprep.mubr.bf16.mxu0 0
    %552 = vmatmul.mubr.bf16.gmra.mrb[0].mxu0 %v168
    %v553 = vpop.f32.mrb[0].mxu0
    %v554 = vadd.f32 %v361, %v553
    %v555 = vpop.f32.mrb[0].mxu0
    %v556 = vpop.f32.mrb[0].mxu0
    %v557 = vadd.f32 %v364, %v556
    %v558 = vpop.f32.mrb[0].mxu0
    %559 = vmatprep.mubr.bf16.mxu0 0
    %560 = vmatmul.mubr.bf16.gmra.mrb[0].mxu0 %v169
    %v561 = vpop.f32.mrb[0].mxu0
    %v562 = vadd.f32 %v369, %v561
    %v563 = vpop.f32.mrb[0].mxu0
    %v564 = vpop.f32.mrb[0].mxu0
    %v565 = vadd.f32 %v372, %v564
    %v566 = vpop.f32.mrb[0].mxu0
    %567 = vmatprep.mubr.bf16.mxu0 0
    %568 = vmatmul.mubr.bf16.gmra.mrb[0].mxu0 %v170
    %v569 = vpop.f32.mrb[0].mxu0
    %v570 = vadd.f32 %v377, %v569
    %v571 = vpop.f32.mrb[0].mxu0
    %v572 = vpop.f32.mrb[0].mxu0
    %v573 = vadd.f32 %v380, %v572
    %v574 = vpop.f32.mrb[0].mxu0
    %575 = vmatprep.mubr.bf16.mxu0 0
    %576 = vmatmul.mubr.bf16.gmra.mrb[0].mxu0 %v171
    %v577 = vpop.f32.mrb[0].mxu0
    %v578 = vadd.f32 %v385, %v577
    %v579 = vpop.f32.mrb[0].mxu0
    %v580 = vpop.f32.mrb[0].mxu0
    %v581 = vadd.f32 %v388, %v580
    %v582 = vpop.f32.mrb[0].mxu0
    %583 = vmatprep.mubr.bf16.mxu0 0
    %584 = vmatmul.mubr.bf16.gmra.mrb[0].mxu0 %v172
    %v585 = vpop.f32.mrb[0].mxu0
    %v586 = vadd.f32 %v393, %v585
    %v587 = vpop.f32.mrb[0].mxu0
    %v588 = vpop.f32.mrb[0].mxu0
    %v589 = vadd.f32 %v396, %v588
    %v590 = vpop.f32.mrb[0].mxu0
    %591 = vmatprep.mubr.bf16.mxu0 0
    %592 = vmatmul.mubr.bf16.gmra.mrb[0].mxu0 %v173
    %v593 = vpop.f32.mrb[0].mxu0
    %v594 = vadd.f32 %v401, %v593
    %v595 = vpop.f32.mrb[0].mxu0
    %v596 = vpop.f32.mrb[0].mxu0
    %v597 = vadd.f32 %v404, %v596
    %v598 = vpop.f32.mrb[0].mxu0
    %599 = vmatprep.mubr.bf16.mxu0 0
    %600 = vmatmul.mubr.bf16.gmra.mrb[0].mxu0 %v174
    %v601 = vpop.f32.mrb[0].mxu0
    %v602 = vadd.f32 %v409, %v601
    %v603 = vpop.f32.mrb[0].mxu0
    %v604 = vpop.f32.mrb[0].mxu0
    %v605 = vadd.f32 %v412, %v604
    %v606 = vpop.f32.mrb[0].mxu0
    %607 = vmatprep.mubr.bf16.mxu0 0
    %608 = vmatmul.mubr.bf16.gmra.mrb[0].mxu0 %v175
    %v609 = vpop.f32.mrb[0].mxu0
    %v610 = vadd.f32 %v417, %v609
    %v611 = vpop.f32.mrb[0].mxu0
    %v612 = vpop.f32.mrb[0].mxu0
    %v613 = vadd.f32 %v420, %v612
    %v614 = vpop.f32.mrb[0].mxu0
    %615 = vmatprep.mubr.bf16.mxu0 0
    %616 = vmatmul.mubr.bf16.gmra.mrb[0].mxu0 %v176
    %v617 = vpop.f32.mrb[0].mxu0
    %v618 = vadd.f32 %v425, %v617
    %v619 = vpop.f32.mrb[0].mxu0
    %v620 = vpop.f32.mrb[0].mxu0
    %v621 = vadd.f32 %v428, %v620
    %v622 = vpop.f32.mrb[0].mxu0
    %623 = vmatprep.mubr.bf16.mxu0 0
    %624 = vmatmul.mubr.bf16.gmra.mrb[0].mxu0 %v177
    %v625 = vpop.f32.mrb[0].mxu0
    %v626 = vadd.f32 %v433, %v625
    %v627 = vpop.f32.mrb[0].mxu0
    %v628 = vpop.f32.mrb[0].mxu0
    %v629 = vadd.f32 %v436, %v628
    %v630 = vpop.f32.mrb[0].mxu0
    %631 = vmatprep.mubr.bf16.mxu0 0
    %632 = vmatmul.mubr.bf16.gmra.mrb[0].mxu0 %v178
    %v633 = vpop.f32.mrb[0].mxu0
    %v634 = vadd.f32 %v441, %v633
    %v635 = vpop.f32.mrb[0].mxu0
    %v636 = vpop.f32.mrb[0].mxu0
    %v637 = vadd.f32 %v444, %v636
    %v638 = vpop.f32.mrb[0].mxu0
    %639 = vdwg.mxu0
    %v640 = vld [vmem:[%s0 + $0x2] sm:$0xff]
    %v641 = vld [vmem:[%s0 + $0xa] sm:$0xff]
    %v642 = vld [vmem:[%s0 + $0x12] sm:$0xff]
    %v643 = vld [vmem:[%s0 + $0x1a] sm:$0xff]
    %v644 = vld [vmem:[%s0 + $0x22] sm:$0xff]
    %v645 = vld [vmem:[%s0 + $0x2a] sm:$0xff]
    %v646 = vld [vmem:[%s0 + $0x32] sm:$0xff]
    %v647 = vld [vmem:[%s0 + $0x3a] sm:$0xff]
    %v648 = vld [vmem:[%s0 + $0x42] sm:$0xff]
    %v649 = vld [vmem:[%s0 + $0x4a] sm:$0xff]
    %v650 = vld [vmem:[%s0 + $0x52] sm:$0xff]
    %v651 = vld [vmem:[%s0 + $0x5a] sm:$0xff]
    %v652 = vld [vmem:[%s0 + $0x62] sm:$0xff]
    %v653 = vld [vmem:[%s0 + $0x6a] sm:$0xff]
    %v654 = vld [vmem:[%s0 + $0x72] sm:$0xff]
    %v655 = vld [vmem:[%s0 + $0x7a] sm:$0xff]
    %v656 = vld [vmem:[%s0 + $0x82] sm:$0xff]
    %v657 = vld [vmem:[%s0 + $0x8a] sm:$0xff]
    %v658 = vld [vmem:[%s0 + $0x92] sm:$0xff]
    %v659 = vld [vmem:[%s0 + $0x9a] sm:$0xff]
    %v660 = vld [vmem:[%s0 + $0xa2] sm:$0xff]
    %v661 = vld [vmem:[%s0 + $0xaa] sm:$0xff]
    %v662 = vld [vmem:[%s0 + $0xb2] sm:$0xff]
    %v663 = vld [vmem:[%s0 + $0xba] sm:$0xff]
    %v664 = vld [vmem:[%s0 + $0xc2] sm:$0xff]
    %v665 = vld [vmem:[%s0 + $0xca] sm:$0xff]
    %v666 = vld [vmem:[%s0 + $0xd2] sm:$0xff]
    %v667 = vld [vmem:[%s0 + $0xda] sm:$0x3f]
    %v668 = vpack.c.bf16 %v641, %v640
    %v669 = vpack.c.bf16 %v643, %v642
    %v670 = vpack.c.bf16 %v645, %v644
    %v671 = vpack.c.bf16 %v647, %v646
    %v672 = vpack.c.bf16 %v649, %v648
    %v673 = vpack.c.bf16 %v651, %v650
    %v674 = vpack.c.bf16 %v653, %v652
    %v675 = vpack.c.bf16 %v655, %v654
    %v676 = vpack.c.bf16 %v657, %v656
    %v677 = vpack.c.bf16 %v659, %v658
    %v678 = vpack.c.bf16 %v661, %v660
    %v679 = vpack.c.bf16 %v663, %v662
    %v680 = vpack.c.bf16 %v665, %v664
    %v681 = vpack.c.bf16 %v667, %v666
    %s682 = scalar_lea.vmem %s1, 128
    %v683 = vld [vmem:[%s682] sm:$0xf]
    %v684 = vld [vmem:[%s682 + $0x4] sm:$0xf]
    %v685 = vld [vmem:[%s682 + $0x8] sm:$0xf]
    %v686 = vld [vmem:[%s682 + $0xc] sm:$0xf]
    %v687 = vld [vmem:[%s682 + $0x10] sm:$0xf]
    %v688 = vld [vmem:[%s682 + $0x14] sm:$0xf]
    %v689 = vld [vmem:[%s682 + $0x18] sm:$0xf]
    %v690 = vld [vmem:[%s682 + $0x1c] sm:$0xf]
    %v691 = vld [vmem:[%s682 + $0x20] sm:$0xf]
    %v692 = vld [vmem:[%s682 + $0x24] sm:$0xf]
    %v693 = vld [vmem:[%s682 + $0x28] sm:$0xf]
    %v694 = vld [vmem:[%s682 + $0x2c] sm:$0xf]
    %v695 = vld [vmem:[%s682 + $0x30] sm:$0xf]
    %v696 = vld [vmem:[%s682 + $0x34] sm:$0xf]
    %v697 = vld [vmem:[%s682 + $0x38] sm:$0xf]
    %v698 = vld [vmem:[%s682 + $0x3c] sm:$0xf]
    %v715 = vunpack.c.l.b16 %v683
    %v716 = vunpack.c.l.b16 %v684
    %v717 = vunpack.c.l.b16 %v685
    %v718 = vunpack.c.l.b16 %v686
    %v719 = vunpack.c.l.b16 %v687
    %v720 = vunpack.c.l.b16 %v688
    %v721 = vunpack.c.l.b16 %v689
    %v722 = vunpack.c.l.b16 %v690
    %v723 = vunpack.c.l.b16 %v691
    %v724 = vunpack.c.l.b16 %v692
    %v725 = vunpack.c.l.b16 %v693
    %v726 = vunpack.c.l.b16 %v694
    %v727 = vunpack.c.l.b16 %v695
    %v728 = vunpack.c.l.b16 %v696
    %v729 = vunpack.c.l.b16 %v697
    %v730 = vunpack.c.l.b16 %v698
    %v731 = vpack.c.b16 %v716, %v715
    %v732 = vpack.c.b16 %v718, %v717
    %v733 = vpack.c.b16 %v720, %v719
    %v734 = vpack.c.b16 %v722, %v721
    %v735 = vpack.c.b16 %v724, %v723
    %v736 = vpack.c.b16 %v726, %v725
    %v737 = vpack.c.b16 %v728, %v727
    %v738 = vpack.c.b16 %v730, %v729
    %747 = vmatprep.subr.bf16.mxu0 0
    %748 = vmatpush1.bf16.msra.mxu0 %v731
    %749 = vmatprep.subr.bf16.mxu0 0
    %750 = vmatpush1.bf16.msra.mxu0 %v732
    %751 = vmatprep.subr.bf16.mxu0 0
    %752 = vmatpush1.bf16.msra.mxu0 %v733
    %753 = vmatprep.subr.bf16.mxu0 0
    %754 = vmatpush1.bf16.msra.mxu0 %v734
    %755 = vmatprep.subr.bf16.mxu0 0
    %756 = vmatpush1.bf16.msra.mxu0 %v735
    %757 = vmatprep.subr.bf16.mxu0 0
    %758 = vmatpush1.bf16.msra.mxu0 %v736
    %759 = vmatprep.subr.bf16.mxu0 0
    %760 = vmatpush1.bf16.msra.mxu0 %v737
    %761 = vmatprep.subr.bf16.mxu0 0
    %762 = vmatpush1.bf16.msra.mxu0 %v738
    %763 = vmatprep.subr.bf16.mxu0 0
    %764 = vmatpush1.bf16.msra.mxu0 0
    %765 = vmatprep.subr.bf16.mxu0 0
    %766 = vmatpush1.bf16.msra.mxu0 0
    %767 = vmatprep.subr.bf16.mxu0 0
    %768 = vmatpush1.bf16.msra.mxu0 0
    %769 = vmatprep.subr.bf16.mxu0 0
    %770 = vmatpush1.bf16.msra.mxu0 0
    %771 = vmatprep.subr.bf16.mxu0 0
    %772 = vmatpush1.bf16.msra.mxu0 0
    %773 = vmatprep.subr.bf16.mxu0 0
    %774 = vmatpush1.bf16.msra.mxu0 0
    %775 = vmatprep.subr.bf16.mxu0 0
    %776 = vmatpush1.bf16.msra.mxu0 0
    %777 = vmatprep.subr.bf16.mxu0 0
    %778 = vmatpush1.bf16.msra.mxu0 0
    %779 = vmatprep.mubr.bf16.mxu0 0
    %780 = vmatmul.mubr.bf16.gmra.mrb[0].mxu0 %v668
    %v781 = vpop.f32.mrb[0].mxu0
    %v782 = vadd.f32 0.0, %v781
    %v783 = vpop.f32.mrb[0].mxu0
    %v784 = vpop.f32.mrb[0].mxu0
    %v785 = vadd.f32 0.0, %v784
    %v786 = vpop.f32.mrb[0].mxu0
    %787 = vmatprep.mubr.bf16.mxu0 0
    %788 = vmatmul.mubr.bf16.gmra.mrb[0].mxu0 %v669
    %v789 = vpop.f32.mrb[0].mxu0
    %v790 = vadd.f32 0.0, %v789
    %v791 = vpop.f32.mrb[0].mxu0
    %v792 = vpop.f32.mrb[0].mxu0
    %v793 = vadd.f32 0.0, %v792
    %v794 = vpop.f32.mrb[0].mxu0
    %795 = vmatprep.mubr.bf16.mxu0 0
    %796 = vmatmul.mubr.bf16.gmra.mrb[0].mxu0 %v670
    %v797 = vpop.f32.mrb[0].mxu0
    %v798 = vadd.f32 0.0, %v797
    %v799 = vpop.f32.mrb[0].mxu0
    %v800 = vpop.f32.mrb[0].mxu0
    %v801 = vadd.f32 0.0, %v800
    %v802 = vpop.f32.mrb[0].mxu0
    %803 = vmatprep.mubr.bf16.mxu0 0
    %804 = vmatmul.mubr.bf16.gmra.mrb[0].mxu0 %v671
    %v805 = vpop.f32.mrb[0].mxu0
    %v806 = vadd.f32 0.0, %v805
    %v807 = vpop.f32.mrb[0].mxu0
    %v808 = vpop.f32.mrb[0].mxu0
    %v809 = vadd.f32 0.0, %v808
    %v810 = vpop.f32.mrb[0].mxu0
    %811 = vmatprep.mubr.bf16.mxu0 0
    %812 = vmatmul.mubr.bf16.gmra.mrb[0].mxu0 %v672
    %v813 = vpop.f32.mrb[0].mxu0
    %v814 = vadd.f32 0.0, %v813
    %v815 = vpop.f32.mrb[0].mxu0
    %v816 = vpop.f32.mrb[0].mxu0
    %v817 = vadd.f32 0.0, %v816
    %v818 = vpop.f32.mrb[0].mxu0
    %819 = vmatprep.mubr.bf16.mxu0 0
    %820 = vmatmul.mubr.bf16.gmra.mrb[0].mxu0 %v673
    %v821 = vpop.f32.mrb[0].mxu0
    %v822 = vadd.f32 0.0, %v821
    %v823 = vpop.f32.mrb[0].mxu0
    %v824 = vpop.f32.mrb[0].mxu0
    %v825 = vadd.f32 0.0, %v824
    %v826 = vpop.f32.mrb[0].mxu0
    %827 = vmatprep.mubr.bf16.mxu0 0
    %828 = vmatmul.mubr.bf16.gmra.mrb[0].mxu0 %v674
    %v829 = vpop.f32.mrb[0].mxu0
    %v830 = vadd.f32 0.0, %v829
    %v831 = vpop.f32.mrb[0].mxu0
    %v832 = vpop.f32.mrb[0].mxu0
    %v833 = vadd.f32 0.0, %v832
    %v834 = vpop.f32.mrb[0].mxu0
    %835 = vmatprep.mubr.bf16.mxu0 0
    %836 = vmatmul.mubr.bf16.gmra.mrb[0].mxu0 %v675
    %v837 = vpop.f32.mrb[0].mxu0
    %v838 = vadd.f32 0.0, %v837
    %v839 = vpop.f32.mrb[0].mxu0
    %v840 = vpop.f32.mrb[0].mxu0
    %v841 = vadd.f32 0.0, %v840
    %v842 = vpop.f32.mrb[0].mxu0
    %843 = vmatprep.mubr.bf16.mxu0 0
    %844 = vmatmul.mubr.bf16.gmra.mrb[0].mxu0 %v676
    %v845 = vpop.f32.mrb[0].mxu0
    %v846 = vadd.f32 0.0, %v845
    %v847 = vpop.f32.mrb[0].mxu0
    %v848 = vpop.f32.mrb[0].mxu0
    %v849 = vadd.f32 0.0, %v848
    %v850 = vpop.f32.mrb[0].mxu0
    %851 = vmatprep.mubr.bf16.mxu0 0
    %852 = vmatmul.mubr.bf16.gmra.mrb[0].mxu0 %v677
    %v853 = vpop.f32.mrb[0].mxu0
    %v854 = vadd.f32 0.0, %v853
    %v855 = vpop.f32.mrb[0].mxu0
    %v856 = vpop.f32.mrb[0].mxu0
    %v857 = vadd.f32 0.0, %v856
    %v858 = vpop.f32.mrb[0].mxu0
    %859 = vmatprep.mubr.bf16.mxu0 0
    %860 = vmatmul.mubr.bf16.gmra.mrb[0].mxu0 %v678
    %v861 = vpop.f32.mrb[0].mxu0
    %v862 = vadd.f32 0.0, %v861
    %v863 = vpop.f32.mrb[0].mxu0
    %v864 = vpop.f32.mrb[0].mxu0
    %v865 = vadd.f32 0.0, %v864
    %v866 = vpop.f32.mrb[0].mxu0
    %867 = vmatprep.mubr.bf16.mxu0 0
    %868 = vmatmul.mubr.bf16.gmra.mrb[0].mxu0 %v679
    %v869 = vpop.f32.mrb[0].mxu0
    %v870 = vadd.f32 0.0, %v869
    %v871 = vpop.f32.mrb[0].mxu0
    %v872 = vpop.f32.mrb[0].mxu0
    %v873 = vadd.f32 0.0, %v872
    %v874 = vpop.f32.mrb[0].mxu0
    %875 = vmatprep.mubr.bf16.mxu0 0
    %876 = vmatmul.mubr.bf16.gmra.mrb[0].mxu0 %v680
    %v877 = vpop.f32.mrb[0].mxu0
    %v878 = vadd.f32 0.0, %v877
    %v879 = vpop.f32.mrb[0].mxu0
    %v880 = vpop.f32.mrb[0].mxu0
    %v881 = vadd.f32 0.0, %v880
    %v882 = vpop.f32.mrb[0].mxu0
    %883 = vmatprep.mubr.bf16.mxu0 0
    %884 = vmatmul.mubr.bf16.gmra.mrb[0].mxu0 %v681
    %v885 = vpop.f32.mrb[0].mxu0
    %v886 = vadd.f32 0.0, %v885
    %v887 = vpop.f32.mrb[0].mxu0
    %v888 = vpop.f32.mrb[0].mxu0
    %v889 = vadd.f32 0.0, %v888
    %v890 = vpop.f32.mrb[0].mxu0
    %891 = vdwg.mxu0
    %v892 = vadd.f32 %v530, %v782
    %v893 = vadd.f32 %v533, %v785
    %v894 = vadd.f32 %v538, %v790
    %v895 = vadd.f32 %v541, %v793
    %v896 = vadd.f32 %v546, %v798
    %v897 = vadd.f32 %v549, %v801
    %v898 = vadd.f32 %v554, %v806
    %v899 = vadd.f32 %v557, %v809
    %v900 = vadd.f32 %v562, %v814
    %v901 = vadd.f32 %v565, %v817
    %v902 = vadd.f32 %v570, %v822
    %v903 = vadd.f32 %v573, %v825
    %v904 = vadd.f32 %v578, %v830
    %v905 = vadd.f32 %v581, %v833
    %v906 = vadd.f32 %v586, %v838
    %v907 = vadd.f32 %v589, %v841
    %v908 = vadd.f32 %v594, %v846
    %v909 = vadd.f32 %v597, %v849
    %v910 = vadd.f32 %v602, %v854
    %v911 = vadd.f32 %v605, %v857
    %v912 = vadd.f32 %v610, %v862
    %v913 = vadd.f32 %v613, %v865
    %v914 = vadd.f32 %v618, %v870
    %v915 = vadd.f32 %v621, %v873
    %v916 = vadd.f32 %v626, %v878
    %v917 = vadd.f32 %v629, %v881
    %v918 = vadd.f32 %v634, %v886
    %v919 = vadd.f32 %v637, %v889
    %v920 = vld [vmem:[%s0 + $0x10] sm:$0xff]
    %v921 = vld [vmem:[%s0 + $0x18] sm:$0xff]
    %v922 = vld [vmem:[%s0 + $0x20] sm:$0xff]
    %v923 = vld [vmem:[%s0 + $0x28] sm:$0xff]
    %v924 = vld [vmem:[%s0 + $0x30] sm:$0xff]
    %v925 = vld [vmem:[%s0 + $0x38] sm:$0xff]
    %v926 = vld [vmem:[%s0 + $0x40] sm:$0xff]
    %v927 = vld [vmem:[%s0 + $0x48] sm:$0xff]
    %v928 = vld [vmem:[%s0 + $0x50] sm:$0xff]
    %v929 = vld [vmem:[%s0 + $0x58] sm:$0xff]
    %v930 = vld [vmem:[%s0 + $0x60] sm:$0xff]
    %v931 = vld [vmem:[%s0 + $0x68] sm:$0xff]
    %v932 = vld [vmem:[%s0 + $0x70] sm:$0xff]
    %v933 = vld [vmem:[%s0 + $0x78] sm:$0xff]
    %v934 = vld [vmem:[%s0 + $0x80] sm:$0xff]
    %v935 = vld [vmem:[%s0 + $0x88] sm:$0xff]
    %v936 = vld [vmem:[%s0 + $0x90] sm:$0xff]
    %v937 = vld [vmem:[%s0 + $0x98] sm:$0xff]
    %v938 = vld [vmem:[%s0 + $0xa0] sm:$0xff]
    %v939 = vld [vmem:[%s0 + $0xa8] sm:$0xff]
    %v940 = vld [vmem:[%s0 + $0xb0] sm:$0xff]
    %v941 = vld [vmem:[%s0 + $0xb8] sm:$0xff]
    %v942 = vld [vmem:[%s0 + $0xc0] sm:$0xff]
    %v943 = vld [vmem:[%s0 + $0xc8] sm:$0xff]
    %v944 = vld [vmem:[%s0 + $0xd0] sm:$0xff]
    %v945 = vld [vmem:[%s0 + $0xd8] sm:$0xff]
    %v946 = vld [vmem:[%s0 + $0xe0] sm:$0xff]
    %v947 = vld [vmem:[%s0 + $0xe8] sm:$0x3f]
    %v948 = vpack.c.bf16 %v921, %v920
    %v949 = vpack.c.bf16 %v923, %v922
    %v950 = vpack.c.bf16 %v925, %v924
    %v951 = vpack.c.bf16 %v927, %v926
    %v952 = vpack.c.bf16 %v929, %v928
    %v953 = vpack.c.bf16 %v931, %v930
    %v954 = vpack.c.bf16 %v933, %v932
    %v955 = vpack.c.bf16 %v935, %v934
    %v956 = vpack.c.bf16 %v937, %v936
    %v957 = vpack.c.bf16 %v939, %v938
    %v958 = vpack.c.bf16 %v941, %v940
    %v959 = vpack.c.bf16 %v943, %v942
    %v960 = vpack.c.bf16 %v945, %v944
    %v961 = vpack.c.bf16 %v947, %v946
    %s962 = scalar_lea.vmem %s1, 192
    %v963 = vld [vmem:[%s962] sm:$0xf]
    %v964 = vld [vmem:[%s962 + $0x4] sm:$0xf]
    %v965 = vld [vmem:[%s962 + $0x8] sm:$0xf]
    %v966 = vld [vmem:[%s962 + $0xc] sm:$0xf]
    %v967 = vld [vmem:[%s962 + $0x10] sm:$0xf]
    %v968 = vld [vmem:[%s962 + $0x14] sm:$0xf]
    %v969 = vld [vmem:[%s962 + $0x18] sm:$0xf]
    %v970 = vld [vmem:[%s962 + $0x1c] sm:$0xf]
    %v971 = vld [vmem:[%s962 + $0x20] sm:$0xf]
    %v972 = vld [vmem:[%s962 + $0x24] sm:$0xf]
    %v973 = vld [vmem:[%s962 + $0x28] sm:$0xf]
    %v974 = vld [vmem:[%s962 + $0x2c] sm:$0xf]
    %v975 = vld [vmem:[%s962 + $0x30] sm:$0xf]
    %v976 = vld [vmem:[%s962 + $0x34] sm:$0xf]
    %v977 = vld [vmem:[%s962 + $0x38] sm:$0xf]
    %v978 = vld [vmem:[%s962 + $0x3c] sm:$0xf]
    %v995 = vunpack.c.l.b16 %v963
    %v996 = vunpack.c.l.b16 %v964
    %v997 = vunpack.c.l.b16 %v965
    %v998 = vunpack.c.l.b16 %v966
    %v999 = vunpack.c.l.b16 %v967
    %v1000 = vunpack.c.l.b16 %v968
    %v1001 = vunpack.c.l.b16 %v969
    %v1002 = vunpack.c.l.b16 %v970
    %v1003 = vunpack.c.l.b16 %v971
    %v1004 = vunpack.c.l.b16 %v972
    %v1005 = vunpack.c.l.b16 %v973
    %v1006 = vunpack.c.l.b16 %v974
    %v1007 = vunpack.c.l.b16 %v975
    %v1008 = vunpack.c.l.b16 %v976
    %v1009 = vunpack.c.l.b16 %v977
    %v1010 = vunpack.c.l.b16 %v978
    %v1011 = vpack.c.b16 %v996, %v995
    %v1012 = vpack.c.b16 %v998, %v997
    %v1013 = vpack.c.b16 %v1000, %v999
    %v1014 = vpack.c.b16 %v1002, %v1001
    %v1015 = vpack.c.b16 %v1004, %v1003
    %v1016 = vpack.c.b16 %v1006, %v1005
    %v1017 = vpack.c.b16 %v1008, %v1007
    %v1018 = vpack.c.b16 %v1010, %v1009
    %1027 = vmatprep.subr.bf16.mxu0 0
    %1028 = vmatpush1.bf16.msra.mxu0 %v1011
    %1029 = vmatprep.subr.bf16.mxu0 0
    %1030 = vmatpush1.bf16.msra.mxu0 %v1012
    %1031 = vmatprep.subr.bf16.mxu0 0
    %1032 = vmatpush1.bf16.msra.mxu0 %v1013
    %1033 = vmatprep.subr.bf16.mxu0 0
    %1034 = vmatpush1.bf16.msra.mxu0 %v1014
    %1035 = vmatprep.subr.bf16.mxu0 0
    %1036 = vmatpush1.bf16.msra.mxu0 %v1015
    %1037 = vmatprep.subr.bf16.mxu0 0
    %1038 = vmatpush1.bf16.msra.mxu0 %v1016
    %1039 = vmatprep.subr.bf16.mxu0 0
    %1040 = vmatpush1.bf16.msra.mxu0 %v1017
    %1041 = vmatprep.subr.bf16.mxu0 0
    %1042 = vmatpush1.bf16.msra.mxu0 %v1018
    %1043 = vmatprep.subr.bf16.mxu0 0
    %1044 = vmatpush1.bf16.msra.mxu0 0
    %1045 = vmatprep.subr.bf16.mxu0 0
    %1046 = vmatpush1.bf16.msra.mxu0 0
    %1047 = vmatprep.subr.bf16.mxu0 0
    %1048 = vmatpush1.bf16.msra.mxu0 0
    %1049 = vmatprep.subr.bf16.mxu0 0
    %1050 = vmatpush1.bf16.msra.mxu0 0
    %1051 = vmatprep.subr.bf16.mxu0 0
    %1052 = vmatpush1.bf16.msra.mxu0 0
    %1053 = vmatprep.subr.bf16.mxu0 0
    %1054 = vmatpush1.bf16.msra.mxu0 0
    %1055 = vmatprep.subr.bf16.mxu0 0
    %1056 = vmatpush1.bf16.msra.mxu0 0
    %1057 = vmatprep.subr.bf16.mxu0 0
    %1058 = vmatpush1.bf16.msra.mxu0 0
    %1059 = vmatprep.mubr.bf16.mxu0 0
    %1060 = vmatmul.mubr.bf16.gmra.mrb[0].mxu0 %v948
    %v1061 = vpop.f32.mrb[0].mxu0
    %v1062 = vadd.f32 0.0, %v1061
    %v1063 = vpop.f32.mrb[0].mxu0
    %v1064 = vpop.f32.mrb[0].mxu0
    %v1065 = vadd.f32 0.0, %v1064
    %v1066 = vpop.f32.mrb[0].mxu0
    %1067 = vmatprep.mubr.bf16.mxu0 0
    %1068 = vmatmul.mubr.bf16.gmra.mrb[0].mxu0 %v949
    %v1069 = vpop.f32.mrb[0].mxu0
    %v1070 = vadd.f32 0.0, %v1069
    %v1071 = vpop.f32.mrb[0].mxu0
    %v1072 = vpop.f32.mrb[0].mxu0
    %v1073 = vadd.f32 0.0, %v1072
    %v1074 = vpop.f32.mrb[0].mxu0
    %1075 = vmatprep.mubr.bf16.mxu0 0
    %1076 = vmatmul.mubr.bf16.gmra.mrb[0].mxu0 %v950
    %v1077 = vpop.f32.mrb[0].mxu0
    %v1078 = vadd.f32 0.0, %v1077
    %v1079 = vpop.f32.mrb[0].mxu0
    %v1080 = vpop.f32.mrb[0].mxu0
    %v1081 = vadd.f32 0.0, %v1080
    %v1082 = vpop.f32.mrb[0].mxu0
    %1083 = vmatprep.mubr.bf16.mxu0 0
    %1084 = vmatmul.mubr.bf16.gmra.mrb[0].mxu0 %v951
    %v1085 = vpop.f32.mrb[0].mxu0
    %v1086 = vadd.f32 0.0, %v1085
    %v1087 = vpop.f32.mrb[0].mxu0
    %v1088 = vpop.f32.mrb[0].mxu0
    %v1089 = vadd.f32 0.0, %v1088
    %v1090 = vpop.f32.mrb[0].mxu0
    %1091 = vmatprep.mubr.bf16.mxu0 0
    %1092 = vmatmul.mubr.bf16.gmra.mrb[0].mxu0 %v952
    %v1093 = vpop.f32.mrb[0].mxu0
    %v1094 = vadd.f32 0.0, %v1093
    %v1095 = vpop.f32.mrb[0].mxu0
    %v1096 = vpop.f32.mrb[0].mxu0
    %v1097 = vadd.f32 0.0, %v1096
    %v1098 = vpop.f32.mrb[0].mxu0
    %1099 = vmatprep.mubr.bf16.mxu0 0
    %1100 = vmatmul.mubr.bf16.gmra.mrb[0].mxu0 %v953
    %v1101 = vpop.f32.mrb[0].mxu0
    %v1102 = vadd.f32 0.0, %v1101
    %v1103 = vpop.f32.mrb[0].mxu0
    %v1104 = vpop.f32.mrb[0].mxu0
    %v1105 = vadd.f32 0.0, %v1104
    %v1106 = vpop.f32.mrb[0].mxu0
    %1107 = vmatprep.mubr.bf16.mxu0 0
    %1108 = vmatmul.mubr.bf16.gmra.mrb[0].mxu0 %v954
    %v1109 = vpop.f32.mrb[0].mxu0
    %v1110 = vadd.f32 0.0, %v1109
    %v1111 = vpop.f32.mrb[0].mxu0
    %v1112 = vpop.f32.mrb[0].mxu0
    %v1113 = vadd.f32 0.0, %v1112
    %v1114 = vpop.f32.mrb[0].mxu0
    %1115 = vmatprep.mubr.bf16.mxu0 0
    %1116 = vmatmul.mubr.bf16.gmra.mrb[0].mxu0 %v955
    %v1117 = vpop.f32.mrb[0].mxu0
    %v1118 = vadd.f32 0.0, %v1117
    %v1119 = vpop.f32.mrb[0].mxu0
    %v1120 = vpop.f32.mrb[0].mxu0
    %v1121 = vadd.f32 0.0, %v1120
    %v1122 = vpop.f32.mrb[0].mxu0
    %1123 = vmatprep.mubr.bf16.mxu0 0
    %1124 = vmatmul.mubr.bf16.gmra.mrb[0].mxu0 %v956
    %v1125 = vpop.f32.mrb[0].mxu0
    %v1126 = vadd.f32 0.0, %v1125
    %v1127 = vpop.f32.mrb[0].mxu0
    %v1128 = vpop.f32.mrb[0].mxu0
    %v1129 = vadd.f32 0.0, %v1128
    %v1130 = vpop.f32.mrb[0].mxu0
    %1131 = vmatprep.mubr.bf16.mxu0 0
    %1132 = vmatmul.mubr.bf16.gmra.mrb[0].mxu0 %v957
    %v1133 = vpop.f32.mrb[0].mxu0
    %v1134 = vadd.f32 0.0, %v1133
    %v1135 = vpop.f32.mrb[0].mxu0
    %v1136 = vpop.f32.mrb[0].mxu0
    %v1137 = vadd.f32 0.0, %v1136
    %v1138 = vpop.f32.mrb[0].mxu0
    %1139 = vmatprep.mubr.bf16.mxu0 0
    %1140 = vmatmul.mubr.bf16.gmra.mrb[0].mxu0 %v958
    %v1141 = vpop.f32.mrb[0].mxu0
    %v1142 = vadd.f32 0.0, %v1141
    %v1143 = vpop.f32.mrb[0].mxu0
    %v1144 = vpop.f32.mrb[0].mxu0
    %v1145 = vadd.f32 0.0, %v1144
    %v1146 = vpop.f32.mrb[0].mxu0
    %1147 = vmatprep.mubr.bf16.mxu0 0
    %1148 = vmatmul.mubr.bf16.gmra.mrb[0].mxu0 %v959
    %v1149 = vpop.f32.mrb[0].mxu0
    %v1150 = vadd.f32 0.0, %v1149
    %v1151 = vpop.f32.mrb[0].mxu0
    %v1152 = vpop.f32.mrb[0].mxu0
    %v1153 = vadd.f32 0.0, %v1152
    %v1154 = vpop.f32.mrb[0].mxu0
    %1155 = vmatprep.mubr.bf16.mxu0 0
    %1156 = vmatmul.mubr.bf16.gmra.mrb[0].mxu0 %v960
    %v1157 = vpop.f32.mrb[0].mxu0
    %v1158 = vadd.f32 0.0, %v1157
    %v1159 = vpop.f32.mrb[0].mxu0
    %v1160 = vpop.f32.mrb[0].mxu0
    %v1161 = vadd.f32 0.0, %v1160
    %v1162 = vpop.f32.mrb[0].mxu0
    %1163 = vmatprep.mubr.bf16.mxu0 0
    %1164 = vmatmul.mubr.bf16.gmra.mrb[0].mxu0 %v961
    %v1165 = vpop.f32.mrb[0].mxu0
    %v1166 = vadd.f32 0.0, %v1165
    %v1167 = vpop.f32.mrb[0].mxu0
    %v1168 = vpop.f32.mrb[0].mxu0
    %v1169 = vadd.f32 0.0, %v1168
    %v1170 = vpop.f32.mrb[0].mxu0
    %1171 = vdwg.mxu0
    %v1172 = vadd.f32 %v892, %v1062
    %v1173 = vadd.f32 %v893, %v1065
    %v1174 = vadd.f32 %v894, %v1070
    %v1175 = vadd.f32 %v895, %v1073
    %v1176 = vadd.f32 %v896, %v1078
    %v1177 = vadd.f32 %v897, %v1081
    %v1178 = vadd.f32 %v898, %v1086
    %v1179 = vadd.f32 %v899, %v1089
    %v1180 = vadd.f32 %v900, %v1094
    %v1181 = vadd.f32 %v901, %v1097
    %v1182 = vadd.f32 %v902, %v1102
    %v1183 = vadd.f32 %v903, %v1105
    %v1184 = vadd.f32 %v904, %v1110
    %v1185 = vadd.f32 %v905, %v1113
    %v1186 = vadd.f32 %v906, %v1118
    %v1187 = vadd.f32 %v907, %v1121
    %v1188 = vadd.f32 %v908, %v1126
    %v1189 = vadd.f32 %v909, %v1129
    %v1190 = vadd.f32 %v910, %v1134
    %v1191 = vadd.f32 %v911, %v1137
    %v1192 = vadd.f32 %v912, %v1142
    %v1193 = vadd.f32 %v913, %v1145
    %v1194 = vadd.f32 %v914, %v1150
    %v1195 = vadd.f32 %v915, %v1153
    %v1196 = vadd.f32 %v916, %v1158
    %v1197 = vadd.f32 %v917, %v1161
    %v1198 = vadd.f32 %v918, %v1166
    %v1199 = vadd.f32 %v919, %v1169
    %v1200 = vld [vmem:[%s0 + $0x11] sm:$0xff]
    %v1201 = vld [vmem:[%s0 + $0x19] sm:$0xff]
    %v1202 = vld [vmem:[%s0 + $0x21] sm:$0xff]
    %v1203 = vld [vmem:[%s0 + $0x29] sm:$0xff]
    %v1204 = vld [vmem:[%s0 + $0x31] sm:$0xff]
    %v1205 = vld [vmem:[%s0 + $0x39] sm:$0xff]
    %v1206 = vld [vmem:[%s0 + $0x41] sm:$0xff]
    %v1207 = vld [vmem:[%s0 + $0x49] sm:$0xff]
    %v1208 = vld [vmem:[%s0 + $0x51] sm:$0xff]
    %v1209 = vld [vmem:[%s0 + $0x59] sm:$0xff]
    %v1210 = vld [vmem:[%s0 + $0x61] sm:$0xff]
    %v1211 = vld [vmem:[%s0 + $0x69] sm:$0xff]
    %v1212 = vld [vmem:[%s0 + $0x71] sm:$0xff]
    %v1213 = vld [vmem:[%s0 + $0x79] sm:$0xff]
    %v1214 = vld [vmem:[%s0 + $0x81] sm:$0xff]
    %v1215 = vld [vmem:[%s0 + $0x89] sm:$0xff]
    %v1216 = vld [vmem:[%s0 + $0x91] sm:$0xff]
    %v1217 = vld [vmem:[%s0 + $0x99] sm:$0xff]
    %v1218 = vld [vmem:[%s0 + $0xa1] sm:$0xff]
    %v1219 = vld [vmem:[%s0 + $0xa9] sm:$0xff]
    %v1220 = vld [vmem:[%s0 + $0xb1] sm:$0xff]
    %v1221 = vld [vmem:[%s0 + $0xb9] sm:$0xff]
    %v1222 = vld [vmem:[%s0 + $0xc1] sm:$0xff]
    %v1223 = vld [vmem:[%s0 + $0xc9] sm:$0xff]
    %v1224 = vld [vmem:[%s0 + $0xd1] sm:$0xff]
    %v1225 = vld [vmem:[%s0 + $0xd9] sm:$0xff]
    %v1226 = vld [vmem:[%s0 + $0xe1] sm:$0xff]
    %v1227 = vld [vmem:[%s0 + $0xe9] sm:$0x3f]
    %v1228 = vpack.c.bf16 %v1201, %v1200
    %v1229 = vpack.c.bf16 %v1203, %v1202
    %v1230 = vpack.c.bf16 %v1205, %v1204
    %v1231 = vpack.c.bf16 %v1207, %v1206
    %v1232 = vpack.c.bf16 %v1209, %v1208
    %v1233 = vpack.c.bf16 %v1211, %v1210
    %v1234 = vpack.c.bf16 %v1213, %v1212
    %v1235 = vpack.c.bf16 %v1215, %v1214
    %v1236 = vpack.c.bf16 %v1217, %v1216
    %v1237 = vpack.c.bf16 %v1219, %v1218
    %v1238 = vpack.c.bf16 %v1221, %v1220
    %v1239 = vpack.c.bf16 %v1223, %v1222
    %v1240 = vpack.c.bf16 %v1225, %v1224
    %v1241 = vpack.c.bf16 %v1227, %v1226
    %s1242 = scalar_lea.vmem %s1, 256
    %v1243 = vld [vmem:[%s1242] sm:$0xf]
    %v1244 = vld [vmem:[%s1242 + $0x4] sm:$0xf]
    %v1245 = vld [vmem:[%s1242 + $0x8] sm:$0xf]
    %v1246 = vld [vmem:[%s1242 + $0xc] sm:$0xf]
    %v1247 = vld [vmem:[%s1242 + $0x10] sm:$0xf]
    %v1248 = vld [vmem:[%s1242 + $0x14] sm:$0xf]
    %v1249 = vld [vmem:[%s1242 + $0x18] sm:$0xf]
    %v1250 = vld [vmem:[%s1242 + $0x1c] sm:$0xf]
    %v1251 = vld [vmem:[%s1242 + $0x20] sm:$0xf]
    %v1252 = vld [vmem:[%s1242 + $0x24] sm:$0xf]
    %v1253 = vld [vmem:[%s1242 + $0x28] sm:$0xf]
    %v1254 = vld [vmem:[%s1242 + $0x2c] sm:$0xf]
    %v1255 = vld [vmem:[%s1242 + $0x30] sm:$0xf]
    %v1256 = vld [vmem:[%s1242 + $0x34] sm:$0xf]
    %v1257 = vld [vmem:[%s1242 + $0x38] sm:$0xf]
    %v1258 = vld [vmem:[%s1242 + $0x3c] sm:$0xf]
    %v1275 = vunpack.c.l.b16 %v1243
    %v1276 = vunpack.c.l.b16 %v1244
    %v1277 = vunpack.c.l.b16 %v1245
    %v1278 = vunpack.c.l.b16 %v1246
    %v1279 = vunpack.c.l.b16 %v1247
    %v1280 = vunpack.c.l.b16 %v1248
    %v1281 = vunpack.c.l.b16 %v1249
    %v1282 = vunpack.c.l.b16 %v1250
    %v1283 = vunpack.c.l.b16 %v1251
    %v1284 = vunpack.c.l.b16 %v1252
    %v1285 = vunpack.c.l.b16 %v1253
    %v1286 = vunpack.c.l.b16 %v1254
    %v1287 = vunpack.c.l.b16 %v1255
    %v1288 = vunpack.c.l.b16 %v1256
    %v1289 = vunpack.c.l.b16 %v1257
    %v1290 = vunpack.c.l.b16 %v1258
    %v1291 = vpack.c.b16 %v1276, %v1275
    %v1292 = vpack.c.b16 %v1278, %v1277
    %v1293 = vpack.c.b16 %v1280, %v1279
    %v1294 = vpack.c.b16 %v1282, %v1281
    %v1295 = vpack.c.b16 %v1284, %v1283
    %v1296 = vpack.c.b16 %v1286, %v1285
    %v1297 = vpack.c.b16 %v1288, %v1287
    %v1298 = vpack.c.b16 %v1290, %v1289
    %1307 = vmatprep.subr.bf16.mxu0 0
    %1308 = vmatpush1.bf16.msra.mxu0 %v1291
    %1309 = vmatprep.subr.bf16.mxu0 0
    %1310 = vmatpush1.bf16.msra.mxu0 %v1292
    %1311 = vmatprep.subr.bf16.mxu0 0
    %1312 = vmatpush1.bf16.msra.mxu0 %v1293
    %1313 = vmatprep.subr.bf16.mxu0 0
    %1314 = vmatpush1.bf16.msra.mxu0 %v1294
    %1315 = vmatprep.subr.bf16.mxu0 0
    %1316 = vmatpush1.bf16.msra.mxu0 %v1295
    %1317 = vmatprep.subr.bf16.mxu0 0
    %1318 = vmatpush1.bf16.msra.mxu0 %v1296
    %1319 = vmatprep.subr.bf16.mxu0 0
    %1320 = vmatpush1.bf16.msra.mxu0 %v1297
    %1321 = vmatprep.subr.bf16.mxu0 0
    %1322 = vmatpush1.bf16.msra.mxu0 %v1298
    %1323 = vmatprep.subr.bf16.mxu0 0
    %1324 = vmatpush1.bf16.msra.mxu0 0
    %1325 = vmatprep.subr.bf16.mxu0 0
    %1326 = vmatpush1.bf16.msra.mxu0 0
    %1327 = vmatprep.subr.bf16.mxu0 0
    %1328 = vmatpush1.bf16.msra.mxu0 0
    %1329 = vmatprep.subr.bf16.mxu0 0
    %1330 = vmatpush1.bf16.msra.mxu0 0
    %1331 = vmatprep.subr.bf16.mxu0 0
    %1332 = vmatpush1.bf16.msra.mxu0 0
    %1333 = vmatprep.subr.bf16.mxu0 0
    %1334 = vmatpush1.bf16.msra.mxu0 0
    %1335 = vmatprep.subr.bf16.mxu0 0
    %1336 = vmatpush1.bf16.msra.mxu0 0
    %1337 = vmatprep.subr.bf16.mxu0 0
    %1338 = vmatpush1.bf16.msra.mxu0 0
    %1339 = vmatprep.mubr.bf16.mxu0 0
    %1340 = vmatmul.mubr.bf16.gmra.mrb[0].mxu0 %v1228
    %v1341 = vpop.f32.mrb[0].mxu0
    %v1342 = vadd.f32 0.0, %v1341
    %v1343 = vpop.f32.mrb[0].mxu0
    %v1344 = vpop.f32.mrb[0].mxu0
    %v1345 = vadd.f32 0.0, %v1344
    %v1346 = vpop.f32.mrb[0].mxu0
    %1347 = vmatprep.mubr.bf16.mxu0 0
    %1348 = vmatmul.mubr.bf16.gmra.mrb[0].mxu0 %v1229
    %v1349 = vpop.f32.mrb[0].mxu0
    %v1350 = vadd.f32 0.0, %v1349
    %v1351 = vpop.f32.mrb[0].mxu0
    %v1352 = vpop.f32.mrb[0].mxu0
    %v1353 = vadd.f32 0.0, %v1352
    %v1354 = vpop.f32.mrb[0].mxu0
    %1355 = vmatprep.mubr.bf16.mxu0 0
    %1356 = vmatmul.mubr.bf16.gmra.mrb[0].mxu0 %v1230
    %v1357 = vpop.f32.mrb[0].mxu0
    %v1358 = vadd.f32 0.0, %v1357
    %v1359 = vpop.f32.mrb[0].mxu0
    %v1360 = vpop.f32.mrb[0].mxu0
    %v1361 = vadd.f32 0.0, %v1360
    %v1362 = vpop.f32.mrb[0].mxu0
    %1363 = vmatprep.mubr.bf16.mxu0 0
    %1364 = vmatmul.mubr.bf16.gmra.mrb[0].mxu0 %v1231
    %v1365 = vpop.f32.mrb[0].mxu0
    %v1366 = vadd.f32 0.0, %v1365
    %v1367 = vpop.f32.mrb[0].mxu0
    %v1368 = vpop.f32.mrb[0].mxu0
    %v1369 = vadd.f32 0.0, %v1368
    %v1370 = vpop.f32.mrb[0].mxu0
    %1371 = vmatprep.mubr.bf16.mxu0 0
    %1372 = vmatmul.mubr.bf16.gmra.mrb[0].mxu0 %v1232
    %v1373 = vpop.f32.mrb[0].mxu0
    %v1374 = vadd.f32 0.0, %v1373
    %v1375 = vpop.f32.mrb[0].mxu0
    %v1376 = vpop.f32.mrb[0].mxu0
    %v1377 = vadd.f32 0.0, %v1376
    %v1378 = vpop.f32.mrb[0].mxu0
    %1379 = vmatprep.mubr.bf16.mxu0 0
    %1380 = vmatmul.mubr.bf16.gmra.mrb[0].mxu0 %v1233
    %v1381 = vpop.f32.mrb[0].mxu0
    %v1382 = vadd.f32 0.0, %v1381
    %v1383 = vpop.f32.mrb[0].mxu0
    %v1384 = vpop.f32.mrb[0].mxu0
    %v1385 = vadd.f32 0.0, %v1384
    %v1386 = vpop.f32.mrb[0].mxu0
    %1387 = vmatprep.mubr.bf16.mxu0 0
    %1388 = vmatmul.mubr.bf16.gmra.mrb[0].mxu0 %v1234
    %v1389 = vpop.f32.mrb[0].mxu0
    %v1390 = vadd.f32 0.0, %v1389
    %v1391 = vpop.f32.mrb[0].mxu0
    %v1392 = vpop.f32.mrb[0].mxu0
    %v1393 = vadd.f32 0.0, %v1392
    %v1394 = vpop.f32.mrb[0].mxu0
    %1395 = vmatprep.mubr.bf16.mxu0 0
    %1396 = vmatmul.mubr.bf16.gmra.mrb[0].mxu0 %v1235
    %v1397 = vpop.f32.mrb[0].mxu0
    %v1398 = vadd.f32 0.0, %v1397
    %v1399 = vpop.f32.mrb[0].mxu0
    %v1400 = vpop.f32.mrb[0].mxu0
    %v1401 = vadd.f32 0.0, %v1400
    %v1402 = vpop.f32.mrb[0].mxu0
    %1403 = vmatprep.mubr.bf16.mxu0 0
    %1404 = vmatmul.mubr.bf16.gmra.mrb[0].mxu0 %v1236
    %v1405 = vpop.f32.mrb[0].mxu0
    %v1406 = vadd.f32 0.0, %v1405
    %v1407 = vpop.f32.mrb[0].mxu0
    %v1408 = vpop.f32.mrb[0].mxu0
    %v1409 = vadd.f32 0.0, %v1408
    %v1410 = vpop.f32.mrb[0].mxu0
    %1411 = vmatprep.mubr.bf16.mxu0 0
    %1412 = vmatmul.mubr.bf16.gmra.mrb[0].mxu0 %v1237
    %v1413 = vpop.f32.mrb[0].mxu0
    %v1414 = vadd.f32 0.0, %v1413
    %v1415 = vpop.f32.mrb[0].mxu0
    %v1416 = vpop.f32.mrb[0].mxu0
    %v1417 = vadd.f32 0.0, %v1416
    %v1418 = vpop.f32.mrb[0].mxu0
    %1419 = vmatprep.mubr.bf16.mxu0 0
    %1420 = vmatmul.mubr.bf16.gmra.mrb[0].mxu0 %v1238
    %v1421 = vpop.f32.mrb[0].mxu0
    %v1422 = vadd.f32 0.0, %v1421
    %v1423 = vpop.f32.mrb[0].mxu0
    %v1424 = vpop.f32.mrb[0].mxu0
    %v1425 = vadd.f32 0.0, %v1424
    %v1426 = vpop.f32.mrb[0].mxu0
    %1427 = vmatprep.mubr.bf16.mxu0 0
    %1428 = vmatmul.mubr.bf16.gmra.mrb[0].mxu0 %v1239
    %v1429 = vpop.f32.mrb[0].mxu0
    %v1430 = vadd.f32 0.0, %v1429
    %v1431 = vpop.f32.mrb[0].mxu0
    %v1432 = vpop.f32.mrb[0].mxu0
    %v1433 = vadd.f32 0.0, %v1432
    %v1434 = vpop.f32.mrb[0].mxu0
    %1435 = vmatprep.mubr.bf16.mxu0 0
    %1436 = vmatmul.mubr.bf16.gmra.mrb[0].mxu0 %v1240
    %v1437 = vpop.f32.mrb[0].mxu0
    %v1438 = vadd.f32 0.0, %v1437
    %v1439 = vpop.f32.mrb[0].mxu0
    %v1440 = vpop.f32.mrb[0].mxu0
    %v1441 = vadd.f32 0.0, %v1440
    %v1442 = vpop.f32.mrb[0].mxu0
    %1443 = vmatprep.mubr.bf16.mxu0 0
    %1444 = vmatmul.mubr.bf16.gmra.mrb[0].mxu0 %v1241
    %v1445 = vpop.f32.mrb[0].mxu0
    %v1446 = vadd.f32 0.0, %v1445
    %v1447 = vpop.f32.mrb[0].mxu0
    %v1448 = vpop.f32.mrb[0].mxu0
    %v1449 = vadd.f32 0.0, %v1448
    %v1450 = vpop.f32.mrb[0].mxu0
    %1451 = vdwg.mxu0
    %v1452 = vadd.f32 %v1172, %v1342
    %v1453 = vadd.f32 %v1173, %v1345
    %v1454 = vadd.f32 %v1174, %v1350
    %v1455 = vadd.f32 %v1175, %v1353
    %v1456 = vadd.f32 %v1176, %v1358
    %v1457 = vadd.f32 %v1177, %v1361
    %v1458 = vadd.f32 %v1178, %v1366
    %v1459 = vadd.f32 %v1179, %v1369
    %v1460 = vadd.f32 %v1180, %v1374
    %v1461 = vadd.f32 %v1181, %v1377
    %v1462 = vadd.f32 %v1182, %v1382
    %v1463 = vadd.f32 %v1183, %v1385
    %v1464 = vadd.f32 %v1184, %v1390
    %v1465 = vadd.f32 %v1185, %v1393
    %v1466 = vadd.f32 %v1186, %v1398
    %v1467 = vadd.f32 %v1187, %v1401
    %v1468 = vadd.f32 %v1188, %v1406
    %v1469 = vadd.f32 %v1189, %v1409
    %v1470 = vadd.f32 %v1190, %v1414
    %v1471 = vadd.f32 %v1191, %v1417
    %v1472 = vadd.f32 %v1192, %v1422
    %v1473 = vadd.f32 %v1193, %v1425
    %v1474 = vadd.f32 %v1194, %v1430
    %v1475 = vadd.f32 %v1195, %v1433
    %v1476 = vadd.f32 %v1196, %v1438
    %v1477 = vadd.f32 %v1197, %v1441
    %v1478 = vadd.f32 %v1198, %v1446
    %v1479 = vadd.f32 %v1199, %v1449
    %v1480 = vld [vmem:[%s0 + $0x12] sm:$0xff]
    %v1481 = vld [vmem:[%s0 + $0x1a] sm:$0xff]
    %v1482 = vld [vmem:[%s0 + $0x22] sm:$0xff]
    %v1483 = vld [vmem:[%s0 + $0x2a] sm:$0xff]
    %v1484 = vld [vmem:[%s0 + $0x32] sm:$0xff]
    %v1485 = vld [vmem:[%s0 + $0x3a] sm:$0xff]
    %v1486 = vld [vmem:[%s0 + $0x42] sm:$0xff]
    %v1487 = vld [vmem:[%s0 + $0x4a] sm:$0xff]
    %v1488 = vld [vmem:[%s0 + $0x52] sm:$0xff]
    %v1489 = vld [vmem:[%s0 + $0x5a] sm:$0xff]
    %v1490 = vld [vmem:[%s0 + $0x62] sm:$0xff]
    %v1491 = vld [vmem:[%s0 + $0x6a] sm:$0xff]
    %v1492 = vld [vmem:[%s0 + $0x72] sm:$0xff]
    %v1493 = vld [vmem:[%s0 + $0x7a] sm:$0xff]
    %v1494 = vld [vmem:[%s0 + $0x82] sm:$0xff]
    %v1495 = vld [vmem:[%s0 + $0x8a] sm:$0xff]
    %v1496 = vld [vmem:[%s0 + $0x92] sm:$0xff]
    %v1497 = vld [vmem:[%s0 + $0x9a] sm:$0xff]
    %v1498 = vld [vmem:[%s0 + $0xa2] sm:$0xff]
    %v1499 = vld [vmem:[%s0 + $0xaa] sm:$0xff]
    %v1500 = vld [vmem:[%s0 + $0xb2] sm:$0xff]
    %v1501 = vld [vmem:[%s0 + $0xba] sm:$0xff]
    %v1502 = vld [vmem:[%s0 + $0xc2] sm:$0xff]
    %v1503 = vld [vmem:[%s0 + $0xca] sm:$0xff]
    %v1504 = vld [vmem:[%s0 + $0xd2] sm:$0xff]
    %v1505 = vld [vmem:[%s0 + $0xda] sm:$0xff]
    %v1506 = vld [vmem:[%s0 + $0xe2] sm:$0xff]
    %v1507 = vld [vmem:[%s0 + $0xea] sm:$0x3f]
    %v1508 = vpack.c.bf16 %v1481, %v1480
    %v1509 = vpack.c.bf16 %v1483, %v1482
    %v1510 = vpack.c.bf16 %v1485, %v1484
    %v1511 = vpack.c.bf16 %v1487, %v1486
    %v1512 = vpack.c.bf16 %v1489, %v1488
    %v1513 = vpack.c.bf16 %v1491, %v1490
    %v1514 = vpack.c.bf16 %v1493, %v1492
    %v1515 = vpack.c.bf16 %v1495, %v1494
    %v1516 = vpack.c.bf16 %v1497, %v1496
    %v1517 = vpack.c.bf16 %v1499, %v1498
    %v1518 = vpack.c.bf16 %v1501, %v1500
    %v1519 = vpack.c.bf16 %v1503, %v1502
    %v1520 = vpack.c.bf16 %v1505, %v1504
    %v1521 = vpack.c.bf16 %v1507, %v1506
    %s1522 = scalar_lea.vmem %s1, 320
    %v1523 = vld [vmem:[%s1522] sm:$0xf]
    %v1524 = vld [vmem:[%s1522 + $0x4] sm:$0xf]
    %v1525 = vld [vmem:[%s1522 + $0x8] sm:$0xf]
    %v1526 = vld [vmem:[%s1522 + $0xc] sm:$0xf]
    %v1527 = vld [vmem:[%s1522 + $0x10] sm:$0xf]
    %v1528 = vld [vmem:[%s1522 + $0x14] sm:$0xf]
    %v1529 = vld [vmem:[%s1522 + $0x18] sm:$0xf]
    %v1530 = vld [vmem:[%s1522 + $0x1c] sm:$0xf]
    %v1531 = vld [vmem:[%s1522 + $0x20] sm:$0xf]
    %v1532 = vld [vmem:[%s1522 + $0x24] sm:$0xf]
    %v1533 = vld [vmem:[%s1522 + $0x28] sm:$0xf]
    %v1534 = vld [vmem:[%s1522 + $0x2c] sm:$0xf]
    %v1535 = vld [vmem:[%s1522 + $0x30] sm:$0xf]
    %v1536 = vld [vmem:[%s1522 + $0x34] sm:$0xf]
    %v1537 = vld [vmem:[%s1522 + $0x38] sm:$0xf]
    %v1538 = vld [vmem:[%s1522 + $0x3c] sm:$0xf]
    %v1555 = vunpack.c.l.b16 %v1523
    %v1556 = vunpack.c.l.b16 %v1524
    %v1557 = vunpack.c.l.b16 %v1525
    %v1558 = vunpack.c.l.b16 %v1526
    %v1559 = vunpack.c.l.b16 %v1527
    %v1560 = vunpack.c.l.b16 %v1528
    %v1561 = vunpack.c.l.b16 %v1529
    %v1562 = vunpack.c.l.b16 %v1530
    %v1563 = vunpack.c.l.b16 %v1531
    %v1564 = vunpack.c.l.b16 %v1532
    %v1565 = vunpack.c.l.b16 %v1533
    %v1566 = vunpack.c.l.b16 %v1534
    %v1567 = vunpack.c.l.b16 %v1535
    %v1568 = vunpack.c.l.b16 %v1536
    %v1569 = vunpack.c.l.b16 %v1537
    %v1570 = vunpack.c.l.b16 %v1538
    %v1571 = vpack.c.b16 %v1556, %v1555
    %v1572 = vpack.c.b16 %v1558, %v1557
    %v1573 = vpack.c.b16 %v1560, %v1559
    %v1574 = vpack.c.b16 %v1562, %v1561
    %v1575 = vpack.c.b16 %v1564, %v1563
    %v1576 = vpack.c.b16 %v1566, %v1565
    %v1577 = vpack.c.b16 %v1568, %v1567
    %v1578 = vpack.c.b16 %v1570, %v1569
    %1587 = vmatprep.subr.bf16.mxu0 0
    %1588 = vmatpush1.bf16.msra.mxu0 %v1571
    %1589 = vmatprep.subr.bf16.mxu0 0
    %1590 = vmatpush1.bf16.msra.mxu0 %v1572
    %1591 = vmatprep.subr.bf16.mxu0 0
    %1592 = vmatpush1.bf16.msra.mxu0 %v1573
    %1593 = vmatprep.subr.bf16.mxu0 0
    %1594 = vmatpush1.bf16.msra.mxu0 %v1574
    %1595 = vmatprep.subr.bf16.mxu0 0
    %1596 = vmatpush1.bf16.msra.mxu0 %v1575
    %1597 = vmatprep.subr.bf16.mxu0 0
    %1598 = vmatpush1.bf16.msra.mxu0 %v1576
    %1599 = vmatprep.subr.bf16.mxu0 0
    %1600 = vmatpush1.bf16.msra.mxu0 %v1577
    %1601 = vmatprep.subr.bf16.mxu0 0
    %1602 = vmatpush1.bf16.msra.mxu0 %v1578
    %1603 = vmatprep.subr.bf16.mxu0 0
    %1604 = vmatpush1.bf16.msra.mxu0 0
    %1605 = vmatprep.subr.bf16.mxu0 0
    %1606 = vmatpush1.bf16.msra.mxu0 0
    %1607 = vmatprep.subr.bf16.mxu0 0
    %1608 = vmatpush1.bf16.msra.mxu0 0
    %1609 = vmatprep.subr.bf16.mxu0 0
    %1610 = vmatpush1.bf16.msra.mxu0 0
    %1611 = vmatprep.subr.bf16.mxu0 0
    %1612 = vmatpush1.bf16.msra.mxu0 0
    %1613 = vmatprep.subr.bf16.mxu0 0
    %1614 = vmatpush1.bf16.msra.mxu0 0
    %1615 = vmatprep.subr.bf16.mxu0 0
    %1616 = vmatpush1.bf16.msra.mxu0 0
    %1617 = vmatprep.subr.bf16.mxu0 0
    %1618 = vmatpush1.bf16.msra.mxu0 0
    %1619 = vmatprep.mubr.bf16.mxu0 0
    %1620 = vmatmul.mubr.bf16.gmra.mrb[0].mxu0 %v1508
    %v1621 = vpop.f32.mrb[0].mxu0
    %v1622 = vadd.f32 0.0, %v1621
    %v1623 = vpop.f32.mrb[0].mxu0
    %v1624 = vpop.f32.mrb[0].mxu0
    %v1625 = vadd.f32 0.0, %v1624
    %v1626 = vpop.f32.mrb[0].mxu0
    %1627 = vmatprep.mubr.bf16.mxu0 0
    %1628 = vmatmul.mubr.bf16.gmra.mrb[0].mxu0 %v1509
    %v1629 = vpop.f32.mrb[0].mxu0
    %v1630 = vadd.f32 0.0, %v1629
    %v1631 = vpop.f32.mrb[0].mxu0
    %v1632 = vpop.f32.mrb[0].mxu0
    %v1633 = vadd.f32 0.0, %v1632
    %v1634 = vpop.f32.mrb[0].mxu0
    %1635 = vmatprep.mubr.bf16.mxu0 0
    %1636 = vmatmul.mubr.bf16.gmra.mrb[0].mxu0 %v1510
    %v1637 = vpop.f32.mrb[0].mxu0
    %v1638 = vadd.f32 0.0, %v1637
    %v1639 = vpop.f32.mrb[0].mxu0
    %v1640 = vpop.f32.mrb[0].mxu0
    %v1641 = vadd.f32 0.0, %v1640
    %v1642 = vpop.f32.mrb[0].mxu0
    %1643 = vmatprep.mubr.bf16.mxu0 0
    %1644 = vmatmul.mubr.bf16.gmra.mrb[0].mxu0 %v1511
    %v1645 = vpop.f32.mrb[0].mxu0
    %v1646 = vadd.f32 0.0, %v1645
    %v1647 = vpop.f32.mrb[0].mxu0
    %v1648 = vpop.f32.mrb[0].mxu0
    %v1649 = vadd.f32 0.0, %v1648
    %v1650 = vpop.f32.mrb[0].mxu0
    %1651 = vmatprep.mubr.bf16.mxu0 0
    %1652 = vmatmul.mubr.bf16.gmra.mrb[0].mxu0 %v1512
    %v1653 = vpop.f32.mrb[0].mxu0
    %v1654 = vadd.f32 0.0, %v1653
    %v1655 = vpop.f32.mrb[0].mxu0
    %v1656 = vpop.f32.mrb[0].mxu0
    %v1657 = vadd.f32 0.0, %v1656
    %v1658 = vpop.f32.mrb[0].mxu0
    %1659 = vmatprep.mubr.bf16.mxu0 0
    %1660 = vmatmul.mubr.bf16.gmra.mrb[0].mxu0 %v1513
    %v1661 = vpop.f32.mrb[0].mxu0
    %v1662 = vadd.f32 0.0, %v1661
    %v1663 = vpop.f32.mrb[0].mxu0
    %v1664 = vpop.f32.mrb[0].mxu0
    %v1665 = vadd.f32 0.0, %v1664
    %v1666 = vpop.f32.mrb[0].mxu0
    %1667 = vmatprep.mubr.bf16.mxu0 0
    %1668 = vmatmul.mubr.bf16.gmra.mrb[0].mxu0 %v1514
    %v1669 = vpop.f32.mrb[0].mxu0
    %v1670 = vadd.f32 0.0, %v1669
    %v1671 = vpop.f32.mrb[0].mxu0
    %v1672 = vpop.f32.mrb[0].mxu0
    %v1673 = vadd.f32 0.0, %v1672
    %v1674 = vpop.f32.mrb[0].mxu0
    %1675 = vmatprep.mubr.bf16.mxu0 0
    %1676 = vmatmul.mubr.bf16.gmra.mrb[0].mxu0 %v1515
    %v1677 = vpop.f32.mrb[0].mxu0
    %v1678 = vadd.f32 0.0, %v1677
    %v1679 = vpop.f32.mrb[0].mxu0
    %v1680 = vpop.f32.mrb[0].mxu0
    %v1681 = vadd.f32 0.0, %v1680
    %v1682 = vpop.f32.mrb[0].mxu0
    %1683 = vmatprep.mubr.bf16.mxu0 0
    %1684 = vmatmul.mubr.bf16.gmra.mrb[0].mxu0 %v1516
    %v1685 = vpop.f32.mrb[0].mxu0
    %v1686 = vadd.f32 0.0, %v1685
    %v1687 = vpop.f32.mrb[0].mxu0
    %v1688 = vpop.f32.mrb[0].mxu0
    %v1689 = vadd.f32 0.0, %v1688
    %v1690 = vpop.f32.mrb[0].mxu0
    %1691 = vmatprep.mubr.bf16.mxu0 0
    %1692 = vmatmul.mubr.bf16.gmra.mrb[0].mxu0 %v1517
    %v1693 = vpop.f32.mrb[0].mxu0
    %v1694 = vadd.f32 0.0, %v1693
    %v1695 = vpop.f32.mrb[0].mxu0
    %v1696 = vpop.f32.mrb[0].mxu0
    %v1697 = vadd.f32 0.0, %v1696
    %v1698 = vpop.f32.mrb[0].mxu0
    %1699 = vmatprep.mubr.bf16.mxu0 0
    %1700 = vmatmul.mubr.bf16.gmra.mrb[0].mxu0 %v1518
    %v1701 = vpop.f32.mrb[0].mxu0
    %v1702 = vadd.f32 0.0, %v1701
    %v1703 = vpop.f32.mrb[0].mxu0
    %v1704 = vpop.f32.mrb[0].mxu0
    %v1705 = vadd.f32 0.0, %v1704
    %v1706 = vpop.f32.mrb[0].mxu0
    %1707 = vmatprep.mubr.bf16.mxu0 0
    %1708 = vmatmul.mubr.bf16.gmra.mrb[0].mxu0 %v1519
    %v1709 = vpop.f32.mrb[0].mxu0
    %v1710 = vadd.f32 0.0, %v1709
    %v1711 = vpop.f32.mrb[0].mxu0
    %v1712 = vpop.f32.mrb[0].mxu0
    %v1713 = vadd.f32 0.0, %v1712
    %v1714 = vpop.f32.mrb[0].mxu0
    %1715 = vmatprep.mubr.bf16.mxu0 0
    %1716 = vmatmul.mubr.bf16.gmra.mrb[0].mxu0 %v1520
    %v1717 = vpop.f32.mrb[0].mxu0
    %v1718 = vadd.f32 0.0, %v1717
    %v1719 = vpop.f32.mrb[0].mxu0
    %v1720 = vpop.f32.mrb[0].mxu0
    %v1721 = vadd.f32 0.0, %v1720
    %v1722 = vpop.f32.mrb[0].mxu0
    %1723 = vmatprep.mubr.bf16.mxu0 0
    %1724 = vmatmul.mubr.bf16.gmra.mrb[0].mxu0 %v1521
    %v1725 = vpop.f32.mrb[0].mxu0
    %v1726 = vadd.f32 0.0, %v1725
    %v1727 = vpop.f32.mrb[0].mxu0
    %v1728 = vpop.f32.mrb[0].mxu0
    %v1729 = vadd.f32 0.0, %v1728
    %v1730 = vpop.f32.mrb[0].mxu0
    %1731 = vdwg.mxu0
    %v1732 = vadd.f32 %v1452, %v1622
    %v1733 = vadd.f32 %v1453, %v1625
    %v1734 = vadd.f32 %v1454, %v1630
    %v1735 = vadd.f32 %v1455, %v1633
    %v1736 = vadd.f32 %v1456, %v1638
    %v1737 = vadd.f32 %v1457, %v1641
    %v1738 = vadd.f32 %v1458, %v1646
    %v1739 = vadd.f32 %v1459, %v1649
    %v1740 = vadd.f32 %v1460, %v1654
    %v1741 = vadd.f32 %v1461, %v1657
    %v1742 = vadd.f32 %v1462, %v1662
    %v1743 = vadd.f32 %v1463, %v1665
    %v1744 = vadd.f32 %v1464, %v1670
    %v1745 = vadd.f32 %v1465, %v1673
    %v1746 = vadd.f32 %v1466, %v1678
    %v1747 = vadd.f32 %v1467, %v1681
    %v1748 = vadd.f32 %v1468, %v1686
    %v1749 = vadd.f32 %v1469, %v1689
    %v1750 = vadd.f32 %v1470, %v1694
    %v1751 = vadd.f32 %v1471, %v1697
    %v1752 = vadd.f32 %v1472, %v1702
    %v1753 = vadd.f32 %v1473, %v1705
    %v1754 = vadd.f32 %v1474, %v1710
    %v1755 = vadd.f32 %v1475, %v1713
    %v1756 = vadd.f32 %v1476, %v1718
    %v1757 = vadd.f32 %v1477, %v1721
    %v1758 = vadd.f32 %v1478, %v1726
    %v1759 = vadd.f32 %v1479, %v1729
    %v1760 = vld [vmem:[%s0 + $0x20] sm:$0xff]
    %v1761 = vld [vmem:[%s0 + $0x28] sm:$0xff]
    %v1762 = vld [vmem:[%s0 + $0x30] sm:$0xff]
    %v1763 = vld [vmem:[%s0 + $0x38] sm:$0xff]
    %v1764 = vld [vmem:[%s0 + $0x40] sm:$0xff]
    %v1765 = vld [vmem:[%s0 + $0x48] sm:$0xff]
    %v1766 = vld [vmem:[%s0 + $0x50] sm:$0xff]
    %v1767 = vld [vmem:[%s0 + $0x58] sm:$0xff]
    %v1768 = vld [vmem:[%s0 + $0x60] sm:$0xff]
    %v1769 = vld [vmem:[%s0 + $0x68] sm:$0xff]
    %v1770 = vld [vmem:[%s0 + $0x70] sm:$0xff]
    %v1771 = vld [vmem:[%s0 + $0x78] sm:$0xff]
    %v1772 = vld [vmem:[%s0 + $0x80] sm:$0xff]
    %v1773 = vld [vmem:[%s0 + $0x88] sm:$0xff]
    %v1774 = vld [vmem:[%s0 + $0x90] sm:$0xff]
    %v1775 = vld [vmem:[%s0 + $0x98] sm:$0xff]
    %v1776 = vld [vmem:[%s0 + $0xa0] sm:$0xff]
    %v1777 = vld [vmem:[%s0 + $0xa8] sm:$0xff]
    %v1778 = vld [vmem:[%s0 + $0xb0] sm:$0xff]
    %v1779 = vld [vmem:[%s0 + $0xb8] sm:$0xff]
    %v1780 = vld [vmem:[%s0 + $0xc0] sm:$0xff]
    %v1781 = vld [vmem:[%s0 + $0xc8] sm:$0xff]
    %v1782 = vld [vmem:[%s0 + $0xd0] sm:$0xff]
    %v1783 = vld [vmem:[%s0 + $0xd8] sm:$0xff]
    %v1784 = vld [vmem:[%s0 + $0xe0] sm:$0xff]
    %v1785 = vld [vmem:[%s0 + $0xe8] sm:$0xff]
    %v1786 = vld [vmem:[%s0 + $0xf0] sm:$0xff]
    %v1787 = vld [vmem:[%s0 + $0xf8] sm:$0x3f]
    %v1788 = vpack.c.bf16 %v1761, %v1760
    %v1789 = vpack.c.bf16 %v1763, %v1762
    %v1790 = vpack.c.bf16 %v1765, %v1764
    %v1791 = vpack.c.bf16 %v1767, %v1766
    %v1792 = vpack.c.bf16 %v1769, %v1768
    %v1793 = vpack.c.bf16 %v1771, %v1770
    %v1794 = vpack.c.bf16 %v1773, %v1772
    %v1795 = vpack.c.bf16 %v1775, %v1774
    %v1796 = vpack.c.bf16 %v1777, %v1776
    %v1797 = vpack.c.bf16 %v1779, %v1778
    %v1798 = vpack.c.bf16 %v1781, %v1780
    %v1799 = vpack.c.bf16 %v1783, %v1782
    %v1800 = vpack.c.bf16 %v1785, %v1784
    %v1801 = vpack.c.bf16 %v1787, %v1786
    %s1802 = scalar_lea.vmem %s1, 384
    %v1803 = vld [vmem:[%s1802] sm:$0xf]
    %v1804 = vld [vmem:[%s1802 + $0x4] sm:$0xf]
    %v1805 = vld [vmem:[%s1802 + $0x8] sm:$0xf]
    %v1806 = vld [vmem:[%s1802 + $0xc] sm:$0xf]
    %v1807 = vld [vmem:[%s1802 + $0x10] sm:$0xf]
    %v1808 = vld [vmem:[%s1802 + $0x14] sm:$0xf]
    %v1809 = vld [vmem:[%s1802 + $0x18] sm:$0xf]
    %v1810 = vld [vmem:[%s1802 + $0x1c] sm:$0xf]
    %v1811 = vld [vmem:[%s1802 + $0x20] sm:$0xf]
    %v1812 = vld [vmem:[%s1802 + $0x24] sm:$0xf]
    %v1813 = vld [vmem:[%s1802 + $0x28] sm:$0xf]
    %v1814 = vld [vmem:[%s1802 + $0x2c] sm:$0xf]
    %v1815 = vld [vmem:[%s1802 + $0x30] sm:$0xf]
    %v1816 = vld [vmem:[%s1802 + $0x34] sm:$0xf]
    %v1817 = vld [vmem:[%s1802 + $0x38] sm:$0xf]
    %v1818 = vld [vmem:[%s1802 + $0x3c] sm:$0xf]
    %v1835 = vunpack.c.l.b16 %v1803
    %v1836 = vunpack.c.l.b16 %v1804
    %v1837 = vunpack.c.l.b16 %v1805
    %v1838 = vunpack.c.l.b16 %v1806
    %v1839 = vunpack.c.l.b16 %v1807
    %v1840 = vunpack.c.l.b16 %v1808
    %v1841 = vunpack.c.l.b16 %v1809
    %v1842 = vunpack.c.l.b16 %v1810
    %v1843 = vunpack.c.l.b16 %v1811
    %v1844 = vunpack.c.l.b16 %v1812
    %v1845 = vunpack.c.l.b16 %v1813
    %v1846 = vunpack.c.l.b16 %v1814
    %v1847 = vunpack.c.l.b16 %v1815
    %v1848 = vunpack.c.l.b16 %v1816
    %v1849 = vunpack.c.l.b16 %v1817
    %v1850 = vunpack.c.l.b16 %v1818
    %v1851 = vpack.c.b16 %v1836, %v1835
    %v1852 = vpack.c.b16 %v1838, %v1837
    %v1853 = vpack.c.b16 %v1840, %v1839
    %v1854 = vpack.c.b16 %v1842, %v1841
    %v1855 = vpack.c.b16 %v1844, %v1843
    %v1856 = vpack.c.b16 %v1846, %v1845
    %v1857 = vpack.c.b16 %v1848, %v1847
    %v1858 = vpack.c.b16 %v1850, %v1849
    %1867 = vmatprep.subr.bf16.mxu0 0
    %1868 = vmatpush1.bf16.msra.mxu0 %v1851
    %1869 = vmatprep.subr.bf16.mxu0 0
    %1870 = vmatpush1.bf16.msra.mxu0 %v1852
    %1871 = vmatprep.subr.bf16.mxu0 0
    %1872 = vmatpush1.bf16.msra.mxu0 %v1853
    %1873 = vmatprep.subr.bf16.mxu0 0
    %1874 = vmatpush1.bf16.msra.mxu0 %v1854
    %1875 = vmatprep.subr.bf16.mxu0 0
    %1876 = vmatpush1.bf16.msra.mxu0 %v1855
    %1877 = vmatprep.subr.bf16.mxu0 0
    %1878 = vmatpush1.bf16.msra.mxu0 %v1856
    %1879 = vmatprep.subr.bf16.mxu0 0
    %1880 = vmatpush1.bf16.msra.mxu0 %v1857
    %1881 = vmatprep.subr.bf16.mxu0 0
    %1882 = vmatpush1.bf16.msra.mxu0 %v1858
    %1883 = vmatprep.subr.bf16.mxu0 0
    %1884 = vmatpush1.bf16.msra.mxu0 0
    %1885 = vmatprep.subr.bf16.mxu0 0
    %1886 = vmatpush1.bf16.msra.mxu0 0
    %1887 = vmatprep.subr.bf16.mxu0 0
    %1888 = vmatpush1.bf16.msra.mxu0 0
    %1889 = vmatprep.subr.bf16.mxu0 0
    %1890 = vmatpush1.bf16.msra.mxu0 0
    %1891 = vmatprep.subr.bf16.mxu0 0
    %1892 = vmatpush1.bf16.msra.mxu0 0
    %1893 = vmatprep.subr.bf16.mxu0 0
    %1894 = vmatpush1.bf16.msra.mxu0 0
    %1895 = vmatprep.subr.bf16.mxu0 0
    %1896 = vmatpush1.bf16.msra.mxu0 0
    %1897 = vmatprep.subr.bf16.mxu0 0
    %1898 = vmatpush1.bf16.msra.mxu0 0
    %1899 = vmatprep.mubr.bf16.mxu0 0
    %1900 = vmatmul.mubr.bf16.gmra.mrb[0].mxu0 %v1788
    %v1901 = vpop.f32.mrb[0].mxu0
    %v1902 = vadd.f32 0.0, %v1901
    %v1903 = vpop.f32.mrb[0].mxu0
    %v1904 = vpop.f32.mrb[0].mxu0
    %v1905 = vadd.f32 0.0, %v1904
    %v1906 = vpop.f32.mrb[0].mxu0
    %1907 = vmatprep.mubr.bf16.mxu0 0
    %1908 = vmatmul.mubr.bf16.gmra.mrb[0].mxu0 %v1789
    %v1909 = vpop.f32.mrb[0].mxu0
    %v1910 = vadd.f32 0.0, %v1909
    %v1911 = vpop.f32.mrb[0].mxu0
    %v1912 = vpop.f32.mrb[0].mxu0
    %v1913 = vadd.f32 0.0, %v1912
    %v1914 = vpop.f32.mrb[0].mxu0
    %1915 = vmatprep.mubr.bf16.mxu0 0
    %1916 = vmatmul.mubr.bf16.gmra.mrb[0].mxu0 %v1790
    %v1917 = vpop.f32.mrb[0].mxu0
    %v1918 = vadd.f32 0.0, %v1917
    %v1919 = vpop.f32.mrb[0].mxu0
    %v1920 = vpop.f32.mrb[0].mxu0
    %v1921 = vadd.f32 0.0, %v1920
    %v1922 = vpop.f32.mrb[0].mxu0
    %1923 = vmatprep.mubr.bf16.mxu0 0
    %1924 = vmatmul.mubr.bf16.gmra.mrb[0].mxu0 %v1791
    %v1925 = vpop.f32.mrb[0].mxu0
    %v1926 = vadd.f32 0.0, %v1925
    %v1927 = vpop.f32.mrb[0].mxu0
    %v1928 = vpop.f32.mrb[0].mxu0
    %v1929 = vadd.f32 0.0, %v1928
    %v1930 = vpop.f32.mrb[0].mxu0
    %1931 = vmatprep.mubr.bf16.mxu0 0
    %1932 = vmatmul.mubr.bf16.gmra.mrb[0].mxu0 %v1792
    %v1933 = vpop.f32.mrb[0].mxu0
    %v1934 = vadd.f32 0.0, %v1933
    %v1935 = vpop.f32.mrb[0].mxu0
    %v1936 = vpop.f32.mrb[0].mxu0
    %v1937 = vadd.f32 0.0, %v1936
    %v1938 = vpop.f32.mrb[0].mxu0
    %1939 = vmatprep.mubr.bf16.mxu0 0
    %1940 = vmatmul.mubr.bf16.gmra.mrb[0].mxu0 %v1793
    %v1941 = vpop.f32.mrb[0].mxu0
    %v1942 = vadd.f32 0.0, %v1941
    %v1943 = vpop.f32.mrb[0].mxu0
    %v1944 = vpop.f32.mrb[0].mxu0
    %v1945 = vadd.f32 0.0, %v1944
    %v1946 = vpop.f32.mrb[0].mxu0
    %1947 = vmatprep.mubr.bf16.mxu0 0
    %1948 = vmatmul.mubr.bf16.gmra.mrb[0].mxu0 %v1794
    %v1949 = vpop.f32.mrb[0].mxu0
    %v1950 = vadd.f32 0.0, %v1949
    %v1951 = vpop.f32.mrb[0].mxu0
    %v1952 = vpop.f32.mrb[0].mxu0
    %v1953 = vadd.f32 0.0, %v1952
    %v1954 = vpop.f32.mrb[0].mxu0
    %1955 = vmatprep.mubr.bf16.mxu0 0
    %1956 = vmatmul.mubr.bf16.gmra.mrb[0].mxu0 %v1795
    %v1957 = vpop.f32.mrb[0].mxu0
    %v1958 = vadd.f32 0.0, %v1957
    %v1959 = vpop.f32.mrb[0].mxu0
    %v1960 = vpop.f32.mrb[0].mxu0
    %v1961 = vadd.f32 0.0, %v1960
    %v1962 = vpop.f32.mrb[0].mxu0
    %1963 = vmatprep.mubr.bf16.mxu0 0
    %1964 = vmatmul.mubr.bf16.gmra.mrb[0].mxu0 %v1796
    %v1965 = vpop.f32.mrb[0].mxu0
    %v1966 = vadd.f32 0.0, %v1965
    %v1967 = vpop.f32.mrb[0].mxu0
    %v1968 = vpop.f32.mrb[0].mxu0
    %v1969 = vadd.f32 0.0, %v1968
    %v1970 = vpop.f32.mrb[0].mxu0
    %1971 = vmatprep.mubr.bf16.mxu0 0
    %1972 = vmatmul.mubr.bf16.gmra.mrb[0].mxu0 %v1797
    %v1973 = vpop.f32.mrb[0].mxu0
    %v1974 = vadd.f32 0.0, %v1973
    %v1975 = vpop.f32.mrb[0].mxu0
    %v1976 = vpop.f32.mrb[0].mxu0
    %v1977 = vadd.f32 0.0, %v1976
    %v1978 = vpop.f32.mrb[0].mxu0
    %1979 = vmatprep.mubr.bf16.mxu0 0
    %1980 = vmatmul.mubr.bf16.gmra.mrb[0].mxu0 %v1798
    %v1981 = vpop.f32.mrb[0].mxu0
    %v1982 = vadd.f32 0.0, %v1981
    %v1983 = vpop.f32.mrb[0].mxu0
    %v1984 = vpop.f32.mrb[0].mxu0
    %v1985 = vadd.f32 0.0, %v1984
    %v1986 = vpop.f32.mrb[0].mxu0
    %1987 = vmatprep.mubr.bf16.mxu0 0
    %1988 = vmatmul.mubr.bf16.gmra.mrb[0].mxu0 %v1799
    %v1989 = vpop.f32.mrb[0].mxu0
    %v1990 = vadd.f32 0.0, %v1989
    %v1991 = vpop.f32.mrb[0].mxu0
    %v1992 = vpop.f32.mrb[0].mxu0
    %v1993 = vadd.f32 0.0, %v1992
    %v1994 = vpop.f32.mrb[0].mxu0
    %1995 = vmatprep.mubr.bf16.mxu0 0
    %1996 = vmatmul.mubr.bf16.gmra.mrb[0].mxu0 %v1800
    %v1997 = vpop.f32.mrb[0].mxu0
    %v1998 = vadd.f32 0.0, %v1997
    %v1999 = vpop.f32.mrb[0].mxu0
    %v2000 = vpop.f32.mrb[0].mxu0
    %v2001 = vadd.f32 0.0, %v2000
    %v2002 = vpop.f32.mrb[0].mxu0
    %2003 = vmatprep.mubr.bf16.mxu0 0
    %2004 = vmatmul.mubr.bf16.gmra.mrb[0].mxu0 %v1801
    %v2005 = vpop.f32.mrb[0].mxu0
    %v2006 = vadd.f32 0.0, %v2005
    %v2007 = vpop.f32.mrb[0].mxu0
    %v2008 = vpop.f32.mrb[0].mxu0
    %v2009 = vadd.f32 0.0, %v2008
    %v2010 = vpop.f32.mrb[0].mxu0
    %2011 = vdwg.mxu0
    %v2012 = vadd.f32 %v1732, %v1902
    %v2013 = vadd.f32 %v1733, %v1905
    %v2014 = vadd.f32 %v1734, %v1910
    %v2015 = vadd.f32 %v1735, %v1913
    %v2016 = vadd.f32 %v1736, %v1918
    %v2017 = vadd.f32 %v1737, %v1921
    %v2018 = vadd.f32 %v1738, %v1926
    %v2019 = vadd.f32 %v1739, %v1929
    %v2020 = vadd.f32 %v1740, %v1934
    %v2021 = vadd.f32 %v1741, %v1937
    %v2022 = vadd.f32 %v1742, %v1942
    %v2023 = vadd.f32 %v1743, %v1945
    %v2024 = vadd.f32 %v1744, %v1950
    %v2025 = vadd.f32 %v1745, %v1953
    %v2026 = vadd.f32 %v1746, %v1958
    %v2027 = vadd.f32 %v1747, %v1961
    %v2028 = vadd.f32 %v1748, %v1966
    %v2029 = vadd.f32 %v1749, %v1969
    %v2030 = vadd.f32 %v1750, %v1974
    %v2031 = vadd.f32 %v1751, %v1977
    %v2032 = vadd.f32 %v1752, %v1982
    %v2033 = vadd.f32 %v1753, %v1985
    %v2034 = vadd.f32 %v1754, %v1990
    %v2035 = vadd.f32 %v1755, %v1993
    %v2036 = vadd.f32 %v1756, %v1998
    %v2037 = vadd.f32 %v1757, %v2001
    %v2038 = vadd.f32 %v1758, %v2006
    %v2039 = vadd.f32 %v1759, %v2009
    %v2040 = vld [vmem:[%s0 + $0x21] sm:$0xff]
    %v2041 = vld [vmem:[%s0 + $0x29] sm:$0xff]
    %v2042 = vld [vmem:[%s0 + $0x31] sm:$0xff]
    %v2043 = vld [vmem:[%s0 + $0x39] sm:$0xff]
    %v2044 = vld [vmem:[%s0 + $0x41] sm:$0xff]
    %v2045 = vld [vmem:[%s0 + $0x49] sm:$0xff]
    %v2046 = vld [vmem:[%s0 + $0x51] sm:$0xff]
    %v2047 = vld [vmem:[%s0 + $0x59] sm:$0xff]
    %v2048 = vld [vmem:[%s0 + $0x61] sm:$0xff]
    %v2049 = vld [vmem:[%s0 + $0x69] sm:$0xff]
    %v2050 = vld [vmem:[%s0 + $0x71] sm:$0xff]
    %v2051 = vld [vmem:[%s0 + $0x79] sm:$0xff]
    %v2052 = vld [vmem:[%s0 + $0x81] sm:$0xff]
    %v2053 = vld [vmem:[%s0 + $0x89] sm:$0xff]
    %v2054 = vld [vmem:[%s0 + $0x91] sm:$0xff]
    %v2055 = vld [vmem:[%s0 + $0x99] sm:$0xff]
    %v2056 = vld [vmem:[%s0 + $0xa1] sm:$0xff]
    %v2057 = vld [vmem:[%s0 + $0xa9] sm:$0xff]
    %v2058 = vld [vmem:[%s0 + $0xb1] sm:$0xff]
    %v2059 = vld [vmem:[%s0 + $0xb9] sm:$0xff]
    %v2060 = vld [vmem:[%s0 + $0xc1] sm:$0xff]
    %v2061 = vld [vmem:[%s0 + $0xc9] sm:$0xff]
    %v2062 = vld [vmem:[%s0 + $0xd1] sm:$0xff]
    %v2063 = vld [vmem:[%s0 + $0xd9] sm:$0xff]
    %v2064 = vld [vmem:[%s0 + $0xe1] sm:$0xff]
    %v2065 = vld [vmem:[%s0 + $0xe9] sm:$0xff]
    %v2066 = vld [vmem:[%s0 + $0xf1] sm:$0xff]
    %v2067 = vld [vmem:[%s0 + $0xf9] sm:$0x3f]
    %v2068 = vpack.c.bf16 %v2041, %v2040
    %v2069 = vpack.c.bf16 %v2043, %v2042
    %v2070 = vpack.c.bf16 %v2045, %v2044
    %v2071 = vpack.c.bf16 %v2047, %v2046
    %v2072 = vpack.c.bf16 %v2049, %v2048
    %v2073 = vpack.c.bf16 %v2051, %v2050
    %v2074 = vpack.c.bf16 %v2053, %v2052
    %v2075 = vpack.c.bf16 %v2055, %v2054
    %v2076 = vpack.c.bf16 %v2057, %v2056
    %v2077 = vpack.c.bf16 %v2059, %v2058
    %v2078 = vpack.c.bf16 %v2061, %v2060
    %v2079 = vpack.c.bf16 %v2063, %v2062
    %v2080 = vpack.c.bf16 %v2065, %v2064
    %v2081 = vpack.c.bf16 %v2067, %v2066
    %s2082 = scalar_lea.vmem %s1, 448
    %v2083 = vld [vmem:[%s2082] sm:$0xf]
    %v2084 = vld [vmem:[%s2082 + $0x4] sm:$0xf]
    %v2085 = vld [vmem:[%s2082 + $0x8] sm:$0xf]
    %v2086 = vld [vmem:[%s2082 + $0xc] sm:$0xf]
    %v2087 = vld [vmem:[%s2082 + $0x10] sm:$0xf]
    %v2088 = vld [vmem:[%s2082 + $0x14] sm:$0xf]
    %v2089 = vld [vmem:[%s2082 + $0x18] sm:$0xf]
    %v2090 = vld [vmem:[%s2082 + $0x1c] sm:$0xf]
    %v2091 = vld [vmem:[%s2082 + $0x20] sm:$0xf]
    %v2092 = vld [vmem:[%s2082 + $0x24] sm:$0xf]
    %v2093 = vld [vmem:[%s2082 + $0x28] sm:$0xf]
    %v2094 = vld [vmem:[%s2082 + $0x2c] sm:$0xf]
    %v2095 = vld [vmem:[%s2082 + $0x30] sm:$0xf]
    %v2096 = vld [vmem:[%s2082 + $0x34] sm:$0xf]
    %v2097 = vld [vmem:[%s2082 + $0x38] sm:$0xf]
    %v2098 = vld [vmem:[%s2082 + $0x3c] sm:$0xf]
    %v2115 = vunpack.c.l.b16 %v2083
    %v2116 = vunpack.c.l.b16 %v2084
    %v2117 = vunpack.c.l.b16 %v2085
    %v2118 = vunpack.c.l.b16 %v2086
    %v2119 = vunpack.c.l.b16 %v2087
    %v2120 = vunpack.c.l.b16 %v2088
    %v2121 = vunpack.c.l.b16 %v2089
    %v2122 = vunpack.c.l.b16 %v2090
    %v2123 = vunpack.c.l.b16 %v2091
    %v2124 = vunpack.c.l.b16 %v2092
    %v2125 = vunpack.c.l.b16 %v2093
    %v2126 = vunpack.c.l.b16 %v2094
    %v2127 = vunpack.c.l.b16 %v2095
    %v2128 = vunpack.c.l.b16 %v2096
    %v2129 = vunpack.c.l.b16 %v2097
    %v2130 = vunpack.c.l.b16 %v2098
    %v2131 = vpack.c.b16 %v2116, %v2115
    %v2132 = vpack.c.b16 %v2118, %v2117
    %v2133 = vpack.c.b16 %v2120, %v2119
    %v2134 = vpack.c.b16 %v2122, %v2121
    %v2135 = vpack.c.b16 %v2124, %v2123
    %v2136 = vpack.c.b16 %v2126, %v2125
    %v2137 = vpack.c.b16 %v2128, %v2127
    %v2138 = vpack.c.b16 %v2130, %v2129
    %2147 = vmatprep.subr.bf16.mxu0 0
    %2148 = vmatpush1.bf16.msra.mxu0 %v2131
    %2149 = vmatprep.subr.bf16.mxu0 0
    %2150 = vmatpush1.bf16.msra.mxu0 %v2132
    %2151 = vmatprep.subr.bf16.mxu0 0
    %2152 = vmatpush1.bf16.msra.mxu0 %v2133
    %2153 = vmatprep.subr.bf16.mxu0 0
    %2154 = vmatpush1.bf16.msra.mxu0 %v2134
    %2155 = vmatprep.subr.bf16.mxu0 0
    %2156 = vmatpush1.bf16.msra.mxu0 %v2135
    %2157 = vmatprep.subr.bf16.mxu0 0
    %2158 = vmatpush1.bf16.msra.mxu0 %v2136
    %2159 = vmatprep.subr.bf16.mxu0 0
    %2160 = vmatpush1.bf16.msra.mxu0 %v2137
    %2161 = vmatprep.subr.bf16.mxu0 0
    %2162 = vmatpush1.bf16.msra.mxu0 %v2138
    %2163 = vmatprep.subr.bf16.mxu0 0
    %2164 = vmatpush1.bf16.msra.mxu0 0
    %2165 = vmatprep.subr.bf16.mxu0 0
    %2166 = vmatpush1.bf16.msra.mxu0 0
    %2167 = vmatprep.subr.bf16.mxu0 0
    %2168 = vmatpush1.bf16.msra.mxu0 0
    %2169 = vmatprep.subr.bf16.mxu0 0
    %2170 = vmatpush1.bf16.msra.mxu0 0
    %2171 = vmatprep.subr.bf16.mxu0 0
    %2172 = vmatpush1.bf16.msra.mxu0 0
    %2173 = vmatprep.subr.bf16.mxu0 0
    %2174 = vmatpush1.bf16.msra.mxu0 0
    %2175 = vmatprep.subr.bf16.mxu0 0
    %2176 = vmatpush1.bf16.msra.mxu0 0
    %2177 = vmatprep.subr.bf16.mxu0 0
    %2178 = vmatpush1.bf16.msra.mxu0 0
    %2179 = vmatprep.mubr.bf16.mxu0 0
    %2180 = vmatmul.mubr.bf16.gmra.mrb[0].mxu0 %v2068
    %v2181 = vpop.f32.mrb[0].mxu0
    %v2182 = vadd.f32 0.0, %v2181
    %v2183 = vpop.f32.mrb[0].mxu0
    %v2184 = vpop.f32.mrb[0].mxu0
    %v2185 = vadd.f32 0.0, %v2184
    %v2186 = vpop.f32.mrb[0].mxu0
    %2187 = vmatprep.mubr.bf16.mxu0 0
    %2188 = vmatmul.mubr.bf16.gmra.mrb[0].mxu0 %v2069
    %v2189 = vpop.f32.mrb[0].mxu0
    %v2190 = vadd.f32 0.0, %v2189
    %v2191 = vpop.f32.mrb[0].mxu0
    %v2192 = vpop.f32.mrb[0].mxu0
    %v2193 = vadd.f32 0.0, %v2192
    %v2194 = vpop.f32.mrb[0].mxu0
    %2195 = vmatprep.mubr.bf16.mxu0 0
    %2196 = vmatmul.mubr.bf16.gmra.mrb[0].mxu0 %v2070
    %v2197 = vpop.f32.mrb[0].mxu0
    %v2198 = vadd.f32 0.0, %v2197
    %v2199 = vpop.f32.mrb[0].mxu0
    %v2200 = vpop.f32.mrb[0].mxu0
    %v2201 = vadd.f32 0.0, %v2200
    %v2202 = vpop.f32.mrb[0].mxu0
    %2203 = vmatprep.mubr.bf16.mxu0 0
    %2204 = vmatmul.mubr.bf16.gmra.mrb[0].mxu0 %v2071
    %v2205 = vpop.f32.mrb[0].mxu0
    %v2206 = vadd.f32 0.0, %v2205
    %v2207 = vpop.f32.mrb[0].mxu0
    %v2208 = vpop.f32.mrb[0].mxu0
    %v2209 = vadd.f32 0.0, %v2208
    %v2210 = vpop.f32.mrb[0].mxu0
    %2211 = vmatprep.mubr.bf16.mxu0 0
    %2212 = vmatmul.mubr.bf16.gmra.mrb[0].mxu0 %v2072
    %v2213 = vpop.f32.mrb[0].mxu0
    %v2214 = vadd.f32 0.0, %v2213
    %v2215 = vpop.f32.mrb[0].mxu0
    %v2216 = vpop.f32.mrb[0].mxu0
    %v2217 = vadd.f32 0.0, %v2216
    %v2218 = vpop.f32.mrb[0].mxu0
    %2219 = vmatprep.mubr.bf16.mxu0 0
    %2220 = vmatmul.mubr.bf16.gmra.mrb[0].mxu0 %v2073
    %v2221 = vpop.f32.mrb[0].mxu0
    %v2222 = vadd.f32 0.0, %v2221
    %v2223 = vpop.f32.mrb[0].mxu0
    %v2224 = vpop.f32.mrb[0].mxu0
    %v2225 = vadd.f32 0.0, %v2224
    %v2226 = vpop.f32.mrb[0].mxu0
    %2227 = vmatprep.mubr.bf16.mxu0 0
    %2228 = vmatmul.mubr.bf16.gmra.mrb[0].mxu0 %v2074
    %v2229 = vpop.f32.mrb[0].mxu0
    %v2230 = vadd.f32 0.0, %v2229
    %v2231 = vpop.f32.mrb[0].mxu0
    %v2232 = vpop.f32.mrb[0].mxu0
    %v2233 = vadd.f32 0.0, %v2232
    %v2234 = vpop.f32.mrb[0].mxu0
    %2235 = vmatprep.mubr.bf16.mxu0 0
    %2236 = vmatmul.mubr.bf16.gmra.mrb[0].mxu0 %v2075
    %v2237 = vpop.f32.mrb[0].mxu0
    %v2238 = vadd.f32 0.0, %v2237
    %v2239 = vpop.f32.mrb[0].mxu0
    %v2240 = vpop.f32.mrb[0].mxu0
    %v2241 = vadd.f32 0.0, %v2240
    %v2242 = vpop.f32.mrb[0].mxu0
    %2243 = vmatprep.mubr.bf16.mxu0 0
    %2244 = vmatmul.mubr.bf16.gmra.mrb[0].mxu0 %v2076
    %v2245 = vpop.f32.mrb[0].mxu0
    %v2246 = vadd.f32 0.0, %v2245
    %v2247 = vpop.f32.mrb[0].mxu0
    %v2248 = vpop.f32.mrb[0].mxu0
    %v2249 = vadd.f32 0.0, %v2248
    %v2250 = vpop.f32.mrb[0].mxu0
    %2251 = vmatprep.mubr.bf16.mxu0 0
    %2252 = vmatmul.mubr.bf16.gmra.mrb[0].mxu0 %v2077
    %v2253 = vpop.f32.mrb[0].mxu0
    %v2254 = vadd.f32 0.0, %v2253
    %v2255 = vpop.f32.mrb[0].mxu0
    %v2256 = vpop.f32.mrb[0].mxu0
    %v2257 = vadd.f32 0.0, %v2256
    %v2258 = vpop.f32.mrb[0].mxu0
    %2259 = vmatprep.mubr.bf16.mxu0 0
    %2260 = vmatmul.mubr.bf16.gmra.mrb[0].mxu0 %v2078
    %v2261 = vpop.f32.mrb[0].mxu0
    %v2262 = vadd.f32 0.0, %v2261
    %v2263 = vpop.f32.mrb[0].mxu0
    %v2264 = vpop.f32.mrb[0].mxu0
    %v2265 = vadd.f32 0.0, %v2264
    %v2266 = vpop.f32.mrb[0].mxu0
    %2267 = vmatprep.mubr.bf16.mxu0 0
    %2268 = vmatmul.mubr.bf16.gmra.mrb[0].mxu0 %v2079
    %v2269 = vpop.f32.mrb[0].mxu0
    %v2270 = vadd.f32 0.0, %v2269
    %v2271 = vpop.f32.mrb[0].mxu0
    %v2272 = vpop.f32.mrb[0].mxu0
    %v2273 = vadd.f32 0.0, %v2272
    %v2274 = vpop.f32.mrb[0].mxu0
    %2275 = vmatprep.mubr.bf16.mxu0 0
    %2276 = vmatmul.mubr.bf16.gmra.mrb[0].mxu0 %v2080
    %v2277 = vpop.f32.mrb[0].mxu0
    %v2278 = vadd.f32 0.0, %v2277
    %v2279 = vpop.f32.mrb[0].mxu0
    %v2280 = vpop.f32.mrb[0].mxu0
    %v2281 = vadd.f32 0.0, %v2280
    %v2282 = vpop.f32.mrb[0].mxu0
    %2283 = vmatprep.mubr.bf16.mxu0 0
    %2284 = vmatmul.mubr.bf16.gmra.mrb[0].mxu0 %v2081
    %v2285 = vpop.f32.mrb[0].mxu0
    %v2286 = vadd.f32 0.0, %v2285
    %v2287 = vpop.f32.mrb[0].mxu0
    %v2288 = vpop.f32.mrb[0].mxu0
    %v2289 = vadd.f32 0.0, %v2288
    %v2290 = vpop.f32.mrb[0].mxu0
    %2291 = vdwg.mxu0
    %v2292 = vadd.f32 %v2012, %v2182
    %v2293 = vadd.f32 %v2013, %v2185
    %v2294 = vadd.f32 %v2014, %v2190
    %v2295 = vadd.f32 %v2015, %v2193
    %v2296 = vadd.f32 %v2016, %v2198
    %v2297 = vadd.f32 %v2017, %v2201
    %v2298 = vadd.f32 %v2018, %v2206
    %v2299 = vadd.f32 %v2019, %v2209
    %v2300 = vadd.f32 %v2020, %v2214
    %v2301 = vadd.f32 %v2021, %v2217
    %v2302 = vadd.f32 %v2022, %v2222
    %v2303 = vadd.f32 %v2023, %v2225
    %v2304 = vadd.f32 %v2024, %v2230
    %v2305 = vadd.f32 %v2025, %v2233
    %v2306 = vadd.f32 %v2026, %v2238
    %v2307 = vadd.f32 %v2027, %v2241
    %v2308 = vadd.f32 %v2028, %v2246
    %v2309 = vadd.f32 %v2029, %v2249
    %v2310 = vadd.f32 %v2030, %v2254
    %v2311 = vadd.f32 %v2031, %v2257
    %v2312 = vadd.f32 %v2032, %v2262
    %v2313 = vadd.f32 %v2033, %v2265
    %v2314 = vadd.f32 %v2034, %v2270
    %v2315 = vadd.f32 %v2035, %v2273
    %v2316 = vadd.f32 %v2036, %v2278
    %v2317 = vadd.f32 %v2037, %v2281
    %v2318 = vadd.f32 %v2038, %v2286
    %v2319 = vadd.f32 %v2039, %v2289
    %v2320 = vld [vmem:[%s0 + $0x22] sm:$0xff]
    %v2321 = vld [vmem:[%s0 + $0x2a] sm:$0xff]
    %v2322 = vld [vmem:[%s0 + $0x32] sm:$0xff]
    %v2323 = vld [vmem:[%s0 + $0x3a] sm:$0xff]
    %v2324 = vld [vmem:[%s0 + $0x42] sm:$0xff]
    %v2325 = vld [vmem:[%s0 + $0x4a] sm:$0xff]
    %v2326 = vld [vmem:[%s0 + $0x52] sm:$0xff]
    %v2327 = vld [vmem:[%s0 + $0x5a] sm:$0xff]
    %v2328 = vld [vmem:[%s0 + $0x62] sm:$0xff]
    %v2329 = vld [vmem:[%s0 + $0x6a] sm:$0xff]
    %v2330 = vld [vmem:[%s0 + $0x72] sm:$0xff]
    %v2331 = vld [vmem:[%s0 + $0x7a] sm:$0xff]
    %v2332 = vld [vmem:[%s0 + $0x82] sm:$0xff]
    %v2333 = vld [vmem:[%s0 + $0x8a] sm:$0xff]
    %v2334 = vld [vmem:[%s0 + $0x92] sm:$0xff]
    %v2335 = vld [vmem:[%s0 + $0x9a] sm:$0xff]
    %v2336 = vld [vmem:[%s0 + $0xa2] sm:$0xff]
    %v2337 = vld [vmem:[%s0 + $0xaa] sm:$0xff]
    %v2338 = vld [vmem:[%s0 + $0xb2] sm:$0xff]
    %v2339 = vld [vmem:[%s0 + $0xba] sm:$0xff]
    %v2340 = vld [vmem:[%s0 + $0xc2] sm:$0xff]
    %v2341 = vld [vmem:[%s0 + $0xca] sm:$0xff]
    %v2342 = vld [vmem:[%s0 + $0xd2] sm:$0xff]
    %v2343 = vld [vmem:[%s0 + $0xda] sm:$0xff]
    %v2344 = vld [vmem:[%s0 + $0xe2] sm:$0xff]
    %v2345 = vld [vmem:[%s0 + $0xea] sm:$0xff]
    %v2346 = vld [vmem:[%s0 + $0xf2] sm:$0xff]
    %v2347 = vld [vmem:[%s0 + $0xfa] sm:$0x3f]
    %v2348 = vpack.c.bf16 %v2321, %v2320
    %v2349 = vpack.c.bf16 %v2323, %v2322
    %v2350 = vpack.c.bf16 %v2325, %v2324
    %v2351 = vpack.c.bf16 %v2327, %v2326
    %v2352 = vpack.c.bf16 %v2329, %v2328
    %v2353 = vpack.c.bf16 %v2331, %v2330
    %v2354 = vpack.c.bf16 %v2333, %v2332
    %v2355 = vpack.c.bf16 %v2335, %v2334
    %v2356 = vpack.c.bf16 %v2337, %v2336
    %v2357 = vpack.c.bf16 %v2339, %v2338
    %v2358 = vpack.c.bf16 %v2341, %v2340
    %v2359 = vpack.c.bf16 %v2343, %v2342
    %v2360 = vpack.c.bf16 %v2345, %v2344
    %v2361 = vpack.c.bf16 %v2347, %v2346
    %s2362 = scalar_lea.vmem %s1, 512
    %v2363 = vld [vmem:[%s2362] sm:$0xf]
    %v2364 = vld [vmem:[%s2362 + $0x4] sm:$0xf]
    %v2365 = vld [vmem:[%s2362 + $0x8] sm:$0xf]
    %v2366 = vld [vmem:[%s2362 + $0xc] sm:$0xf]
    %v2367 = vld [vmem:[%s2362 + $0x10] sm:$0xf]
    %v2368 = vld [vmem:[%s2362 + $0x14] sm:$0xf]
    %v2369 = vld [vmem:[%s2362 + $0x18] sm:$0xf]
    %v2370 = vld [vmem:[%s2362 + $0x1c] sm:$0xf]
    %v2371 = vld [vmem:[%s2362 + $0x20] sm:$0xf]
    %v2372 = vld [vmem:[%s2362 + $0x24] sm:$0xf]
    %v2373 = vld [vmem:[%s2362 + $0x28] sm:$0xf]
    %v2374 = vld [vmem:[%s2362 + $0x2c] sm:$0xf]
    %v2375 = vld [vmem:[%s2362 + $0x30] sm:$0xf]
    %v2376 = vld [vmem:[%s2362 + $0x34] sm:$0xf]
    %v2377 = vld [vmem:[%s2362 + $0x38] sm:$0xf]
    %v2378 = vld [vmem:[%s2362 + $0x3c] sm:$0xf]
    %v2395 = vunpack.c.l.b16 %v2363
    %v2396 = vunpack.c.l.b16 %v2364
    %v2397 = vunpack.c.l.b16 %v2365
    %v2398 = vunpack.c.l.b16 %v2366
    %v2399 = vunpack.c.l.b16 %v2367
    %v2400 = vunpack.c.l.b16 %v2368
    %v2401 = vunpack.c.l.b16 %v2369
    %v2402 = vunpack.c.l.b16 %v2370
    %v2403 = vunpack.c.l.b16 %v2371
    %v2404 = vunpack.c.l.b16 %v2372
    %v2405 = vunpack.c.l.b16 %v2373
    %v2406 = vunpack.c.l.b16 %v2374
    %v2407 = vunpack.c.l.b16 %v2375
    %v2408 = vunpack.c.l.b16 %v2376
    %v2409 = vunpack.c.l.b16 %v2377
    %v2410 = vunpack.c.l.b16 %v2378
    %v2411 = vpack.c.b16 %v2396, %v2395
    %v2412 = vpack.c.b16 %v2398, %v2397
    %v2413 = vpack.c.b16 %v2400, %v2399
    %v2414 = vpack.c.b16 %v2402, %v2401
    %v2415 = vpack.c.b16 %v2404, %v2403
    %v2416 = vpack.c.b16 %v2406, %v2405
    %v2417 = vpack.c.b16 %v2408, %v2407
    %v2418 = vpack.c.b16 %v2410, %v2409
    %2427 = vmatprep.subr.bf16.mxu0 0
    %2428 = vmatpush1.bf16.msra.mxu0 %v2411
    %2429 = vmatprep.subr.bf16.mxu0 0
    %2430 = vmatpush1.bf16.msra.mxu0 %v2412
    %2431 = vmatprep.subr.bf16.mxu0 0
    %2432 = vmatpush1.bf16.msra.mxu0 %v2413
    %2433 = vmatprep.subr.bf16.mxu0 0
    %2434 = vmatpush1.bf16.msra.mxu0 %v2414
    %2435 = vmatprep.subr.bf16.mxu0 0
    %2436 = vmatpush1.bf16.msra.mxu0 %v2415
    %2437 = vmatprep.subr.bf16.mxu0 0
    %2438 = vmatpush1.bf16.msra.mxu0 %v2416
    %2439 = vmatprep.subr.bf16.mxu0 0
    %2440 = vmatpush1.bf16.msra.mxu0 %v2417
    %2441 = vmatprep.subr.bf16.mxu0 0
    %2442 = vmatpush1.bf16.msra.mxu0 %v2418
    %2443 = vmatprep.subr.bf16.mxu0 0
    %2444 = vmatpush1.bf16.msra.mxu0 0
    %2445 = vmatprep.subr.bf16.mxu0 0
    %2446 = vmatpush1.bf16.msra.mxu0 0
    %2447 = vmatprep.subr.bf16.mxu0 0
    %2448 = vmatpush1.bf16.msra.mxu0 0
    %2449 = vmatprep.subr.bf16.mxu0 0
    %2450 = vmatpush1.bf16.msra.mxu0 0
    %2451 = vmatprep.subr.bf16.mxu0 0
    %2452 = vmatpush1.bf16.msra.mxu0 0
    %2453 = vmatprep.subr.bf16.mxu0 0
    %2454 = vmatpush1.bf16.msra.mxu0 0
    %2455 = vmatprep.subr.bf16.mxu0 0
    %2456 = vmatpush1.bf16.msra.mxu0 0
    %2457 = vmatprep.subr.bf16.mxu0 0
    %2458 = vmatpush1.bf16.msra.mxu0 0
    %2459 = vmatprep.mubr.bf16.mxu0 0
    %2460 = vmatmul.mubr.bf16.gmra.mrb[0].mxu0 %v2348
    %v2461 = vpop.f32.mrb[0].mxu0
    %v2462 = vadd.f32 0.0, %v2461
    %v2463 = vpop.f32.mrb[0].mxu0
    %v2464 = vpop.f32.mrb[0].mxu0
    %v2465 = vadd.f32 0.0, %v2464
    %v2466 = vpop.f32.mrb[0].mxu0
    %2467 = vmatprep.mubr.bf16.mxu0 0
    %2468 = vmatmul.mubr.bf16.gmra.mrb[0].mxu0 %v2349
    %v2469 = vpop.f32.mrb[0].mxu0
    %v2470 = vadd.f32 0.0, %v2469
    %v2471 = vpop.f32.mrb[0].mxu0
    %v2472 = vpop.f32.mrb[0].mxu0
    %v2473 = vadd.f32 0.0, %v2472
    %v2474 = vpop.f32.mrb[0].mxu0
    %2475 = vmatprep.mubr.bf16.mxu0 0
    %2476 = vmatmul.mubr.bf16.gmra.mrb[0].mxu0 %v2350
    %v2477 = vpop.f32.mrb[0].mxu0
    %v2478 = vadd.f32 0.0, %v2477
    %v2479 = vpop.f32.mrb[0].mxu0
    %v2480 = vpop.f32.mrb[0].mxu0
    %v2481 = vadd.f32 0.0, %v2480
    %v2482 = vpop.f32.mrb[0].mxu0
    %2483 = vmatprep.mubr.bf16.mxu0 0
    %2484 = vmatmul.mubr.bf16.gmra.mrb[0].mxu0 %v2351
    %v2485 = vpop.f32.mrb[0].mxu0
    %v2486 = vadd.f32 0.0, %v2485
    %v2487 = vpop.f32.mrb[0].mxu0
    %v2488 = vpop.f32.mrb[0].mxu0
    %v2489 = vadd.f32 0.0, %v2488
    %v2490 = vpop.f32.mrb[0].mxu0
    %2491 = vmatprep.mubr.bf16.mxu0 0
    %2492 = vmatmul.mubr.bf16.gmra.mrb[0].mxu0 %v2352
    %v2493 = vpop.f32.mrb[0].mxu0
    %v2494 = vadd.f32 0.0, %v2493
    %v2495 = vpop.f32.mrb[0].mxu0
    %v2496 = vpop.f32.mrb[0].mxu0
    %v2497 = vadd.f32 0.0, %v2496
    %v2498 = vpop.f32.mrb[0].mxu0
    %2499 = vmatprep.mubr.bf16.mxu0 0
    %2500 = vmatmul.mubr.bf16.gmra.mrb[0].mxu0 %v2353
    %v2501 = vpop.f32.mrb[0].mxu0
    %v2502 = vadd.f32 0.0, %v2501
    %v2503 = vpop.f32.mrb[0].mxu0
    %v2504 = vpop.f32.mrb[0].mxu0
    %v2505 = vadd.f32 0.0, %v2504
    %v2506 = vpop.f32.mrb[0].mxu0
    %2507 = vmatprep.mubr.bf16.mxu0 0
    %2508 = vmatmul.mubr.bf16.gmra.mrb[0].mxu0 %v2354
    %v2509 = vpop.f32.mrb[0].mxu0
    %v2510 = vadd.f32 0.0, %v2509
    %v2511 = vpop.f32.mrb[0].mxu0
    %v2512 = vpop.f32.mrb[0].mxu0
    %v2513 = vadd.f32 0.0, %v2512
    %v2514 = vpop.f32.mrb[0].mxu0
    %2515 = vmatprep.mubr.bf16.mxu0 0
    %2516 = vmatmul.mubr.bf16.gmra.mrb[0].mxu0 %v2355
    %v2517 = vpop.f32.mrb[0].mxu0
    %v2518 = vadd.f32 0.0, %v2517
    %v2519 = vpop.f32.mrb[0].mxu0
    %v2520 = vpop.f32.mrb[0].mxu0
    %v2521 = vadd.f32 0.0, %v2520
    %v2522 = vpop.f32.mrb[0].mxu0
    %2523 = vmatprep.mubr.bf16.mxu0 0
    %2524 = vmatmul.mubr.bf16.gmra.mrb[0].mxu0 %v2356
    %v2525 = vpop.f32.mrb[0].mxu0
    %v2526 = vadd.f32 0.0, %v2525
    %v2527 = vpop.f32.mrb[0].mxu0
    %v2528 = vpop.f32.mrb[0].mxu0
    %v2529 = vadd.f32 0.0, %v2528
    %v2530 = vpop.f32.mrb[0].mxu0
    %2531 = vmatprep.mubr.bf16.mxu0 0
    %2532 = vmatmul.mubr.bf16.gmra.mrb[0].mxu0 %v2357
    %v2533 = vpop.f32.mrb[0].mxu0
    %v2534 = vadd.f32 0.0, %v2533
    %v2535 = vpop.f32.mrb[0].mxu0
    %v2536 = vpop.f32.mrb[0].mxu0
    %v2537 = vadd.f32 0.0, %v2536
    %v2538 = vpop.f32.mrb[0].mxu0
    %2539 = vmatprep.mubr.bf16.mxu0 0
    %2540 = vmatmul.mubr.bf16.gmra.mrb[0].mxu0 %v2358
    %v2541 = vpop.f32.mrb[0].mxu0
    %v2542 = vadd.f32 0.0, %v2541
    %v2543 = vpop.f32.mrb[0].mxu0
    %v2544 = vpop.f32.mrb[0].mxu0
    %v2545 = vadd.f32 0.0, %v2544
    %v2546 = vpop.f32.mrb[0].mxu0
    %2547 = vmatprep.mubr.bf16.mxu0 0
    %2548 = vmatmul.mubr.bf16.gmra.mrb[0].mxu0 %v2359
    %v2549 = vpop.f32.mrb[0].mxu0
    %v2550 = vadd.f32 0.0, %v2549
    %v2551 = vpop.f32.mrb[0].mxu0
    %v2552 = vpop.f32.mrb[0].mxu0
    %v2553 = vadd.f32 0.0, %v2552
    %v2554 = vpop.f32.mrb[0].mxu0
    %2555 = vmatprep.mubr.bf16.mxu0 0
    %2556 = vmatmul.mubr.bf16.gmra.mrb[0].mxu0 %v2360
    %v2557 = vpop.f32.mrb[0].mxu0
    %v2558 = vadd.f32 0.0, %v2557
    %v2559 = vpop.f32.mrb[0].mxu0
    %v2560 = vpop.f32.mrb[0].mxu0
    %v2561 = vadd.f32 0.0, %v2560
    %v2562 = vpop.f32.mrb[0].mxu0
    %2563 = vmatprep.mubr.bf16.mxu0 0
    %2564 = vmatmul.mubr.bf16.gmra.mrb[0].mxu0 %v2361
    %v2565 = vpop.f32.mrb[0].mxu0
    %v2566 = vadd.f32 0.0, %v2565
    %v2567 = vpop.f32.mrb[0].mxu0
    %v2568 = vpop.f32.mrb[0].mxu0
    %v2569 = vadd.f32 0.0, %v2568
    %v2570 = vpop.f32.mrb[0].mxu0
    %2571 = vdwg.mxu0
    %v2572 = vadd.f32 %v2292, %v2462
    %v2573 = vadd.f32 %v2293, %v2465
    %v2574 = vadd.f32 %v2294, %v2470
    %v2575 = vadd.f32 %v2295, %v2473
    %v2576 = vadd.f32 %v2296, %v2478
    %v2577 = vadd.f32 %v2297, %v2481
    %v2578 = vadd.f32 %v2298, %v2486
    %v2579 = vadd.f32 %v2299, %v2489
    %v2580 = vadd.f32 %v2300, %v2494
    %v2581 = vadd.f32 %v2301, %v2497
    %v2582 = vadd.f32 %v2302, %v2502
    %v2583 = vadd.f32 %v2303, %v2505
    %v2584 = vadd.f32 %v2304, %v2510
    %v2585 = vadd.f32 %v2305, %v2513
    %v2586 = vadd.f32 %v2306, %v2518
    %v2587 = vadd.f32 %v2307, %v2521
    %v2588 = vadd.f32 %v2308, %v2526
    %v2589 = vadd.f32 %v2309, %v2529
    %v2590 = vadd.f32 %v2310, %v2534
    %v2591 = vadd.f32 %v2311, %v2537
    %v2592 = vadd.f32 %v2312, %v2542
    %v2593 = vadd.f32 %v2313, %v2545
    %v2594 = vadd.f32 %v2314, %v2550
    %v2595 = vadd.f32 %v2315, %v2553
    %v2596 = vadd.f32 %v2316, %v2558
    %v2597 = vadd.f32 %v2317, %v2561
    %v2598 = vadd.f32 %v2318, %v2566
    %v2599 = vadd.f32 %v2319, %v2569
    %v2601 = vlaneseq
    %v2602 = vshrl.u32 %v2601, 7
    %v2603 = vsub.s32 0, %v2602
    %v2604 = vrot.slane %v136, %v2603
    %v2606 = vadd.f32 %v2572, %v2604
    %v2607 = vadd.f32 %v2573, %v2604
    %v2608 = vadd.f32 %v2574, %v2604
    %v2609 = vadd.f32 %v2575, %v2604
    %v2610 = vadd.f32 %v2576, %v2604
    %v2611 = vadd.f32 %v2577, %v2604
    %v2612 = vadd.f32 %v2578, %v2604
    %v2613 = vadd.f32 %v2579, %v2604
    %v2614 = vadd.f32 %v2580, %v2604
    %v2615 = vadd.f32 %v2581, %v2604
    %v2616 = vadd.f32 %v2582, %v2604
    %v2617 = vadd.f32 %v2583, %v2604
    %v2618 = vadd.f32 %v2584, %v2604
    %v2619 = vadd.f32 %v2585, %v2604
    %v2620 = vadd.f32 %v2586, %v2604
    %v2621 = vadd.f32 %v2587, %v2604
    %v2622 = vadd.f32 %v2588, %v2604
    %v2623 = vadd.f32 %v2589, %v2604
    %v2624 = vadd.f32 %v2590, %v2604
    %v2625 = vadd.f32 %v2591, %v2604
    %v2626 = vadd.f32 %v2592, %v2604
    %v2627 = vadd.f32 %v2593, %v2604
    %v2628 = vadd.f32 %v2594, %v2604
    %v2629 = vadd.f32 %v2595, %v2604
    %v2630 = vadd.f32 %v2596, %v2604
    %v2631 = vadd.f32 %v2597, %v2604
    %v2632 = vadd.f32 %v2598, %v2604
    %v2633 = vadd.f32 %v2599, %v2604
    %v2634 = vmax.f32 %v2606, 0.0
    %v2635 = vmax.f32 %v2607, 0.0
    %v2636 = vmax.f32 %v2608, 0.0
    %v2637 = vmax.f32 %v2609, 0.0
    %v2638 = vmax.f32 %v2610, 0.0
    %v2639 = vmax.f32 %v2611, 0.0
    %v2640 = vmax.f32 %v2612, 0.0
    %v2641 = vmax.f32 %v2613, 0.0
    %v2642 = vmax.f32 %v2614, 0.0
    %v2643 = vmax.f32 %v2615, 0.0
    %v2644 = vmax.f32 %v2616, 0.0
    %v2645 = vmax.f32 %v2617, 0.0
    %v2646 = vmax.f32 %v2618, 0.0
    %v2647 = vmax.f32 %v2619, 0.0
    %v2648 = vmax.f32 %v2620, 0.0
    %v2649 = vmax.f32 %v2621, 0.0
    %v2650 = vmax.f32 %v2622, 0.0
    %v2651 = vmax.f32 %v2623, 0.0
    %v2652 = vmax.f32 %v2624, 0.0
    %v2653 = vmax.f32 %v2625, 0.0
    %v2654 = vmax.f32 %v2626, 0.0
    %v2655 = vmax.f32 %v2627, 0.0
    %v2656 = vmax.f32 %v2628, 0.0
    %v2657 = vmax.f32 %v2629, 0.0
    %v2658 = vmax.f32 %v2630, 0.0
    %v2659 = vmax.f32 %v2631, 0.0
    %v2660 = vmax.f32 %v2632, 0.0
    %v2661 = vmax.f32 %v2633, 0.0
    %2662 = vst [vmem:[#allocation2] sm:$0xff] %v2634
    %2663 = vst [vmem:[#allocation2 + $0x8] sm:$0xff] %v2635
    %2664 = vst [vmem:[#allocation2 + $0x10] sm:$0xff] %v2636
    %2665 = vst [vmem:[#allocation2 + $0x18] sm:$0xff] %v2637
    %2666 = vst [vmem:[#allocation2 + $0x20] sm:$0xff] %v2638
    %2667 = vst [vmem:[#allocation2 + $0x28] sm:$0xff] %v2639
    %2668 = vst [vmem:[#allocation2 + $0x30] sm:$0xff] %v2640
    %2669 = vst [vmem:[#allocation2 + $0x38] sm:$0xff] %v2641
    %2670 = vst [vmem:[#allocation2 + $0x40] sm:$0xff] %v2642
    %2671 = vst [vmem:[#allocation2 + $0x48] sm:$0xff] %v2643
    %2672 = vst [vmem:[#allocation2 + $0x50] sm:$0xff] %v2644
    %2673 = vst [vmem:[#allocation2 + $0x58] sm:$0xff] %v2645
    %2674 = vst [vmem:[#allocation2 + $0x60] sm:$0xff] %v2646
    %2675 = vst [vmem:[#allocation2 + $0x68] sm:$0xff] %v2647
    %2676 = vst [vmem:[#allocation2 + $0x70] sm:$0xff] %v2648
    %2677 = vst [vmem:[#allocation2 + $0x78] sm:$0xff] %v2649
    %2678 = vst [vmem:[#allocation2 + $0x80] sm:$0xff] %v2650
    %2679 = vst [vmem:[#allocation2 + $0x88] sm:$0xff] %v2651
    %2680 = vst [vmem:[#allocation2 + $0x90] sm:$0xff] %v2652
    %2681 = vst [vmem:[#allocation2 + $0x98] sm:$0xff] %v2653
    %2682 = vst [vmem:[#allocation2 + $0xa0] sm:$0xff] %v2654
    %2683 = vst [vmem:[#allocation2 + $0xa8] sm:$0xff] %v2655
    %2684 = vst [vmem:[#allocation2 + $0xb0] sm:$0xff] %v2656
    %2685 = vst [vmem:[#allocation2 + $0xb8] sm:$0xff] %v2657
    %2686 = vst [vmem:[#allocation2 + $0xc0] sm:$0xff] %v2658
    %2687 = vst [vmem:[#allocation2 + $0xc8] sm:$0xff] %v2659
    %2688 = vst [vmem:[#allocation2 + $0xd0] sm:$0xff] %v2660
    %2689 = vst [vmem:[#allocation2 + $0xd8] sm:$0x3f] %v2661
    %v2690 = vld [vmem:[%s0 + $0x100] sm:$0xff]
    %v2691 = vld [vmem:[%s0 + $0x108] sm:$0xff]
    %v2692 = vld [vmem:[%s0 + $0x110] sm:$0xff]
    %v2693 = vld [vmem:[%s0 + $0x118] sm:$0xff]
    %v2694 = vld [vmem:[%s0 + $0x120] sm:$0xff]
    %v2695 = vld [vmem:[%s0 + $0x128] sm:$0xff]
    %v2696 = vld [vmem:[%s0 + $0x130] sm:$0xff]
    %v2697 = vld [vmem:[%s0 + $0x138] sm:$0xff]
    %v2698 = vld [vmem:[%s0 + $0x140] sm:$0xff]
    %v2699 = vld [vmem:[%s0 + $0x148] sm:$0xff]
    %v2700 = vld [vmem:[%s0 + $0x150] sm:$0xff]
    %v2701 = vld [vmem:[%s0 + $0x158] sm:$0xff]
    %v2702 = vld [vmem:[%s0 + $0x160] sm:$0xff]
    %v2703 = vld [vmem:[%s0 + $0x168] sm:$0xff]
    %v2704 = vld [vmem:[%s0 + $0x170] sm:$0xff]
    %v2705 = vld [vmem:[%s0 + $0x178] sm:$0xff]
    %v2706 = vld [vmem:[%s0 + $0x180] sm:$0xff]
    %v2707 = vld [vmem:[%s0 + $0x188] sm:$0xff]
    %v2708 = vld [vmem:[%s0 + $0x190] sm:$0xff]
    %v2709 = vld [vmem:[%s0 + $0x198] sm:$0xff]
    %v2710 = vld [vmem:[%s0 + $0x1a0] sm:$0xff]
    %v2711 = vld [vmem:[%s0 + $0x1a8] sm:$0xff]
    %v2712 = vld [vmem:[%s0 + $0x1b0] sm:$0xff]
    %v2713 = vld [vmem:[%s0 + $0x1b8] sm:$0xff]
    %v2714 = vld [vmem:[%s0 + $0x1c0] sm:$0xff]
    %v2715 = vld [vmem:[%s0 + $0x1c8] sm:$0xff]
    %v2716 = vld [vmem:[%s0 + $0x1d0] sm:$0xff]
    %v2717 = vld [vmem:[%s0 + $0x1d8] sm:$0x3f]
    %v2718 = vpack.c.bf16 %v2691, %v2690
    %v2719 = vpack.c.bf16 %v2693, %v2692
    %v2720 = vpack.c.bf16 %v2695, %v2694
    %v2721 = vpack.c.bf16 %v2697, %v2696
    %v2722 = vpack.c.bf16 %v2699, %v2698
    %v2723 = vpack.c.bf16 %v2701, %v2700
    %v2724 = vpack.c.bf16 %v2703, %v2702
    %v2725 = vpack.c.bf16 %v2705, %v2704
    %v2726 = vpack.c.bf16 %v2707, %v2706
    %v2727 = vpack.c.bf16 %v2709, %v2708
    %v2728 = vpack.c.bf16 %v2711, %v2710
    %v2729 = vpack.c.bf16 %v2713, %v2712
    %v2730 = vpack.c.bf16 %v2715, %v2714
    %v2731 = vpack.c.bf16 %v2717, %v2716
    %v2732 = vld [vmem:[%s1] sm:$0xf]
    %v2733 = vld [vmem:[%s1 + $0x4] sm:$0xf]
    %v2734 = vld [vmem:[%s1 + $0x8] sm:$0xf]
    %v2735 = vld [vmem:[%s1 + $0xc] sm:$0xf]
    %v2736 = vld [vmem:[%s1 + $0x10] sm:$0xf]
    %v2737 = vld [vmem:[%s1 + $0x14] sm:$0xf]
    %v2738 = vld [vmem:[%s1 + $0x18] sm:$0xf]
    %v2739 = vld [vmem:[%s1 + $0x1c] sm:$0xf]
    %v2740 = vld [vmem:[%s1 + $0x20] sm:$0xf]
    %v2741 = vld [vmem:[%s1 + $0x24] sm:$0xf]
    %v2742 = vld [vmem:[%s1 + $0x28] sm:$0xf]
    %v2743 = vld [vmem:[%s1 + $0x2c] sm:$0xf]
    %v2744 = vld [vmem:[%s1 + $0x30] sm:$0xf]
    %v2745 = vld [vmem:[%s1 + $0x34] sm:$0xf]
    %v2746 = vld [vmem:[%s1 + $0x38] sm:$0xf]
    %v2747 = vld [vmem:[%s1 + $0x3c] sm:$0xf]
    %v2748 = vld [vmem:[%s0 + $0x101] sm:$0xff]
    %v2749 = vld [vmem:[%s0 + $0x109] sm:$0xff]
    %v2750 = vld [vmem:[%s0 + $0x111] sm:$0xff]
    %v2751 = vld [vmem:[%s0 + $0x119] sm:$0xff]
    %v2752 = vld [vmem:[%s0 + $0x121] sm:$0xff]
    %v2753 = vld [vmem:[%s0 + $0x129] sm:$0xff]
    %v2754 = vld [vmem:[%s0 + $0x131] sm:$0xff]
    %v2755 = vld [vmem:[%s0 + $0x139] sm:$0xff]
    %v2756 = vld [vmem:[%s0 + $0x141] sm:$0xff]
    %v2757 = vld [vmem:[%s0 + $0x149] sm:$0xff]
    %v2758 = vld [vmem:[%s0 + $0x151] sm:$0xff]
    %v2759 = vld [vmem:[%s0 + $0x159] sm:$0xff]
    %v2760 = vld [vmem:[%s0 + $0x161] sm:$0xff]
    %v2761 = vld [vmem:[%s0 + $0x169] sm:$0xff]
    %v2762 = vld [vmem:[%s0 + $0x171] sm:$0xff]
    %v2763 = vld [vmem:[%s0 + $0x179] sm:$0xff]
    %v2764 = vld [vmem:[%s0 + $0x181] sm:$0xff]
    %v2765 = vld [vmem:[%s0 + $0x189] sm:$0xff]
    %v2766 = vld [vmem:[%s0 + $0x191] sm:$0xff]
    %v2767 = vld [vmem:[%s0 + $0x199] sm:$0xff]
    %v2768 = vld [vmem:[%s0 + $0x1a1] sm:$0xff]
    %v2769 = vld [vmem:[%s0 + $0x1a9] sm:$0xff]
    %v2770 = vld [vmem:[%s0 + $0x1b1] sm:$0xff]
    %v2771 = vld [vmem:[%s0 + $0x1b9] sm:$0xff]
    %v2772 = vld [vmem:[%s0 + $0x1c1] sm:$0xff]
    %v2773 = vld [vmem:[%s0 + $0x1c9] sm:$0xff]
    %v2774 = vld [vmem:[%s0 + $0x1d1] sm:$0xff]
    %v2775 = vld [vmem:[%s0 + $0x1d9] sm:$0x3f]
    %v2776 = vpack.c.bf16 %v2749, %v2748
    %v2777 = vpack.c.bf16 %v2751, %v2750
    %v2778 = vpack.c.bf16 %v2753, %v2752
    %v2779 = vpack.c.bf16 %v2755, %v2754
    %v2780 = vpack.c.bf16 %v2757, %v2756
    %v2781 = vpack.c.bf16 %v2759, %v2758
    %v2782 = vpack.c.bf16 %v2761, %v2760
    %v2783 = vpack.c.bf16 %v2763, %v2762
    %v2784 = vpack.c.bf16 %v2765, %v2764
    %v2785 = vpack.c.bf16 %v2767, %v2766
    %v2786 = vpack.c.bf16 %v2769, %v2768
    %v2787 = vpack.c.bf16 %v2771, %v2770
    %v2788 = vpack.c.bf16 %v2773, %v2772
    %v2789 = vpack.c.bf16 %v2775, %v2774
    %v2790 = vld [vmem:[%s237] sm:$0xf]
    %v2791 = vld [vmem:[%s237 + $0x4] sm:$0xf]
    %v2792 = vld [vmem:[%s237 + $0x8] sm:$0xf]
    %v2793 = vld [vmem:[%s237 + $0xc] sm:$0xf]
    %v2794 = vld [vmem:[%s237 + $0x10] sm:$0xf]
    %v2795 = vld [vmem:[%s237 + $0x14] sm:$0xf]
    %v2796 = vld [vmem:[%s237 + $0x18] sm:$0xf]
    %v2797 = vld [vmem:[%s237 + $0x1c] sm:$0xf]
    %v2798 = vld [vmem:[%s237 + $0x20] sm:$0xf]
    %v2799 = vld [vmem:[%s237 + $0x24] sm:$0xf]
    %v2800 = vld [vmem:[%s237 + $0x28] sm:$0xf]
    %v2801 = vld [vmem:[%s237 + $0x2c] sm:$0xf]
    %v2802 = vld [vmem:[%s237 + $0x30] sm:$0xf]
    %v2803 = vld [vmem:[%s237 + $0x34] sm:$0xf]
    %v2804 = vld [vmem:[%s237 + $0x38] sm:$0xf]
    %v2805 = vld [vmem:[%s237 + $0x3c] sm:$0xf]
    %v2822 = vunpack.c.l.b16 %v2790
    %v2823 = vunpack.c.l.b16 %v2791
    %v2824 = vunpack.c.l.b16 %v2792
    %v2825 = vunpack.c.l.b16 %v2793
    %v2826 = vunpack.c.l.b16 %v2794
    %v2827 = vunpack.c.l.b16 %v2795
    %v2828 = vunpack.c.l.b16 %v2796
    %v2829 = vunpack.c.l.b16 %v2797
    %v2830 = vunpack.c.l.b16 %v2798
    %v2831 = vunpack.c.l.b16 %v2799
    %v2832 = vunpack.c.l.b16 %v2800
    %v2833 = vunpack.c.l.b16 %v2801
    %v2834 = vunpack.c.l.b16 %v2802
    %v2835 = vunpack.c.l.b16 %v2803
    %v2836 = vunpack.c.l.b16 %v2804
    %v2837 = vunpack.c.l.b16 %v2805
    %v2838 = vpack.c.b16 %v2823, %v2822
    %v2839 = vpack.c.b16 %v2825, %v2824
    %v2840 = vpack.c.b16 %v2827, %v2826
    %v2841 = vpack.c.b16 %v2829, %v2828
    %v2842 = vpack.c.b16 %v2831, %v2830
    %v2843 = vpack.c.b16 %v2833, %v2832
    %v2844 = vpack.c.b16 %v2835, %v2834
    %v2845 = vpack.c.b16 %v2837, %v2836
    %2854 = vmatprep.subr.bf16.mxu0 0
    %2855 = vmatpush1.bf16.msra.mxu0 %v2838
    %2856 = vmatprep.subr.bf16.mxu0 0
    %2857 = vmatpush1.bf16.msra.mxu0 %v2839
    %2858 = vmatprep.subr.bf16.mxu0 0
    %2859 = vmatpush1.bf16.msra.mxu0 %v2840
    %2860 = vmatprep.subr.bf16.mxu0 0
    %2861 = vmatpush1.bf16.msra.mxu0 %v2841
    %2862 = vmatprep.subr.bf16.mxu0 0
    %2863 = vmatpush1.bf16.msra.mxu0 %v2842
    %2864 = vmatprep.subr.bf16.mxu0 0
    %2865 = vmatpush1.bf16.msra.mxu0 %v2843
    %2866 = vmatprep.subr.bf16.mxu0 0
    %2867 = vmatpush1.bf16.msra.mxu0 %v2844
    %2868 = vmatprep.subr.bf16.mxu0 0
    %2869 = vmatpush1.bf16.msra.mxu0 %v2845
    %2870 = vmatprep.subr.bf16.mxu0 0
    %2871 = vmatpush1.bf16.msra.mxu0 0
    %2872 = vmatprep.subr.bf16.mxu0 0
    %2873 = vmatpush1.bf16.msra.mxu0 0
    %2874 = vmatprep.subr.bf16.mxu0 0
    %2875 = vmatpush1.bf16.msra.mxu0 0
    %2876 = vmatprep.subr.bf16.mxu0 0
    %2877 = vmatpush1.bf16.msra.mxu0 0
    %2878 = vmatprep.subr.bf16.mxu0 0
    %2879 = vmatpush1.bf16.msra.mxu0 0
    %2880 = vmatprep.subr.bf16.mxu0 0
    %2881 = vmatpush1.bf16.msra.mxu0 0
    %2882 = vmatprep.subr.bf16.mxu0 0
    %2883 = vmatpush1.bf16.msra.mxu0 0
    %2884 = vmatprep.subr.bf16.mxu0 0
    %2885 = vmatpush1.bf16.msra.mxu0 0
    %2886 = vmatprep.mubr.bf16.mxu0 0
    %2887 = vmatmul.mubr.bf16.gmra.mrb[0].mxu0 %v2776
    %v2888 = vpop.f32.mrb[0].mxu0
    %v2889 = vadd.f32 0.0, %v2888
    %v2890 = vpop.f32.mrb[0].mxu0
    %v2891 = vpop.f32.mrb[0].mxu0
    %v2892 = vadd.f32 0.0, %v2891
    %v2893 = vpop.f32.mrb[0].mxu0
    %2894 = vmatprep.mubr.bf16.mxu0 0
    %2895 = vmatmul.mubr.bf16.gmra.mrb[0].mxu0 %v2777
    %v2896 = vpop.f32.mrb[0].mxu0
    %v2897 = vadd.f32 0.0, %v2896
    %v2898 = vpop.f32.mrb[0].mxu0
    %v2899 = vpop.f32.mrb[0].mxu0
    %v2900 = vadd.f32 0.0, %v2899
    %v2901 = vpop.f32.mrb[0].mxu0
    %2902 = vmatprep.mubr.bf16.mxu0 0
    %2903 = vmatmul.mubr.bf16.gmra.mrb[0].mxu0 %v2778
    %v2904 = vpop.f32.mrb[0].mxu0
    %v2905 = vadd.f32 0.0, %v2904
    %v2906 = vpop.f32.mrb[0].mxu0
    %v2907 = vpop.f32.mrb[0].mxu0
    %v2908 = vadd.f32 0.0, %v2907
    %v2909 = vpop.f32.mrb[0].mxu0
    %2910 = vmatprep.mubr.bf16.mxu0 0
    %2911 = vmatmul.mubr.bf16.gmra.mrb[0].mxu0 %v2779
    %v2912 = vpop.f32.mrb[0].mxu0
    %v2913 = vadd.f32 0.0, %v2912
    %v2914 = vpop.f32.mrb[0].mxu0
    %v2915 = vpop.f32.mrb[0].mxu0
    %v2916 = vadd.f32 0.0, %v2915
    %v2917 = vpop.f32.mrb[0].mxu0
    %2918 = vmatprep.mubr.bf16.mxu0 0
    %2919 = vmatmul.mubr.bf16.gmra.mrb[0].mxu0 %v2780
    %v2920 = vpop.f32.mrb[0].mxu0
    %v2921 = vadd.f32 0.0, %v2920
    %v2922 = vpop.f32.mrb[0].mxu0
    %v2923 = vpop.f32.mrb[0].mxu0
    %v2924 = vadd.f32 0.0, %v2923
    %v2925 = vpop.f32.mrb[0].mxu0
    %2926 = vmatprep.mubr.bf16.mxu0 0
    %2927 = vmatmul.mubr.bf16.gmra.mrb[0].mxu0 %v2781
    %v2928 = vpop.f32.mrb[0].mxu0
    %v2929 = vadd.f32 0.0, %v2928
    %v2930 = vpop.f32.mrb[0].mxu0
    %v2931 = vpop.f32.mrb[0].mxu0
    %v2932 = vadd.f32 0.0, %v2931
    %v2933 = vpop.f32.mrb[0].mxu0
    %2934 = vmatprep.mubr.bf16.mxu0 0
    %2935 = vmatmul.mubr.bf16.gmra.mrb[0].mxu0 %v2782
    %v2936 = vpop.f32.mrb[0].mxu0
    %v2937 = vadd.f32 0.0, %v2936
    %v2938 = vpop.f32.mrb[0].mxu0
    %v2939 = vpop.f32.mrb[0].mxu0
    %v2940 = vadd.f32 0.0, %v2939
    %v2941 = vpop.f32.mrb[0].mxu0
    %2942 = vmatprep.mubr.bf16.mxu0 0
    %2943 = vmatmul.mubr.bf16.gmra.mrb[0].mxu0 %v2783
    %v2944 = vpop.f32.mrb[0].mxu0
    %v2945 = vadd.f32 0.0, %v2944
    %v2946 = vpop.f32.mrb[0].mxu0
    %v2947 = vpop.f32.mrb[0].mxu0
    %v2948 = vadd.f32 0.0, %v2947
    %v2949 = vpop.f32.mrb[0].mxu0
    %2950 = vmatprep.mubr.bf16.mxu0 0
    %2951 = vmatmul.mubr.bf16.gmra.mrb[0].mxu0 %v2784
    %v2952 = vpop.f32.mrb[0].mxu0
    %v2953 = vadd.f32 0.0, %v2952
    %v2954 = vpop.f32.mrb[0].mxu0
    %v2955 = vpop.f32.mrb[0].mxu0
    %v2956 = vadd.f32 0.0, %v2955
    %v2957 = vpop.f32.mrb[0].mxu0
    %2958 = vmatprep.mubr.bf16.mxu0 0
    %2959 = vmatmul.mubr.bf16.gmra.mrb[0].mxu0 %v2785
    %v2960 = vpop.f32.mrb[0].mxu0
    %v2961 = vadd.f32 0.0, %v2960
    %v2962 = vpop.f32.mrb[0].mxu0
    %v2963 = vpop.f32.mrb[0].mxu0
    %v2964 = vadd.f32 0.0, %v2963
    %v2965 = vpop.f32.mrb[0].mxu0
    %2966 = vmatprep.mubr.bf16.mxu0 0
    %2967 = vmatmul.mubr.bf16.gmra.mrb[0].mxu0 %v2786
    %v2968 = vpop.f32.mrb[0].mxu0
    %v2969 = vadd.f32 0.0, %v2968
    %v2970 = vpop.f32.mrb[0].mxu0
    %v2971 = vpop.f32.mrb[0].mxu0
    %v2972 = vadd.f32 0.0, %v2971
    %v2973 = vpop.f32.mrb[0].mxu0
    %2974 = vmatprep.mubr.bf16.mxu0 0
    %2975 = vmatmul.mubr.bf16.gmra.mrb[0].mxu0 %v2787
    %v2976 = vpop.f32.mrb[0].mxu0
    %v2977 = vadd.f32 0.0, %v2976
    %v2978 = vpop.f32.mrb[0].mxu0
    %v2979 = vpop.f32.mrb[0].mxu0
    %v2980 = vadd.f32 0.0, %v2979
    %v2981 = vpop.f32.mrb[0].mxu0
    %2982 = vmatprep.mubr.bf16.mxu0 0
    %2983 = vmatmul.mubr.bf16.gmra.mrb[0].mxu0 %v2788
    %v2984 = vpop.f32.mrb[0].mxu0
    %v2985 = vadd.f32 0.0, %v2984
    %v2986 = vpop.f32.mrb[0].mxu0
    %v2987 = vpop.f32.mrb[0].mxu0
    %v2988 = vadd.f32 0.0, %v2987
    %v2989 = vpop.f32.mrb[0].mxu0
    %2990 = vmatprep.mubr.bf16.mxu0 0
    %2991 = vmatmul.mubr.bf16.gmra.mrb[0].mxu0 %v2789
    %v2992 = vpop.f32.mrb[0].mxu0
    %v2993 = vadd.f32 0.0, %v2992
    %v2994 = vpop.f32.mrb[0].mxu0
    %v2995 = vpop.f32.mrb[0].mxu0
    %v2996 = vadd.f32 0.0, %v2995
    %v2997 = vpop.f32.mrb[0].mxu0
    %2998 = vdwg.mxu0
    %v3015 = vunpack.c.l.b16 %v2732
    %v3016 = vunpack.c.l.b16 %v2733
    %v3017 = vunpack.c.l.b16 %v2734
    %v3018 = vunpack.c.l.b16 %v2735
    %v3019 = vunpack.c.l.b16 %v2736
    %v3020 = vunpack.c.l.b16 %v2737
    %v3021 = vunpack.c.l.b16 %v2738
    %v3022 = vunpack.c.l.b16 %v2739
    %v3023 = vunpack.c.l.b16 %v2740
    %v3024 = vunpack.c.l.b16 %v2741
    %v3025 = vunpack.c.l.b16 %v2742
    %v3026 = vunpack.c.l.b16 %v2743
    %v3027 = vunpack.c.l.b16 %v2744
    %v3028 = vunpack.c.l.b16 %v2745
    %v3029 = vunpack.c.l.b16 %v2746
    %v3030 = vunpack.c.l.b16 %v2747
    %v3031 = vpack.c.b16 %v3016, %v3015
    %v3032 = vpack.c.b16 %v3018, %v3017
    %v3033 = vpack.c.b16 %v3020, %v3019
    %v3034 = vpack.c.b16 %v3022, %v3021
    %v3035 = vpack.c.b16 %v3024, %v3023
    %v3036 = vpack.c.b16 %v3026, %v3025
    %v3037 = vpack.c.b16 %v3028, %v3027
    %v3038 = vpack.c.b16 %v3030, %v3029
    %3047 = vmatprep.subr.bf16.mxu0 0
    %3048 = vmatpush1.bf16.msra.mxu0 %v3031
    %3049 = vmatprep.subr.bf16.mxu0 0
    %3050 = vmatpush1.bf16.msra.mxu0 %v3032
    %3051 = vmatprep.subr.bf16.mxu0 0
    %3052 = vmatpush1.bf16.msra.mxu0 %v3033
    %3053 = vmatprep.subr.bf16.mxu0 0
    %3054 = vmatpush1.bf16.msra.mxu0 %v3034
    %3055 = vmatprep.subr.bf16.mxu0 0
    %3056 = vmatpush1.bf16.msra.mxu0 %v3035
    %3057 = vmatprep.subr.bf16.mxu0 0
    %3058 = vmatpush1.bf16.msra.mxu0 %v3036
    %3059 = vmatprep.subr.bf16.mxu0 0
    %3060 = vmatpush1.bf16.msra.mxu0 %v3037
    %3061 = vmatprep.subr.bf16.mxu0 0
    %3062 = vmatpush1.bf16.msra.mxu0 %v3038
    %3063 = vmatprep.subr.bf16.mxu0 0
    %3064 = vmatpush1.bf16.msra.mxu0 0
    %3065 = vmatprep.subr.bf16.mxu0 0
    %3066 = vmatpush1.bf16.msra.mxu0 0
    %3067 = vmatprep.subr.bf16.mxu0 0
    %3068 = vmatpush1.bf16.msra.mxu0 0
    %3069 = vmatprep.subr.bf16.mxu0 0
    %3070 = vmatpush1.bf16.msra.mxu0 0
    %3071 = vmatprep.subr.bf16.mxu0 0
    %3072 = vmatpush1.bf16.msra.mxu0 0
    %3073 = vmatprep.subr.bf16.mxu0 0
    %3074 = vmatpush1.bf16.msra.mxu0 0
    %3075 = vmatprep.subr.bf16.mxu0 0
    %3076 = vmatpush1.bf16.msra.mxu0 0
    %3077 = vmatprep.subr.bf16.mxu0 0
    %3078 = vmatpush1.bf16.msra.mxu0 0
    %3079 = vmatprep.mubr.bf16.mxu0 0
    %3080 = vmatmul.mubr.bf16.gmra.mrb[0].mxu0 %v2718
    %v3081 = vpop.f32.mrb[0].mxu0
    %v3082 = vadd.f32 %v2889, %v3081
    %v3083 = vpop.f32.mrb[0].mxu0
    %v3084 = vpop.f32.mrb[0].mxu0
    %v3085 = vadd.f32 %v2892, %v3084
    %v3086 = vpop.f32.mrb[0].mxu0
    %3087 = vmatprep.mubr.bf16.mxu0 0
    %3088 = vmatmul.mubr.bf16.gmra.mrb[0].mxu0 %v2719
    %v3089 = vpop.f32.mrb[0].mxu0
    %v3090 = vadd.f32 %v2897, %v3089
    %v3091 = vpop.f32.mrb[0].mxu0
    %v3092 = vpop.f32.mrb[0].mxu0
    %v3093 = vadd.f32 %v2900, %v3092
    %v3094 = vpop.f32.mrb[0].mxu0
    %3095 = vmatprep.mubr.bf16.mxu0 0
    %3096 = vmatmul.mubr.bf16.gmra.mrb[0].mxu0 %v2720
    %v3097 = vpop.f32.mrb[0].mxu0
    %v3098 = vadd.f32 %v2905, %v3097
    %v3099 = vpop.f32.mrb[0].mxu0
    %v3100 = vpop.f32.mrb[0].mxu0
    %v3101 = vadd.f32 %v2908, %v3100
    %v3102 = vpop.f32.mrb[0].mxu0
    %3103 = vmatprep.mubr.bf16.mxu0 0
    %3104 = vmatmul.mubr.bf16.gmra.mrb[0].mxu0 %v2721
    %v3105 = vpop.f32.mrb[0].mxu0
    %v3106 = vadd.f32 %v2913, %v3105
    %v3107 = vpop.f32.mrb[0].mxu0
    %v3108 = vpop.f32.mrb[0].mxu0
    %v3109 = vadd.f32 %v2916, %v3108
    %v3110 = vpop.f32.mrb[0].mxu0
    %3111 = vmatprep.mubr.bf16.mxu0 0
    %3112 = vmatmul.mubr.bf16.gmra.mrb[0].mxu0 %v2722
    %v3113 = vpop.f32.mrb[0].mxu0
    %v3114 = vadd.f32 %v2921, %v3113
    %v3115 = vpop.f32.mrb[0].mxu0
    %v3116 = vpop.f32.mrb[0].mxu0
    %v3117 = vadd.f32 %v2924, %v3116
    %v3118 = vpop.f32.mrb[0].mxu0
    %3119 = vmatprep.mubr.bf16.mxu0 0
    %3120 = vmatmul.mubr.bf16.gmra.mrb[0].mxu0 %v2723
    %v3121 = vpop.f32.mrb[0].mxu0
    %v3122 = vadd.f32 %v2929, %v3121
    %v3123 = vpop.f32.mrb[0].mxu0
    %v3124 = vpop.f32.mrb[0].mxu0
    %v3125 = vadd.f32 %v2932, %v3124
    %v3126 = vpop.f32.mrb[0].mxu0
    %3127 = vmatprep.mubr.bf16.mxu0 0
    %3128 = vmatmul.mubr.bf16.gmra.mrb[0].mxu0 %v2724
    %v3129 = vpop.f32.mrb[0].mxu0
    %v3130 = vadd.f32 %v2937, %v3129
    %v3131 = vpop.f32.mrb[0].mxu0
    %v3132 = vpop.f32.mrb[0].mxu0
    %v3133 = vadd.f32 %v2940, %v3132
    %v3134 = vpop.f32.mrb[0].mxu0
    %3135 = vmatprep.mubr.bf16.mxu0 0
    %3136 = vmatmul.mubr.bf16.gmra.mrb[0].mxu0 %v2725
    %v3137 = vpop.f32.mrb[0].mxu0
    %v3138 = vadd.f32 %v2945, %v3137
    %v3139 = vpop.f32.mrb[0].mxu0
    %v3140 = vpop.f32.mrb[0].mxu0
    %v3141 = vadd.f32 %v2948, %v3140
    %v3142 = vpop.f32.mrb[0].mxu0
    %3143 = vmatprep.mubr.bf16.mxu0 0
    %3144 = vmatmul.mubr.bf16.gmra.mrb[0].mxu0 %v2726
    %v3145 = vpop.f32.mrb[0].mxu0
    %v3146 = vadd.f32 %v2953, %v3145
    %v3147 = vpop.f32.mrb[0].mxu0
    %v3148 = vpop.f32.mrb[0].mxu0
    %v3149 = vadd.f32 %v2956, %v3148
    %v3150 = vpop.f32.mrb[0].mxu0
    %3151 = vmatprep.mubr.bf16.mxu0 0
    %3152 = vmatmul.mubr.bf16.gmra.mrb[0].mxu0 %v2727
    %v3153 = vpop.f32.mrb[0].mxu0
    %v3154 = vadd.f32 %v2961, %v3153
    %v3155 = vpop.f32.mrb[0].mxu0
    %v3156 = vpop.f32.mrb[0].mxu0
    %v3157 = vadd.f32 %v2964, %v3156
    %v3158 = vpop.f32.mrb[0].mxu0
    %3159 = vmatprep.mubr.bf16.mxu0 0
    %3160 = vmatmul.mubr.bf16.gmra.mrb[0].mxu0 %v2728
    %v3161 = vpop.f32.mrb[0].mxu0
    %v3162 = vadd.f32 %v2969, %v3161
    %v3163 = vpop.f32.mrb[0].mxu0
    %v3164 = vpop.f32.mrb[0].mxu0
    %v3165 = vadd.f32 %v2972, %v3164
    %v3166 = vpop.f32.mrb[0].mxu0
    %3167 = vmatprep.mubr.bf16.mxu0 0
    %3168 = vmatmul.mubr.bf16.gmra.mrb[0].mxu0 %v2729
    %v3169 = vpop.f32.mrb[0].mxu0
    %v3170 = vadd.f32 %v2977, %v3169
    %v3171 = vpop.f32.mrb[0].mxu0
    %v3172 = vpop.f32.mrb[0].mxu0
    %v3173 = vadd.f32 %v2980, %v3172
    %v3174 = vpop.f32.mrb[0].mxu0
    %3175 = vmatprep.mubr.bf16.mxu0 0
    %3176 = vmatmul.mubr.bf16.gmra.mrb[0].mxu0 %v2730
    %v3177 = vpop.f32.mrb[0].mxu0
    %v3178 = vadd.f32 %v2985, %v3177
    %v3179 = vpop.f32.mrb[0].mxu0
    %v3180 = vpop.f32.mrb[0].mxu0
    %v3181 = vadd.f32 %v2988, %v3180
    %v3182 = vpop.f32.mrb[0].mxu0
    %3183 = vmatprep.mubr.bf16.mxu0 0
    %3184 = vmatmul.mubr.bf16.gmra.mrb[0].mxu0 %v2731
    %v3185 = vpop.f32.mrb[0].mxu0
    %v3186 = vadd.f32 %v2993, %v3185
    %v3187 = vpop.f32.mrb[0].mxu0
    %v3188 = vpop.f32.mrb[0].mxu0
    %v3189 = vadd.f32 %v2996, %v3188
    %v3190 = vpop.f32.mrb[0].mxu0
    %3191 = vdwg.mxu0
    %v3192 = vld [vmem:[%s0 + $0x102] sm:$0xff]
    %v3193 = vld [vmem:[%s0 + $0x10a] sm:$0xff]
    %v3194 = vld [vmem:[%s0 + $0x112] sm:$0xff]
    %v3195 = vld [vmem:[%s0 + $0x11a] sm:$0xff]
    %v3196 = vld [vmem:[%s0 + $0x122] sm:$0xff]
    %v3197 = vld [vmem:[%s0 + $0x12a] sm:$0xff]
    %v3198 = vld [vmem:[%s0 + $0x132] sm:$0xff]
    %v3199 = vld [vmem:[%s0 + $0x13a] sm:$0xff]
    %v3200 = vld [vmem:[%s0 + $0x142] sm:$0xff]
    %v3201 = vld [vmem:[%s0 + $0x14a] sm:$0xff]
    %v3202 = vld [vmem:[%s0 + $0x152] sm:$0xff]
    %v3203 = vld [vmem:[%s0 + $0x15a] sm:$0xff]
    %v3204 = vld [vmem:[%s0 + $0x162] sm:$0xff]
    %v3205 = vld [vmem:[%s0 + $0x16a] sm:$0xff]
    %v3206 = vld [vmem:[%s0 + $0x172] sm:$0xff]
    %v3207 = vld [vmem:[%s0 + $0x17a] sm:$0xff]
    %v3208 = vld [vmem:[%s0 + $0x182] sm:$0xff]
    %v3209 = vld [vmem:[%s0 + $0x18a] sm:$0xff]
    %v3210 = vld [vmem:[%s0 + $0x192] sm:$0xff]
    %v3211 = vld [vmem:[%s0 + $0x19a] sm:$0xff]
    %v3212 = vld [vmem:[%s0 + $0x1a2] sm:$0xff]
    %v3213 = vld [vmem:[%s0 + $0x1aa] sm:$0xff]
    %v3214 = vld [vmem:[%s0 + $0x1b2] sm:$0xff]
    %v3215 = vld [vmem:[%s0 + $0x1ba] sm:$0xff]
    %v3216 = vld [vmem:[%s0 + $0x1c2] sm:$0xff]
    %v3217 = vld [vmem:[%s0 + $0x1ca] sm:$0xff]
    %v3218 = vld [vmem:[%s0 + $0x1d2] sm:$0xff]
    %v3219 = vld [vmem:[%s0 + $0x1da] sm:$0x3f]
    %v3220 = vpack.c.bf16 %v3193, %v3192
    %v3221 = vpack.c.bf16 %v3195, %v3194
    %v3222 = vpack.c.bf16 %v3197, %v3196
    %v3223 = vpack.c.bf16 %v3199, %v3198
    %v3224 = vpack.c.bf16 %v3201, %v3200
    %v3225 = vpack.c.bf16 %v3203, %v3202
    %v3226 = vpack.c.bf16 %v3205, %v3204
    %v3227 = vpack.c.bf16 %v3207, %v3206
    %v3228 = vpack.c.bf16 %v3209, %v3208
    %v3229 = vpack.c.bf16 %v3211, %v3210
    %v3230 = vpack.c.bf16 %v3213, %v3212
    %v3231 = vpack.c.bf16 %v3215, %v3214
    %v3232 = vpack.c.bf16 %v3217, %v3216
    %v3233 = vpack.c.bf16 %v3219, %v3218
    %v3234 = vld [vmem:[%s682] sm:$0xf]
    %v3235 = vld [vmem:[%s682 + $0x4] sm:$0xf]
    %v3236 = vld [vmem:[%s682 + $0x8] sm:$0xf]
    %v3237 = vld [vmem:[%s682 + $0xc] sm:$0xf]
    %v3238 = vld [vmem:[%s682 + $0x10] sm:$0xf]
    %v3239 = vld [vmem:[%s682 + $0x14] sm:$0xf]
    %v3240 = vld [vmem:[%s682 + $0x18] sm:$0xf]
    %v3241 = vld [vmem:[%s682 + $0x1c] sm:$0xf]
    %v3242 = vld [vmem:[%s682 + $0x20] sm:$0xf]
    %v3243 = vld [vmem:[%s682 + $0x24] sm:$0xf]
    %v3244 = vld [vmem:[%s682 + $0x28] sm:$0xf]
    %v3245 = vld [vmem:[%s682 + $0x2c] sm:$0xf]
    %v3246 = vld [vmem:[%s682 + $0x30] sm:$0xf]
    %v3247 = vld [vmem:[%s682 + $0x34] sm:$0xf]
    %v3248 = vld [vmem:[%s682 + $0x38] sm:$0xf]
    %v3249 = vld [vmem:[%s682 + $0x3c] sm:$0xf]
    %v3266 = vunpack.c.l.b16 %v3234
    %v3267 = vunpack.c.l.b16 %v3235
    %v3268 = vunpack.c.l.b16 %v3236
    %v3269 = vunpack.c.l.b16 %v3237
    %v3270 = vunpack.c.l.b16 %v3238
    %v3271 = vunpack.c.l.b16 %v3239
    %v3272 = vunpack.c.l.b16 %v3240
    %v3273 = vunpack.c.l.b16 %v3241
    %v3274 = vunpack.c.l.b16 %v3242
    %v3275 = vunpack.c.l.b16 %v3243
    %v3276 = vunpack.c.l.b16 %v3244
    %v3277 = vunpack.c.l.b16 %v3245
    %v3278 = vunpack.c.l.b16 %v3246
    %v3279 = vunpack.c.l.b16 %v3247
    %v3280 = vunpack.c.l.b16 %v3248
    %v3281 = vunpack.c.l.b16 %v3249
    %v3282 = vpack.c.b16 %v3267, %v3266
    %v3283 = vpack.c.b16 %v3269, %v3268
    %v3284 = vpack.c.b16 %v3271, %v3270
    %v3285 = vpack.c.b16 %v3273, %v3272
    %v3286 = vpack.c.b16 %v3275, %v3274
    %v3287 = vpack.c.b16 %v3277, %v3276
    %v3288 = vpack.c.b16 %v3279, %v3278
    %v3289 = vpack.c.b16 %v3281, %v3280
    %3298 = vmatprep.subr.bf16.mxu0 0
    %3299 = vmatpush1.bf16.msra.mxu0 %v3282
    %3300 = vmatprep.subr.bf16.mxu0 0
    %3301 = vmatpush1.bf16.msra.mxu0 %v3283
    %3302 = vmatprep.subr.bf16.mxu0 0
    %3303 = vmatpush1.bf16.msra.mxu0 %v3284
    %3304 = vmatprep.subr.bf16.mxu0 0
    %3305 = vmatpush1.bf16.msra.mxu0 %v3285
    %3306 = vmatprep.subr.bf16.mxu0 0
    %3307 = vmatpush1.bf16.msra.mxu0 %v3286
    %3308 = vmatprep.subr.bf16.mxu0 0
    %3309 = vmatpush1.bf16.msra.mxu0 %v3287
    %3310 = vmatprep.subr.bf16.mxu0 0
    %3311 = vmatpush1.bf16.msra.mxu0 %v3288
    %3312 = vmatprep.subr.bf16.mxu0 0
    %3313 = vmatpush1.bf16.msra.mxu0 %v3289
    %3314 = vmatprep.subr.bf16.mxu0 0
    %3315 = vmatpush1.bf16.msra.mxu0 0
    %3316 = vmatprep.subr.bf16.mxu0 0
    %3317 = vmatpush1.bf16.msra.mxu0 0
    %3318 = vmatprep.subr.bf16.mxu0 0
    %3319 = vmatpush1.bf16.msra.mxu0 0
    %3320 = vmatprep.subr.bf16.mxu0 0
    %3321 = vmatpush1.bf16.msra.mxu0 0
    %3322 = vmatprep.subr.bf16.mxu0 0
    %3323 = vmatpush1.bf16.msra.mxu0 0
    %3324 = vmatprep.subr.bf16.mxu0 0
    %3325 = vmatpush1.bf16.msra.mxu0 0
    %3326 = vmatprep.subr.bf16.mxu0 0
    %3327 = vmatpush1.bf16.msra.mxu0 0
    %3328 = vmatprep.subr.bf16.mxu0 0
    %3329 = vmatpush1.bf16.msra.mxu0 0
    %3330 = vmatprep.mubr.bf16.mxu0 0
    %3331 = vmatmul.mubr.bf16.gmra.mrb[0].mxu0 %v3220
    %v3332 = vpop.f32.mrb[0].mxu0
    %v3333 = vadd.f32 0.0, %v3332
    %v3334 = vpop.f32.mrb[0].mxu0
    %v3335 = vpop.f32.mrb[0].mxu0
    %v3336 = vadd.f32 0.0, %v3335
    %v3337 = vpop.f32.mrb[0].mxu0
    %3338 = vmatprep.mubr.bf16.mxu0 0
    %3339 = vmatmul.mubr.bf16.gmra.mrb[0].mxu0 %v3221
    %v3340 = vpop.f32.mrb[0].mxu0
    %v3341 = vadd.f32 0.0, %v3340
    %v3342 = vpop.f32.mrb[0].mxu0
    %v3343 = vpop.f32.mrb[0].mxu0
    %v3344 = vadd.f32 0.0, %v3343
    %v3345 = vpop.f32.mrb[0].mxu0
    %3346 = vmatprep.mubr.bf16.mxu0 0
    %3347 = vmatmul.mubr.bf16.gmra.mrb[0].mxu0 %v3222
    %v3348 = vpop.f32.mrb[0].mxu0
    %v3349 = vadd.f32 0.0, %v3348
    %v3350 = vpop.f32.mrb[0].mxu0
    %v3351 = vpop.f32.mrb[0].mxu0
    %v3352 = vadd.f32 0.0, %v3351
    %v3353 = vpop.f32.mrb[0].mxu0
    %3354 = vmatprep.mubr.bf16.mxu0 0
    %3355 = vmatmul.mubr.bf16.gmra.mrb[0].mxu0 %v3223
    %v3356 = vpop.f32.mrb[0].mxu0
    %v3357 = vadd.f32 0.0, %v3356
    %v3358 = vpop.f32.mrb[0].mxu0
    %v3359 = vpop.f32.mrb[0].mxu0
    %v3360 = vadd.f32 0.0, %v3359
    %v3361 = vpop.f32.mrb[0].mxu0
    %3362 = vmatprep.mubr.bf16.mxu0 0
    %3363 = vmatmul.mubr.bf16.gmra.mrb[0].mxu0 %v3224
    %v3364 = vpop.f32.mrb[0].mxu0
    %v3365 = vadd.f32 0.0, %v3364
    %v3366 = vpop.f32.mrb[0].mxu0
    %v3367 = vpop.f32.mrb[0].mxu0
    %v3368 = vadd.f32 0.0, %v3367
    %v3369 = vpop.f32.mrb[0].mxu0
    %3370 = vmatprep.mubr.bf16.mxu0 0
    %3371 = vmatmul.mubr.bf16.gmra.mrb[0].mxu0 %v3225
    %v3372 = vpop.f32.mrb[0].mxu0
    %v3373 = vadd.f32 0.0, %v3372
    %v3374 = vpop.f32.mrb[0].mxu0
    %v3375 = vpop.f32.mrb[0].mxu0
    %v3376 = vadd.f32 0.0, %v3375
    %v3377 = vpop.f32.mrb[0].mxu0
    %3378 = vmatprep.mubr.bf16.mxu0 0
    %3379 = vmatmul.mubr.bf16.gmra.mrb[0].mxu0 %v3226
    %v3380 = vpop.f32.mrb[0].mxu0
    %v3381 = vadd.f32 0.0, %v3380
    %v3382 = vpop.f32.mrb[0].mxu0
    %v3383 = vpop.f32.mrb[0].mxu0
    %v3384 = vadd.f32 0.0, %v3383
    %v3385 = vpop.f32.mrb[0].mxu0
    %3386 = vmatprep.mubr.bf16.mxu0 0
    %3387 = vmatmul.mubr.bf16.gmra.mrb[0].mxu0 %v3227
    %v3388 = vpop.f32.mrb[0].mxu0
    %v3389 = vadd.f32 0.0, %v3388
    %v3390 = vpop.f32.mrb[0].mxu0
    %v3391 = vpop.f32.mrb[0].mxu0
    %v3392 = vadd.f32 0.0, %v3391
    %v3393 = vpop.f32.mrb[0].mxu0
    %3394 = vmatprep.mubr.bf16.mxu0 0
    %3395 = vmatmul.mubr.bf16.gmra.mrb[0].mxu0 %v3228
    %v3396 = vpop.f32.mrb[0].mxu0
    %v3397 = vadd.f32 0.0, %v3396
    %v3398 = vpop.f32.mrb[0].mxu0
    %v3399 = vpop.f32.mrb[0].mxu0
    %v3400 = vadd.f32 0.0, %v3399
    %v3401 = vpop.f32.mrb[0].mxu0
    %3402 = vmatprep.mubr.bf16.mxu0 0
    %3403 = vmatmul.mubr.bf16.gmra.mrb[0].mxu0 %v3229
    %v3404 = vpop.f32.mrb[0].mxu0
    %v3405 = vadd.f32 0.0, %v3404
    %v3406 = vpop.f32.mrb[0].mxu0
    %v3407 = vpop.f32.mrb[0].mxu0
    %v3408 = vadd.f32 0.0, %v3407
    %v3409 = vpop.f32.mrb[0].mxu0
    %3410 = vmatprep.mubr.bf16.mxu0 0
    %3411 = vmatmul.mubr.bf16.gmra.mrb[0].mxu0 %v3230
    %v3412 = vpop.f32.mrb[0].mxu0
    %v3413 = vadd.f32 0.0, %v3412
    %v3414 = vpop.f32.mrb[0].mxu0
    %v3415 = vpop.f32.mrb[0].mxu0
    %v3416 = vadd.f32 0.0, %v3415
    %v3417 = vpop.f32.mrb[0].mxu0
    %3418 = vmatprep.mubr.bf16.mxu0 0
    %3419 = vmatmul.mubr.bf16.gmra.mrb[0].mxu0 %v3231
    %v3420 = vpop.f32.mrb[0].mxu0
    %v3421 = vadd.f32 0.0, %v3420
    %v3422 = vpop.f32.mrb[0].mxu0
    %v3423 = vpop.f32.mrb[0].mxu0
    %v3424 = vadd.f32 0.0, %v3423
    %v3425 = vpop.f32.mrb[0].mxu0
    %3426 = vmatprep.mubr.bf16.mxu0 0
    %3427 = vmatmul.mubr.bf16.gmra.mrb[0].mxu0 %v3232
    %v3428 = vpop.f32.mrb[0].mxu0
    %v3429 = vadd.f32 0.0, %v3428
    %v3430 = vpop.f32.mrb[0].mxu0
    %v3431 = vpop.f32.mrb[0].mxu0
    %v3432 = vadd.f32 0.0, %v3431
    %v3433 = vpop.f32.mrb[0].mxu0
    %3434 = vmatprep.mubr.bf16.mxu0 0
    %3435 = vmatmul.mubr.bf16.gmra.mrb[0].mxu0 %v3233
    %v3436 = vpop.f32.mrb[0].mxu0
    %v3437 = vadd.f32 0.0, %v3436
    %v3438 = vpop.f32.mrb[0].mxu0
    %v3439 = vpop.f32.mrb[0].mxu0
    %v3440 = vadd.f32 0.0, %v3439
    %v3441 = vpop.f32.mrb[0].mxu0
    %3442 = vdwg.mxu0
    %v3443 = vadd.f32 %v3082, %v3333
    %v3444 = vadd.f32 %v3085, %v3336
    %v3445 = vadd.f32 %v3090, %v3341
    %v3446 = vadd.f32 %v3093, %v3344
    %v3447 = vadd.f32 %v3098, %v3349
    %v3448 = vadd.f32 %v3101, %v3352
    %v3449 = vadd.f32 %v3106, %v3357
    %v3450 = vadd.f32 %v3109, %v3360
    %v3451 = vadd.f32 %v3114, %v3365
    %v3452 = vadd.f32 %v3117, %v3368
    %v3453 = vadd.f32 %v3122, %v3373
    %v3454 = vadd.f32 %v3125, %v3376
    %v3455 = vadd.f32 %v3130, %v3381
    %v3456 = vadd.f32 %v3133, %v3384
    %v3457 = vadd.f32 %v3138, %v3389
    %v3458 = vadd.f32 %v3141, %v3392
    %v3459 = vadd.f32 %v3146, %v3397
    %v3460 = vadd.f32 %v3149, %v3400
    %v3461 = vadd.f32 %v3154, %v3405
    %v3462 = vadd.f32 %v3157, %v3408
    %v3463 = vadd.f32 %v3162, %v3413
    %v3464 = vadd.f32 %v3165, %v3416
    %v3465 = vadd.f32 %v3170, %v3421
    %v3466 = vadd.f32 %v3173, %v3424
    %v3467 = vadd.f32 %v3178, %v3429
    %v3468 = vadd.f32 %v3181, %v3432
    %v3469 = vadd.f32 %v3186, %v3437
    %v3470 = vadd.f32 %v3189, %v3440
    %v3471 = vld [vmem:[%s0 + $0x110] sm:$0xff]
    %v3472 = vld [vmem:[%s0 + $0x118] sm:$0xff]
    %v3473 = vld [vmem:[%s0 + $0x120] sm:$0xff]
    %v3474 = vld [vmem:[%s0 + $0x128] sm:$0xff]
    %v3475 = vld [vmem:[%s0 + $0x130] sm:$0xff]
    %v3476 = vld [vmem:[%s0 + $0x138] sm:$0xff]
    %v3477 = vld [vmem:[%s0 + $0x140] sm:$0xff]
    %v3478 = vld [vmem:[%s0 + $0x148] sm:$0xff]
    %v3479 = vld [vmem:[%s0 + $0x150] sm:$0xff]
    %v3480 = vld [vmem:[%s0 + $0x158] sm:$0xff]
    %v3481 = vld [vmem:[%s0 + $0x160] sm:$0xff]
    %v3482 = vld [vmem:[%s0 + $0x168] sm:$0xff]
    %v3483 = vld [vmem:[%s0 + $0x170] sm:$0xff]
    %v3484 = vld [vmem:[%s0 + $0x178] sm:$0xff]
    %v3485 = vld [vmem:[%s0 + $0x180] sm:$0xff]
    %v3486 = vld [vmem:[%s0 + $0x188] sm:$0xff]
    %v3487 = vld [vmem:[%s0 + $0x190] sm:$0xff]
    %v3488 = vld [vmem:[%s0 + $0x198] sm:$0xff]
    %v3489 = vld [vmem:[%s0 + $0x1a0] sm:$0xff]
    %v3490 = vld [vmem:[%s0 + $0x1a8] sm:$0xff]
    %v3491 = vld [vmem:[%s0 + $0x1b0] sm:$0xff]
    %v3492 = vld [vmem:[%s0 + $0x1b8] sm:$0xff]
    %v3493 = vld [vmem:[%s0 + $0x1c0] sm:$0xff]
    %v3494 = vld [vmem:[%s0 + $0x1c8] sm:$0xff]
    %v3495 = vld [vmem:[%s0 + $0x1d0] sm:$0xff]
    %v3496 = vld [vmem:[%s0 + $0x1d8] sm:$0xff]
    %v3497 = vld [vmem:[%s0 + $0x1e0] sm:$0xff]
    %v3498 = vld [vmem:[%s0 + $0x1e8] sm:$0x3f]
    %v3499 = vpack.c.bf16 %v3472, %v3471
    %v3500 = vpack.c.bf16 %v3474, %v3473
    %v3501 = vpack.c.bf16 %v3476, %v3475
    %v3502 = vpack.c.bf16 %v3478, %v3477
    %v3503 = vpack.c.bf16 %v3480, %v3479
    %v3504 = vpack.c.bf16 %v3482, %v3481
    %v3505 = vpack.c.bf16 %v3484, %v3483
    %v3506 = vpack.c.bf16 %v3486, %v3485
    %v3507 = vpack.c.bf16 %v3488, %v3487
    %v3508 = vpack.c.bf16 %v3490, %v3489
    %v3509 = vpack.c.bf16 %v3492, %v3491
    %v3510 = vpack.c.bf16 %v3494, %v3493
    %v3511 = vpack.c.bf16 %v3496, %v3495
    %v3512 = vpack.c.bf16 %v3498, %v3497
    %v3513 = vld [vmem:[%s962] sm:$0xf]
    %v3514 = vld [vmem:[%s962 + $0x4] sm:$0xf]
    %v3515 = vld [vmem:[%s962 + $0x8] sm:$0xf]
    %v3516 = vld [vmem:[%s962 + $0xc] sm:$0xf]
    %v3517 = vld [vmem:[%s962 + $0x10] sm:$0xf]
    %v3518 = vld [vmem:[%s962 + $0x14] sm:$0xf]
    %v3519 = vld [vmem:[%s962 + $0x18] sm:$0xf]
    %v3520 = vld [vmem:[%s962 + $0x1c] sm:$0xf]
    %v3521 = vld [vmem:[%s962 + $0x20] sm:$0xf]
    %v3522 = vld [vmem:[%s962 + $0x24] sm:$0xf]
    %v3523 = vld [vmem:[%s962 + $0x28] sm:$0xf]
    %v3524 = vld [vmem:[%s962 + $0x2c] sm:$0xf]
    %v3525 = vld [vmem:[%s962 + $0x30] sm:$0xf]
    %v3526 = vld [vmem:[%s962 + $0x34] sm:$0xf]
    %v3527 = vld [vmem:[%s962 + $0x38] sm:$0xf]
    %v3528 = vld [vmem:[%s962 + $0x3c] sm:$0xf]
    %v3545 = vunpack.c.l.b16 %v3513
    %v3546 = vunpack.c.l.b16 %v3514
    %v3547 = vunpack.c.l.b16 %v3515
    %v3548 = vunpack.c.l.b16 %v3516
    %v3549 = vunpack.c.l.b16 %v3517
    %v3550 = vunpack.c.l.b16 %v3518
    %v3551 = vunpack.c.l.b16 %v3519
    %v3552 = vunpack.c.l.b16 %v3520
    %v3553 = vunpack.c.l.b16 %v3521
    %v3554 = vunpack.c.l.b16 %v3522
    %v3555 = vunpack.c.l.b16 %v3523
    %v3556 = vunpack.c.l.b16 %v3524
    %v3557 = vunpack.c.l.b16 %v3525
    %v3558 = vunpack.c.l.b16 %v3526
    %v3559 = vunpack.c.l.b16 %v3527
    %v3560 = vunpack.c.l.b16 %v3528
    %v3561 = vpack.c.b16 %v3546, %v3545
    %v3562 = vpack.c.b16 %v3548, %v3547
    %v3563 = vpack.c.b16 %v3550, %v3549
    %v3564 = vpack.c.b16 %v3552, %v3551
    %v3565 = vpack.c.b16 %v3554, %v3553
    %v3566 = vpack.c.b16 %v3556, %v3555
    %v3567 = vpack.c.b16 %v3558, %v3557
    %v3568 = vpack.c.b16 %v3560, %v3559
    %3577 = vmatprep.subr.bf16.mxu0 0
    %3578 = vmatpush1.bf16.msra.mxu0 %v3561
    %3579 = vmatprep.subr.bf16.mxu0 0
    %3580 = vmatpush1.bf16.msra.mxu0 %v3562
    %3581 = vmatprep.subr.bf16.mxu0 0
    %3582 = vmatpush1.bf16.msra.mxu0 %v3563
    %3583 = vmatprep.subr.bf16.mxu0 0
    %3584 = vmatpush1.bf16.msra.mxu0 %v3564
    %3585 = vmatprep.subr.bf16.mxu0 0
    %3586 = vmatpush1.bf16.msra.mxu0 %v3565
    %3587 = vmatprep.subr.bf16.mxu0 0
    %3588 = vmatpush1.bf16.msra.mxu0 %v3566
    %3589 = vmatprep.subr.bf16.mxu0 0
    %3590 = vmatpush1.bf16.msra.mxu0 %v3567
    %3591 = vmatprep.subr.bf16.mxu0 0
    %3592 = vmatpush1.bf16.msra.mxu0 %v3568
    %3593 = vmatprep.subr.bf16.mxu0 0
    %3594 = vmatpush1.bf16.msra.mxu0 0
    %3595 = vmatprep.subr.bf16.mxu0 0
    %3596 = vmatpush1.bf16.msra.mxu0 0
    %3597 = vmatprep.subr.bf16.mxu0 0
    %3598 = vmatpush1.bf16.msra.mxu0 0
    %3599 = vmatprep.subr.bf16.mxu0 0
    %3600 = vmatpush1.bf16.msra.mxu0 0
    %3601 = vmatprep.subr.bf16.mxu0 0
    %3602 = vmatpush1.bf16.msra.mxu0 0
    %3603 = vmatprep.subr.bf16.mxu0 0
    %3604 = vmatpush1.bf16.msra.mxu0 0
    %3605 = vmatprep.subr.bf16.mxu0 0
    %3606 = vmatpush1.bf16.msra.mxu0 0
    %3607 = vmatprep.subr.bf16.mxu0 0
    %3608 = vmatpush1.bf16.msra.mxu0 0
    %3609 = vmatprep.mubr.bf16.mxu0 0
    %3610 = vmatmul.mubr.bf16.gmra.mrb[0].mxu0 %v3499
    %v3611 = vpop.f32.mrb[0].mxu0
    %v3612 = vadd.f32 0.0, %v3611
    %v3613 = vpop.f32.mrb[0].mxu0
    %v3614 = vpop.f32.mrb[0].mxu0
    %v3615 = vadd.f32 0.0, %v3614
    %v3616 = vpop.f32.mrb[0].mxu0
    %3617 = vmatprep.mubr.bf16.mxu0 0
    %3618 = vmatmul.mubr.bf16.gmra.mrb[0].mxu0 %v3500
    %v3619 = vpop.f32.mrb[0].mxu0
    %v3620 = vadd.f32 0.0, %v3619
    %v3621 = vpop.f32.mrb[0].mxu0
    %v3622 = vpop.f32.mrb[0].mxu0
    %v3623 = vadd.f32 0.0, %v3622
    %v3624 = vpop.f32.mrb[0].mxu0
    %3625 = vmatprep.mubr.bf16.mxu0 0
    %3626 = vmatmul.mubr.bf16.gmra.mrb[0].mxu0 %v3501
    %v3627 = vpop.f32.mrb[0].mxu0
    %v3628 = vadd.f32 0.0, %v3627
    %v3629 = vpop.f32.mrb[0].mxu0
    %v3630 = vpop.f32.mrb[0].mxu0
    %v3631 = vadd.f32 0.0, %v3630
    %v3632 = vpop.f32.mrb[0].mxu0
    %3633 = vmatprep.mubr.bf16.mxu0 0
    %3634 = vmatmul.mubr.bf16.gmra.mrb[0].mxu0 %v3502
    %v3635 = vpop.f32.mrb[0].mxu0
    %v3636 = vadd.f32 0.0, %v3635
    %v3637 = vpop.f32.mrb[0].mxu0
    %v3638 = vpop.f32.mrb[0].mxu0
    %v3639 = vadd.f32 0.0, %v3638
    %v3640 = vpop.f32.mrb[0].mxu0
    %3641 = vmatprep.mubr.bf16.mxu0 0
    %3642 = vmatmul.mubr.bf16.gmra.mrb[0].mxu0 %v3503
    %v3643 = vpop.f32.mrb[0].mxu0
    %v3644 = vadd.f32 0.0, %v3643
    %v3645 = vpop.f32.mrb[0].mxu0
    %v3646 = vpop.f32.mrb[0].mxu0
    %v3647 = vadd.f32 0.0, %v3646
    %v3648 = vpop.f32.mrb[0].mxu0
    %3649 = vmatprep.mubr.bf16.mxu0 0
    %3650 = vmatmul.mubr.bf16.gmra.mrb[0].mxu0 %v3504
    %v3651 = vpop.f32.mrb[0].mxu0
    %v3652 = vadd.f32 0.0, %v3651
    %v3653 = vpop.f32.mrb[0].mxu0
    %v3654 = vpop.f32.mrb[0].mxu0
    %v3655 = vadd.f32 0.0, %v3654
    %v3656 = vpop.f32.mrb[0].mxu0
    %3657 = vmatprep.mubr.bf16.mxu0 0
    %3658 = vmatmul.mubr.bf16.gmra.mrb[0].mxu0 %v3505
    %v3659 = vpop.f32.mrb[0].mxu0
    %v3660 = vadd.f32 0.0, %v3659
    %v3661 = vpop.f32.mrb[0].mxu0
    %v3662 = vpop.f32.mrb[0].mxu0
    %v3663 = vadd.f32 0.0, %v3662
    %v3664 = vpop.f32.mrb[0].mxu0
    %3665 = vmatprep.mubr.bf16.mxu0 0
    %3666 = vmatmul.mubr.bf16.gmra.mrb[0].mxu0 %v3506
    %v3667 = vpop.f32.mrb[0].mxu0
    %v3668 = vadd.f32 0.0, %v3667
    %v3669 = vpop.f32.mrb[0].mxu0
    %v3670 = vpop.f32.mrb[0].mxu0
    %v3671 = vadd.f32 0.0, %v3670
    %v3672 = vpop.f32.mrb[0].mxu0
    %3673 = vmatprep.mubr.bf16.mxu0 0
    %3674 = vmatmul.mubr.bf16.gmra.mrb[0].mxu0 %v3507
    %v3675 = vpop.f32.mrb[0].mxu0
    %v3676 = vadd.f32 0.0, %v3675
    %v3677 = vpop.f32.mrb[0].mxu0
    %v3678 = vpop.f32.mrb[0].mxu0
    %v3679 = vadd.f32 0.0, %v3678
    %v3680 = vpop.f32.mrb[0].mxu0
    %3681 = vmatprep.mubr.bf16.mxu0 0
    %3682 = vmatmul.mubr.bf16.gmra.mrb[0].mxu0 %v3508
    %v3683 = vpop.f32.mrb[0].mxu0
    %v3684 = vadd.f32 0.0, %v3683
    %v3685 = vpop.f32.mrb[0].mxu0
    %v3686 = vpop.f32.mrb[0].mxu0
    %v3687 = vadd.f32 0.0, %v3686
    %v3688 = vpop.f32.mrb[0].mxu0
    %3689 = vmatprep.mubr.bf16.mxu0 0
    %3690 = vmatmul.mubr.bf16.gmra.mrb[0].mxu0 %v3509
    %v3691 = vpop.f32.mrb[0].mxu0
    %v3692 = vadd.f32 0.0, %v3691
    %v3693 = vpop.f32.mrb[0].mxu0
    %v3694 = vpop.f32.mrb[0].mxu0
    %v3695 = vadd.f32 0.0, %v3694
    %v3696 = vpop.f32.mrb[0].mxu0
    %3697 = vmatprep.mubr.bf16.mxu0 0
    %3698 = vmatmul.mubr.bf16.gmra.mrb[0].mxu0 %v3510
    %v3699 = vpop.f32.mrb[0].mxu0
    %v3700 = vadd.f32 0.0, %v3699
    %v3701 = vpop.f32.mrb[0].mxu0
    %v3702 = vpop.f32.mrb[0].mxu0
    %v3703 = vadd.f32 0.0, %v3702
    %v3704 = vpop.f32.mrb[0].mxu0
    %3705 = vmatprep.mubr.bf16.mxu0 0
    %3706 = vmatmul.mubr.bf16.gmra.mrb[0].mxu0 %v3511
    %v3707 = vpop.f32.mrb[0].mxu0
    %v3708 = vadd.f32 0.0, %v3707
    %v3709 = vpop.f32.mrb[0].mxu0
    %v3710 = vpop.f32.mrb[0].mxu0
    %v3711 = vadd.f32 0.0, %v3710
    %v3712 = vpop.f32.mrb[0].mxu0
    %3713 = vmatprep.mubr.bf16.mxu0 0
    %3714 = vmatmul.mubr.bf16.gmra.mrb[0].mxu0 %v3512
    %v3715 = vpop.f32.mrb[0].mxu0
    %v3716 = vadd.f32 0.0, %v3715
    %v3717 = vpop.f32.mrb[0].mxu0
    %v3718 = vpop.f32.mrb[0].mxu0
    %v3719 = vadd.f32 0.0, %v3718
    %v3720 = vpop.f32.mrb[0].mxu0
    %3721 = vdwg.mxu0
    %v3722 = vadd.f32 %v3443, %v3612
    %v3723 = vadd.f32 %v3444, %v3615
    %v3724 = vadd.f32 %v3445, %v3620
    %v3725 = vadd.f32 %v3446, %v3623
    %v3726 = vadd.f32 %v3447, %v3628
    %v3727 = vadd.f32 %v3448, %v3631
    %v3728 = vadd.f32 %v3449, %v3636
    %v3729 = vadd.f32 %v3450, %v3639
    %v3730 = vadd.f32 %v3451, %v3644
    %v3731 = vadd.f32 %v3452, %v3647
    %v3732 = vadd.f32 %v3453, %v3652
    %v3733 = vadd.f32 %v3454, %v3655
    %v3734 = vadd.f32 %v3455, %v3660
    %v3735 = vadd.f32 %v3456, %v3663
    %v3736 = vadd.f32 %v3457, %v3668
    %v3737 = vadd.f32 %v3458, %v3671
    %v3738 = vadd.f32 %v3459, %v3676
    %v3739 = vadd.f32 %v3460, %v3679
    %v3740 = vadd.f32 %v3461, %v3684
    %v3741 = vadd.f32 %v3462, %v3687
    %v3742 = vadd.f32 %v3463, %v3692
    %v3743 = vadd.f32 %v3464, %v3695
    %v3744 = vadd.f32 %v3465, %v3700
    %v3745 = vadd.f32 %v3466, %v3703
    %v3746 = vadd.f32 %v3467, %v3708
    %v3747 = vadd.f32 %v3468, %v3711
    %v3748 = vadd.f32 %v3469, %v3716
    %v3749 = vadd.f32 %v3470, %v3719
    %v3750 = vld [vmem:[%s0 + $0x111] sm:$0xff]
    %v3751 = vld [vmem:[%s0 + $0x119] sm:$0xff]
    %v3752 = vld [vmem:[%s0 + $0x121] sm:$0xff]
    %v3753 = vld [vmem:[%s0 + $0x129] sm:$0xff]
    %v3754 = vld [vmem:[%s0 + $0x131] sm:$0xff]
    %v3755 = vld [vmem:[%s0 + $0x139] sm:$0xff]
    %v3756 = vld [vmem:[%s0 + $0x141] sm:$0xff]
    %v3757 = vld [vmem:[%s0 + $0x149] sm:$0xff]
    %v3758 = vld [vmem:[%s0 + $0x151] sm:$0xff]
    %v3759 = vld [vmem:[%s0 + $0x159] sm:$0xff]
    %v3760 = vld [vmem:[%s0 + $0x161] sm:$0xff]
    %v3761 = vld [vmem:[%s0 + $0x169] sm:$0xff]
    %v3762 = vld [vmem:[%s0 + $0x171] sm:$0xff]
    %v3763 = vld [vmem:[%s0 + $0x179] sm:$0xff]
    %v3764 = vld [vmem:[%s0 + $0x181] sm:$0xff]
    %v3765 = vld [vmem:[%s0 + $0x189] sm:$0xff]
    %v3766 = vld [vmem:[%s0 + $0x191] sm:$0xff]
    %v3767 = vld [vmem:[%s0 + $0x199] sm:$0xff]
    %v3768 = vld [vmem:[%s0 + $0x1a1] sm:$0xff]
    %v3769 = vld [vmem:[%s0 + $0x1a9] sm:$0xff]
    %v3770 = vld [vmem:[%s0 + $0x1b1] sm:$0xff]
    %v3771 = vld [vmem:[%s0 + $0x1b9] sm:$0xff]
    %v3772 = vld [vmem:[%s0 + $0x1c1] sm:$0xff]
    %v3773 = vld [vmem:[%s0 + $0x1c9] sm:$0xff]
    %v3774 = vld [vmem:[%s0 + $0x1d1] sm:$0xff]
    %v3775 = vld [vmem:[%s0 + $0x1d9] sm:$0xff]
    %v3776 = vld [vmem:[%s0 + $0x1e1] sm:$0xff]
    %v3777 = vld [vmem:[%s0 + $0x1e9] sm:$0x3f]
    %v3778 = vpack.c.bf16 %v3751, %v3750
    %v3779 = vpack.c.bf16 %v3753, %v3752
    %v3780 = vpack.c.bf16 %v3755, %v3754
    %v3781 = vpack.c.bf16 %v3757, %v3756
    %v3782 = vpack.c.bf16 %v3759, %v3758
    %v3783 = vpack.c.bf16 %v3761, %v3760
    %v3784 = vpack.c.bf16 %v3763, %v3762
    %v3785 = vpack.c.bf16 %v3765, %v3764
    %v3786 = vpack.c.bf16 %v3767, %v3766
    %v3787 = vpack.c.bf16 %v3769, %v3768
    %v3788 = vpack.c.bf16 %v3771, %v3770
    %v3789 = vpack.c.bf16 %v3773, %v3772
    %v3790 = vpack.c.bf16 %v3775, %v3774
    %v3791 = vpack.c.bf16 %v3777, %v3776
    %v3792 = vld [vmem:[%s1242] sm:$0xf]
    %v3793 = vld [vmem:[%s1242 + $0x4] sm:$0xf]
    %v3794 = vld [vmem:[%s1242 + $0x8] sm:$0xf]
    %v3795 = vld [vmem:[%s1242 + $0xc] sm:$0xf]
    %v3796 = vld [vmem:[%s1242 + $0x10] sm:$0xf]
    %v3797 = vld [vmem:[%s1242 + $0x14] sm:$0xf]
    %v3798 = vld [vmem:[%s1242 + $0x18] sm:$0xf]
    %v3799 = vld [vmem:[%s1242 + $0x1c] sm:$0xf]
    %v3800 = vld [vmem:[%s1242 + $0x20] sm:$0xf]
    %v3801 = vld [vmem:[%s1242 + $0x24] sm:$0xf]
    %v3802 = vld [vmem:[%s1242 + $0x28] sm:$0xf]
    %v3803 = vld [vmem:[%s1242 + $0x2c] sm:$0xf]
    %v3804 = vld [vmem:[%s1242 + $0x30] sm:$0xf]
    %v3805 = vld [vmem:[%s1242 + $0x34] sm:$0xf]
    %v3806 = vld [vmem:[%s1242 + $0x38] sm:$0xf]
    %v3807 = vld [vmem:[%s1242 + $0x3c] sm:$0xf]
    %v3824 = vunpack.c.l.b16 %v3792
    %v3825 = vunpack.c.l.b16 %v3793
    %v3826 = vunpack.c.l.b16 %v3794
    %v3827 = vunpack.c.l.b16 %v3795
    %v3828 = vunpack.c.l.b16 %v3796
    %v3829 = vunpack.c.l.b16 %v3797
    %v3830 = vunpack.c.l.b16 %v3798
    %v3831 = vunpack.c.l.b16 %v3799
    %v3832 = vunpack.c.l.b16 %v3800
    %v3833 = vunpack.c.l.b16 %v3801
    %v3834 = vunpack.c.l.b16 %v3802
    %v3835 = vunpack.c.l.b16 %v3803
    %v3836 = vunpack.c.l.b16 %v3804
    %v3837 = vunpack.c.l.b16 %v3805
    %v3838 = vunpack.c.l.b16 %v3806
    %v3839 = vunpack.c.l.b16 %v3807
    %v3840 = vpack.c.b16 %v3825, %v3824
    %v3841 = vpack.c.b16 %v3827, %v3826
    %v3842 = vpack.c.b16 %v3829, %v3828
    %v3843 = vpack.c.b16 %v3831, %v3830
    %v3844 = vpack.c.b16 %v3833, %v3832
    %v3845 = vpack.c.b16 %v3835, %v3834
    %v3846 = vpack.c.b16 %v3837, %v3836
    %v3847 = vpack.c.b16 %v3839, %v3838
    %3856 = vmatprep.subr.bf16.mxu0 0
    %3857 = vmatpush1.bf16.msra.mxu0 %v3840
    %3858 = vmatprep.subr.bf16.mxu0 0
    %3859 = vmatpush1.bf16.msra.mxu0 %v3841
    %3860 = vmatprep.subr.bf16.mxu0 0
    %3861 = vmatpush1.bf16.msra.mxu0 %v3842
    %3862 = vmatprep.subr.bf16.mxu0 0
    %3863 = vmatpush1.bf16.msra.mxu0 %v3843
    %3864 = vmatprep.subr.bf16.mxu0 0
    %3865 = vmatpush1.bf16.msra.mxu0 %v3844
    %3866 = vmatprep.subr.bf16.mxu0 0
    %3867 = vmatpush1.bf16.msra.mxu0 %v3845
    %3868 = vmatprep.subr.bf16.mxu0 0
    %3869 = vmatpush1.bf16.msra.mxu0 %v3846
    %3870 = vmatprep.subr.bf16.mxu0 0
    %3871 = vmatpush1.bf16.msra.mxu0 %v3847
    %3872 = vmatprep.subr.bf16.mxu0 0
    %3873 = vmatpush1.bf16.msra.mxu0 0
    %3874 = vmatprep.subr.bf16.mxu0 0
    %3875 = vmatpush1.bf16.msra.mxu0 0
    %3876 = vmatprep.subr.bf16.mxu0 0
    %3877 = vmatpush1.bf16.msra.mxu0 0
    %3878 = vmatprep.subr.bf16.mxu0 0
    %3879 = vmatpush1.bf16.msra.mxu0 0
    %3880 = vmatprep.subr.bf16.mxu0 0
    %3881 = vmatpush1.bf16.msra.mxu0 0
    %3882 = vmatprep.subr.bf16.mxu0 0
    %3883 = vmatpush1.bf16.msra.mxu0 0
    %3884 = vmatprep.subr.bf16.mxu0 0
    %3885 = vmatpush1.bf16.msra.mxu0 0
    %3886 = vmatprep.subr.bf16.mxu0 0
    %3887 = vmatpush1.bf16.msra.mxu0 0
    %3888 = vmatprep.mubr.bf16.mxu0 0
    %3889 = vmatmul.mubr.bf16.gmra.mrb[0].mxu0 %v3778
    %v3890 = vpop.f32.mrb[0].mxu0
    %v3891 = vadd.f32 0.0, %v3890
    %v3892 = vpop.f32.mrb[0].mxu0
    %v3893 = vpop.f32.mrb[0].mxu0
    %v3894 = vadd.f32 0.0, %v3893
    %v3895 = vpop.f32.mrb[0].mxu0
    %3896 = vmatprep.mubr.bf16.mxu0 0
    %3897 = vmatmul.mubr.bf16.gmra.mrb[0].mxu0 %v3779
    %v3898 = vpop.f32.mrb[0].mxu0
    %v3899 = vadd.f32 0.0, %v3898
    %v3900 = vpop.f32.mrb[0].mxu0
    %v3901 = vpop.f32.mrb[0].mxu0
    %v3902 = vadd.f32 0.0, %v3901
    %v3903 = vpop.f32.mrb[0].mxu0
    %3904 = vmatprep.mubr.bf16.mxu0 0
    %3905 = vmatmul.mubr.bf16.gmra.mrb[0].mxu0 %v3780
    %v3906 = vpop.f32.mrb[0].mxu0
    %v3907 = vadd.f32 0.0, %v3906
    %v3908 = vpop.f32.mrb[0].mxu0
    %v3909 = vpop.f32.mrb[0].mxu0
    %v3910 = vadd.f32 0.0, %v3909
    %v3911 = vpop.f32.mrb[0].mxu0
    %3912 = vmatprep.mubr.bf16.mxu0 0
    %3913 = vmatmul.mubr.bf16.gmra.mrb[0].mxu0 %v3781
    %v3914 = vpop.f32.mrb[0].mxu0
    %v3915 = vadd.f32 0.0, %v3914
    %v3916 = vpop.f32.mrb[0].mxu0
    %v3917 = vpop.f32.mrb[0].mxu0
    %v3918 = vadd.f32 0.0, %v3917
    %v3919 = vpop.f32.mrb[0].mxu0
    %3920 = vmatprep.mubr.bf16.mxu0 0
    %3921 = vmatmul.mubr.bf16.gmra.mrb[0].mxu0 %v3782
    %v3922 = vpop.f32.mrb[0].mxu0
    %v3923 = vadd.f32 0.0, %v3922
    %v3924 = vpop.f32.mrb[0].mxu0
    %v3925 = vpop.f32.mrb[0].mxu0
    %v3926 = vadd.f32 0.0, %v3925
    %v3927 = vpop.f32.mrb[0].mxu0
    %3928 = vmatprep.mubr.bf16.mxu0 0
    %3929 = vmatmul.mubr.bf16.gmra.mrb[0].mxu0 %v3783
    %v3930 = vpop.f32.mrb[0].mxu0
    %v3931 = vadd.f32 0.0, %v3930
    %v3932 = vpop.f32.mrb[0].mxu0
    %v3933 = vpop.f32.mrb[0].mxu0
    %v3934 = vadd.f32 0.0, %v3933
    %v3935 = vpop.f32.mrb[0].mxu0
    %3936 = vmatprep.mubr.bf16.mxu0 0
    %3937 = vmatmul.mubr.bf16.gmra.mrb[0].mxu0 %v3784
    %v3938 = vpop.f32.mrb[0].mxu0
    %v3939 = vadd.f32 0.0, %v3938
    %v3940 = vpop.f32.mrb[0].mxu0
    %v3941 = vpop.f32.mrb[0].mxu0
    %v3942 = vadd.f32 0.0, %v3941
    %v3943 = vpop.f32.mrb[0].mxu0
    %3944 = vmatprep.mubr.bf16.mxu0 0
    %3945 = vmatmul.mubr.bf16.gmra.mrb[0].mxu0 %v3785
    %v3946 = vpop.f32.mrb[0].mxu0
    %v3947 = vadd.f32 0.0, %v3946
    %v3948 = vpop.f32.mrb[0].mxu0
    %v3949 = vpop.f32.mrb[0].mxu0
    %v3950 = vadd.f32 0.0, %v3949
    %v3951 = vpop.f32.mrb[0].mxu0
    %3952 = vmatprep.mubr.bf16.mxu0 0
    %3953 = vmatmul.mubr.bf16.gmra.mrb[0].mxu0 %v3786
    %v3954 = vpop.f32.mrb[0].mxu0
    %v3955 = vadd.f32 0.0, %v3954
    %v3956 = vpop.f32.mrb[0].mxu0
    %v3957 = vpop.f32.mrb[0].mxu0
    %v3958 = vadd.f32 0.0, %v3957
    %v3959 = vpop.f32.mrb[0].mxu0
    %3960 = vmatprep.mubr.bf16.mxu0 0
    %3961 = vmatmul.mubr.bf16.gmra.mrb[0].mxu0 %v3787
    %v3962 = vpop.f32.mrb[0].mxu0
    %v3963 = vadd.f32 0.0, %v3962
    %v3964 = vpop.f32.mrb[0].mxu0
    %v3965 = vpop.f32.mrb[0].mxu0
    %v3966 = vadd.f32 0.0, %v3965
    %v3967 = vpop.f32.mrb[0].mxu0
    %3968 = vmatprep.mubr.bf16.mxu0 0
    %3969 = vmatmul.mubr.bf16.gmra.mrb[0].mxu0 %v3788
    %v3970 = vpop.f32.mrb[0].mxu0
    %v3971 = vadd.f32 0.0, %v3970
    %v3972 = vpop.f32.mrb[0].mxu0
    %v3973 = vpop.f32.mrb[0].mxu0
    %v3974 = vadd.f32 0.0, %v3973
    %v3975 = vpop.f32.mrb[0].mxu0
    %3976 = vmatprep.mubr.bf16.mxu0 0
    %3977 = vmatmul.mubr.bf16.gmra.mrb[0].mxu0 %v3789
    %v3978 = vpop.f32.mrb[0].mxu0
    %v3979 = vadd.f32 0.0, %v3978
    %v3980 = vpop.f32.mrb[0].mxu0
    %v3981 = vpop.f32.mrb[0].mxu0
    %v3982 = vadd.f32 0.0, %v3981
    %v3983 = vpop.f32.mrb[0].mxu0
    %3984 = vmatprep.mubr.bf16.mxu0 0
    %3985 = vmatmul.mubr.bf16.gmra.mrb[0].mxu0 %v3790
    %v3986 = vpop.f32.mrb[0].mxu0
    %v3987 = vadd.f32 0.0, %v3986
    %v3988 = vpop.f32.mrb[0].mxu0
    %v3989 = vpop.f32.mrb[0].mxu0
    %v3990 = vadd.f32 0.0, %v3989
    %v3991 = vpop.f32.mrb[0].mxu0
    %3992 = vmatprep.mubr.bf16.mxu0 0
    %3993 = vmatmul.mubr.bf16.gmra.mrb[0].mxu0 %v3791
    %v3994 = vpop.f32.mrb[0].mxu0
    %v3995 = vadd.f32 0.0, %v3994
    %v3996 = vpop.f32.mrb[0].mxu0
    %v3997 = vpop.f32.mrb[0].mxu0
    %v3998 = vadd.f32 0.0, %v3997
    %v3999 = vpop.f32.mrb[0].mxu0
    %4000 = vdwg.mxu0
    %v4001 = vadd.f32 %v3722, %v3891
    %v4002 = vadd.f32 %v3723, %v3894
    %v4003 = vadd.f32 %v3724, %v3899
    %v4004 = vadd.f32 %v3725, %v3902
    %v4005 = vadd.f32 %v3726, %v3907
    %v4006 = vadd.f32 %v3727, %v3910
    %v4007 = vadd.f32 %v3728, %v3915
    %v4008 = vadd.f32 %v3729, %v3918
    %v4009 = vadd.f32 %v3730, %v3923
    %v4010 = vadd.f32 %v3731, %v3926
    %v4011 = vadd.f32 %v3732, %v3931
    %v4012 = vadd.f32 %v3733, %v3934
    %v4013 = vadd.f32 %v3734, %v3939
    %v4014 = vadd.f32 %v3735, %v3942
    %v4015 = vadd.f32 %v3736, %v3947
    %v4016 = vadd.f32 %v3737, %v3950
    %v4017 = vadd.f32 %v3738, %v3955
    %v4018 = vadd.f32 %v3739, %v3958
    %v4019 = vadd.f32 %v3740, %v3963
    %v4020 = vadd.f32 %v3741, %v3966
    %v4021 = vadd.f32 %v3742, %v3971
    %v4022 = vadd.f32 %v3743, %v3974
    %v4023 = vadd.f32 %v3744, %v3979
    %v4024 = vadd.f32 %v3745, %v3982
    %v4025 = vadd.f32 %v3746, %v3987
    %v4026 = vadd.f32 %v3747, %v3990
    %v4027 = vadd.f32 %v3748, %v3995
    %v4028 = vadd.f32 %v3749, %v3998
    %v4029 = vld [vmem:[%s0 + $0x112] sm:$0xff]
    %v4030 = vld [vmem:[%s0 + $0x11a] sm:$0xff]
    %v4031 = vld [vmem:[%s0 + $0x122] sm:$0xff]
    %v4032 = vld [vmem:[%s0 + $0x12a] sm:$0xff]
    %v4033 = vld [vmem:[%s0 + $0x132] sm:$0xff]
    %v4034 = vld [vmem:[%s0 + $0x13a] sm:$0xff]
    %v4035 = vld [vmem:[%s0 + $0x142] sm:$0xff]
    %v4036 = vld [vmem:[%s0 + $0x14a] sm:$0xff]
    %v4037 = vld [vmem:[%s0 + $0x152] sm:$0xff]
    %v4038 = vld [vmem:[%s0 + $0x15a] sm:$0xff]
    %v4039 = vld [vmem:[%s0 + $0x162] sm:$0xff]
    %v4040 = vld [vmem:[%s0 + $0x16a] sm:$0xff]
    %v4041 = vld [vmem:[%s0 + $0x172] sm:$0xff]
    %v4042 = vld [vmem:[%s0 + $0x17a] sm:$0xff]
    %v4043 = vld [vmem:[%s0 + $0x182] sm:$0xff]
    %v4044 = vld [vmem:[%s0 + $0x18a] sm:$0xff]
    %v4045 = vld [vmem:[%s0 + $0x192] sm:$0xff]
    %v4046 = vld [vmem:[%s0 + $0x19a] sm:$0xff]
    %v4047 = vld [vmem:[%s0 + $0x1a2] sm:$0xff]
    %v4048 = vld [vmem:[%s0 + $0x1aa] sm:$0xff]
    %v4049 = vld [vmem:[%s0 + $0x1b2] sm:$0xff]
    %v4050 = vld [vmem:[%s0 + $0x1ba] sm:$0xff]
    %v4051 = vld [vmem:[%s0 + $0x1c2] sm:$0xff]
    %v4052 = vld [vmem:[%s0 + $0x1ca] sm:$0xff]
    %v4053 = vld [vmem:[%s0 + $0x1d2] sm:$0xff]
    %v4054 = vld [vmem:[%s0 + $0x1da] sm:$0xff]
    %v4055 = vld [vmem:[%s0 + $0x1e2] sm:$0xff]
    %v4056 = vld [vmem:[%s0 + $0x1ea] sm:$0x3f]
    %v4057 = vpack.c.bf16 %v4030, %v4029
    %v4058 = vpack.c.bf16 %v4032, %v4031
    %v4059 = vpack.c.bf16 %v4034, %v4033
    %v4060 = vpack.c.bf16 %v4036, %v4035
    %v4061 = vpack.c.bf16 %v4038, %v4037
    %v4062 = vpack.c.bf16 %v4040, %v4039
    %v4063 = vpack.c.bf16 %v4042, %v4041
    %v4064 = vpack.c.bf16 %v4044, %v4043
    %v4065 = vpack.c.bf16 %v4046, %v4045
    %v4066 = vpack.c.bf16 %v4048, %v4047
    %v4067 = vpack.c.bf16 %v4050, %v4049
    %v4068 = vpack.c.bf16 %v4052, %v4051
    %v4069 = vpack.c.bf16 %v4054, %v4053
    %v4070 = vpack.c.bf16 %v4056, %v4055
    %v4071 = vld [vmem:[%s1522] sm:$0xf]
    %v4072 = vld [vmem:[%s1522 + $0x4] sm:$0xf]
    %v4073 = vld [vmem:[%s1522 + $0x8] sm:$0xf]
    %v4074 = vld [vmem:[%s1522 + $0xc] sm:$0xf]
    %v4075 = vld [vmem:[%s1522 + $0x10] sm:$0xf]
    %v4076 = vld [vmem:[%s1522 + $0x14] sm:$0xf]
    %v4077 = vld [vmem:[%s1522 + $0x18] sm:$0xf]
    %v4078 = vld [vmem:[%s1522 + $0x1c] sm:$0xf]
    %v4079 = vld [vmem:[%s1522 + $0x20] sm:$0xf]
    %v4080 = vld [vmem:[%s1522 + $0x24] sm:$0xf]
    %v4081 = vld [vmem:[%s1522 + $0x28] sm:$0xf]
    %v4082 = vld [vmem:[%s1522 + $0x2c] sm:$0xf]
    %v4083 = vld [vmem:[%s1522 + $0x30] sm:$0xf]
    %v4084 = vld [vmem:[%s1522 + $0x34] sm:$0xf]
    %v4085 = vld [vmem:[%s1522 + $0x38] sm:$0xf]
    %v4086 = vld [vmem:[%s1522 + $0x3c] sm:$0xf]
    %v4103 = vunpack.c.l.b16 %v4071
    %v4104 = vunpack.c.l.b16 %v4072
    %v4105 = vunpack.c.l.b16 %v4073
    %v4106 = vunpack.c.l.b16 %v4074
    %v4107 = vunpack.c.l.b16 %v4075
    %v4108 = vunpack.c.l.b16 %v4076
    %v4109 = vunpack.c.l.b16 %v4077
    %v4110 = vunpack.c.l.b16 %v4078
    %v4111 = vunpack.c.l.b16 %v4079
    %v4112 = vunpack.c.l.b16 %v4080
    %v4113 = vunpack.c.l.b16 %v4081
    %v4114 = vunpack.c.l.b16 %v4082
    %v4115 = vunpack.c.l.b16 %v4083
    %v4116 = vunpack.c.l.b16 %v4084
    %v4117 = vunpack.c.l.b16 %v4085
    %v4118 = vunpack.c.l.b16 %v4086
    %v4119 = vpack.c.b16 %v4104, %v4103
    %v4120 = vpack.c.b16 %v4106, %v4105
    %v4121 = vpack.c.b16 %v4108, %v4107
    %v4122 = vpack.c.b16 %v4110, %v4109
    %v4123 = vpack.c.b16 %v4112, %v4111
    %v4124 = vpack.c.b16 %v4114, %v4113
    %v4125 = vpack.c.b16 %v4116, %v4115
    %v4126 = vpack.c.b16 %v4118, %v4117
    %4135 = vmatprep.subr.bf16.mxu0 0
    %4136 = vmatpush1.bf16.msra.mxu0 %v4119
    %4137 = vmatprep.subr.bf16.mxu0 0
    %4138 = vmatpush1.bf16.msra.mxu0 %v4120
    %4139 = vmatprep.subr.bf16.mxu0 0
    %4140 = vmatpush1.bf16.msra.mxu0 %v4121
    %4141 = vmatprep.subr.bf16.mxu0 0
    %4142 = vmatpush1.bf16.msra.mxu0 %v4122
    %4143 = vmatprep.subr.bf16.mxu0 0
    %4144 = vmatpush1.bf16.msra.mxu0 %v4123
    %4145 = vmatprep.subr.bf16.mxu0 0
    %4146 = vmatpush1.bf16.msra.mxu0 %v4124
    %4147 = vmatprep.subr.bf16.mxu0 0
    %4148 = vmatpush1.bf16.msra.mxu0 %v4125
    %4149 = vmatprep.subr.bf16.mxu0 0
    %4150 = vmatpush1.bf16.msra.mxu0 %v4126
    %4151 = vmatprep.subr.bf16.mxu0 0
    %4152 = vmatpush1.bf16.msra.mxu0 0
    %4153 = vmatprep.subr.bf16.mxu0 0
    %4154 = vmatpush1.bf16.msra.mxu0 0
    %4155 = vmatprep.subr.bf16.mxu0 0
    %4156 = vmatpush1.bf16.msra.mxu0 0
    %4157 = vmatprep.subr.bf16.mxu0 0
    %4158 = vmatpush1.bf16.msra.mxu0 0
    %4159 = vmatprep.subr.bf16.mxu0 0
    %4160 = vmatpush1.bf16.msra.mxu0 0
    %4161 = vmatprep.subr.bf16.mxu0 0
    %4162 = vmatpush1.bf16.msra.mxu0 0
    %4163 = vmatprep.subr.bf16.mxu0 0
    %4164 = vmatpush1.bf16.msra.mxu0 0
    %4165 = vmatprep.subr.bf16.mxu0 0
    %4166 = vmatpush1.bf16.msra.mxu0 0
    %4167 = vmatprep.mubr.bf16.mxu0 0
    %4168 = vmatmul.mubr.bf16.gmra.mrb[0].mxu0 %v4057
    %v4169 = vpop.f32.mrb[0].mxu0
    %v4170 = vadd.f32 0.0, %v4169
    %v4171 = vpop.f32.mrb[0].mxu0
    %v4172 = vpop.f32.mrb[0].mxu0
    %v4173 = vadd.f32 0.0, %v4172
    %v4174 = vpop.f32.mrb[0].mxu0
    %4175 = vmatprep.mubr.bf16.mxu0 0
    %4176 = vmatmul.mubr.bf16.gmra.mrb[0].mxu0 %v4058
    %v4177 = vpop.f32.mrb[0].mxu0
    %v4178 = vadd.f32 0.0, %v4177
    %v4179 = vpop.f32.mrb[0].mxu0
    %v4180 = vpop.f32.mrb[0].mxu0
    %v4181 = vadd.f32 0.0, %v4180
    %v4182 = vpop.f32.mrb[0].mxu0
    %4183 = vmatprep.mubr.bf16.mxu0 0
    %4184 = vmatmul.mubr.bf16.gmra.mrb[0].mxu0 %v4059
    %v4185 = vpop.f32.mrb[0].mxu0
    %v4186 = vadd.f32 0.0, %v4185
    %v4187 = vpop.f32.mrb[0].mxu0
    %v4188 = vpop.f32.mrb[0].mxu0
    %v4189 = vadd.f32 0.0, %v4188
    %v4190 = vpop.f32.mrb[0].mxu0
    %4191 = vmatprep.mubr.bf16.mxu0 0
    %4192 = vmatmul.mubr.bf16.gmra.mrb[0].mxu0 %v4060
    %v4193 = vpop.f32.mrb[0].mxu0
    %v4194 = vadd.f32 0.0, %v4193
    %v4195 = vpop.f32.mrb[0].mxu0
    %v4196 = vpop.f32.mrb[0].mxu0
    %v4197 = vadd.f32 0.0, %v4196
    %v4198 = vpop.f32.mrb[0].mxu0
    %4199 = vmatprep.mubr.bf16.mxu0 0
    %4200 = vmatmul.mubr.bf16.gmra.mrb[0].mxu0 %v4061
    %v4201 = vpop.f32.mrb[0].mxu0
    %v4202 = vadd.f32 0.0, %v4201
    %v4203 = vpop.f32.mrb[0].mxu0
    %v4204 = vpop.f32.mrb[0].mxu0
    %v4205 = vadd.f32 0.0, %v4204
    %v4206 = vpop.f32.mrb[0].mxu0
    %4207 = vmatprep.mubr.bf16.mxu0 0
    %4208 = vmatmul.mubr.bf16.gmra.mrb[0].mxu0 %v4062
    %v4209 = vpop.f32.mrb[0].mxu0
    %v4210 = vadd.f32 0.0, %v4209
    %v4211 = vpop.f32.mrb[0].mxu0
    %v4212 = vpop.f32.mrb[0].mxu0
    %v4213 = vadd.f32 0.0, %v4212
    %v4214 = vpop.f32.mrb[0].mxu0
    %4215 = vmatprep.mubr.bf16.mxu0 0
    %4216 = vmatmul.mubr.bf16.gmra.mrb[0].mxu0 %v4063
    %v4217 = vpop.f32.mrb[0].mxu0
    %v4218 = vadd.f32 0.0, %v4217
    %v4219 = vpop.f32.mrb[0].mxu0
    %v4220 = vpop.f32.mrb[0].mxu0
    %v4221 = vadd.f32 0.0, %v4220
    %v4222 = vpop.f32.mrb[0].mxu0
    %4223 = vmatprep.mubr.bf16.mxu0 0
    %4224 = vmatmul.mubr.bf16.gmra.mrb[0].mxu0 %v4064
    %v4225 = vpop.f32.mrb[0].mxu0
    %v4226 = vadd.f32 0.0, %v4225
    %v4227 = vpop.f32.mrb[0].mxu0
    %v4228 = vpop.f32.mrb[0].mxu0
    %v4229 = vadd.f32 0.0, %v4228
    %v4230 = vpop.f32.mrb[0].mxu0
    %4231 = vmatprep.mubr.bf16.mxu0 0
    %4232 = vmatmul.mubr.bf16.gmra.mrb[0].mxu0 %v4065
    %v4233 = vpop.f32.mrb[0].mxu0
    %v4234 = vadd.f32 0.0, %v4233
    %v4235 = vpop.f32.mrb[0].mxu0
    %v4236 = vpop.f32.mrb[0].mxu0
    %v4237 = vadd.f32 0.0, %v4236
    %v4238 = vpop.f32.mrb[0].mxu0
    %4239 = vmatprep.mubr.bf16.mxu0 0
    %4240 = vmatmul.mubr.bf16.gmra.mrb[0].mxu0 %v4066
    %v4241 = vpop.f32.mrb[0].mxu0
    %v4242 = vadd.f32 0.0, %v4241
    %v4243 = vpop.f32.mrb[0].mxu0
    %v4244 = vpop.f32.mrb[0].mxu0
    %v4245 = vadd.f32 0.0, %v4244
    %v4246 = vpop.f32.mrb[0].mxu0
    %4247 = vmatprep.mubr.bf16.mxu0 0
    %4248 = vmatmul.mubr.bf16.gmra.mrb[0].mxu0 %v4067
    %v4249 = vpop.f32.mrb[0].mxu0
    %v4250 = vadd.f32 0.0, %v4249
    %v4251 = vpop.f32.mrb[0].mxu0
    %v4252 = vpop.f32.mrb[0].mxu0
    %v4253 = vadd.f32 0.0, %v4252
    %v4254 = vpop.f32.mrb[0].mxu0
    %4255 = vmatprep.mubr.bf16.mxu0 0
    %4256 = vmatmul.mubr.bf16.gmra.mrb[0].mxu0 %v4068
    %v4257 = vpop.f32.mrb[0].mxu0
    %v4258 = vadd.f32 0.0, %v4257
    %v4259 = vpop.f32.mrb[0].mxu0
    %v4260 = vpop.f32.mrb[0].mxu0
    %v4261 = vadd.f32 0.0, %v4260
    %v4262 = vpop.f32.mrb[0].mxu0
    %4263 = vmatprep.mubr.bf16.mxu0 0
    %4264 = vmatmul.mubr.bf16.gmra.mrb[0].mxu0 %v4069
    %v4265 = vpop.f32.mrb[0].mxu0
    %v4266 = vadd.f32 0.0, %v4265
    %v4267 = vpop.f32.mrb[0].mxu0
    %v4268 = vpop.f32.mrb[0].mxu0
    %v4269 = vadd.f32 0.0, %v4268
    %v4270 = vpop.f32.mrb[0].mxu0
    %4271 = vmatprep.mubr.bf16.mxu0 0
    %4272 = vmatmul.mubr.bf16.gmra.mrb[0].mxu0 %v4070
    %v4273 = vpop.f32.mrb[0].mxu0
    %v4274 = vadd.f32 0.0, %v4273
    %v4275 = vpop.f32.mrb[0].mxu0
    %v4276 = vpop.f32.mrb[0].mxu0
    %v4277 = vadd.f32 0.0, %v4276
    %v4278 = vpop.f32.mrb[0].mxu0
    %4279 = vdwg.mxu0
    %v4280 = vadd.f32 %v4001, %v4170
    %v4281 = vadd.f32 %v4002, %v4173
    %v4282 = vadd.f32 %v4003, %v4178
    %v4283 = vadd.f32 %v4004, %v4181
    %v4284 = vadd.f32 %v4005, %v4186
    %v4285 = vadd.f32 %v4006, %v4189
    %v4286 = vadd.f32 %v4007, %v4194
    %v4287 = vadd.f32 %v4008, %v4197
    %v4288 = vadd.f32 %v4009, %v4202
    %v4289 = vadd.f32 %v4010, %v4205
    %v4290 = vadd.f32 %v4011, %v4210
    %v4291 = vadd.f32 %v4012, %v4213
    %v4292 = vadd.f32 %v4013, %v4218
    %v4293 = vadd.f32 %v4014, %v4221
    %v4294 = vadd.f32 %v4015, %v4226
    %v4295 = vadd.f32 %v4016, %v4229
    %v4296 = vadd.f32 %v4017, %v4234
    %v4297 = vadd.f32 %v4018, %v4237
    %v4298 = vadd.f32 %v4019, %v4242
    %v4299 = vadd.f32 %v4020, %v4245
    %v4300 = vadd.f32 %v4021, %v4250
    %v4301 = vadd.f32 %v4022, %v4253
    %v4302 = vadd.f32 %v4023, %v4258
    %v4303 = vadd.f32 %v4024, %v4261
    %v4304 = vadd.f32 %v4025, %v4266
    %v4305 = vadd.f32 %v4026, %v4269
    %v4306 = vadd.f32 %v4027, %v4274
    %v4307 = vadd.f32 %v4028, %v4277
    %v4308 = vld [vmem:[%s0 + $0x120] sm:$0xff]
    %v4309 = vld [vmem:[%s0 + $0x128] sm:$0xff]
    %v4310 = vld [vmem:[%s0 + $0x130] sm:$0xff]
    %v4311 = vld [vmem:[%s0 + $0x138] sm:$0xff]
    %v4312 = vld [vmem:[%s0 + $0x140] sm:$0xff]
    %v4313 = vld [vmem:[%s0 + $0x148] sm:$0xff]
    %v4314 = vld [vmem:[%s0 + $0x150] sm:$0xff]
    %v4315 = vld [vmem:[%s0 + $0x158] sm:$0xff]
    %v4316 = vld [vmem:[%s0 + $0x160] sm:$0xff]
    %v4317 = vld [vmem:[%s0 + $0x168] sm:$0xff]
    %v4318 = vld [vmem:[%s0 + $0x170] sm:$0xff]
    %v4319 = vld [vmem:[%s0 + $0x178] sm:$0xff]
    %v4320 = vld [vmem:[%s0 + $0x180] sm:$0xff]
    %v4321 = vld [vmem:[%s0 + $0x188] sm:$0xff]
    %v4322 = vld [vmem:[%s0 + $0x190] sm:$0xff]
    %v4323 = vld [vmem:[%s0 + $0x198] sm:$0xff]
    %v4324 = vld [vmem:[%s0 + $0x1a0] sm:$0xff]
    %v4325 = vld [vmem:[%s0 + $0x1a8] sm:$0xff]
    %v4326 = vld [vmem:[%s0 + $0x1b0] sm:$0xff]
    %v4327 = vld [vmem:[%s0 + $0x1b8] sm:$0xff]
    %v4328 = vld [vmem:[%s0 + $0x1c0] sm:$0xff]
    %v4329 = vld [vmem:[%s0 + $0x1c8] sm:$0xff]
    %v4330 = vld [vmem:[%s0 + $0x1d0] sm:$0xff]
    %v4331 = vld [vmem:[%s0 + $0x1d8] sm:$0xff]
    %v4332 = vld [vmem:[%s0 + $0x1e0] sm:$0xff]
    %v4333 = vld [vmem:[%s0 + $0x1e8] sm:$0xff]
    %v4334 = vld [vmem:[%s0 + $0x1f0] sm:$0xff]
    %v4335 = vld [vmem:[%s0 + $0x1f8] sm:$0x3f]
    %v4336 = vpack.c.bf16 %v4309, %v4308
    %v4337 = vpack.c.bf16 %v4311, %v4310
    %v4338 = vpack.c.bf16 %v4313, %v4312
    %v4339 = vpack.c.bf16 %v4315, %v4314
    %v4340 = vpack.c.bf16 %v4317, %v4316
    %v4341 = vpack.c.bf16 %v4319, %v4318
    %v4342 = vpack.c.bf16 %v4321, %v4320
    %v4343 = vpack.c.bf16 %v4323, %v4322
    %v4344 = vpack.c.bf16 %v4325, %v4324
    %v4345 = vpack.c.bf16 %v4327, %v4326
    %v4346 = vpack.c.bf16 %v4329, %v4328
    %v4347 = vpack.c.bf16 %v4331, %v4330
    %v4348 = vpack.c.bf16 %v4333, %v4332
    %v4349 = vpack.c.bf16 %v4335, %v4334
    %v4350 = vld [vmem:[%s1802] sm:$0xf]
    %v4351 = vld [vmem:[%s1802 + $0x4] sm:$0xf]
    %v4352 = vld [vmem:[%s1802 + $0x8] sm:$0xf]
    %v4353 = vld [vmem:[%s1802 + $0xc] sm:$0xf]
    %v4354 = vld [vmem:[%s1802 + $0x10] sm:$0xf]
    %v4355 = vld [vmem:[%s1802 + $0x14] sm:$0xf]
    %v4356 = vld [vmem:[%s1802 + $0x18] sm:$0xf]
    %v4357 = vld [vmem:[%s1802 + $0x1c] sm:$0xf]
    %v4358 = vld [vmem:[%s1802 + $0x20] sm:$0xf]
    %v4359 = vld [vmem:[%s1802 + $0x24] sm:$0xf]
    %v4360 = vld [vmem:[%s1802 + $0x28] sm:$0xf]
    %v4361 = vld [vmem:[%s1802 + $0x2c] sm:$0xf]
    %v4362 = vld [vmem:[%s1802 + $0x30] sm:$0xf]
    %v4363 = vld [vmem:[%s1802 + $0x34] sm:$0xf]
    %v4364 = vld [vmem:[%s1802 + $0x38] sm:$0xf]
    %v4365 = vld [vmem:[%s1802 + $0x3c] sm:$0xf]
    %v4382 = vunpack.c.l.b16 %v4350
    %v4383 = vunpack.c.l.b16 %v4351
    %v4384 = vunpack.c.l.b16 %v4352
    %v4385 = vunpack.c.l.b16 %v4353
    %v4386 = vunpack.c.l.b16 %v4354
    %v4387 = vunpack.c.l.b16 %v4355
    %v4388 = vunpack.c.l.b16 %v4356
    %v4389 = vunpack.c.l.b16 %v4357
    %v4390 = vunpack.c.l.b16 %v4358
    %v4391 = vunpack.c.l.b16 %v4359
    %v4392 = vunpack.c.l.b16 %v4360
    %v4393 = vunpack.c.l.b16 %v4361
    %v4394 = vunpack.c.l.b16 %v4362
    %v4395 = vunpack.c.l.b16 %v4363
    %v4396 = vunpack.c.l.b16 %v4364
    %v4397 = vunpack.c.l.b16 %v4365
    %v4398 = vpack.c.b16 %v4383, %v4382
    %v4399 = vpack.c.b16 %v4385, %v4384
    %v4400 = vpack.c.b16 %v4387, %v4386
    %v4401 = vpack.c.b16 %v4389, %v4388
    %v4402 = vpack.c.b16 %v4391, %v4390
    %v4403 = vpack.c.b16 %v4393, %v4392
    %v4404 = vpack.c.b16 %v4395, %v4394
    %v4405 = vpack.c.b16 %v4397, %v4396
    %4414 = vmatprep.subr.bf16.mxu0 0
    %4415 = vmatpush1.bf16.msra.mxu0 %v4398
    %4416 = vmatprep.subr.bf16.mxu0 0
    %4417 = vmatpush1.bf16.msra.mxu0 %v4399
    %4418 = vmatprep.subr.bf16.mxu0 0
    %4419 = vmatpush1.bf16.msra.mxu0 %v4400
    %4420 = vmatprep.subr.bf16.mxu0 0
    %4421 = vmatpush1.bf16.msra.mxu0 %v4401
    %4422 = vmatprep.subr.bf16.mxu0 0
    %4423 = vmatpush1.bf16.msra.mxu0 %v4402
    %4424 = vmatprep.subr.bf16.mxu0 0
    %4425 = vmatpush1.bf16.msra.mxu0 %v4403
    %4426 = vmatprep.subr.bf16.mxu0 0
    %4427 = vmatpush1.bf16.msra.mxu0 %v4404
    %4428 = vmatprep.subr.bf16.mxu0 0
    %4429 = vmatpush1.bf16.msra.mxu0 %v4405
    %4430 = vmatprep.subr.bf16.mxu0 0
    %4431 = vmatpush1.bf16.msra.mxu0 0
    %4432 = vmatprep.subr.bf16.mxu0 0
    %4433 = vmatpush1.bf16.msra.mxu0 0
    %4434 = vmatprep.subr.bf16.mxu0 0
    %4435 = vmatpush1.bf16.msra.mxu0 0
    %4436 = vmatprep.subr.bf16.mxu0 0
    %4437 = vmatpush1.bf16.msra.mxu0 0
    %4438 = vmatprep.subr.bf16.mxu0 0
    %4439 = vmatpush1.bf16.msra.mxu0 0
    %4440 = vmatprep.subr.bf16.mxu0 0
    %4441 = vmatpush1.bf16.msra.mxu0 0
    %4442 = vmatprep.subr.bf16.mxu0 0
    %4443 = vmatpush1.bf16.msra.mxu0 0
    %4444 = vmatprep.subr.bf16.mxu0 0
    %4445 = vmatpush1.bf16.msra.mxu0 0
    %4446 = vmatprep.mubr.bf16.mxu0 0
    %4447 = vmatmul.mubr.bf16.gmra.mrb[0].mxu0 %v4336
    %v4448 = vpop.f32.mrb[0].mxu0
    %v4449 = vadd.f32 0.0, %v4448
    %v4450 = vpop.f32.mrb[0].mxu0
    %v4451 = vpop.f32.mrb[0].mxu0
    %v4452 = vadd.f32 0.0, %v4451
    %v4453 = vpop.f32.mrb[0].mxu0
    %4454 = vmatprep.mubr.bf16.mxu0 0
    %4455 = vmatmul.mubr.bf16.gmra.mrb[0].mxu0 %v4337
    %v4456 = vpop.f32.mrb[0].mxu0
    %v4457 = vadd.f32 0.0, %v4456
    %v4458 = vpop.f32.mrb[0].mxu0
    %v4459 = vpop.f32.mrb[0].mxu0
    %v4460 = vadd.f32 0.0, %v4459
    %v4461 = vpop.f32.mrb[0].mxu0
    %4462 = vmatprep.mubr.bf16.mxu0 0
    %4463 = vmatmul.mubr.bf16.gmra.mrb[0].mxu0 %v4338
    %v4464 = vpop.f32.mrb[0].mxu0
    %v4465 = vadd.f32 0.0, %v4464
    %v4466 = vpop.f32.mrb[0].mxu0
    %v4467 = vpop.f32.mrb[0].mxu0
    %v4468 = vadd.f32 0.0, %v4467
    %v4469 = vpop.f32.mrb[0].mxu0
    %4470 = vmatprep.mubr.bf16.mxu0 0
    %4471 = vmatmul.mubr.bf16.gmra.mrb[0].mxu0 %v4339
    %v4472 = vpop.f32.mrb[0].mxu0
    %v4473 = vadd.f32 0.0, %v4472
    %v4474 = vpop.f32.mrb[0].mxu0
    %v4475 = vpop.f32.mrb[0].mxu0
    %v4476 = vadd.f32 0.0, %v4475
    %v4477 = vpop.f32.mrb[0].mxu0
    %4478 = vmatprep.mubr.bf16.mxu0 0
    %4479 = vmatmul.mubr.bf16.gmra.mrb[0].mxu0 %v4340
    %v4480 = vpop.f32.mrb[0].mxu0
    %v4481 = vadd.f32 0.0, %v4480
    %v4482 = vpop.f32.mrb[0].mxu0
    %v4483 = vpop.f32.mrb[0].mxu0
    %v4484 = vadd.f32 0.0, %v4483
    %v4485 = vpop.f32.mrb[0].mxu0
    %4486 = vmatprep.mubr.bf16.mxu0 0
    %4487 = vmatmul.mubr.bf16.gmra.mrb[0].mxu0 %v4341
    %v4488 = vpop.f32.mrb[0].mxu0
    %v4489 = vadd.f32 0.0, %v4488
    %v4490 = vpop.f32.mrb[0].mxu0
    %v4491 = vpop.f32.mrb[0].mxu0
    %v4492 = vadd.f32 0.0, %v4491
    %v4493 = vpop.f32.mrb[0].mxu0
    %4494 = vmatprep.mubr.bf16.mxu0 0
    %4495 = vmatmul.mubr.bf16.gmra.mrb[0].mxu0 %v4342
    %v4496 = vpop.f32.mrb[0].mxu0
    %v4497 = vadd.f32 0.0, %v4496
    %v4498 = vpop.f32.mrb[0].mxu0
    %v4499 = vpop.f32.mrb[0].mxu0
    %v4500 = vadd.f32 0.0, %v4499
    %v4501 = vpop.f32.mrb[0].mxu0
    %4502 = vmatprep.mubr.bf16.mxu0 0
    %4503 = vmatmul.mubr.bf16.gmra.mrb[0].mxu0 %v4343
    %v4504 = vpop.f32.mrb[0].mxu0
    %v4505 = vadd.f32 0.0, %v4504
    %v4506 = vpop.f32.mrb[0].mxu0
    %v4507 = vpop.f32.mrb[0].mxu0
    %v4508 = vadd.f32 0.0, %v4507
    %v4509 = vpop.f32.mrb[0].mxu0
    %4510 = vmatprep.mubr.bf16.mxu0 0
    %4511 = vmatmul.mubr.bf16.gmra.mrb[0].mxu0 %v4344
    %v4512 = vpop.f32.mrb[0].mxu0
    %v4513 = vadd.f32 0.0, %v4512
    %v4514 = vpop.f32.mrb[0].mxu0
    %v4515 = vpop.f32.mrb[0].mxu0
    %v4516 = vadd.f32 0.0, %v4515
    %v4517 = vpop.f32.mrb[0].mxu0
    %4518 = vmatprep.mubr.bf16.mxu0 0
    %4519 = vmatmul.mubr.bf16.gmra.mrb[0].mxu0 %v4345
    %v4520 = vpop.f32.mrb[0].mxu0
    %v4521 = vadd.f32 0.0, %v4520
    %v4522 = vpop.f32.mrb[0].mxu0
    %v4523 = vpop.f32.mrb[0].mxu0
    %v4524 = vadd.f32 0.0, %v4523
    %v4525 = vpop.f32.mrb[0].mxu0
    %4526 = vmatprep.mubr.bf16.mxu0 0
    %4527 = vmatmul.mubr.bf16.gmra.mrb[0].mxu0 %v4346
    %v4528 = vpop.f32.mrb[0].mxu0
    %v4529 = vadd.f32 0.0, %v4528
    %v4530 = vpop.f32.mrb[0].mxu0
    %v4531 = vpop.f32.mrb[0].mxu0
    %v4532 = vadd.f32 0.0, %v4531
    %v4533 = vpop.f32.mrb[0].mxu0
    %4534 = vmatprep.mubr.bf16.mxu0 0
    %4535 = vmatmul.mubr.bf16.gmra.mrb[0].mxu0 %v4347
    %v4536 = vpop.f32.mrb[0].mxu0
    %v4537 = vadd.f32 0.0, %v4536
    %v4538 = vpop.f32.mrb[0].mxu0
    %v4539 = vpop.f32.mrb[0].mxu0
    %v4540 = vadd.f32 0.0, %v4539
    %v4541 = vpop.f32.mrb[0].mxu0
    %4542 = vmatprep.mubr.bf16.mxu0 0
    %4543 = vmatmul.mubr.bf16.gmra.mrb[0].mxu0 %v4348
    %v4544 = vpop.f32.mrb[0].mxu0
    %v4545 = vadd.f32 0.0, %v4544
    %v4546 = vpop.f32.mrb[0].mxu0
    %v4547 = vpop.f32.mrb[0].mxu0
    %v4548 = vadd.f32 0.0, %v4547
    %v4549 = vpop.f32.mrb[0].mxu0
    %4550 = vmatprep.mubr.bf16.mxu0 0
    %4551 = vmatmul.mubr.bf16.gmra.mrb[0].mxu0 %v4349
    %v4552 = vpop.f32.mrb[0].mxu0
    %v4553 = vadd.f32 0.0, %v4552
    %v4554 = vpop.f32.mrb[0].mxu0
    %v4555 = vpop.f32.mrb[0].mxu0
    %v4556 = vadd.f32 0.0, %v4555
    %v4557 = vpop.f32.mrb[0].mxu0
    %4558 = vdwg.mxu0
    %v4559 = vadd.f32 %v4280, %v4449
    %v4560 = vadd.f32 %v4281, %v4452
    %v4561 = vadd.f32 %v4282, %v4457
    %v4562 = vadd.f32 %v4283, %v4460
    %v4563 = vadd.f32 %v4284, %v4465
    %v4564 = vadd.f32 %v4285, %v4468
    %v4565 = vadd.f32 %v4286, %v4473
    %v4566 = vadd.f32 %v4287, %v4476
    %v4567 = vadd.f32 %v4288, %v4481
    %v4568 = vadd.f32 %v4289, %v4484
    %v4569 = vadd.f32 %v4290, %v4489
    %v4570 = vadd.f32 %v4291, %v4492
    %v4571 = vadd.f32 %v4292, %v4497
    %v4572 = vadd.f32 %v4293, %v4500
    %v4573 = vadd.f32 %v4294, %v4505
    %v4574 = vadd.f32 %v4295, %v4508
    %v4575 = vadd.f32 %v4296, %v4513
    %v4576 = vadd.f32 %v4297, %v4516
    %v4577 = vadd.f32 %v4298, %v4521
    %v4578 = vadd.f32 %v4299, %v4524
    %v4579 = vadd.f32 %v4300, %v4529
    %v4580 = vadd.f32 %v4301, %v4532
    %v4581 = vadd.f32 %v4302, %v4537
    %v4582 = vadd.f32 %v4303, %v4540
    %v4583 = vadd.f32 %v4304, %v4545
    %v4584 = vadd.f32 %v4305, %v4548
    %v4585 = vadd.f32 %v4306, %v4553
    %v4586 = vadd.f32 %v4307, %v4556
    %v4587 = vld [vmem:[%s0 + $0x121] sm:$0xff]
    %v4588 = vld [vmem:[%s0 + $0x129] sm:$0xff]
    %v4589 = vld [vmem:[%s0 + $0x131] sm:$0xff]
    %v4590 = vld [vmem:[%s0 + $0x139] sm:$0xff]
    %v4591 = vld [vmem:[%s0 + $0x141] sm:$0xff]
    %v4592 = vld [vmem:[%s0 + $0x149] sm:$0xff]
    %v4593 = vld [vmem:[%s0 + $0x151] sm:$0xff]
    %v4594 = vld [vmem:[%s0 + $0x159] sm:$0xff]
    %v4595 = vld [vmem:[%s0 + $0x161] sm:$0xff]
    %v4596 = vld [vmem:[%s0 + $0x169] sm:$0xff]
    %v4597 = vld [vmem:[%s0 + $0x171] sm:$0xff]
    %v4598 = vld [vmem:[%s0 + $0x179] sm:$0xff]
    %v4599 = vld [vmem:[%s0 + $0x181] sm:$0xff]
    %v4600 = vld [vmem:[%s0 + $0x189] sm:$0xff]
    %v4601 = vld [vmem:[%s0 + $0x191] sm:$0xff]
    %v4602 = vld [vmem:[%s0 + $0x199] sm:$0xff]
    %v4603 = vld [vmem:[%s0 + $0x1a1] sm:$0xff]
    %v4604 = vld [vmem:[%s0 + $0x1a9] sm:$0xff]
    %v4605 = vld [vmem:[%s0 + $0x1b1] sm:$0xff]
    %v4606 = vld [vmem:[%s0 + $0x1b9] sm:$0xff]
    %v4607 = vld [vmem:[%s0 + $0x1c1] sm:$0xff]
    %v4608 = vld [vmem:[%s0 + $0x1c9] sm:$0xff]
    %v4609 = vld [vmem:[%s0 + $0x1d1] sm:$0xff]
    %v4610 = vld [vmem:[%s0 + $0x1d9] sm:$0xff]
    %v4611 = vld [vmem:[%s0 + $0x1e1] sm:$0xff]
    %v4612 = vld [vmem:[%s0 + $0x1e9] sm:$0xff]
    %v4613 = vld [vmem:[%s0 + $0x1f1] sm:$0xff]
    %v4614 = vld [vmem:[%s0 + $0x1f9] sm:$0x3f]
    %v4615 = vpack.c.bf16 %v4588, %v4587
    %v4616 = vpack.c.bf16 %v4590, %v4589
    %v4617 = vpack.c.bf16 %v4592, %v4591
    %v4618 = vpack.c.bf16 %v4594, %v4593
    %v4619 = vpack.c.bf16 %v4596, %v4595
    %v4620 = vpack.c.bf16 %v4598, %v4597
    %v4621 = vpack.c.bf16 %v4600, %v4599
    %v4622 = vpack.c.bf16 %v4602, %v4601
    %v4623 = vpack.c.bf16 %v4604, %v4603
    %v4624 = vpack.c.bf16 %v4606, %v4605
    %v4625 = vpack.c.bf16 %v4608, %v4607
    %v4626 = vpack.c.bf16 %v4610, %v4609
    %v4627 = vpack.c.bf16 %v4612, %v4611
    %v4628 = vpack.c.bf16 %v4614, %v4613
    %v4629 = vld [vmem:[%s2082] sm:$0xf]
    %v4630 = vld [vmem:[%s2082 + $0x4] sm:$0xf]
    %v4631 = vld [vmem:[%s2082 + $0x8] sm:$0xf]
    %v4632 = vld [vmem:[%s2082 + $0xc] sm:$0xf]
    %v4633 = vld [vmem:[%s2082 + $0x10] sm:$0xf]
    %v4634 = vld [vmem:[%s2082 + $0x14] sm:$0xf]
    %v4635 = vld [vmem:[%s2082 + $0x18] sm:$0xf]
    %v4636 = vld [vmem:[%s2082 + $0x1c] sm:$0xf]
    %v4637 = vld [vmem:[%s2082 + $0x20] sm:$0xf]
    %v4638 = vld [vmem:[%s2082 + $0x24] sm:$0xf]
    %v4639 = vld [vmem:[%s2082 + $0x28] sm:$0xf]
    %v4640 = vld [vmem:[%s2082 + $0x2c] sm:$0xf]
    %v4641 = vld [vmem:[%s2082 + $0x30] sm:$0xf]
    %v4642 = vld [vmem:[%s2082 + $0x34] sm:$0xf]
    %v4643 = vld [vmem:[%s2082 + $0x38] sm:$0xf]
    %v4644 = vld [vmem:[%s2082 + $0x3c] sm:$0xf]
    %v4661 = vunpack.c.l.b16 %v4629
    %v4662 = vunpack.c.l.b16 %v4630
    %v4663 = vunpack.c.l.b16 %v4631
    %v4664 = vunpack.c.l.b16 %v4632
    %v4665 = vunpack.c.l.b16 %v4633
    %v4666 = vunpack.c.l.b16 %v4634
    %v4667 = vunpack.c.l.b16 %v4635
    %v4668 = vunpack.c.l.b16 %v4636
    %v4669 = vunpack.c.l.b16 %v4637
    %v4670 = vunpack.c.l.b16 %v4638
    %v4671 = vunpack.c.l.b16 %v4639
    %v4672 = vunpack.c.l.b16 %v4640
    %v4673 = vunpack.c.l.b16 %v4641
    %v4674 = vunpack.c.l.b16 %v4642
    %v4675 = vunpack.c.l.b16 %v4643
    %v4676 = vunpack.c.l.b16 %v4644
    %v4677 = vpack.c.b16 %v4662, %v4661
    %v4678 = vpack.c.b16 %v4664, %v4663
    %v4679 = vpack.c.b16 %v4666, %v4665
    %v4680 = vpack.c.b16 %v4668, %v4667
    %v4681 = vpack.c.b16 %v4670, %v4669
    %v4682 = vpack.c.b16 %v4672, %v4671
    %v4683 = vpack.c.b16 %v4674, %v4673
    %v4684 = vpack.c.b16 %v4676, %v4675
    %4693 = vmatprep.subr.bf16.mxu0 0
    %4694 = vmatpush1.bf16.msra.mxu0 %v4677
    %4695 = vmatprep.subr.bf16.mxu0 0
    %4696 = vmatpush1.bf16.msra.mxu0 %v4678
    %4697 = vmatprep.subr.bf16.mxu0 0
    %4698 = vmatpush1.bf16.msra.mxu0 %v4679
    %4699 = vmatprep.subr.bf16.mxu0 0
    %4700 = vmatpush1.bf16.msra.mxu0 %v4680
    %4701 = vmatprep.subr.bf16.mxu0 0
    %4702 = vmatpush1.bf16.msra.mxu0 %v4681
    %4703 = vmatprep.subr.bf16.mxu0 0
    %4704 = vmatpush1.bf16.msra.mxu0 %v4682
    %4705 = vmatprep.subr.bf16.mxu0 0
    %4706 = vmatpush1.bf16.msra.mxu0 %v4683
    %4707 = vmatprep.subr.bf16.mxu0 0
    %4708 = vmatpush1.bf16.msra.mxu0 %v4684
    %4709 = vmatprep.subr.bf16.mxu0 0
    %4710 = vmatpush1.bf16.msra.mxu0 0
    %4711 = vmatprep.subr.bf16.mxu0 0
    %4712 = vmatpush1.bf16.msra.mxu0 0
    %4713 = vmatprep.subr.bf16.mxu0 0
    %4714 = vmatpush1.bf16.msra.mxu0 0
    %4715 = vmatprep.subr.bf16.mxu0 0
    %4716 = vmatpush1.bf16.msra.mxu0 0
    %4717 = vmatprep.subr.bf16.mxu0 0
    %4718 = vmatpush1.bf16.msra.mxu0 0
    %4719 = vmatprep.subr.bf16.mxu0 0
    %4720 = vmatpush1.bf16.msra.mxu0 0
    %4721 = vmatprep.subr.bf16.mxu0 0
    %4722 = vmatpush1.bf16.msra.mxu0 0
    %4723 = vmatprep.subr.bf16.mxu0 0
    %4724 = vmatpush1.bf16.msra.mxu0 0
    %4725 = vmatprep.mubr.bf16.mxu0 0
    %4726 = vmatmul.mubr.bf16.gmra.mrb[0].mxu0 %v4615
    %v4727 = vpop.f32.mrb[0].mxu0
    %v4728 = vadd.f32 0.0, %v4727
    %v4729 = vpop.f32.mrb[0].mxu0
    %v4730 = vpop.f32.mrb[0].mxu0
    %v4731 = vadd.f32 0.0, %v4730
    %v4732 = vpop.f32.mrb[0].mxu0
    %4733 = vmatprep.mubr.bf16.mxu0 0
    %4734 = vmatmul.mubr.bf16.gmra.mrb[0].mxu0 %v4616
    %v4735 = vpop.f32.mrb[0].mxu0
    %v4736 = vadd.f32 0.0, %v4735
    %v4737 = vpop.f32.mrb[0].mxu0
    %v4738 = vpop.f32.mrb[0].mxu0
    %v4739 = vadd.f32 0.0, %v4738
    %v4740 = vpop.f32.mrb[0].mxu0
    %4741 = vmatprep.mubr.bf16.mxu0 0
    %4742 = vmatmul.mubr.bf16.gmra.mrb[0].mxu0 %v4617
    %v4743 = vpop.f32.mrb[0].mxu0
    %v4744 = vadd.f32 0.0, %v4743
    %v4745 = vpop.f32.mrb[0].mxu0
    %v4746 = vpop.f32.mrb[0].mxu0
    %v4747 = vadd.f32 0.0, %v4746
    %v4748 = vpop.f32.mrb[0].mxu0
    %4749 = vmatprep.mubr.bf16.mxu0 0
    %4750 = vmatmul.mubr.bf16.gmra.mrb[0].mxu0 %v4618
    %v4751 = vpop.f32.mrb[0].mxu0
    %v4752 = vadd.f32 0.0, %v4751
    %v4753 = vpop.f32.mrb[0].mxu0
    %v4754 = vpop.f32.mrb[0].mxu0
    %v4755 = vadd.f32 0.0, %v4754
    %v4756 = vpop.f32.mrb[0].mxu0
    %4757 = vmatprep.mubr.bf16.mxu0 0
    %4758 = vmatmul.mubr.bf16.gmra.mrb[0].mxu0 %v4619
    %v4759 = vpop.f32.mrb[0].mxu0
    %v4760 = vadd.f32 0.0, %v4759
    %v4761 = vpop.f32.mrb[0].mxu0
    %v4762 = vpop.f32.mrb[0].mxu0
    %v4763 = vadd.f32 0.0, %v4762
    %v4764 = vpop.f32.mrb[0].mxu0
    %4765 = vmatprep.mubr.bf16.mxu0 0
    %4766 = vmatmul.mubr.bf16.gmra.mrb[0].mxu0 %v4620
    %v4767 = vpop.f32.mrb[0].mxu0
    %v4768 = vadd.f32 0.0, %v4767
    %v4769 = vpop.f32.mrb[0].mxu0
    %v4770 = vpop.f32.mrb[0].mxu0
    %v4771 = vadd.f32 0.0, %v4770
    %v4772 = vpop.f32.mrb[0].mxu0
    %4773 = vmatprep.mubr.bf16.mxu0 0
    %4774 = vmatmul.mubr.bf16.gmra.mrb[0].mxu0 %v4621
    %v4775 = vpop.f32.mrb[0].mxu0
    %v4776 = vadd.f32 0.0, %v4775
    %v4777 = vpop.f32.mrb[0].mxu0
    %v4778 = vpop.f32.mrb[0].mxu0
    %v4779 = vadd.f32 0.0, %v4778
    %v4780 = vpop.f32.mrb[0].mxu0
    %4781 = vmatprep.mubr.bf16.mxu0 0
    %4782 = vmatmul.mubr.bf16.gmra.mrb[0].mxu0 %v4622
    %v4783 = vpop.f32.mrb[0].mxu0
    %v4784 = vadd.f32 0.0, %v4783
    %v4785 = vpop.f32.mrb[0].mxu0
    %v4786 = vpop.f32.mrb[0].mxu0
    %v4787 = vadd.f32 0.0, %v4786
    %v4788 = vpop.f32.mrb[0].mxu0
    %4789 = vmatprep.mubr.bf16.mxu0 0
    %4790 = vmatmul.mubr.bf16.gmra.mrb[0].mxu0 %v4623
    %v4791 = vpop.f32.mrb[0].mxu0
    %v4792 = vadd.f32 0.0, %v4791
    %v4793 = vpop.f32.mrb[0].mxu0
    %v4794 = vpop.f32.mrb[0].mxu0
    %v4795 = vadd.f32 0.0, %v4794
    %v4796 = vpop.f32.mrb[0].mxu0
    %4797 = vmatprep.mubr.bf16.mxu0 0
    %4798 = vmatmul.mubr.bf16.gmra.mrb[0].mxu0 %v4624
    %v4799 = vpop.f32.mrb[0].mxu0
    %v4800 = vadd.f32 0.0, %v4799
    %v4801 = vpop.f32.mrb[0].mxu0
    %v4802 = vpop.f32.mrb[0].mxu0
    %v4803 = vadd.f32 0.0, %v4802
    %v4804 = vpop.f32.mrb[0].mxu0
    %4805 = vmatprep.mubr.bf16.mxu0 0
    %4806 = vmatmul.mubr.bf16.gmra.mrb[0].mxu0 %v4625
    %v4807 = vpop.f32.mrb[0].mxu0
    %v4808 = vadd.f32 0.0, %v4807
    %v4809 = vpop.f32.mrb[0].mxu0
    %v4810 = vpop.f32.mrb[0].mxu0
    %v4811 = vadd.f32 0.0, %v4810
    %v4812 = vpop.f32.mrb[0].mxu0
    %4813 = vmatprep.mubr.bf16.mxu0 0
    %4814 = vmatmul.mubr.bf16.gmra.mrb[0].mxu0 %v4626
    %v4815 = vpop.f32.mrb[0].mxu0
    %v4816 = vadd.f32 0.0, %v4815
    %v4817 = vpop.f32.mrb[0].mxu0
    %v4818 = vpop.f32.mrb[0].mxu0
    %v4819 = vadd.f32 0.0, %v4818
    %v4820 = vpop.f32.mrb[0].mxu0
    %4821 = vmatprep.mubr.bf16.mxu0 0
    %4822 = vmatmul.mubr.bf16.gmra.mrb[0].mxu0 %v4627
    %v4823 = vpop.f32.mrb[0].mxu0
    %v4824 = vadd.f32 0.0, %v4823
    %v4825 = vpop.f32.mrb[0].mxu0
    %v4826 = vpop.f32.mrb[0].mxu0
    %v4827 = vadd.f32 0.0, %v4826
    %v4828 = vpop.f32.mrb[0].mxu0
    %4829 = vmatprep.mubr.bf16.mxu0 0
    %4830 = vmatmul.mubr.bf16.gmra.mrb[0].mxu0 %v4628
    %v4831 = vpop.f32.mrb[0].mxu0
    %v4832 = vadd.f32 0.0, %v4831
    %v4833 = vpop.f32.mrb[0].mxu0
    %v4834 = vpop.f32.mrb[0].mxu0
    %v4835 = vadd.f32 0.0, %v4834
    %v4836 = vpop.f32.mrb[0].mxu0
    %4837 = vdwg.mxu0
    %v4838 = vadd.f32 %v4559, %v4728
    %v4839 = vadd.f32 %v4560, %v4731
    %v4840 = vadd.f32 %v4561, %v4736
    %v4841 = vadd.f32 %v4562, %v4739
    %v4842 = vadd.f32 %v4563, %v4744
    %v4843 = vadd.f32 %v4564, %v4747
    %v4844 = vadd.f32 %v4565, %v4752
    %v4845 = vadd.f32 %v4566, %v4755
    %v4846 = vadd.f32 %v4567, %v4760
    %v4847 = vadd.f32 %v4568, %v4763
    %v4848 = vadd.f32 %v4569, %v4768
    %v4849 = vadd.f32 %v4570, %v4771
    %v4850 = vadd.f32 %v4571, %v4776
    %v4851 = vadd.f32 %v4572, %v4779
    %v4852 = vadd.f32 %v4573, %v4784
    %v4853 = vadd.f32 %v4574, %v4787
    %v4854 = vadd.f32 %v4575, %v4792
    %v4855 = vadd.f32 %v4576, %v4795
    %v4856 = vadd.f32 %v4577, %v4800
    %v4857 = vadd.f32 %v4578, %v4803
    %v4858 = vadd.f32 %v4579, %v4808
    %v4859 = vadd.f32 %v4580, %v4811
    %v4860 = vadd.f32 %v4581, %v4816
    %v4861 = vadd.f32 %v4582, %v4819
    %v4862 = vadd.f32 %v4583, %v4824
    %v4863 = vadd.f32 %v4584, %v4827
    %v4864 = vadd.f32 %v4585, %v4832
    %v4865 = vadd.f32 %v4586, %v4835
    %v4866 = vld [vmem:[%s0 + $0x122] sm:$0xff]
    %v4867 = vld [vmem:[%s0 + $0x12a] sm:$0xff]
    %v4868 = vld [vmem:[%s0 + $0x132] sm:$0xff]
    %v4869 = vld [vmem:[%s0 + $0x13a] sm:$0xff]
    %v4870 = vld [vmem:[%s0 + $0x142] sm:$0xff]
    %v4871 = vld [vmem:[%s0 + $0x14a] sm:$0xff]
    %v4872 = vld [vmem:[%s0 + $0x152] sm:$0xff]
    %v4873 = vld [vmem:[%s0 + $0x15a] sm:$0xff]
    %v4874 = vld [vmem:[%s0 + $0x162] sm:$0xff]
    %v4875 = vld [vmem:[%s0 + $0x16a] sm:$0xff]
    %v4876 = vld [vmem:[%s0 + $0x172] sm:$0xff]
    %v4877 = vld [vmem:[%s0 + $0x17a] sm:$0xff]
    %v4878 = vld [vmem:[%s0 + $0x182] sm:$0xff]
    %v4879 = vld [vmem:[%s0 + $0x18a] sm:$0xff]
    %v4880 = vld [vmem:[%s0 + $0x192] sm:$0xff]
    %v4881 = vld [vmem:[%s0 + $0x19a] sm:$0xff]
    %v4882 = vld [vmem:[%s0 + $0x1a2] sm:$0xff]
    %v4883 = vld [vmem:[%s0 + $0x1aa] sm:$0xff]
    %v4884 = vld [vmem:[%s0 + $0x1b2] sm:$0xff]
    %v4885 = vld [vmem:[%s0 + $0x1ba] sm:$0xff]
    %v4886 = vld [vmem:[%s0 + $0x1c2] sm:$0xff]
    %v4887 = vld [vmem:[%s0 + $0x1ca] sm:$0xff]
    %v4888 = vld [vmem:[%s0 + $0x1d2] sm:$0xff]
    %v4889 = vld [vmem:[%s0 + $0x1da] sm:$0xff]
    %v4890 = vld [vmem:[%s0 + $0x1e2] sm:$0xff]
    %v4891 = vld [vmem:[%s0 + $0x1ea] sm:$0xff]
    %v4892 = vld [vmem:[%s0 + $0x1f2] sm:$0xff]
    %v4893 = vld [vmem:[%s0 + $0x1fa] sm:$0x3f]
    %v4894 = vpack.c.bf16 %v4867, %v4866
    %v4895 = vpack.c.bf16 %v4869, %v4868
    %v4896 = vpack.c.bf16 %v4871, %v4870
    %v4897 = vpack.c.bf16 %v4873, %v4872
    %v4898 = vpack.c.bf16 %v4875, %v4874
    %v4899 = vpack.c.bf16 %v4877, %v4876
    %v4900 = vpack.c.bf16 %v4879, %v4878
    %v4901 = vpack.c.bf16 %v4881, %v4880
    %v4902 = vpack.c.bf16 %v4883, %v4882
    %v4903 = vpack.c.bf16 %v4885, %v4884
    %v4904 = vpack.c.bf16 %v4887, %v4886
    %v4905 = vpack.c.bf16 %v4889, %v4888
    %v4906 = vpack.c.bf16 %v4891, %v4890
    %v4907 = vpack.c.bf16 %v4893, %v4892
    %v4908 = vld [vmem:[%s2362] sm:$0xf]
    %v4909 = vld [vmem:[%s2362 + $0x4] sm:$0xf]
    %v4910 = vld [vmem:[%s2362 + $0x8] sm:$0xf]
    %v4911 = vld [vmem:[%s2362 + $0xc] sm:$0xf]
    %v4912 = vld [vmem:[%s2362 + $0x10] sm:$0xf]
    %v4913 = vld [vmem:[%s2362 + $0x14] sm:$0xf]
    %v4914 = vld [vmem:[%s2362 + $0x18] sm:$0xf]
    %v4915 = vld [vmem:[%s2362 + $0x1c] sm:$0xf]
    %v4916 = vld [vmem:[%s2362 + $0x20] sm:$0xf]
    %v4917 = vld [vmem:[%s2362 + $0x24] sm:$0xf]
    %v4918 = vld [vmem:[%s2362 + $0x28] sm:$0xf]
    %v4919 = vld [vmem:[%s2362 + $0x2c] sm:$0xf]
    %v4920 = vld [vmem:[%s2362 + $0x30] sm:$0xf]
    %v4921 = vld [vmem:[%s2362 + $0x34] sm:$0xf]
    %v4922 = vld [vmem:[%s2362 + $0x38] sm:$0xf]
    %v4923 = vld [vmem:[%s2362 + $0x3c] sm:$0xf]
    %v4940 = vunpack.c.l.b16 %v4908
    %v4941 = vunpack.c.l.b16 %v4909
    %v4942 = vunpack.c.l.b16 %v4910
    %v4943 = vunpack.c.l.b16 %v4911
    %v4944 = vunpack.c.l.b16 %v4912
    %v4945 = vunpack.c.l.b16 %v4913
    %v4946 = vunpack.c.l.b16 %v4914
    %v4947 = vunpack.c.l.b16 %v4915
    %v4948 = vunpack.c.l.b16 %v4916
    %v4949 = vunpack.c.l.b16 %v4917
    %v4950 = vunpack.c.l.b16 %v4918
    %v4951 = vunpack.c.l.b16 %v4919
    %v4952 = vunpack.c.l.b16 %v4920
    %v4953 = vunpack.c.l.b16 %v4921
    %v4954 = vunpack.c.l.b16 %v4922
    %v4955 = vunpack.c.l.b16 %v4923
    %v4956 = vpack.c.b16 %v4941, %v4940
    %v4957 = vpack.c.b16 %v4943, %v4942
    %v4958 = vpack.c.b16 %v4945, %v4944
    %v4959 = vpack.c.b16 %v4947, %v4946
    %v4960 = vpack.c.b16 %v4949, %v4948
    %v4961 = vpack.c.b16 %v4951, %v4950
    %v4962 = vpack.c.b16 %v4953, %v4952
    %v4963 = vpack.c.b16 %v4955, %v4954
    %4972 = vmatprep.subr.bf16.mxu0 0
    %4973 = vmatpush1.bf16.msra.mxu0 %v4956
    %4974 = vmatprep.subr.bf16.mxu0 0
    %4975 = vmatpush1.bf16.msra.mxu0 %v4957
    %4976 = vmatprep.subr.bf16.mxu0 0
    %4977 = vmatpush1.bf16.msra.mxu0 %v4958
    %4978 = vmatprep.subr.bf16.mxu0 0
    %4979 = vmatpush1.bf16.msra.mxu0 %v4959
    %4980 = vmatprep.subr.bf16.mxu0 0
    %4981 = vmatpush1.bf16.msra.mxu0 %v4960
    %4982 = vmatprep.subr.bf16.mxu0 0
    %4983 = vmatpush1.bf16.msra.mxu0 %v4961
    %4984 = vmatprep.subr.bf16.mxu0 0
    %4985 = vmatpush1.bf16.msra.mxu0 %v4962
    %4986 = vmatprep.subr.bf16.mxu0 0
    %4987 = vmatpush1.bf16.msra.mxu0 %v4963
    %4988 = vmatprep.subr.bf16.mxu0 0
    %4989 = vmatpush1.bf16.msra.mxu0 0
    %4990 = vmatprep.subr.bf16.mxu0 0
    %4991 = vmatpush1.bf16.msra.mxu0 0
    %4992 = vmatprep.subr.bf16.mxu0 0
    %4993 = vmatpush1.bf16.msra.mxu0 0
    %4994 = vmatprep.subr.bf16.mxu0 0
    %4995 = vmatpush1.bf16.msra.mxu0 0
    %4996 = vmatprep.subr.bf16.mxu0 0
    %4997 = vmatpush1.bf16.msra.mxu0 0
    %4998 = vmatprep.subr.bf16.mxu0 0
    %4999 = vmatpush1.bf16.msra.mxu0 0
    %5000 = vmatprep.subr.bf16.mxu0 0
    %5001 = vmatpush1.bf16.msra.mxu0 0
    %5002 = vmatprep.subr.bf16.mxu0 0
    %5003 = vmatpush1.bf16.msra.mxu0 0
    %5004 = vmatprep.mubr.bf16.mxu0 0
    %5005 = vmatmul.mubr.bf16.gmra.mrb[0].mxu0 %v4894
    %v5006 = vpop.f32.mrb[0].mxu0
    %v5007 = vadd.f32 0.0, %v5006
    %v5008 = vpop.f32.mrb[0].mxu0
    %v5009 = vpop.f32.mrb[0].mxu0
    %v5010 = vadd.f32 0.0, %v5009
    %v5011 = vpop.f32.mrb[0].mxu0
    %5012 = vmatprep.mubr.bf16.mxu0 0
    %5013 = vmatmul.mubr.bf16.gmra.mrb[0].mxu0 %v4895
    %v5014 = vpop.f32.mrb[0].mxu0
    %v5015 = vadd.f32 0.0, %v5014
    %v5016 = vpop.f32.mrb[0].mxu0
    %v5017 = vpop.f32.mrb[0].mxu0
    %v5018 = vadd.f32 0.0, %v5017
    %v5019 = vpop.f32.mrb[0].mxu0
    %5020 = vmatprep.mubr.bf16.mxu0 0
    %5021 = vmatmul.mubr.bf16.gmra.mrb[0].mxu0 %v4896
    %v5022 = vpop.f32.mrb[0].mxu0
    %v5023 = vadd.f32 0.0, %v5022
    %v5024 = vpop.f32.mrb[0].mxu0
    %v5025 = vpop.f32.mrb[0].mxu0
    %v5026 = vadd.f32 0.0, %v5025
    %v5027 = vpop.f32.mrb[0].mxu0
    %5028 = vmatprep.mubr.bf16.mxu0 0
    %5029 = vmatmul.mubr.bf16.gmra.mrb[0].mxu0 %v4897
    %v5030 = vpop.f32.mrb[0].mxu0
    %v5031 = vadd.f32 0.0, %v5030
    %v5032 = vpop.f32.mrb[0].mxu0
    %v5033 = vpop.f32.mrb[0].mxu0
    %v5034 = vadd.f32 0.0, %v5033
    %v5035 = vpop.f32.mrb[0].mxu0
    %5036 = vmatprep.mubr.bf16.mxu0 0
    %5037 = vmatmul.mubr.bf16.gmra.mrb[0].mxu0 %v4898
    %v5038 = vpop.f32.mrb[0].mxu0
    %v5039 = vadd.f32 0.0, %v5038
    %v5040 = vpop.f32.mrb[0].mxu0
    %v5041 = vpop.f32.mrb[0].mxu0
    %v5042 = vadd.f32 0.0, %v5041
    %v5043 = vpop.f32.mrb[0].mxu0
    %5044 = vmatprep.mubr.bf16.mxu0 0
    %5045 = vmatmul.mubr.bf16.gmra.mrb[0].mxu0 %v4899
    %v5046 = vpop.f32.mrb[0].mxu0
    %v5047 = vadd.f32 0.0, %v5046
    %v5048 = vpop.f32.mrb[0].mxu0
    %v5049 = vpop.f32.mrb[0].mxu0
    %v5050 = vadd.f32 0.0, %v5049
    %v5051 = vpop.f32.mrb[0].mxu0
    %5052 = vmatprep.mubr.bf16.mxu0 0
    %5053 = vmatmul.mubr.bf16.gmra.mrb[0].mxu0 %v4900
    %v5054 = vpop.f32.mrb[0].mxu0
    %v5055 = vadd.f32 0.0, %v5054
    %v5056 = vpop.f32.mrb[0].mxu0
    %v5057 = vpop.f32.mrb[0].mxu0
    %v5058 = vadd.f32 0.0, %v5057
    %v5059 = vpop.f32.mrb[0].mxu0
    %5060 = vmatprep.mubr.bf16.mxu0 0
    %5061 = vmatmul.mubr.bf16.gmra.mrb[0].mxu0 %v4901
    %v5062 = vpop.f32.mrb[0].mxu0
    %v5063 = vadd.f32 0.0, %v5062
    %v5064 = vpop.f32.mrb[0].mxu0
    %v5065 = vpop.f32.mrb[0].mxu0
    %v5066 = vadd.f32 0.0, %v5065
    %v5067 = vpop.f32.mrb[0].mxu0
    %5068 = vmatprep.mubr.bf16.mxu0 0
    %5069 = vmatmul.mubr.bf16.gmra.mrb[0].mxu0 %v4902
    %v5070 = vpop.f32.mrb[0].mxu0
    %v5071 = vadd.f32 0.0, %v5070
    %v5072 = vpop.f32.mrb[0].mxu0
    %v5073 = vpop.f32.mrb[0].mxu0
    %v5074 = vadd.f32 0.0, %v5073
    %v5075 = vpop.f32.mrb[0].mxu0
    %5076 = vmatprep.mubr.bf16.mxu0 0
    %5077 = vmatmul.mubr.bf16.gmra.mrb[0].mxu0 %v4903
    %v5078 = vpop.f32.mrb[0].mxu0
    %v5079 = vadd.f32 0.0, %v5078
    %v5080 = vpop.f32.mrb[0].mxu0
    %v5081 = vpop.f32.mrb[0].mxu0
    %v5082 = vadd.f32 0.0, %v5081
    %v5083 = vpop.f32.mrb[0].mxu0
    %5084 = vmatprep.mubr.bf16.mxu0 0
    %5085 = vmatmul.mubr.bf16.gmra.mrb[0].mxu0 %v4904
    %v5086 = vpop.f32.mrb[0].mxu0
    %v5087 = vadd.f32 0.0, %v5086
    %v5088 = vpop.f32.mrb[0].mxu0
    %v5089 = vpop.f32.mrb[0].mxu0
    %v5090 = vadd.f32 0.0, %v5089
    %v5091 = vpop.f32.mrb[0].mxu0
    %5092 = vmatprep.mubr.bf16.mxu0 0
    %5093 = vmatmul.mubr.bf16.gmra.mrb[0].mxu0 %v4905
    %v5094 = vpop.f32.mrb[0].mxu0
    %v5095 = vadd.f32 0.0, %v5094
    %v5096 = vpop.f32.mrb[0].mxu0
    %v5097 = vpop.f32.mrb[0].mxu0
    %v5098 = vadd.f32 0.0, %v5097
    %v5099 = vpop.f32.mrb[0].mxu0
    %5100 = vmatprep.mubr.bf16.mxu0 0
    %5101 = vmatmul.mubr.bf16.gmra.mrb[0].mxu0 %v4906
    %v5102 = vpop.f32.mrb[0].mxu0
    %v5103 = vadd.f32 0.0, %v5102
    %v5104 = vpop.f32.mrb[0].mxu0
    %v5105 = vpop.f32.mrb[0].mxu0
    %v5106 = vadd.f32 0.0, %v5105
    %v5107 = vpop.f32.mrb[0].mxu0
    %5108 = vmatprep.mubr.bf16.mxu0 0
    %5109 = vmatmul.mubr.bf16.gmra.mrb[0].mxu0 %v4907
    %v5110 = vpop.f32.mrb[0].mxu0
    %v5111 = vadd.f32 0.0, %v5110
    %v5112 = vpop.f32.mrb[0].mxu0
    %v5113 = vpop.f32.mrb[0].mxu0
    %v5114 = vadd.f32 0.0, %v5113
    %v5115 = vpop.f32.mrb[0].mxu0
    %5116 = vdwg.mxu0
    %v5117 = vadd.f32 %v4838, %v5007
    %v5118 = vadd.f32 %v4839, %v5010
    %v5119 = vadd.f32 %v4840, %v5015
    %v5120 = vadd.f32 %v4841, %v5018
    %v5121 = vadd.f32 %v4842, %v5023
    %v5122 = vadd.f32 %v4843, %v5026
    %v5123 = vadd.f32 %v4844, %v5031
    %v5124 = vadd.f32 %v4845, %v5034
    %v5125 = vadd.f32 %v4846, %v5039
    %v5126 = vadd.f32 %v4847, %v5042
    %v5127 = vadd.f32 %v4848, %v5047
    %v5128 = vadd.f32 %v4849, %v5050
    %v5129 = vadd.f32 %v4850, %v5055
    %v5130 = vadd.f32 %v4851, %v5058
    %v5131 = vadd.f32 %v4852, %v5063
    %v5132 = vadd.f32 %v4853, %v5066
    %v5133 = vadd.f32 %v4854, %v5071
    %v5134 = vadd.f32 %v4855, %v5074
    %v5135 = vadd.f32 %v4856, %v5079
    %v5136 = vadd.f32 %v4857, %v5082
    %v5137 = vadd.f32 %v4858, %v5087
    %v5138 = vadd.f32 %v4859, %v5090
    %v5139 = vadd.f32 %v4860, %v5095
    %v5140 = vadd.f32 %v4861, %v5098
    %v5141 = vadd.f32 %v4862, %v5103
    %v5142 = vadd.f32 %v4863, %v5106
    %v5143 = vadd.f32 %v4864, %v5111
    %v5144 = vadd.f32 %v4865, %v5114
    %v5145 = vadd.f32 %v5117, %v2604
    %v5146 = vadd.f32 %v5118, %v2604
    %v5147 = vadd.f32 %v5119, %v2604
    %v5148 = vadd.f32 %v5120, %v2604
    %v5149 = vadd.f32 %v5121, %v2604
    %v5150 = vadd.f32 %v5122, %v2604
    %v5151 = vadd.f32 %v5123, %v2604
    %v5152 = vadd.f32 %v5124, %v2604
    %v5153 = vadd.f32 %v5125, %v2604
    %v5154 = vadd.f32 %v5126, %v2604
    %v5155 = vadd.f32 %v5127, %v2604
    %v5156 = vadd.f32 %v5128, %v2604
    %v5157 = vadd.f32 %v5129, %v2604
    %v5158 = vadd.f32 %v5130, %v2604
    %v5159 = vadd.f32 %v5131, %v2604
    %v5160 = vadd.f32 %v5132, %v2604
    %v5161 = vadd.f32 %v5133, %v2604
    %v5162 = vadd.f32 %v5134, %v2604
    %v5163 = vadd.f32 %v5135, %v2604
    %v5164 = vadd.f32 %v5136, %v2604
    %v5165 = vadd.f32 %v5137, %v2604
    %v5166 = vadd.f32 %v5138, %v2604
    %v5167 = vadd.f32 %v5139, %v2604
    %v5168 = vadd.f32 %v5140, %v2604
    %v5169 = vadd.f32 %v5141, %v2604
    %v5170 = vadd.f32 %v5142, %v2604
    %v5171 = vadd.f32 %v5143, %v2604
    %v5172 = vadd.f32 %v5144, %v2604
    %v5173 = vmax.f32 %v5145, 0.0
    %v5174 = vmax.f32 %v5146, 0.0
    %v5175 = vmax.f32 %v5147, 0.0
    %v5176 = vmax.f32 %v5148, 0.0
    %v5177 = vmax.f32 %v5149, 0.0
    %v5178 = vmax.f32 %v5150, 0.0
    %v5179 = vmax.f32 %v5151, 0.0
    %v5180 = vmax.f32 %v5152, 0.0
    %v5181 = vmax.f32 %v5153, 0.0
    %v5182 = vmax.f32 %v5154, 0.0
    %v5183 = vmax.f32 %v5155, 0.0
    %v5184 = vmax.f32 %v5156, 0.0
    %v5185 = vmax.f32 %v5157, 0.0
    %v5186 = vmax.f32 %v5158, 0.0
    %v5187 = vmax.f32 %v5159, 0.0
    %v5188 = vmax.f32 %v5160, 0.0
    %v5189 = vmax.f32 %v5161, 0.0
    %v5190 = vmax.f32 %v5162, 0.0
    %v5191 = vmax.f32 %v5163, 0.0
    %v5192 = vmax.f32 %v5164, 0.0
    %v5193 = vmax.f32 %v5165, 0.0
    %v5194 = vmax.f32 %v5166, 0.0
    %v5195 = vmax.f32 %v5167, 0.0
    %v5196 = vmax.f32 %v5168, 0.0
    %v5197 = vmax.f32 %v5169, 0.0
    %v5198 = vmax.f32 %v5170, 0.0
    %v5199 = vmax.f32 %v5171, 0.0
    %v5200 = vmax.f32 %v5172, 0.0
    %5201 = vst [vmem:[#allocation2 + $0xe0] sm:$0xff] %v5173
    %5202 = vst [vmem:[#allocation2 + $0xe8] sm:$0xff] %v5174
    %5203 = vst [vmem:[#allocation2 + $0xf0] sm:$0xff] %v5175
    %5204 = vst [vmem:[#allocation2 + $0xf8] sm:$0xff] %v5176
    %5205 = vst [vmem:[#allocation2 + $0x100] sm:$0xff] %v5177
    %5206 = vst [vmem:[#allocation2 + $0x108] sm:$0xff] %v5178
    %5207 = vst [vmem:[#allocation2 + $0x110] sm:$0xff] %v5179
    %5208 = vst [vmem:[#allocation2 + $0x118] sm:$0xff] %v5180
    %5209 = vst [vmem:[#allocation2 + $0x120] sm:$0xff] %v5181
    %5210 = vst [vmem:[#allocation2 + $0x128] sm:$0xff] %v5182
    %5211 = vst [vmem:[#allocation2 + $0x130] sm:$0xff] %v5183
    %5212 = vst [vmem:[#allocation2 + $0x138] sm:$0xff] %v5184
    %5213 = vst [vmem:[#allocation2 + $0x140] sm:$0xff] %v5185
    %5214 = vst [vmem:[#allocation2 + $0x148] sm:$0xff] %v5186
    %5215 = vst [vmem:[#allocation2 + $0x150] sm:$0xff] %v5187
    %5216 = vst [vmem:[#allocation2 + $0x158] sm:$0xff] %v5188
    %5217 = vst [vmem:[#allocation2 + $0x160] sm:$0xff] %v5189
    %5218 = vst [vmem:[#allocation2 + $0x168] sm:$0xff] %v5190
    %5219 = vst [vmem:[#allocation2 + $0x170] sm:$0xff] %v5191
    %5220 = vst [vmem:[#allocation2 + $0x178] sm:$0xff] %v5192
    %5221 = vst [vmem:[#allocation2 + $0x180] sm:$0xff] %v5193
    %5222 = vst [vmem:[#allocation2 + $0x188] sm:$0xff] %v5194
    %5223 = vst [vmem:[#allocation2 + $0x190] sm:$0xff] %v5195
    %5224 = vst [vmem:[#allocation2 + $0x198] sm:$0xff] %v5196
    %5225 = vst [vmem:[#allocation2 + $0x1a0] sm:$0xff] %v5197
    %5226 = vst [vmem:[#allocation2 + $0x1a8] sm:$0xff] %v5198
    %5227 = vst [vmem:[#allocation2 + $0x1b0] sm:$0xff] %v5199
    %5228 = vst [vmem:[#allocation2 + $0x1b8] sm:$0x3f] %v5200
    %v5229 = vld [vmem:[%s4] sm:$0x1]
    %v5230 = vld [vmem:[#allocation2] ss:$2 sm:$0xff]
    %s5231 = scalar_lea.vmem [#allocation2], 16
    %v5232 = vld [vmem:[%s5231] ss:$2 sm:$0xff]
    %s5233 = scalar_lea.vmem [#allocation2], 32
    %v5234 = vld [vmem:[%s5233] ss:$2 sm:$0xff]
    %s5235 = scalar_lea.vmem [#allocation2], 48
    %v5236 = vld [vmem:[%s5235] ss:$2 sm:$0xff]
    %s5237 = scalar_lea.vmem [#allocation2], 64
    %v5238 = vld [vmem:[%s5237] ss:$2 sm:$0xff]
    %s5239 = scalar_lea.vmem [#allocation2], 80
    %v5240 = vld [vmem:[%s5239] ss:$2 sm:$0xff]
    %s5241 = scalar_lea.vmem [#allocation2], 96
    %v5242 = vld [vmem:[%s5241] ss:$2 sm:$0xff]
    %s5243 = scalar_lea.vmem [#allocation2], 112
    %v5244 = vld [vmem:[%s5243] ss:$2 sm:$0xff]
    %s5245 = scalar_lea.vmem [#allocation2], 128
    %v5246 = vld [vmem:[%s5245] ss:$2 sm:$0xff]
    %s5247 = scalar_lea.vmem [#allocation2], 144
    %v5248 = vld [vmem:[%s5247] ss:$2 sm:$0xff]
    %s5249 = scalar_lea.vmem [#allocation2], 160
    %v5250 = vld [vmem:[%s5249] ss:$2 sm:$0x3f]
    %v5251 = vpack.c.bf16 %v5232, %v5230
    %v5252 = vpack.c.bf16 %v5236, %v5234
    %v5253 = vpack.c.bf16 %v5240, %v5238
    %v5254 = vpack.c.bf16 %v5244, %v5242
    %v5255 = vpack.c.bf16 %v5248, %v5246
    %v5256 = vpack.c.bf16 %v5250, %v5250
    %v5257 = vld [vmem:[%s3] sm:$0xf]
    %v5258 = vld [vmem:[%s3 + $0x4] sm:$0xf]
    %v5259 = vld [vmem:[%s3 + $0x8] sm:$0xf]
    %v5260 = vld [vmem:[%s3 + $0xc] sm:$0xf]
    %v5261 = vld [vmem:[%s3 + $0x10] sm:$0xf]
    %v5262 = vld [vmem:[%s3 + $0x14] sm:$0xf]
    %v5263 = vld [vmem:[%s3 + $0x18] sm:$0xf]
    %v5264 = vld [vmem:[%s3 + $0x1c] sm:$0xf]
    %v5265 = vld [vmem:[%s3 + $0x20] sm:$0xf]
    %v5266 = vld [vmem:[%s3 + $0x24] sm:$0xf]
    %v5267 = vld [vmem:[%s3 + $0x28] sm:$0xf]
    %v5268 = vld [vmem:[%s3 + $0x2c] sm:$0xf]
    %v5269 = vld [vmem:[%s3 + $0x30] sm:$0xf]
    %v5270 = vld [vmem:[%s3 + $0x34] sm:$0xf]
    %v5271 = vld [vmem:[%s3 + $0x38] sm:$0xf]
    %v5272 = vld [vmem:[%s3 + $0x3c] sm:$0xf]
    %s5273 = scalar_lea.vmem [#allocation2], 1
    %v5274 = vld [vmem:[%s5273] ss:$2 sm:$0xff]
    %s5275 = scalar_lea.vmem [#allocation2], 17
    %v5276 = vld [vmem:[%s5275] ss:$2 sm:$0xff]
    %s5277 = scalar_lea.vmem [#allocation2], 33
    %v5278 = vld [vmem:[%s5277] ss:$2 sm:$0xff]
    %s5279 = scalar_lea.vmem [#allocation2], 49
    %v5280 = vld [vmem:[%s5279] ss:$2 sm:$0xff]
    %s5281 = scalar_lea.vmem [#allocation2], 65
    %v5282 = vld [vmem:[%s5281] ss:$2 sm:$0xff]
    %s5283 = scalar_lea.vmem [#allocation2], 81
    %v5284 = vld [vmem:[%s5283] ss:$2 sm:$0xff]
    %s5285 = scalar_lea.vmem [#allocation2], 97
    %v5286 = vld [vmem:[%s5285] ss:$2 sm:$0xff]
    %s5287 = scalar_lea.vmem [#allocation2], 113
    %v5288 = vld [vmem:[%s5287] ss:$2 sm:$0xff]
    %s5289 = scalar_lea.vmem [#allocation2], 129
    %v5290 = vld [vmem:[%s5289] ss:$2 sm:$0xff]
    %s5291 = scalar_lea.vmem [#allocation2], 145
    %v5292 = vld [vmem:[%s5291] ss:$2 sm:$0xff]
    %s5293 = scalar_lea.vmem [#allocation2], 161
    %v5294 = vld [vmem:[%s5293] ss:$2 sm:$0x3f]
    %v5295 = vpack.c.bf16 %v5276, %v5274
    %v5296 = vpack.c.bf16 %v5280, %v5278
    %v5297 = vpack.c.bf16 %v5284, %v5282
    %v5298 = vpack.c.bf16 %v5288, %v5286
    %v5299 = vpack.c.bf16 %v5292, %v5290
    %v5300 = vpack.c.bf16 %v5294, %v5294
    %s5301 = scalar_lea.vmem %s3, 64
    %v5302 = vld [vmem:[%s5301] sm:$0xf]
    %v5303 = vld [vmem:[%s5301 + $0x4] sm:$0xf]
    %v5304 = vld [vmem:[%s5301 + $0x8] sm:$0xf]
    %v5305 = vld [vmem:[%s5301 + $0xc] sm:$0xf]
    %v5306 = vld [vmem:[%s5301 + $0x10] sm:$0xf]
    %v5307 = vld [vmem:[%s5301 + $0x14] sm:$0xf]
    %v5308 = vld [vmem:[%s5301 + $0x18] sm:$0xf]
    %v5309 = vld [vmem:[%s5301 + $0x1c] sm:$0xf]
    %v5310 = vld [vmem:[%s5301 + $0x20] sm:$0xf]
    %v5311 = vld [vmem:[%s5301 + $0x24] sm:$0xf]
    %v5312 = vld [vmem:[%s5301 + $0x28] sm:$0xf]
    %v5313 = vld [vmem:[%s5301 + $0x2c] sm:$0xf]
    %v5314 = vld [vmem:[%s5301 + $0x30] sm:$0xf]
    %v5315 = vld [vmem:[%s5301 + $0x34] sm:$0xf]
    %v5316 = vld [vmem:[%s5301 + $0x38] sm:$0xf]
    %v5317 = vld [vmem:[%s5301 + $0x3c] sm:$0xf]
    %v5334 = vunpack.c.l.b16 %v5302
    %v5335 = vunpack.c.l.b16 %v5303
    %v5336 = vunpack.c.l.b16 %v5304
    %v5337 = vunpack.c.l.b16 %v5305
    %v5338 = vunpack.c.l.b16 %v5306
    %v5339 = vunpack.c.l.b16 %v5307
    %v5340 = vunpack.c.l.b16 %v5308
    %v5341 = vunpack.c.l.b16 %v5309
    %v5342 = vunpack.c.l.b16 %v5310
    %v5343 = vunpack.c.l.b16 %v5311
    %v5344 = vunpack.c.l.b16 %v5312
    %v5345 = vunpack.c.l.b16 %v5313
    %v5346 = vunpack.c.l.b16 %v5314
    %v5347 = vunpack.c.l.b16 %v5315
    %v5348 = vunpack.c.l.b16 %v5316
    %v5349 = vunpack.c.l.b16 %v5317
    %v5350 = vpack.c.b16 %v5335, %v5334
    %v5351 = vpack.c.b16 %v5337, %v5336
    %v5352 = vpack.c.b16 %v5339, %v5338
    %v5353 = vpack.c.b16 %v5341, %v5340
    %v5354 = vpack.c.b16 %v5343, %v5342
    %v5355 = vpack.c.b16 %v5345, %v5344
    %v5356 = vpack.c.b16 %v5347, %v5346
    %v5357 = vpack.c.b16 %v5349, %v5348
    %5366 = vmatprep.subr.bf16.mxu0 0
    %5367 = vmatpush1.bf16.msra.mxu0 %v5350
    %5368 = vmatprep.subr.bf16.mxu0 0
    %5369 = vmatpush1.bf16.msra.mxu0 %v5351
    %5370 = vmatprep.subr.bf16.mxu0 0
    %5371 = vmatpush1.bf16.msra.mxu0 %v5352
    %5372 = vmatprep.subr.bf16.mxu0 0
    %5373 = vmatpush1.bf16.msra.mxu0 %v5353
    %5374 = vmatprep.subr.bf16.mxu0 0
    %5375 = vmatpush1.bf16.msra.mxu0 %v5354
    %5376 = vmatprep.subr.bf16.mxu0 0
    %5377 = vmatpush1.bf16.msra.mxu0 %v5355
    %5378 = vmatprep.subr.bf16.mxu0 0
    %5379 = vmatpush1.bf16.msra.mxu0 %v5356
    %5380 = vmatprep.subr.bf16.mxu0 0
    %5381 = vmatpush1.bf16.msra.mxu0 %v5357
    %5382 = vmatprep.subr.bf16.mxu0 0
    %5383 = vmatpush1.bf16.msra.mxu0 0
    %5384 = vmatprep.subr.bf16.mxu0 0
    %5385 = vmatpush1.bf16.msra.mxu0 0
    %5386 = vmatprep.subr.bf16.mxu0 0
    %5387 = vmatpush1.bf16.msra.mxu0 0
    %5388 = vmatprep.subr.bf16.mxu0 0
    %5389 = vmatpush1.bf16.msra.mxu0 0
    %5390 = vmatprep.subr.bf16.mxu0 0
    %5391 = vmatpush1.bf16.msra.mxu0 0
    %5392 = vmatprep.subr.bf16.mxu0 0
    %5393 = vmatpush1.bf16.msra.mxu0 0
    %5394 = vmatprep.subr.bf16.mxu0 0
    %5395 = vmatpush1.bf16.msra.mxu0 0
    %5396 = vmatprep.subr.bf16.mxu0 0
    %5397 = vmatpush1.bf16.msra.mxu0 0
    %5398 = vmatprep.mubr.bf16.mxu0 0
    %5399 = vmatmul.mubr.bf16.gmra.mrb[0].mxu0 %v5295
    %v5400 = vpop.f32.mrb[0].mxu0
    %v5401 = vadd.f32 0.0, %v5400
    %v5402 = vpop.f32.mrb[0].mxu0
    %v5403 = vpop.f32.mrb[0].mxu0
    %v5404 = vadd.f32 0.0, %v5403
    %v5405 = vpop.f32.mrb[0].mxu0
    %5406 = vmatprep.mubr.bf16.mxu0 0
    %5407 = vmatmul.mubr.bf16.gmra.mrb[0].mxu0 %v5296
    %v5408 = vpop.f32.mrb[0].mxu0
    %v5409 = vadd.f32 0.0, %v5408
    %v5410 = vpop.f32.mrb[0].mxu0
    %v5411 = vpop.f32.mrb[0].mxu0
    %v5412 = vadd.f32 0.0, %v5411
    %v5413 = vpop.f32.mrb[0].mxu0
    %5414 = vmatprep.mubr.bf16.mxu0 0
    %5415 = vmatmul.mubr.bf16.gmra.mrb[0].mxu0 %v5297
    %v5416 = vpop.f32.mrb[0].mxu0
    %v5417 = vadd.f32 0.0, %v5416
    %v5418 = vpop.f32.mrb[0].mxu0
    %v5419 = vpop.f32.mrb[0].mxu0
    %v5420 = vadd.f32 0.0, %v5419
    %v5421 = vpop.f32.mrb[0].mxu0
    %5422 = vmatprep.mubr.bf16.mxu0 0
    %5423 = vmatmul.mubr.bf16.gmra.mrb[0].mxu0 %v5298
    %v5424 = vpop.f32.mrb[0].mxu0
    %v5425 = vadd.f32 0.0, %v5424
    %v5426 = vpop.f32.mrb[0].mxu0
    %v5427 = vpop.f32.mrb[0].mxu0
    %v5428 = vadd.f32 0.0, %v5427
    %v5429 = vpop.f32.mrb[0].mxu0
    %5430 = vmatprep.mubr.bf16.mxu0 0
    %5431 = vmatmul.mubr.bf16.gmra.mrb[0].mxu0 %v5299
    %v5432 = vpop.f32.mrb[0].mxu0
    %v5433 = vadd.f32 0.0, %v5432
    %v5434 = vpop.f32.mrb[0].mxu0
    %v5435 = vpop.f32.mrb[0].mxu0
    %v5436 = vadd.f32 0.0, %v5435
    %v5437 = vpop.f32.mrb[0].mxu0
    %5438 = vmatprep.mubr.bf16.mxu0 0
    %5439 = vmatmul.mubr.bf16.gmra.mrb[0].mxu0 %v5300
    %v5440 = vpop.f32.mrb[0].mxu0
    %v5441 = vadd.f32 0.0, %v5440
    %v5442 = vpop.f32.mrb[0].mxu0
    %v5443 = vpop.f32.mrb[0].mxu0
    %v5444 = vpop.f32.mrb[0].mxu0
    %5445 = vdwg.mxu0
    %v5462 = vunpack.c.l.b16 %v5257
    %v5463 = vunpack.c.l.b16 %v5258
    %v5464 = vunpack.c.l.b16 %v5259
    %v5465 = vunpack.c.l.b16 %v5260
    %v5466 = vunpack.c.l.b16 %v5261
    %v5467 = vunpack.c.l.b16 %v5262
    %v5468 = vunpack.c.l.b16 %v5263
    %v5469 = vunpack.c.l.b16 %v5264
    %v5470 = vunpack.c.l.b16 %v5265
    %v5471 = vunpack.c.l.b16 %v5266
    %v5472 = vunpack.c.l.b16 %v5267
    %v5473 = vunpack.c.l.b16 %v5268
    %v5474 = vunpack.c.l.b16 %v5269
    %v5475 = vunpack.c.l.b16 %v5270
    %v5476 = vunpack.c.l.b16 %v5271
    %v5477 = vunpack.c.l.b16 %v5272
    %v5478 = vpack.c.b16 %v5463, %v5462
    %v5479 = vpack.c.b16 %v5465, %v5464
    %v5480 = vpack.c.b16 %v5467, %v5466
    %v5481 = vpack.c.b16 %v5469, %v5468
    %v5482 = vpack.c.b16 %v5471, %v5470
    %v5483 = vpack.c.b16 %v5473, %v5472
    %v5484 = vpack.c.b16 %v5475, %v5474
    %v5485 = vpack.c.b16 %v5477, %v5476
    %5494 = vmatprep.subr.bf16.mxu0 0
    %5495 = vmatpush1.bf16.msra.mxu0 %v5478
    %5496 = vmatprep.subr.bf16.mxu0 0
    %5497 = vmatpush1.bf16.msra.mxu0 %v5479
    %5498 = vmatprep.subr.bf16.mxu0 0
    %5499 = vmatpush1.bf16.msra.mxu0 %v5480
    %5500 = vmatprep.subr.bf16.mxu0 0
    %5501 = vmatpush1.bf16.msra.mxu0 %v5481
    %5502 = vmatprep.subr.bf16.mxu0 0
    %5503 = vmatpush1.bf16.msra.mxu0 %v5482
    %5504 = vmatprep.subr.bf16.mxu0 0
    %5505 = vmatpush1.bf16.msra.mxu0 %v5483
    %5506 = vmatprep.subr.bf16.mxu0 0
    %5507 = vmatpush1.bf16.msra.mxu0 %v5484
    %5508 = vmatprep.subr.bf16.mxu0 0
    %5509 = vmatpush1.bf16.msra.mxu0 %v5485
    %5510 = vmatprep.subr.bf16.mxu0 0
    %5511 = vmatpush1.bf16.msra.mxu0 0
    %5512 = vmatprep.subr.bf16.mxu0 0
    %5513 = vmatpush1.bf16.msra.mxu0 0
    %5514 = vmatprep.subr.bf16.mxu0 0
    %5515 = vmatpush1.bf16.msra.mxu0 0
    %5516 = vmatprep.subr.bf16.mxu0 0
    %5517 = vmatpush1.bf16.msra.mxu0 0
    %5518 = vmatprep.subr.bf16.mxu0 0
    %5519 = vmatpush1.bf16.msra.mxu0 0
    %5520 = vmatprep.subr.bf16.mxu0 0
    %5521 = vmatpush1.bf16.msra.mxu0 0
    %5522 = vmatprep.subr.bf16.mxu0 0
    %5523 = vmatpush1.bf16.msra.mxu0 0
    %5524 = vmatprep.subr.bf16.mxu0 0
    %5525 = vmatpush1.bf16.msra.mxu0 0
    %5526 = vmatprep.mubr.bf16.mxu0 0
    %5527 = vmatmul.mubr.bf16.gmra.mrb[0].mxu0 %v5251
    %v5528 = vpop.f32.mrb[0].mxu0
    %v5529 = vadd.f32 %v5401, %v5528
    %v5530 = vpop.f32.mrb[0].mxu0
    %v5531 = vpop.f32.mrb[0].mxu0
    %v5532 = vadd.f32 %v5404, %v5531
    %v5533 = vpop.f32.mrb[0].mxu0
    %5534 = vmatprep.mubr.bf16.mxu0 0
    %5535 = vmatmul.mubr.bf16.gmra.mrb[0].mxu0 %v5252
    %v5536 = vpop.f32.mrb[0].mxu0
    %v5537 = vadd.f32 %v5409, %v5536
    %v5538 = vpop.f32.mrb[0].mxu0
    %v5539 = vpop.f32.mrb[0].mxu0
    %v5540 = vadd.f32 %v5412, %v5539
    %v5541 = vpop.f32.mrb[0].mxu0
    %5542 = vmatprep.mubr.bf16.mxu0 0
    %5543 = vmatmul.mubr.bf16.gmra.mrb[0].mxu0 %v5253
    %v5544 = vpop.f32.mrb[0].mxu0
    %v5545 = vadd.f32 %v5417, %v5544
    %v5546 = vpop.f32.mrb[0].mxu0
    %v5547 = vpop.f32.mrb[0].mxu0
    %v5548 = vadd.f32 %v5420, %v5547
    %v5549 = vpop.f32.mrb[0].mxu0
    %5550 = vmatprep.mubr.bf16.mxu0 0
    %5551 = vmatmul.mubr.bf16.gmra.mrb[0].mxu0 %v5254
    %v5552 = vpop.f32.mrb[0].mxu0
    %v5553 = vadd.f32 %v5425, %v5552
    %v5554 = vpop.f32.mrb[0].mxu0
    %v5555 = vpop.f32.mrb[0].mxu0
    %v5556 = vadd.f32 %v5428, %v5555
    %v5557 = vpop.f32.mrb[0].mxu0
    %5558 = vmatprep.mubr.bf16.mxu0 0
    %5559 = vmatmul.mubr.bf16.gmra.mrb[0].mxu0 %v5255
    %v5560 = vpop.f32.mrb[0].mxu0
    %v5561 = vadd.f32 %v5433, %v5560
    %v5562 = vpop.f32.mrb[0].mxu0
    %v5563 = vpop.f32.mrb[0].mxu0
    %v5564 = vadd.f32 %v5436, %v5563
    %v5565 = vpop.f32.mrb[0].mxu0
    %5566 = vmatprep.mubr.bf16.mxu0 0
    %5567 = vmatmul.mubr.bf16.gmra.mrb[0].mxu0 %v5256
    %v5568 = vpop.f32.mrb[0].mxu0
    %v5569 = vadd.f32 %v5441, %v5568
    %v5570 = vpop.f32.mrb[0].mxu0
    %v5571 = vpop.f32.mrb[0].mxu0
    %v5572 = vpop.f32.mrb[0].mxu0
    %5573 = vdwg.mxu0
    %s5574 = scalar_lea.vmem [#allocation2], 2
    %v5575 = vld [vmem:[%s5574] ss:$2 sm:$0xff]
    %s5576 = scalar_lea.vmem [#allocation2], 18
    %v5577 = vld [vmem:[%s5576] ss:$2 sm:$0xff]
    %s5578 = scalar_lea.vmem [#allocation2], 34
    %v5579 = vld [vmem:[%s5578] ss:$2 sm:$0xff]
    %s5580 = scalar_lea.vmem [#allocation2], 50
    %v5581 = vld [vmem:[%s5580] ss:$2 sm:$0xff]
    %s5582 = scalar_lea.vmem [#allocation2], 66
    %v5583 = vld [vmem:[%s5582] ss:$2 sm:$0xff]
    %s5584 = scalar_lea.vmem [#allocation2], 82
    %v5585 = vld [vmem:[%s5584] ss:$2 sm:$0xff]
    %s5586 = scalar_lea.vmem [#allocation2], 98
    %v5587 = vld [vmem:[%s5586] ss:$2 sm:$0xff]
    %s5588 = scalar_lea.vmem [#allocation2], 114
    %v5589 = vld [vmem:[%s5588] ss:$2 sm:$0xff]
    %s5590 = scalar_lea.vmem [#allocation2], 130
    %v5591 = vld [vmem:[%s5590] ss:$2 sm:$0xff]
    %s5592 = scalar_lea.vmem [#allocation2], 146
    %v5593 = vld [vmem:[%s5592] ss:$2 sm:$0xff]
    %s5594 = scalar_lea.vmem [#allocation2], 162
    %v5595 = vld [vmem:[%s5594] ss:$2 sm:$0x3f]
    %v5596 = vpack.c.bf16 %v5577, %v5575
    %v5597 = vpack.c.bf16 %v5581, %v5579
    %v5598 = vpack.c.bf16 %v5585, %v5583
    %v5599 = vpack.c.bf16 %v5589, %v5587
    %v5600 = vpack.c.bf16 %v5593, %v5591
    %v5601 = vpack.c.bf16 %v5595, %v5595
    %s5602 = scalar_lea.vmem %s3, 128
    %v5603 = vld [vmem:[%s5602] sm:$0xf]
    %v5604 = vld [vmem:[%s5602 + $0x4] sm:$0xf]
    %v5605 = vld [vmem:[%s5602 + $0x8] sm:$0xf]
    %v5606 = vld [vmem:[%s5602 + $0xc] sm:$0xf]
    %v5607 = vld [vmem:[%s5602 + $0x10] sm:$0xf]
    %v5608 = vld [vmem:[%s5602 + $0x14] sm:$0xf]
    %v5609 = vld [vmem:[%s5602 + $0x18] sm:$0xf]
    %v5610 = vld [vmem:[%s5602 + $0x1c] sm:$0xf]
    %v5611 = vld [vmem:[%s5602 + $0x20] sm:$0xf]
    %v5612 = vld [vmem:[%s5602 + $0x24] sm:$0xf]
    %v5613 = vld [vmem:[%s5602 + $0x28] sm:$0xf]
    %v5614 = vld [vmem:[%s5602 + $0x2c] sm:$0xf]
    %v5615 = vld [vmem:[%s5602 + $0x30] sm:$0xf]
    %v5616 = vld [vmem:[%s5602 + $0x34] sm:$0xf]
    %v5617 = vld [vmem:[%s5602 + $0x38] sm:$0xf]
    %v5618 = vld [vmem:[%s5602 + $0x3c] sm:$0xf]
    %v5635 = vunpack.c.l.b16 %v5603
    %v5636 = vunpack.c.l.b16 %v5604
    %v5637 = vunpack.c.l.b16 %v5605
    %v5638 = vunpack.c.l.b16 %v5606
    %v5639 = vunpack.c.l.b16 %v5607
    %v5640 = vunpack.c.l.b16 %v5608
    %v5641 = vunpack.c.l.b16 %v5609
    %v5642 = vunpack.c.l.b16 %v5610
    %v5643 = vunpack.c.l.b16 %v5611
    %v5644 = vunpack.c.l.b16 %v5612
    %v5645 = vunpack.c.l.b16 %v5613
    %v5646 = vunpack.c.l.b16 %v5614
    %v5647 = vunpack.c.l.b16 %v5615
    %v5648 = vunpack.c.l.b16 %v5616
    %v5649 = vunpack.c.l.b16 %v5617
    %v5650 = vunpack.c.l.b16 %v5618
    %v5651 = vpack.c.b16 %v5636, %v5635
    %v5652 = vpack.c.b16 %v5638, %v5637
    %v5653 = vpack.c.b16 %v5640, %v5639
    %v5654 = vpack.c.b16 %v5642, %v5641
    %v5655 = vpack.c.b16 %v5644, %v5643
    %v5656 = vpack.c.b16 %v5646, %v5645
    %v5657 = vpack.c.b16 %v5648, %v5647
    %v5658 = vpack.c.b16 %v5650, %v5649
    %5667 = vmatprep.subr.bf16.mxu0 0
    %5668 = vmatpush1.bf16.msra.mxu0 %v5651
    %5669 = vmatprep.subr.bf16.mxu0 0
    %5670 = vmatpush1.bf16.msra.mxu0 %v5652
    %5671 = vmatprep.subr.bf16.mxu0 0
    %5672 = vmatpush1.bf16.msra.mxu0 %v5653
    %5673 = vmatprep.subr.bf16.mxu0 0
    %5674 = vmatpush1.bf16.msra.mxu0 %v5654
    %5675 = vmatprep.subr.bf16.mxu0 0
    %5676 = vmatpush1.bf16.msra.mxu0 %v5655
    %5677 = vmatprep.subr.bf16.mxu0 0
    %5678 = vmatpush1.bf16.msra.mxu0 %v5656
    %5679 = vmatprep.subr.bf16.mxu0 0
    %5680 = vmatpush1.bf16.msra.mxu0 %v5657
    %5681 = vmatprep.subr.bf16.mxu0 0
    %5682 = vmatpush1.bf16.msra.mxu0 %v5658
    %5683 = vmatprep.subr.bf16.mxu0 0
    %5684 = vmatpush1.bf16.msra.mxu0 0
    %5685 = vmatprep.subr.bf16.mxu0 0
    %5686 = vmatpush1.bf16.msra.mxu0 0
    %5687 = vmatprep.subr.bf16.mxu0 0
    %5688 = vmatpush1.bf16.msra.mxu0 0
    %5689 = vmatprep.subr.bf16.mxu0 0
    %5690 = vmatpush1.bf16.msra.mxu0 0
    %5691 = vmatprep.subr.bf16.mxu0 0
    %5692 = vmatpush1.bf16.msra.mxu0 0
    %5693 = vmatprep.subr.bf16.mxu0 0
    %5694 = vmatpush1.bf16.msra.mxu0 0
    %5695 = vmatprep.subr.bf16.mxu0 0
    %5696 = vmatpush1.bf16.msra.mxu0 0
    %5697 = vmatprep.subr.bf16.mxu0 0
    %5698 = vmatpush1.bf16.msra.mxu0 0
    %5699 = vmatprep.mubr.bf16.mxu0 0
    %5700 = vmatmul.mubr.bf16.gmra.mrb[0].mxu0 %v5596
    %v5701 = vpop.f32.mrb[0].mxu0
    %v5702 = vadd.f32 0.0, %v5701
    %v5703 = vpop.f32.mrb[0].mxu0
    %v5704 = vpop.f32.mrb[0].mxu0
    %v5705 = vadd.f32 0.0, %v5704
    %v5706 = vpop.f32.mrb[0].mxu0
    %5707 = vmatprep.mubr.bf16.mxu0 0
    %5708 = vmatmul.mubr.bf16.gmra.mrb[0].mxu0 %v5597
    %v5709 = vpop.f32.mrb[0].mxu0
    %v5710 = vadd.f32 0.0, %v5709
    %v5711 = vpop.f32.mrb[0].mxu0
    %v5712 = vpop.f32.mrb[0].mxu0
    %v5713 = vadd.f32 0.0, %v5712
    %v5714 = vpop.f32.mrb[0].mxu0
    %5715 = vmatprep.mubr.bf16.mxu0 0
    %5716 = vmatmul.mubr.bf16.gmra.mrb[0].mxu0 %v5598
    %v5717 = vpop.f32.mrb[0].mxu0
    %v5718 = vadd.f32 0.0, %v5717
    %v5719 = vpop.f32.mrb[0].mxu0
    %v5720 = vpop.f32.mrb[0].mxu0
    %v5721 = vadd.f32 0.0, %v5720
    %v5722 = vpop.f32.mrb[0].mxu0
    %5723 = vmatprep.mubr.bf16.mxu0 0
    %5724 = vmatmul.mubr.bf16.gmra.mrb[0].mxu0 %v5599
    %v5725 = vpop.f32.mrb[0].mxu0
    %v5726 = vadd.f32 0.0, %v5725
    %v5727 = vpop.f32.mrb[0].mxu0
    %v5728 = vpop.f32.mrb[0].mxu0
    %v5729 = vadd.f32 0.0, %v5728
    %v5730 = vpop.f32.mrb[0].mxu0
    %5731 = vmatprep.mubr.bf16.mxu0 0
    %5732 = vmatmul.mubr.bf16.gmra.mrb[0].mxu0 %v5600
    %v5733 = vpop.f32.mrb[0].mxu0
    %v5734 = vadd.f32 0.0, %v5733
    %v5735 = vpop.f32.mrb[0].mxu0
    %v5736 = vpop.f32.mrb[0].mxu0
    %v5737 = vadd.f32 0.0, %v5736
    %v5738 = vpop.f32.mrb[0].mxu0
    %5739 = vmatprep.mubr.bf16.mxu0 0
    %5740 = vmatmul.mubr.bf16.gmra.mrb[0].mxu0 %v5601
    %v5741 = vpop.f32.mrb[0].mxu0
    %v5742 = vadd.f32 0.0, %v5741
    %v5743 = vpop.f32.mrb[0].mxu0
    %v5744 = vpop.f32.mrb[0].mxu0
    %v5745 = vpop.f32.mrb[0].mxu0
    %5746 = vdwg.mxu0
    %v5747 = vadd.f32 %v5529, %v5702
    %v5748 = vadd.f32 %v5532, %v5705
    %v5749 = vadd.f32 %v5537, %v5710
    %v5750 = vadd.f32 %v5540, %v5713
    %v5751 = vadd.f32 %v5545, %v5718
    %v5752 = vadd.f32 %v5548, %v5721
    %v5753 = vadd.f32 %v5553, %v5726
    %v5754 = vadd.f32 %v5556, %v5729
    %v5755 = vadd.f32 %v5561, %v5734
    %v5756 = vadd.f32 %v5564, %v5737
    %v5757 = vadd.f32 %v5569, %v5742
    %v5758 = vld [vmem:[%s5231] ss:$2 sm:$0xff]
    %v5759 = vld [vmem:[%s5233] ss:$2 sm:$0xff]
    %v5760 = vld [vmem:[%s5235] ss:$2 sm:$0xff]
    %v5761 = vld [vmem:[%s5237] ss:$2 sm:$0xff]
    %v5762 = vld [vmem:[%s5239] ss:$2 sm:$0xff]
    %v5763 = vld [vmem:[%s5241] ss:$2 sm:$0xff]
    %v5764 = vld [vmem:[%s5243] ss:$2 sm:$0xff]
    %v5765 = vld [vmem:[%s5245] ss:$2 sm:$0xff]
    %v5766 = vld [vmem:[%s5247] ss:$2 sm:$0xff]
    %v5767 = vld [vmem:[%s5249] ss:$2 sm:$0xff]
    %s5768 = scalar_lea.vmem [#allocation2], 176
    %v5769 = vld [vmem:[%s5768] ss:$2 sm:$0x3f]
    %v5770 = vpack.c.bf16 %v5759, %v5758
    %v5771 = vpack.c.bf16 %v5761, %v5760
    %v5772 = vpack.c.bf16 %v5763, %v5762
    %v5773 = vpack.c.bf16 %v5765, %v5764
    %v5774 = vpack.c.bf16 %v5767, %v5766
    %v5775 = vpack.c.bf16 %v5769, %v5769
    %s5776 = scalar_lea.vmem %s3, 192
    %v5777 = vld [vmem:[%s5776] sm:$0xf]
    %v5778 = vld [vmem:[%s5776 + $0x4] sm:$0xf]
    %v5779 = vld [vmem:[%s5776 + $0x8] sm:$0xf]
    %v5780 = vld [vmem:[%s5776 + $0xc] sm:$0xf]
    %v5781 = vld [vmem:[%s5776 + $0x10] sm:$0xf]
    %v5782 = vld [vmem:[%s5776 + $0x14] sm:$0xf]
    %v5783 = vld [vmem:[%s5776 + $0x18] sm:$0xf]
    %v5784 = vld [vmem:[%s5776 + $0x1c] sm:$0xf]
    %v5785 = vld [vmem:[%s5776 + $0x20] sm:$0xf]
    %v5786 = vld [vmem:[%s5776 + $0x24] sm:$0xf]
    %v5787 = vld [vmem:[%s5776 + $0x28] sm:$0xf]
    %v5788 = vld [vmem:[%s5776 + $0x2c] sm:$0xf]
    %v5789 = vld [vmem:[%s5776 + $0x30] sm:$0xf]
    %v5790 = vld [vmem:[%s5776 + $0x34] sm:$0xf]
    %v5791 = vld [vmem:[%s5776 + $0x38] sm:$0xf]
    %v5792 = vld [vmem:[%s5776 + $0x3c] sm:$0xf]
    %v5809 = vunpack.c.l.b16 %v5777
    %v5810 = vunpack.c.l.b16 %v5778
    %v5811 = vunpack.c.l.b16 %v5779
    %v5812 = vunpack.c.l.b16 %v5780
    %v5813 = vunpack.c.l.b16 %v5781
    %v5814 = vunpack.c.l.b16 %v5782
    %v5815 = vunpack.c.l.b16 %v5783
    %v5816 = vunpack.c.l.b16 %v5784
    %v5817 = vunpack.c.l.b16 %v5785
    %v5818 = vunpack.c.l.b16 %v5786
    %v5819 = vunpack.c.l.b16 %v5787
    %v5820 = vunpack.c.l.b16 %v5788
    %v5821 = vunpack.c.l.b16 %v5789
    %v5822 = vunpack.c.l.b16 %v5790
    %v5823 = vunpack.c.l.b16 %v5791
    %v5824 = vunpack.c.l.b16 %v5792
    %v5825 = vpack.c.b16 %v5810, %v5809
    %v5826 = vpack.c.b16 %v5812, %v5811
    %v5827 = vpack.c.b16 %v5814, %v5813
    %v5828 = vpack.c.b16 %v5816, %v5815
    %v5829 = vpack.c.b16 %v5818, %v5817
    %v5830 = vpack.c.b16 %v5820, %v5819
    %v5831 = vpack.c.b16 %v5822, %v5821
    %v5832 = vpack.c.b16 %v5824, %v5823
    %5841 = vmatprep.subr.bf16.mxu0 0
    %5842 = vmatpush1.bf16.msra.mxu0 %v5825
    %5843 = vmatprep.subr.bf16.mxu0 0
    %5844 = vmatpush1.bf16.msra.mxu0 %v5826
    %5845 = vmatprep.subr.bf16.mxu0 0
    %5846 = vmatpush1.bf16.msra.mxu0 %v5827
    %5847 = vmatprep.subr.bf16.mxu0 0
    %5848 = vmatpush1.bf16.msra.mxu0 %v5828
    %5849 = vmatprep.subr.bf16.mxu0 0
    %5850 = vmatpush1.bf16.msra.mxu0 %v5829
    %5851 = vmatprep.subr.bf16.mxu0 0
    %5852 = vmatpush1.bf16.msra.mxu0 %v5830
    %5853 = vmatprep.subr.bf16.mxu0 0
    %5854 = vmatpush1.bf16.msra.mxu0 %v5831
    %5855 = vmatprep.subr.bf16.mxu0 0
    %5856 = vmatpush1.bf16.msra.mxu0 %v5832
    %5857 = vmatprep.subr.bf16.mxu0 0
    %5858 = vmatpush1.bf16.msra.mxu0 0
    %5859 = vmatprep.subr.bf16.mxu0 0
    %5860 = vmatpush1.bf16.msra.mxu0 0
    %5861 = vmatprep.subr.bf16.mxu0 0
    %5862 = vmatpush1.bf16.msra.mxu0 0
    %5863 = vmatprep.subr.bf16.mxu0 0
    %5864 = vmatpush1.bf16.msra.mxu0 0
    %5865 = vmatprep.subr.bf16.mxu0 0
    %5866 = vmatpush1.bf16.msra.mxu0 0
    %5867 = vmatprep.subr.bf16.mxu0 0
    %5868 = vmatpush1.bf16.msra.mxu0 0
    %5869 = vmatprep.subr.bf16.mxu0 0
    %5870 = vmatpush1.bf16.msra.mxu0 0
    %5871 = vmatprep.subr.bf16.mxu0 0
    %5872 = vmatpush1.bf16.msra.mxu0 0
    %5873 = vmatprep.mubr.bf16.mxu0 0
    %5874 = vmatmul.mubr.bf16.gmra.mrb[0].mxu0 %v5770
    %v5875 = vpop.f32.mrb[0].mxu0
    %v5876 = vadd.f32 0.0, %v5875
    %v5877 = vpop.f32.mrb[0].mxu0
    %v5878 = vpop.f32.mrb[0].mxu0
    %v5879 = vadd.f32 0.0, %v5878
    %v5880 = vpop.f32.mrb[0].mxu0
    %5881 = vmatprep.mubr.bf16.mxu0 0
    %5882 = vmatmul.mubr.bf16.gmra.mrb[0].mxu0 %v5771
    %v5883 = vpop.f32.mrb[0].mxu0
    %v5884 = vadd.f32 0.0, %v5883
    %v5885 = vpop.f32.mrb[0].mxu0
    %v5886 = vpop.f32.mrb[0].mxu0
    %v5887 = vadd.f32 0.0, %v5886
    %v5888 = vpop.f32.mrb[0].mxu0
    %5889 = vmatprep.mubr.bf16.mxu0 0
    %5890 = vmatmul.mubr.bf16.gmra.mrb[0].mxu0 %v5772
    %v5891 = vpop.f32.mrb[0].mxu0
    %v5892 = vadd.f32 0.0, %v5891
    %v5893 = vpop.f32.mrb[0].mxu0
    %v5894 = vpop.f32.mrb[0].mxu0
    %v5895 = vadd.f32 0.0, %v5894
    %v5896 = vpop.f32.mrb[0].mxu0
    %5897 = vmatprep.mubr.bf16.mxu0 0
    %5898 = vmatmul.mubr.bf16.gmra.mrb[0].mxu0 %v5773
    %v5899 = vpop.f32.mrb[0].mxu0
    %v5900 = vadd.f32 0.0, %v5899
    %v5901 = vpop.f32.mrb[0].mxu0
    %v5902 = vpop.f32.mrb[0].mxu0
    %v5903 = vadd.f32 0.0, %v5902
    %v5904 = vpop.f32.mrb[0].mxu0
    %5905 = vmatprep.mubr.bf16.mxu0 0
    %5906 = vmatmul.mubr.bf16.gmra.mrb[0].mxu0 %v5774
    %v5907 = vpop.f32.mrb[0].mxu0
    %v5908 = vadd.f32 0.0, %v5907
    %v5909 = vpop.f32.mrb[0].mxu0
    %v5910 = vpop.f32.mrb[0].mxu0
    %v5911 = vadd.f32 0.0, %v5910
    %v5912 = vpop.f32.mrb[0].mxu0
    %5913 = vmatprep.mubr.bf16.mxu0 0
    %5914 = vmatmul.mubr.bf16.gmra.mrb[0].mxu0 %v5775
    %v5915 = vpop.f32.mrb[0].mxu0
    %v5916 = vadd.f32 0.0, %v5915
    %v5917 = vpop.f32.mrb[0].mxu0
    %v5918 = vpop.f32.mrb[0].mxu0
    %v5919 = vpop.f32.mrb[0].mxu0
    %5920 = vdwg.mxu0
    %v5921 = vadd.f32 %v5747, %v5876
    %v5922 = vadd.f32 %v5748, %v5879
    %v5923 = vadd.f32 %v5749, %v5884
    %v5924 = vadd.f32 %v5750, %v5887
    %v5925 = vadd.f32 %v5751, %v5892
    %v5926 = vadd.f32 %v5752, %v5895
    %v5927 = vadd.f32 %v5753, %v5900
    %v5928 = vadd.f32 %v5754, %v5903
    %v5929 = vadd.f32 %v5755, %v5908
    %v5930 = vadd.f32 %v5756, %v5911
    %v5931 = vadd.f32 %v5757, %v5916
    %v5932 = vld [vmem:[%s5275] ss:$2 sm:$0xff]
    %v5933 = vld [vmem:[%s5277] ss:$2 sm:$0xff]
    %v5934 = vld [vmem:[%s5279] ss:$2 sm:$0xff]
    %v5935 = vld [vmem:[%s5281] ss:$2 sm:$0xff]
    %v5936 = vld [vmem:[%s5283] ss:$2 sm:$0xff]
    %v5937 = vld [vmem:[%s5285] ss:$2 sm:$0xff]
    %v5938 = vld [vmem:[%s5287] ss:$2 sm:$0xff]
    %v5939 = vld [vmem:[%s5289] ss:$2 sm:$0xff]
    %v5940 = vld [vmem:[%s5291] ss:$2 sm:$0xff]
    %v5941 = vld [vmem:[%s5293] ss:$2 sm:$0xff]
    %s5942 = scalar_lea.vmem [#allocation2], 177
    %v5943 = vld [vmem:[%s5942] ss:$2 sm:$0x3f]
    %v5944 = vpack.c.bf16 %v5933, %v5932
    %v5945 = vpack.c.bf16 %v5935, %v5934
    %v5946 = vpack.c.bf16 %v5937, %v5936
    %v5947 = vpack.c.bf16 %v5939, %v5938
    %v5948 = vpack.c.bf16 %v5941, %v5940
    %v5949 = vpack.c.bf16 %v5943, %v5943
    %s5950 = scalar_lea.vmem %s3, 256
    %v5951 = vld [vmem:[%s5950] sm:$0xf]
    %v5952 = vld [vmem:[%s5950 + $0x4] sm:$0xf]
    %v5953 = vld [vmem:[%s5950 + $0x8] sm:$0xf]
    %v5954 = vld [vmem:[%s5950 + $0xc] sm:$0xf]
    %v5955 = vld [vmem:[%s5950 + $0x10] sm:$0xf]
    %v5956 = vld [vmem:[%s5950 + $0x14] sm:$0xf]
    %v5957 = vld [vmem:[%s5950 + $0x18] sm:$0xf]
    %v5958 = vld [vmem:[%s5950 + $0x1c] sm:$0xf]
    %v5959 = vld [vmem:[%s5950 + $0x20] sm:$0xf]
    %v5960 = vld [vmem:[%s5950 + $0x24] sm:$0xf]
    %v5961 = vld [vmem:[%s5950 + $0x28] sm:$0xf]
    %v5962 = vld [vmem:[%s5950 + $0x2c] sm:$0xf]
    %v5963 = vld [vmem:[%s5950 + $0x30] sm:$0xf]
    %v5964 = vld [vmem:[%s5950 + $0x34] sm:$0xf]
    %v5965 = vld [vmem:[%s5950 + $0x38] sm:$0xf]
    %v5966 = vld [vmem:[%s5950 + $0x3c] sm:$0xf]
    %v5983 = vunpack.c.l.b16 %v5951
    %v5984 = vunpack.c.l.b16 %v5952
    %v5985 = vunpack.c.l.b16 %v5953
    %v5986 = vunpack.c.l.b16 %v5954
    %v5987 = vunpack.c.l.b16 %v5955
    %v5988 = vunpack.c.l.b16 %v5956
    %v5989 = vunpack.c.l.b16 %v5957
    %v5990 = vunpack.c.l.b16 %v5958
    %v5991 = vunpack.c.l.b16 %v5959
    %v5992 = vunpack.c.l.b16 %v5960
    %v5993 = vunpack.c.l.b16 %v5961
    %v5994 = vunpack.c.l.b16 %v5962
    %v5995 = vunpack.c.l.b16 %v5963
    %v5996 = vunpack.c.l.b16 %v5964
    %v5997 = vunpack.c.l.b16 %v5965
    %v5998 = vunpack.c.l.b16 %v5966
    %v5999 = vpack.c.b16 %v5984, %v5983
    %v6000 = vpack.c.b16 %v5986, %v5985
    %v6001 = vpack.c.b16 %v5988, %v5987
    %v6002 = vpack.c.b16 %v5990, %v5989
    %v6003 = vpack.c.b16 %v5992, %v5991
    %v6004 = vpack.c.b16 %v5994, %v5993
    %v6005 = vpack.c.b16 %v5996, %v5995
    %v6006 = vpack.c.b16 %v5998, %v5997
    %6015 = vmatprep.subr.bf16.mxu0 0
    %6016 = vmatpush1.bf16.msra.mxu0 %v5999
    %6017 = vmatprep.subr.bf16.mxu0 0
    %6018 = vmatpush1.bf16.msra.mxu0 %v6000
    %6019 = vmatprep.subr.bf16.mxu0 0
    %6020 = vmatpush1.bf16.msra.mxu0 %v6001
    %6021 = vmatprep.subr.bf16.mxu0 0
    %6022 = vmatpush1.bf16.msra.mxu0 %v6002
    %6023 = vmatprep.subr.bf16.mxu0 0
    %6024 = vmatpush1.bf16.msra.mxu0 %v6003
    %6025 = vmatprep.subr.bf16.mxu0 0
    %6026 = vmatpush1.bf16.msra.mxu0 %v6004
    %6027 = vmatprep.subr.bf16.mxu0 0
    %6028 = vmatpush1.bf16.msra.mxu0 %v6005
    %6029 = vmatprep.subr.bf16.mxu0 0
    %6030 = vmatpush1.bf16.msra.mxu0 %v6006
    %6031 = vmatprep.subr.bf16.mxu0 0
    %6032 = vmatpush1.bf16.msra.mxu0 0
    %6033 = vmatprep.subr.bf16.mxu0 0
    %6034 = vmatpush1.bf16.msra.mxu0 0
    %6035 = vmatprep.subr.bf16.mxu0 0
    %6036 = vmatpush1.bf16.msra.mxu0 0
    %6037 = vmatprep.subr.bf16.mxu0 0
    %6038 = vmatpush1.bf16.msra.mxu0 0
    %6039 = vmatprep.subr.bf16.mxu0 0
    %6040 = vmatpush1.bf16.msra.mxu0 0
    %6041 = vmatprep.subr.bf16.mxu0 0
    %6042 = vmatpush1.bf16.msra.mxu0 0
    %6043 = vmatprep.subr.bf16.mxu0 0
    %6044 = vmatpush1.bf16.msra.mxu0 0
    %6045 = vmatprep.subr.bf16.mxu0 0
    %6046 = vmatpush1.bf16.msra.mxu0 0
    %6047 = vmatprep.mubr.bf16.mxu0 0
    %6048 = vmatmul.mubr.bf16.gmra.mrb[0].mxu0 %v5944
    %v6049 = vpop.f32.mrb[0].mxu0
    %v6050 = vadd.f32 0.0, %v6049
    %v6051 = vpop.f32.mrb[0].mxu0
    %v6052 = vpop.f32.mrb[0].mxu0
    %v6053 = vadd.f32 0.0, %v6052
    %v6054 = vpop.f32.mrb[0].mxu0
    %6055 = vmatprep.mubr.bf16.mxu0 0
    %6056 = vmatmul.mubr.bf16.gmra.mrb[0].mxu0 %v5945
    %v6057 = vpop.f32.mrb[0].mxu0
    %v6058 = vadd.f32 0.0, %v6057
    %v6059 = vpop.f32.mrb[0].mxu0
    %v6060 = vpop.f32.mrb[0].mxu0
    %v6061 = vadd.f32 0.0, %v6060
    %v6062 = vpop.f32.mrb[0].mxu0
    %6063 = vmatprep.mubr.bf16.mxu0 0
    %6064 = vmatmul.mubr.bf16.gmra.mrb[0].mxu0 %v5946
    %v6065 = vpop.f32.mrb[0].mxu0
    %v6066 = vadd.f32 0.0, %v6065
    %v6067 = vpop.f32.mrb[0].mxu0
    %v6068 = vpop.f32.mrb[0].mxu0
    %v6069 = vadd.f32 0.0, %v6068
    %v6070 = vpop.f32.mrb[0].mxu0
    %6071 = vmatprep.mubr.bf16.mxu0 0
    %6072 = vmatmul.mubr.bf16.gmra.mrb[0].mxu0 %v5947
    %v6073 = vpop.f32.mrb[0].mxu0
    %v6074 = vadd.f32 0.0, %v6073
    %v6075 = vpop.f32.mrb[0].mxu0
    %v6076 = vpop.f32.mrb[0].mxu0
    %v6077 = vadd.f32 0.0, %v6076
    %v6078 = vpop.f32.mrb[0].mxu0
    %6079 = vmatprep.mubr.bf16.mxu0 0
    %6080 = vmatmul.mubr.bf16.gmra.mrb[0].mxu0 %v5948
    %v6081 = vpop.f32.mrb[0].mxu0
    %v6082 = vadd.f32 0.0, %v6081
    %v6083 = vpop.f32.mrb[0].mxu0
    %v6084 = vpop.f32.mrb[0].mxu0
    %v6085 = vadd.f32 0.0, %v6084
    %v6086 = vpop.f32.mrb[0].mxu0
    %6087 = vmatprep.mubr.bf16.mxu0 0
    %6088 = vmatmul.mubr.bf16.gmra.mrb[0].mxu0 %v5949
    %v6089 = vpop.f32.mrb[0].mxu0
    %v6090 = vadd.f32 0.0, %v6089
    %v6091 = vpop.f32.mrb[0].mxu0
    %v6092 = vpop.f32.mrb[0].mxu0
    %v6093 = vpop.f32.mrb[0].mxu0
    %6094 = vdwg.mxu0
    %v6095 = vadd.f32 %v5921, %v6050
    %v6096 = vadd.f32 %v5922, %v6053
    %v6097 = vadd.f32 %v5923, %v6058
    %v6098 = vadd.f32 %v5924, %v6061
    %v6099 = vadd.f32 %v5925, %v6066
    %v6100 = vadd.f32 %v5926, %v6069
    %v6101 = vadd.f32 %v5927, %v6074
    %v6102 = vadd.f32 %v5928, %v6077
    %v6103 = vadd.f32 %v5929, %v6082
    %v6104 = vadd.f32 %v5930, %v6085
    %v6105 = vadd.f32 %v5931, %v6090
    %v6106 = vld [vmem:[%s5576] ss:$2 sm:$0xff]
    %v6107 = vld [vmem:[%s5578] ss:$2 sm:$0xff]
    %v6108 = vld [vmem:[%s5580] ss:$2 sm:$0xff]
    %v6109 = vld [vmem:[%s5582] ss:$2 sm:$0xff]
    %v6110 = vld [vmem:[%s5584] ss:$2 sm:$0xff]
    %v6111 = vld [vmem:[%s5586] ss:$2 sm:$0xff]
    %v6112 = vld [vmem:[%s5588] ss:$2 sm:$0xff]
    %v6113 = vld [vmem:[%s5590] ss:$2 sm:$0xff]
    %v6114 = vld [vmem:[%s5592] ss:$2 sm:$0xff]
    %v6115 = vld [vmem:[%s5594] ss:$2 sm:$0xff]
    %s6116 = scalar_lea.vmem [#allocation2], 178
    %v6117 = vld [vmem:[%s6116] ss:$2 sm:$0x3f]
    %v6118 = vpack.c.bf16 %v6107, %v6106
    %v6119 = vpack.c.bf16 %v6109, %v6108
    %v6120 = vpack.c.bf16 %v6111, %v6110
    %v6121 = vpack.c.bf16 %v6113, %v6112
    %v6122 = vpack.c.bf16 %v6115, %v6114
    %v6123 = vpack.c.bf16 %v6117, %v6117
    %s6124 = scalar_lea.vmem %s3, 320
    %v6125 = vld [vmem:[%s6124] sm:$0xf]
    %v6126 = vld [vmem:[%s6124 + $0x4] sm:$0xf]
    %v6127 = vld [vmem:[%s6124 + $0x8] sm:$0xf]
    %v6128 = vld [vmem:[%s6124 + $0xc] sm:$0xf]
    %v6129 = vld [vmem:[%s6124 + $0x10] sm:$0xf]
    %v6130 = vld [vmem:[%s6124 + $0x14] sm:$0xf]
    %v6131 = vld [vmem:[%s6124 + $0x18] sm:$0xf]
    %v6132 = vld [vmem:[%s6124 + $0x1c] sm:$0xf]
    %v6133 = vld [vmem:[%s6124 + $0x20] sm:$0xf]
    %v6134 = vld [vmem:[%s6124 + $0x24] sm:$0xf]
    %v6135 = vld [vmem:[%s6124 + $0x28] sm:$0xf]
    %v6136 = vld [vmem:[%s6124 + $0x2c] sm:$0xf]
    %v6137 = vld [vmem:[%s6124 + $0x30] sm:$0xf]
    %v6138 = vld [vmem:[%s6124 + $0x34] sm:$0xf]
    %v6139 = vld [vmem:[%s6124 + $0x38] sm:$0xf]
    %v6140 = vld [vmem:[%s6124 + $0x3c] sm:$0xf]
    %v6157 = vunpack.c.l.b16 %v6125
    %v6158 = vunpack.c.l.b16 %v6126
    %v6159 = vunpack.c.l.b16 %v6127
    %v6160 = vunpack.c.l.b16 %v6128
    %v6161 = vunpack.c.l.b16 %v6129
    %v6162 = vunpack.c.l.b16 %v6130
    %v6163 = vunpack.c.l.b16 %v6131
    %v6164 = vunpack.c.l.b16 %v6132
    %v6165 = vunpack.c.l.b16 %v6133
    %v6166 = vunpack.c.l.b16 %v6134
    %v6167 = vunpack.c.l.b16 %v6135
    %v6168 = vunpack.c.l.b16 %v6136
    %v6169 = vunpack.c.l.b16 %v6137
    %v6170 = vunpack.c.l.b16 %v6138
    %v6171 = vunpack.c.l.b16 %v6139
    %v6172 = vunpack.c.l.b16 %v6140
    %v6173 = vpack.c.b16 %v6158, %v6157
    %v6174 = vpack.c.b16 %v6160, %v6159
    %v6175 = vpack.c.b16 %v6162, %v6161
    %v6176 = vpack.c.b16 %v6164, %v6163
    %v6177 = vpack.c.b16 %v6166, %v6165
    %v6178 = vpack.c.b16 %v6168, %v6167
    %v6179 = vpack.c.b16 %v6170, %v6169
    %v6180 = vpack.c.b16 %v6172, %v6171
    %6189 = vmatprep.subr.bf16.mxu0 0
    %6190 = vmatpush1.bf16.msra.mxu0 %v6173
    %6191 = vmatprep.subr.bf16.mxu0 0
    %6192 = vmatpush1.bf16.msra.mxu0 %v6174
    %6193 = vmatprep.subr.bf16.mxu0 0
    %6194 = vmatpush1.bf16.msra.mxu0 %v6175
    %6195 = vmatprep.subr.bf16.mxu0 0
    %6196 = vmatpush1.bf16.msra.mxu0 %v6176
    %6197 = vmatprep.subr.bf16.mxu0 0
    %6198 = vmatpush1.bf16.msra.mxu0 %v6177
    %6199 = vmatprep.subr.bf16.mxu0 0
    %6200 = vmatpush1.bf16.msra.mxu0 %v6178
    %6201 = vmatprep.subr.bf16.mxu0 0
    %6202 = vmatpush1.bf16.msra.mxu0 %v6179
    %6203 = vmatprep.subr.bf16.mxu0 0
    %6204 = vmatpush1.bf16.msra.mxu0 %v6180
    %6205 = vmatprep.subr.bf16.mxu0 0
    %6206 = vmatpush1.bf16.msra.mxu0 0
    %6207 = vmatprep.subr.bf16.mxu0 0
    %6208 = vmatpush1.bf16.msra.mxu0 0
    %6209 = vmatprep.subr.bf16.mxu0 0
    %6210 = vmatpush1.bf16.msra.mxu0 0
    %6211 = vmatprep.subr.bf16.mxu0 0
    %6212 = vmatpush1.bf16.msra.mxu0 0
    %6213 = vmatprep.subr.bf16.mxu0 0
    %6214 = vmatpush1.bf16.msra.mxu0 0
    %6215 = vmatprep.subr.bf16.mxu0 0
    %6216 = vmatpush1.bf16.msra.mxu0 0
    %6217 = vmatprep.subr.bf16.mxu0 0
    %6218 = vmatpush1.bf16.msra.mxu0 0
    %6219 = vmatprep.subr.bf16.mxu0 0
    %6220 = vmatpush1.bf16.msra.mxu0 0
    %6221 = vmatprep.mubr.bf16.mxu0 0
    %6222 = vmatmul.mubr.bf16.gmra.mrb[0].mxu0 %v6118
    %v6223 = vpop.f32.mrb[0].mxu0
    %v6224 = vadd.f32 0.0, %v6223
    %v6225 = vpop.f32.mrb[0].mxu0
    %v6226 = vpop.f32.mrb[0].mxu0
    %v6227 = vadd.f32 0.0, %v6226
    %v6228 = vpop.f32.mrb[0].mxu0
    %6229 = vmatprep.mubr.bf16.mxu0 0
    %6230 = vmatmul.mubr.bf16.gmra.mrb[0].mxu0 %v6119
    %v6231 = vpop.f32.mrb[0].mxu0
    %v6232 = vadd.f32 0.0, %v6231
    %v6233 = vpop.f32.mrb[0].mxu0
    %v6234 = vpop.f32.mrb[0].mxu0
    %v6235 = vadd.f32 0.0, %v6234
    %v6236 = vpop.f32.mrb[0].mxu0
    %6237 = vmatprep.mubr.bf16.mxu0 0
    %6238 = vmatmul.mubr.bf16.gmra.mrb[0].mxu0 %v6120
    %v6239 = vpop.f32.mrb[0].mxu0
    %v6240 = vadd.f32 0.0, %v6239
    %v6241 = vpop.f32.mrb[0].mxu0
    %v6242 = vpop.f32.mrb[0].mxu0
    %v6243 = vadd.f32 0.0, %v6242
    %v6244 = vpop.f32.mrb[0].mxu0
    %6245 = vmatprep.mubr.bf16.mxu0 0
    %6246 = vmatmul.mubr.bf16.gmra.mrb[0].mxu0 %v6121
    %v6247 = vpop.f32.mrb[0].mxu0
    %v6248 = vadd.f32 0.0, %v6247
    %v6249 = vpop.f32.mrb[0].mxu0
    %v6250 = vpop.f32.mrb[0].mxu0
    %v6251 = vadd.f32 0.0, %v6250
    %v6252 = vpop.f32.mrb[0].mxu0
    %6253 = vmatprep.mubr.bf16.mxu0 0
    %6254 = vmatmul.mubr.bf16.gmra.mrb[0].mxu0 %v6122
    %v6255 = vpop.f32.mrb[0].mxu0
    %v6256 = vadd.f32 0.0, %v6255
    %v6257 = vpop.f32.mrb[0].mxu0
    %v6258 = vpop.f32.mrb[0].mxu0
    %v6259 = vadd.f32 0.0, %v6258
    %v6260 = vpop.f32.mrb[0].mxu0
    %6261 = vmatprep.mubr.bf16.mxu0 0
    %6262 = vmatmul.mubr.bf16.gmra.mrb[0].mxu0 %v6123
    %v6263 = vpop.f32.mrb[0].mxu0
    %v6264 = vadd.f32 0.0, %v6263
    %v6265 = vpop.f32.mrb[0].mxu0
    %v6266 = vpop.f32.mrb[0].mxu0
    %v6267 = vpop.f32.mrb[0].mxu0
    %6268 = vdwg.mxu0
    %v6269 = vadd.f32 %v6095, %v6224
    %v6270 = vadd.f32 %v6096, %v6227
    %v6271 = vadd.f32 %v6097, %v6232
    %v6272 = vadd.f32 %v6098, %v6235
    %v6273 = vadd.f32 %v6099, %v6240
    %v6274 = vadd.f32 %v6100, %v6243
    %v6275 = vadd.f32 %v6101, %v6248
    %v6276 = vadd.f32 %v6102, %v6251
    %v6277 = vadd.f32 %v6103, %v6256
    %v6278 = vadd.f32 %v6104, %v6259
    %v6279 = vadd.f32 %v6105, %v6264
    %v6280 = vld [vmem:[%s5233] ss:$2 sm:$0xff]
    %v6281 = vld [vmem:[%s5235] ss:$2 sm:$0xff]
    %v6282 = vld [vmem:[%s5237] ss:$2 sm:$0xff]
    %v6283 = vld [vmem:[%s5239] ss:$2 sm:$0xff]
    %v6284 = vld [vmem:[%s5241] ss:$2 sm:$0xff]
    %v6285 = vld [vmem:[%s5243] ss:$2 sm:$0xff]
    %v6286 = vld [vmem:[%s5245] ss:$2 sm:$0xff]
    %v6287 = vld [vmem:[%s5247] ss:$2 sm:$0xff]
    %v6288 = vld [vmem:[%s5249] ss:$2 sm:$0xff]
    %v6289 = vld [vmem:[%s5768] ss:$2 sm:$0xff]
    %s6290 = scalar_lea.vmem [#allocation2], 192
    %v6291 = vld [vmem:[%s6290] ss:$2 sm:$0x3f]
    %v6292 = vpack.c.bf16 %v6281, %v6280
    %v6293 = vpack.c.bf16 %v6283, %v6282
    %v6294 = vpack.c.bf16 %v6285, %v6284
    %v6295 = vpack.c.bf16 %v6287, %v6286
    %v6296 = vpack.c.bf16 %v6289, %v6288
    %v6297 = vpack.c.bf16 %v6291, %v6291
    %s6298 = scalar_lea.vmem %s3, 384
    %v6299 = vld [vmem:[%s6298] sm:$0xf]
    %v6300 = vld [vmem:[%s6298 + $0x4] sm:$0xf]
    %v6301 = vld [vmem:[%s6298 + $0x8] sm:$0xf]
    %v6302 = vld [vmem:[%s6298 + $0xc] sm:$0xf]
    %v6303 = vld [vmem:[%s6298 + $0x10] sm:$0xf]
    %v6304 = vld [vmem:[%s6298 + $0x14] sm:$0xf]
    %v6305 = vld [vmem:[%s6298 + $0x18] sm:$0xf]
    %v6306 = vld [vmem:[%s6298 + $0x1c] sm:$0xf]
    %v6307 = vld [vmem:[%s6298 + $0x20] sm:$0xf]
    %v6308 = vld [vmem:[%s6298 + $0x24] sm:$0xf]
    %v6309 = vld [vmem:[%s6298 + $0x28] sm:$0xf]
    %v6310 = vld [vmem:[%s6298 + $0x2c] sm:$0xf]
    %v6311 = vld [vmem:[%s6298 + $0x30] sm:$0xf]
    %v6312 = vld [vmem:[%s6298 + $0x34] sm:$0xf]
    %v6313 = vld [vmem:[%s6298 + $0x38] sm:$0xf]
    %v6314 = vld [vmem:[%s6298 + $0x3c] sm:$0xf]
    %v6331 = vunpack.c.l.b16 %v6299
    %v6332 = vunpack.c.l.b16 %v6300
    %v6333 = vunpack.c.l.b16 %v6301
    %v6334 = vunpack.c.l.b16 %v6302
    %v6335 = vunpack.c.l.b16 %v6303
    %v6336 = vunpack.c.l.b16 %v6304
    %v6337 = vunpack.c.l.b16 %v6305
    %v6338 = vunpack.c.l.b16 %v6306
    %v6339 = vunpack.c.l.b16 %v6307
    %v6340 = vunpack.c.l.b16 %v6308
    %v6341 = vunpack.c.l.b16 %v6309
    %v6342 = vunpack.c.l.b16 %v6310
    %v6343 = vunpack.c.l.b16 %v6311
    %v6344 = vunpack.c.l.b16 %v6312
    %v6345 = vunpack.c.l.b16 %v6313
    %v6346 = vunpack.c.l.b16 %v6314
    %v6347 = vpack.c.b16 %v6332, %v6331
    %v6348 = vpack.c.b16 %v6334, %v6333
    %v6349 = vpack.c.b16 %v6336, %v6335
    %v6350 = vpack.c.b16 %v6338, %v6337
    %v6351 = vpack.c.b16 %v6340, %v6339
    %v6352 = vpack.c.b16 %v6342, %v6341
    %v6353 = vpack.c.b16 %v6344, %v6343
    %v6354 = vpack.c.b16 %v6346, %v6345
    %6363 = vmatprep.subr.bf16.mxu0 0
    %6364 = vmatpush1.bf16.msra.mxu0 %v6347
    %6365 = vmatprep.subr.bf16.mxu0 0
    %6366 = vmatpush1.bf16.msra.mxu0 %v6348
    %6367 = vmatprep.subr.bf16.mxu0 0
    %6368 = vmatpush1.bf16.msra.mxu0 %v6349
    %6369 = vmatprep.subr.bf16.mxu0 0
    %6370 = vmatpush1.bf16.msra.mxu0 %v6350
    %6371 = vmatprep.subr.bf16.mxu0 0
    %6372 = vmatpush1.bf16.msra.mxu0 %v6351
    %6373 = vmatprep.subr.bf16.mxu0 0
    %6374 = vmatpush1.bf16.msra.mxu0 %v6352
    %6375 = vmatprep.subr.bf16.mxu0 0
    %6376 = vmatpush1.bf16.msra.mxu0 %v6353
    %6377 = vmatprep.subr.bf16.mxu0 0
    %6378 = vmatpush1.bf16.msra.mxu0 %v6354
    %6379 = vmatprep.subr.bf16.mxu0 0
    %6380 = vmatpush1.bf16.msra.mxu0 0
    %6381 = vmatprep.subr.bf16.mxu0 0
    %6382 = vmatpush1.bf16.msra.mxu0 0
    %6383 = vmatprep.subr.bf16.mxu0 0
    %6384 = vmatpush1.bf16.msra.mxu0 0
    %6385 = vmatprep.subr.bf16.mxu0 0
    %6386 = vmatpush1.bf16.msra.mxu0 0
    %6387 = vmatprep.subr.bf16.mxu0 0
    %6388 = vmatpush1.bf16.msra.mxu0 0
    %6389 = vmatprep.subr.bf16.mxu0 0
    %6390 = vmatpush1.bf16.msra.mxu0 0
    %6391 = vmatprep.subr.bf16.mxu0 0
    %6392 = vmatpush1.bf16.msra.mxu0 0
    %6393 = vmatprep.subr.bf16.mxu0 0
    %6394 = vmatpush1.bf16.msra.mxu0 0
    %6395 = vmatprep.mubr.bf16.mxu0 0
    %6396 = vmatmul.mubr.bf16.gmra.mrb[0].mxu0 %v6292
    %v6397 = vpop.f32.mrb[0].mxu0
    %v6398 = vadd.f32 0.0, %v6397
    %v6399 = vpop.f32.mrb[0].mxu0
    %v6400 = vpop.f32.mrb[0].mxu0
    %v6401 = vadd.f32 0.0, %v6400
    %v6402 = vpop.f32.mrb[0].mxu0
    %6403 = vmatprep.mubr.bf16.mxu0 0
    %6404 = vmatmul.mubr.bf16.gmra.mrb[0].mxu0 %v6293
    %v6405 = vpop.f32.mrb[0].mxu0
    %v6406 = vadd.f32 0.0, %v6405
    %v6407 = vpop.f32.mrb[0].mxu0
    %v6408 = vpop.f32.mrb[0].mxu0
    %v6409 = vadd.f32 0.0, %v6408
    %v6410 = vpop.f32.mrb[0].mxu0
    %6411 = vmatprep.mubr.bf16.mxu0 0
    %6412 = vmatmul.mubr.bf16.gmra.mrb[0].mxu0 %v6294
    %v6413 = vpop.f32.mrb[0].mxu0
    %v6414 = vadd.f32 0.0, %v6413
    %v6415 = vpop.f32.mrb[0].mxu0
    %v6416 = vpop.f32.mrb[0].mxu0
    %v6417 = vadd.f32 0.0, %v6416
    %v6418 = vpop.f32.mrb[0].mxu0
    %6419 = vmatprep.mubr.bf16.mxu0 0
    %6420 = vmatmul.mubr.bf16.gmra.mrb[0].mxu0 %v6295
    %v6421 = vpop.f32.mrb[0].mxu0
    %v6422 = vadd.f32 0.0, %v6421
    %v6423 = vpop.f32.mrb[0].mxu0
    %v6424 = vpop.f32.mrb[0].mxu0
    %v6425 = vadd.f32 0.0, %v6424
    %v6426 = vpop.f32.mrb[0].mxu0
    %6427 = vmatprep.mubr.bf16.mxu0 0
    %6428 = vmatmul.mubr.bf16.gmra.mrb[0].mxu0 %v6296
    %v6429 = vpop.f32.mrb[0].mxu0
    %v6430 = vadd.f32 0.0, %v6429
    %v6431 = vpop.f32.mrb[0].mxu0
    %v6432 = vpop.f32.mrb[0].mxu0
    %v6433 = vadd.f32 0.0, %v6432
    %v6434 = vpop.f32.mrb[0].mxu0
    %6435 = vmatprep.mubr.bf16.mxu0 0
    %6436 = vmatmul.mubr.bf16.gmra.mrb[0].mxu0 %v6297
    %v6437 = vpop.f32.mrb[0].mxu0
    %v6438 = vadd.f32 0.0, %v6437
    %v6439 = vpop.f32.mrb[0].mxu0
    %v6440 = vpop.f32.mrb[0].mxu0
    %v6441 = vpop.f32.mrb[0].mxu0
    %6442 = vdwg.mxu0
    %v6443 = vadd.f32 %v6269, %v6398
    %v6444 = vadd.f32 %v6270, %v6401
    %v6445 = vadd.f32 %v6271, %v6406
    %v6446 = vadd.f32 %v6272, %v6409
    %v6447 = vadd.f32 %v6273, %v6414
    %v6448 = vadd.f32 %v6274, %v6417
    %v6449 = vadd.f32 %v6275, %v6422
    %v6450 = vadd.f32 %v6276, %v6425
    %v6451 = vadd.f32 %v6277, %v6430
    %v6452 = vadd.f32 %v6278, %v6433
    %v6453 = vadd.f32 %v6279, %v6438
    %v6454 = vld [vmem:[%s5277] ss:$2 sm:$0xff]
    %v6455 = vld [vmem:[%s5279] ss:$2 sm:$0xff]
    %v6456 = vld [vmem:[%s5281] ss:$2 sm:$0xff]
    %v6457 = vld [vmem:[%s5283] ss:$2 sm:$0xff]
    %v6458 = vld [vmem:[%s5285] ss:$2 sm:$0xff]
    %v6459 = vld [vmem:[%s5287] ss:$2 sm:$0xff]
    %v6460 = vld [vmem:[%s5289] ss:$2 sm:$0xff]
    %v6461 = vld [vmem:[%s5291] ss:$2 sm:$0xff]
    %v6462 = vld [vmem:[%s5293] ss:$2 sm:$0xff]
    %v6463 = vld [vmem:[%s5942] ss:$2 sm:$0xff]
    %s6464 = scalar_lea.vmem [#allocation2], 193
    %v6465 = vld [vmem:[%s6464] ss:$2 sm:$0x3f]
    %v6466 = vpack.c.bf16 %v6455, %v6454
    %v6467 = vpack.c.bf16 %v6457, %v6456
    %v6468 = vpack.c.bf16 %v6459, %v6458
    %v6469 = vpack.c.bf16 %v6461, %v6460
    %v6470 = vpack.c.bf16 %v6463, %v6462
    %v6471 = vpack.c.bf16 %v6465, %v6465
    %s6472 = scalar_lea.vmem %s3, 448
    %v6473 = vld [vmem:[%s6472] sm:$0xf]
    %v6474 = vld [vmem:[%s6472 + $0x4] sm:$0xf]
    %v6475 = vld [vmem:[%s6472 + $0x8] sm:$0xf]
    %v6476 = vld [vmem:[%s6472 + $0xc] sm:$0xf]
    %v6477 = vld [vmem:[%s6472 + $0x10] sm:$0xf]
    %v6478 = vld [vmem:[%s6472 + $0x14] sm:$0xf]
    %v6479 = vld [vmem:[%s6472 + $0x18] sm:$0xf]
    %v6480 = vld [vmem:[%s6472 + $0x1c] sm:$0xf]
    %v6481 = vld [vmem:[%s6472 + $0x20] sm:$0xf]
    %v6482 = vld [vmem:[%s6472 + $0x24] sm:$0xf]
    %v6483 = vld [vmem:[%s6472 + $0x28] sm:$0xf]
    %v6484 = vld [vmem:[%s6472 + $0x2c] sm:$0xf]
    %v6485 = vld [vmem:[%s6472 + $0x30] sm:$0xf]
    %v6486 = vld [vmem:[%s6472 + $0x34] sm:$0xf]
    %v6487 = vld [vmem:[%s6472 + $0x38] sm:$0xf]
    %v6488 = vld [vmem:[%s6472 + $0x3c] sm:$0xf]
    %v6505 = vunpack.c.l.b16 %v6473
    %v6506 = vunpack.c.l.b16 %v6474
    %v6507 = vunpack.c.l.b16 %v6475
    %v6508 = vunpack.c.l.b16 %v6476
    %v6509 = vunpack.c.l.b16 %v6477
    %v6510 = vunpack.c.l.b16 %v6478
    %v6511 = vunpack.c.l.b16 %v6479
    %v6512 = vunpack.c.l.b16 %v6480
    %v6513 = vunpack.c.l.b16 %v6481
    %v6514 = vunpack.c.l.b16 %v6482
    %v6515 = vunpack.c.l.b16 %v6483
    %v6516 = vunpack.c.l.b16 %v6484
    %v6517 = vunpack.c.l.b16 %v6485
    %v6518 = vunpack.c.l.b16 %v6486
    %v6519 = vunpack.c.l.b16 %v6487
    %v6520 = vunpack.c.l.b16 %v6488
    %v6521 = vpack.c.b16 %v6506, %v6505
    %v6522 = vpack.c.b16 %v6508, %v6507
    %v6523 = vpack.c.b16 %v6510, %v6509
    %v6524 = vpack.c.b16 %v6512, %v6511
    %v6525 = vpack.c.b16 %v6514, %v6513
    %v6526 = vpack.c.b16 %v6516, %v6515
    %v6527 = vpack.c.b16 %v6518, %v6517
    %v6528 = vpack.c.b16 %v6520, %v6519
    %6537 = vmatprep.subr.bf16.mxu0 0
    %6538 = vmatpush1.bf16.msra.mxu0 %v6521
    %6539 = vmatprep.subr.bf16.mxu0 0
    %6540 = vmatpush1.bf16.msra.mxu0 %v6522
    %6541 = vmatprep.subr.bf16.mxu0 0
    %6542 = vmatpush1.bf16.msra.mxu0 %v6523
    %6543 = vmatprep.subr.bf16.mxu0 0
    %6544 = vmatpush1.bf16.msra.mxu0 %v6524
    %6545 = vmatprep.subr.bf16.mxu0 0
    %6546 = vmatpush1.bf16.msra.mxu0 %v6525
    %6547 = vmatprep.subr.bf16.mxu0 0
    %6548 = vmatpush1.bf16.msra.mxu0 %v6526
    %6549 = vmatprep.subr.bf16.mxu0 0
    %6550 = vmatpush1.bf16.msra.mxu0 %v6527
    %6551 = vmatprep.subr.bf16.mxu0 0
    %6552 = vmatpush1.bf16.msra.mxu0 %v6528
    %6553 = vmatprep.subr.bf16.mxu0 0
    %6554 = vmatpush1.bf16.msra.mxu0 0
    %6555 = vmatprep.subr.bf16.mxu0 0
    %6556 = vmatpush1.bf16.msra.mxu0 0
    %6557 = vmatprep.subr.bf16.mxu0 0
    %6558 = vmatpush1.bf16.msra.mxu0 0
    %6559 = vmatprep.subr.bf16.mxu0 0
    %6560 = vmatpush1.bf16.msra.mxu0 0
    %6561 = vmatprep.subr.bf16.mxu0 0
    %6562 = vmatpush1.bf16.msra.mxu0 0
    %6563 = vmatprep.subr.bf16.mxu0 0
    %6564 = vmatpush1.bf16.msra.mxu0 0
    %6565 = vmatprep.subr.bf16.mxu0 0
    %6566 = vmatpush1.bf16.msra.mxu0 0
    %6567 = vmatprep.subr.bf16.mxu0 0
    %6568 = vmatpush1.bf16.msra.mxu0 0
    %6569 = vmatprep.mubr.bf16.mxu0 0
    %6570 = vmatmul.mubr.bf16.gmra.mrb[0].mxu0 %v6466
    %v6571 = vpop.f32.mrb[0].mxu0
    %v6572 = vadd.f32 0.0, %v6571
    %v6573 = vpop.f32.mrb[0].mxu0
    %v6574 = vpop.f32.mrb[0].mxu0
    %v6575 = vadd.f32 0.0, %v6574
    %v6576 = vpop.f32.mrb[0].mxu0
    %6577 = vmatprep.mubr.bf16.mxu0 0
    %6578 = vmatmul.mubr.bf16.gmra.mrb[0].mxu0 %v6467
    %v6579 = vpop.f32.mrb[0].mxu0
    %v6580 = vadd.f32 0.0, %v6579
    %v6581 = vpop.f32.mrb[0].mxu0
    %v6582 = vpop.f32.mrb[0].mxu0
    %v6583 = vadd.f32 0.0, %v6582
    %v6584 = vpop.f32.mrb[0].mxu0
    %6585 = vmatprep.mubr.bf16.mxu0 0
    %6586 = vmatmul.mubr.bf16.gmra.mrb[0].mxu0 %v6468
    %v6587 = vpop.f32.mrb[0].mxu0
    %v6588 = vadd.f32 0.0, %v6587
    %v6589 = vpop.f32.mrb[0].mxu0
    %v6590 = vpop.f32.mrb[0].mxu0
    %v6591 = vadd.f32 0.0, %v6590
    %v6592 = vpop.f32.mrb[0].mxu0
    %6593 = vmatprep.mubr.bf16.mxu0 0
    %6594 = vmatmul.mubr.bf16.gmra.mrb[0].mxu0 %v6469
    %v6595 = vpop.f32.mrb[0].mxu0
    %v6596 = vadd.f32 0.0, %v6595
    %v6597 = vpop.f32.mrb[0].mxu0
    %v6598 = vpop.f32.mrb[0].mxu0
    %v6599 = vadd.f32 0.0, %v6598
    %v6600 = vpop.f32.mrb[0].mxu0
    %6601 = vmatprep.mubr.bf16.mxu0 0
    %6602 = vmatmul.mubr.bf16.gmra.mrb[0].mxu0 %v6470
    %v6603 = vpop.f32.mrb[0].mxu0
    %v6604 = vadd.f32 0.0, %v6603
    %v6605 = vpop.f32.mrb[0].mxu0
    %v6606 = vpop.f32.mrb[0].mxu0
    %v6607 = vadd.f32 0.0, %v6606
    %v6608 = vpop.f32.mrb[0].mxu0
    %6609 = vmatprep.mubr.bf16.mxu0 0
    %6610 = vmatmul.mubr.bf16.gmra.mrb[0].mxu0 %v6471
    %v6611 = vpop.f32.mrb[0].mxu0
    %v6612 = vadd.f32 0.0, %v6611
    %v6613 = vpop.f32.mrb[0].mxu0
    %v6614 = vpop.f32.mrb[0].mxu0
    %v6615 = vpop.f32.mrb[0].mxu0
    %6616 = vdwg.mxu0
    %v6617 = vadd.f32 %v6443, %v6572
    %v6618 = vadd.f32 %v6444, %v6575
    %v6619 = vadd.f32 %v6445, %v6580
    %v6620 = vadd.f32 %v6446, %v6583
    %v6621 = vadd.f32 %v6447, %v6588
    %v6622 = vadd.f32 %v6448, %v6591
    %v6623 = vadd.f32 %v6449, %v6596
    %v6624 = vadd.f32 %v6450, %v6599
    %v6625 = vadd.f32 %v6451, %v6604
    %v6626 = vadd.f32 %v6452, %v6607
    %v6627 = vadd.f32 %v6453, %v6612
    %v6628 = vld [vmem:[%s5578] ss:$2 sm:$0xff]
    %v6629 = vld [vmem:[%s5580] ss:$2 sm:$0xff]
    %v6630 = vld [vmem:[%s5582] ss:$2 sm:$0xff]
    %v6631 = vld [vmem:[%s5584] ss:$2 sm:$0xff]
    %v6632 = vld [vmem:[%s5586] ss:$2 sm:$0xff]
    %v6633 = vld [vmem:[%s5588] ss:$2 sm:$0xff]
    %v6634 = vld [vmem:[%s5590] ss:$2 sm:$0xff]
    %v6635 = vld [vmem:[%s5592] ss:$2 sm:$0xff]
    %v6636 = vld [vmem:[%s5594] ss:$2 sm:$0xff]
    %v6637 = vld [vmem:[%s6116] ss:$2 sm:$0xff]
    %s6638 = scalar_lea.vmem [#allocation2], 194
    %v6639 = vld [vmem:[%s6638] ss:$2 sm:$0x3f]
    %v6640 = vpack.c.bf16 %v6629, %v6628
    %v6641 = vpack.c.bf16 %v6631, %v6630
    %v6642 = vpack.c.bf16 %v6633, %v6632
    %v6643 = vpack.c.bf16 %v6635, %v6634
    %v6644 = vpack.c.bf16 %v6637, %v6636
    %v6645 = vpack.c.bf16 %v6639, %v6639
    %s6646 = scalar_lea.vmem %s3, 512
    %v6647 = vld [vmem:[%s6646] sm:$0xf]
    %v6648 = vld [vmem:[%s6646 + $0x4] sm:$0xf]
    %v6649 = vld [vmem:[%s6646 + $0x8] sm:$0xf]
    %v6650 = vld [vmem:[%s6646 + $0xc] sm:$0xf]
    %v6651 = vld [vmem:[%s6646 + $0x10] sm:$0xf]
    %v6652 = vld [vmem:[%s6646 + $0x14] sm:$0xf]
    %v6653 = vld [vmem:[%s6646 + $0x18] sm:$0xf]
    %v6654 = vld [vmem:[%s6646 + $0x1c] sm:$0xf]
    %v6655 = vld [vmem:[%s6646 + $0x20] sm:$0xf]
    %v6656 = vld [vmem:[%s6646 + $0x24] sm:$0xf]
    %v6657 = vld [vmem:[%s6646 + $0x28] sm:$0xf]
    %v6658 = vld [vmem:[%s6646 + $0x2c] sm:$0xf]
    %v6659 = vld [vmem:[%s6646 + $0x30] sm:$0xf]
    %v6660 = vld [vmem:[%s6646 + $0x34] sm:$0xf]
    %v6661 = vld [vmem:[%s6646 + $0x38] sm:$0xf]
    %v6662 = vld [vmem:[%s6646 + $0x3c] sm:$0xf]
    %v6679 = vunpack.c.l.b16 %v6647
    %v6680 = vunpack.c.l.b16 %v6648
    %v6681 = vunpack.c.l.b16 %v6649
    %v6682 = vunpack.c.l.b16 %v6650
    %v6683 = vunpack.c.l.b16 %v6651
    %v6684 = vunpack.c.l.b16 %v6652
    %v6685 = vunpack.c.l.b16 %v6653
    %v6686 = vunpack.c.l.b16 %v6654
    %v6687 = vunpack.c.l.b16 %v6655
    %v6688 = vunpack.c.l.b16 %v6656
    %v6689 = vunpack.c.l.b16 %v6657
    %v6690 = vunpack.c.l.b16 %v6658
    %v6691 = vunpack.c.l.b16 %v6659
    %v6692 = vunpack.c.l.b16 %v6660
    %v6693 = vunpack.c.l.b16 %v6661
    %v6694 = vunpack.c.l.b16 %v6662
    %v6695 = vpack.c.b16 %v6680, %v6679
    %v6696 = vpack.c.b16 %v6682, %v6681
    %v6697 = vpack.c.b16 %v6684, %v6683
    %v6698 = vpack.c.b16 %v6686, %v6685
    %v6699 = vpack.c.b16 %v6688, %v6687
    %v6700 = vpack.c.b16 %v6690, %v6689
    %v6701 = vpack.c.b16 %v6692, %v6691
    %v6702 = vpack.c.b16 %v6694, %v6693
    %6711 = vmatprep.subr.bf16.mxu0 0
    %6712 = vmatpush1.bf16.msra.mxu0 %v6695
    %6713 = vmatprep.subr.bf16.mxu0 0
    %6714 = vmatpush1.bf16.msra.mxu0 %v6696
    %6715 = vmatprep.subr.bf16.mxu0 0
    %6716 = vmatpush1.bf16.msra.mxu0 %v6697
    %6717 = vmatprep.subr.bf16.mxu0 0
    %6718 = vmatpush1.bf16.msra.mxu0 %v6698
    %6719 = vmatprep.subr.bf16.mxu0 0
    %6720 = vmatpush1.bf16.msra.mxu0 %v6699
    %6721 = vmatprep.subr.bf16.mxu0 0
    %6722 = vmatpush1.bf16.msra.mxu0 %v6700
    %6723 = vmatprep.subr.bf16.mxu0 0
    %6724 = vmatpush1.bf16.msra.mxu0 %v6701
    %6725 = vmatprep.subr.bf16.mxu0 0
    %6726 = vmatpush1.bf16.msra.mxu0 %v6702
    %6727 = vmatprep.subr.bf16.mxu0 0
    %6728 = vmatpush1.bf16.msra.mxu0 0
    %6729 = vmatprep.subr.bf16.mxu0 0
    %6730 = vmatpush1.bf16.msra.mxu0 0
    %6731 = vmatprep.subr.bf16.mxu0 0
    %6732 = vmatpush1.bf16.msra.mxu0 0
    %6733 = vmatprep.subr.bf16.mxu0 0
    %6734 = vmatpush1.bf16.msra.mxu0 0
    %6735 = vmatprep.subr.bf16.mxu0 0
    %6736 = vmatpush1.bf16.msra.mxu0 0
    %6737 = vmatprep.subr.bf16.mxu0 0
    %6738 = vmatpush1.bf16.msra.mxu0 0
    %6739 = vmatprep.subr.bf16.mxu0 0
    %6740 = vmatpush1.bf16.msra.mxu0 0
    %6741 = vmatprep.subr.bf16.mxu0 0
    %6742 = vmatpush1.bf16.msra.mxu0 0
    %6743 = vmatprep.mubr.bf16.mxu0 0
    %6744 = vmatmul.mubr.bf16.gmra.mrb[0].mxu0 %v6640
    %v6745 = vpop.f32.mrb[0].mxu0
    %v6746 = vadd.f32 0.0, %v6745
    %v6747 = vpop.f32.mrb[0].mxu0
    %v6748 = vpop.f32.mrb[0].mxu0
    %v6749 = vadd.f32 0.0, %v6748
    %v6750 = vpop.f32.mrb[0].mxu0
    %6751 = vmatprep.mubr.bf16.mxu0 0
    %6752 = vmatmul.mubr.bf16.gmra.mrb[0].mxu0 %v6641
    %v6753 = vpop.f32.mrb[0].mxu0
    %v6754 = vadd.f32 0.0, %v6753
    %v6755 = vpop.f32.mrb[0].mxu0
    %v6756 = vpop.f32.mrb[0].mxu0
    %v6757 = vadd.f32 0.0, %v6756
    %v6758 = vpop.f32.mrb[0].mxu0
    %6759 = vmatprep.mubr.bf16.mxu0 0
    %6760 = vmatmul.mubr.bf16.gmra.mrb[0].mxu0 %v6642
    %v6761 = vpop.f32.mrb[0].mxu0
    %v6762 = vadd.f32 0.0, %v6761
    %v6763 = vpop.f32.mrb[0].mxu0
    %v6764 = vpop.f32.mrb[0].mxu0
    %v6765 = vadd.f32 0.0, %v6764
    %v6766 = vpop.f32.mrb[0].mxu0
    %6767 = vmatprep.mubr.bf16.mxu0 0
    %6768 = vmatmul.mubr.bf16.gmra.mrb[0].mxu0 %v6643
    %v6769 = vpop.f32.mrb[0].mxu0
    %v6770 = vadd.f32 0.0, %v6769
    %v6771 = vpop.f32.mrb[0].mxu0
    %v6772 = vpop.f32.mrb[0].mxu0
    %v6773 = vadd.f32 0.0, %v6772
    %v6774 = vpop.f32.mrb[0].mxu0
    %6775 = vmatprep.mubr.bf16.mxu0 0
    %6776 = vmatmul.mubr.bf16.gmra.mrb[0].mxu0 %v6644
    %v6777 = vpop.f32.mrb[0].mxu0
    %v6778 = vadd.f32 0.0, %v6777
    %v6779 = vpop.f32.mrb[0].mxu0
    %v6780 = vpop.f32.mrb[0].mxu0
    %v6781 = vadd.f32 0.0, %v6780
    %v6782 = vpop.f32.mrb[0].mxu0
    %6783 = vmatprep.mubr.bf16.mxu0 0
    %6784 = vmatmul.mubr.bf16.gmra.mrb[0].mxu0 %v6645
    %v6785 = vpop.f32.mrb[0].mxu0
    %v6786 = vadd.f32 0.0, %v6785
    %v6787 = vpop.f32.mrb[0].mxu0
    %v6788 = vpop.f32.mrb[0].mxu0
    %v6789 = vpop.f32.mrb[0].mxu0
    %6790 = vdwg.mxu0
    %v6791 = vadd.f32 %v6617, %v6746
    %v6792 = vadd.f32 %v6618, %v6749
    %v6793 = vadd.f32 %v6619, %v6754
    %v6794 = vadd.f32 %v6620, %v6757
    %v6795 = vadd.f32 %v6621, %v6762
    %v6796 = vadd.f32 %v6622, %v6765
    %v6797 = vadd.f32 %v6623, %v6770
    %v6798 = vadd.f32 %v6624, %v6773
    %v6799 = vadd.f32 %v6625, %v6778
    %v6800 = vadd.f32 %v6626, %v6781
    %v6801 = vadd.f32 %v6627, %v6786
    %v6803 = vlaneseq
    %v6804 = vshrl.u32 %v6803, 7
    %v6805 = vsub.s32 0, %v6804
    %v6806 = vrot.slane %v5229, %v6805
    %v6808 = vadd.f32 %v6791, %v6806
    %v6809 = vadd.f32 %v6792, %v6806
    %v6810 = vadd.f32 %v6793, %v6806
    %v6811 = vadd.f32 %v6794, %v6806
    %v6812 = vadd.f32 %v6795, %v6806
    %v6813 = vadd.f32 %v6796, %v6806
    %v6814 = vadd.f32 %v6797, %v6806
    %v6815 = vadd.f32 %v6798, %v6806
    %v6816 = vadd.f32 %v6799, %v6806
    %v6817 = vadd.f32 %v6800, %v6806
    %v6818 = vadd.f32 %v6801, %v6806
    %v6819 = vmax.f32 %v6808, 0.0
    %v6820 = vmax.f32 %v6809, 0.0
    %v6821 = vmax.f32 %v6810, 0.0
    %v6822 = vmax.f32 %v6811, 0.0
    %v6823 = vmax.f32 %v6812, 0.0
    %v6824 = vmax.f32 %v6813, 0.0
    %v6825 = vmax.f32 %v6814, 0.0
    %v6826 = vmax.f32 %v6815, 0.0
    %v6827 = vmax.f32 %v6816, 0.0
    %v6828 = vmax.f32 %v6817, 0.0
    %v6829 = vmax.f32 %v6818, 0.0
    %6830 = vst [vmem:[#allocation3] sm:$0xff] %v6819
    %6831 = vst [vmem:[#allocation3 + $0x8] sm:$0xff] %v6820
    %6832 = vst [vmem:[#allocation3 + $0x10] sm:$0xff] %v6821
    %6833 = vst [vmem:[#allocation3 + $0x18] sm:$0xff] %v6822
    %6834 = vst [vmem:[#allocation3 + $0x20] sm:$0xff] %v6823
    %6835 = vst [vmem:[#allocation3 + $0x28] sm:$0xff] %v6824
    %6836 = vst [vmem:[#allocation3 + $0x30] sm:$0xff] %v6825
    %6837 = vst [vmem:[#allocation3 + $0x38] sm:$0xff] %v6826
    %6838 = vst [vmem:[#allocation3 + $0x40] sm:$0xff] %v6827
    %6839 = vst [vmem:[#allocation3 + $0x48] sm:$0xff] %v6828
    %6840 = vst [vmem:[#allocation3 + $0x50] sm:$0x3f] %v6829
    %s6841 = scalar_lea.vmem [#allocation2], 224
    %v6842 = vld [vmem:[%s6841] ss:$2 sm:$0xff]
    %s6843 = scalar_lea.vmem [#allocation2], 240
    %v6844 = vld [vmem:[%s6843] ss:$2 sm:$0xff]
    %s6845 = scalar_lea.vmem [#allocation2], 256
    %v6846 = vld [vmem:[%s6845] ss:$2 sm:$0xff]
    %s6847 = scalar_lea.vmem [#allocation2], 272
    %v6848 = vld [vmem:[%s6847] ss:$2 sm:$0xff]
    %s6849 = scalar_lea.vmem [#allocation2], 288
    %v6850 = vld [vmem:[%s6849] ss:$2 sm:$0xff]
    %s6851 = scalar_lea.vmem [#allocation2], 304
    %v6852 = vld [vmem:[%s6851] ss:$2 sm:$0xff]
    %s6853 = scalar_lea.vmem [#allocation2], 320
    %v6854 = vld [vmem:[%s6853] ss:$2 sm:$0xff]
    %s6855 = scalar_lea.vmem [#allocation2], 336
    %v6856 = vld [vmem:[%s6855] ss:$2 sm:$0xff]
    %s6857 = scalar_lea.vmem [#allocation2], 352
    %v6858 = vld [vmem:[%s6857] ss:$2 sm:$0xff]
    %s6859 = scalar_lea.vmem [#allocation2], 368
    %v6860 = vld [vmem:[%s6859] ss:$2 sm:$0xff]
    %s6861 = scalar_lea.vmem [#allocation2], 384
    %v6862 = vld [vmem:[%s6861] ss:$2 sm:$0x3f]
    %v6863 = vpack.c.bf16 %v6844, %v6842
    %v6864 = vpack.c.bf16 %v6848, %v6846
    %v6865 = vpack.c.bf16 %v6852, %v6850
    %v6866 = vpack.c.bf16 %v6856, %v6854
    %v6867 = vpack.c.bf16 %v6860, %v6858
    %v6868 = vpack.c.bf16 %v6862, %v6862
    %v6869 = vld [vmem:[%s3] sm:$0xf]
    %v6870 = vld [vmem:[%s3 + $0x4] sm:$0xf]
    %v6871 = vld [vmem:[%s3 + $0x8] sm:$0xf]
    %v6872 = vld [vmem:[%s3 + $0xc] sm:$0xf]
    %v6873 = vld [vmem:[%s3 + $0x10] sm:$0xf]
    %v6874 = vld [vmem:[%s3 + $0x14] sm:$0xf]
    %v6875 = vld [vmem:[%s3 + $0x18] sm:$0xf]
    %v6876 = vld [vmem:[%s3 + $0x1c] sm:$0xf]
    %v6877 = vld [vmem:[%s3 + $0x20] sm:$0xf]
    %v6878 = vld [vmem:[%s3 + $0x24] sm:$0xf]
    %v6879 = vld [vmem:[%s3 + $0x28] sm:$0xf]
    %v6880 = vld [vmem:[%s3 + $0x2c] sm:$0xf]
    %v6881 = vld [vmem:[%s3 + $0x30] sm:$0xf]
    %v6882 = vld [vmem:[%s3 + $0x34] sm:$0xf]
    %v6883 = vld [vmem:[%s3 + $0x38] sm:$0xf]
    %v6884 = vld [vmem:[%s3 + $0x3c] sm:$0xf]
    %s6885 = scalar_lea.vmem [#allocation2], 225
    %v6886 = vld [vmem:[%s6885] ss:$2 sm:$0xff]
    %s6887 = scalar_lea.vmem [#allocation2], 241
    %v6888 = vld [vmem:[%s6887] ss:$2 sm:$0xff]
    %s6889 = scalar_lea.vmem [#allocation2], 257
    %v6890 = vld [vmem:[%s6889] ss:$2 sm:$0xff]
    %s6891 = scalar_lea.vmem [#allocation2], 273
    %v6892 = vld [vmem:[%s6891] ss:$2 sm:$0xff]
    %s6893 = scalar_lea.vmem [#allocation2], 289
    %v6894 = vld [vmem:[%s6893] ss:$2 sm:$0xff]
    %s6895 = scalar_lea.vmem [#allocation2], 305
    %v6896 = vld [vmem:[%s6895] ss:$2 sm:$0xff]
    %s6897 = scalar_lea.vmem [#allocation2], 321
    %v6898 = vld [vmem:[%s6897] ss:$2 sm:$0xff]
    %s6899 = scalar_lea.vmem [#allocation2], 337
    %v6900 = vld [vmem:[%s6899] ss:$2 sm:$0xff]
    %s6901 = scalar_lea.vmem [#allocation2], 353
    %v6902 = vld [vmem:[%s6901] ss:$2 sm:$0xff]
    %s6903 = scalar_lea.vmem [#allocation2], 369
    %v6904 = vld [vmem:[%s6903] ss:$2 sm:$0xff]
    %s6905 = scalar_lea.vmem [#allocation2], 385
    %v6906 = vld [vmem:[%s6905] ss:$2 sm:$0x3f]
    %v6907 = vpack.c.bf16 %v6888, %v6886
    %v6908 = vpack.c.bf16 %v6892, %v6890
    %v6909 = vpack.c.bf16 %v6896, %v6894
    %v6910 = vpack.c.bf16 %v6900, %v6898
    %v6911 = vpack.c.bf16 %v6904, %v6902
    %v6912 = vpack.c.bf16 %v6906, %v6906
    %v6913 = vld [vmem:[%s5301] sm:$0xf]
    %v6914 = vld [vmem:[%s5301 + $0x4] sm:$0xf]
    %v6915 = vld [vmem:[%s5301 + $0x8] sm:$0xf]
    %v6916 = vld [vmem:[%s5301 + $0xc] sm:$0xf]
    %v6917 = vld [vmem:[%s5301 + $0x10] sm:$0xf]
    %v6918 = vld [vmem:[%s5301 + $0x14] sm:$0xf]
    %v6919 = vld [vmem:[%s5301 + $0x18] sm:$0xf]
    %v6920 = vld [vmem:[%s5301 + $0x1c] sm:$0xf]
    %v6921 = vld [vmem:[%s5301 + $0x20] sm:$0xf]
    %v6922 = vld [vmem:[%s5301 + $0x24] sm:$0xf]
    %v6923 = vld [vmem:[%s5301 + $0x28] sm:$0xf]
    %v6924 = vld [vmem:[%s5301 + $0x2c] sm:$0xf]
    %v6925 = vld [vmem:[%s5301 + $0x30] sm:$0xf]
    %v6926 = vld [vmem:[%s5301 + $0x34] sm:$0xf]
    %v6927 = vld [vmem:[%s5301 + $0x38] sm:$0xf]
    %v6928 = vld [vmem:[%s5301 + $0x3c] sm:$0xf]
    %v6945 = vunpack.c.l.b16 %v6913
    %v6946 = vunpack.c.l.b16 %v6914
    %v6947 = vunpack.c.l.b16 %v6915
    %v6948 = vunpack.c.l.b16 %v6916
    %v6949 = vunpack.c.l.b16 %v6917
    %v6950 = vunpack.c.l.b16 %v6918
    %v6951 = vunpack.c.l.b16 %v6919
    %v6952 = vunpack.c.l.b16 %v6920
    %v6953 = vunpack.c.l.b16 %v6921
    %v6954 = vunpack.c.l.b16 %v6922
    %v6955 = vunpack.c.l.b16 %v6923
    %v6956 = vunpack.c.l.b16 %v6924
    %v6957 = vunpack.c.l.b16 %v6925
    %v6958 = vunpack.c.l.b16 %v6926
    %v6959 = vunpack.c.l.b16 %v6927
    %v6960 = vunpack.c.l.b16 %v6928
    %v6961 = vpack.c.b16 %v6946, %v6945
    %v6962 = vpack.c.b16 %v6948, %v6947
    %v6963 = vpack.c.b16 %v6950, %v6949
    %v6964 = vpack.c.b16 %v6952, %v6951
    %v6965 = vpack.c.b16 %v6954, %v6953
    %v6966 = vpack.c.b16 %v6956, %v6955
    %v6967 = vpack.c.b16 %v6958, %v6957
    %v6968 = vpack.c.b16 %v6960, %v6959
    %6977 = vmatprep.subr.bf16.mxu0 0
    %6978 = vmatpush1.bf16.msra.mxu0 %v6961
    %6979 = vmatprep.subr.bf16.mxu0 0
    %6980 = vmatpush1.bf16.msra.mxu0 %v6962
    %6981 = vmatprep.subr.bf16.mxu0 0
    %6982 = vmatpush1.bf16.msra.mxu0 %v6963
    %6983 = vmatprep.subr.bf16.mxu0 0
    %6984 = vmatpush1.bf16.msra.mxu0 %v6964
    %6985 = vmatprep.subr.bf16.mxu0 0
    %6986 = vmatpush1.bf16.msra.mxu0 %v6965
    %6987 = vmatprep.subr.bf16.mxu0 0
    %6988 = vmatpush1.bf16.msra.mxu0 %v6966
    %6989 = vmatprep.subr.bf16.mxu0 0
    %6990 = vmatpush1.bf16.msra.mxu0 %v6967
    %6991 = vmatprep.subr.bf16.mxu0 0
    %6992 = vmatpush1.bf16.msra.mxu0 %v6968
    %6993 = vmatprep.subr.bf16.mxu0 0
    %6994 = vmatpush1.bf16.msra.mxu0 0
    %6995 = vmatprep.subr.bf16.mxu0 0
    %6996 = vmatpush1.bf16.msra.mxu0 0
    %6997 = vmatprep.subr.bf16.mxu0 0
    %6998 = vmatpush1.bf16.msra.mxu0 0
    %6999 = vmatprep.subr.bf16.mxu0 0
    %7000 = vmatpush1.bf16.msra.mxu0 0
    %7001 = vmatprep.subr.bf16.mxu0 0
    %7002 = vmatpush1.bf16.msra.mxu0 0
    %7003 = vmatprep.subr.bf16.mxu0 0
    %7004 = vmatpush1.bf16.msra.mxu0 0
    %7005 = vmatprep.subr.bf16.mxu0 0
    %7006 = vmatpush1.bf16.msra.mxu0 0
    %7007 = vmatprep.subr.bf16.mxu0 0
    %7008 = vmatpush1.bf16.msra.mxu0 0
    %7009 = vmatprep.mubr.bf16.mxu0 0
    %7010 = vmatmul.mubr.bf16.gmra.mrb[0].mxu0 %v6907
    %v7011 = vpop.f32.mrb[0].mxu0
    %v7012 = vadd.f32 0.0, %v7011
    %v7013 = vpop.f32.mrb[0].mxu0
    %v7014 = vpop.f32.mrb[0].mxu0
    %v7015 = vadd.f32 0.0, %v7014
    %v7016 = vpop.f32.mrb[0].mxu0
    %7017 = vmatprep.mubr.bf16.mxu0 0
    %7018 = vmatmul.mubr.bf16.gmra.mrb[0].mxu0 %v6908
    %v7019 = vpop.f32.mrb[0].mxu0
    %v7020 = vadd.f32 0.0, %v7019
    %v7021 = vpop.f32.mrb[0].mxu0
    %v7022 = vpop.f32.mrb[0].mxu0
    %v7023 = vadd.f32 0.0, %v7022
    %v7024 = vpop.f32.mrb[0].mxu0
    %7025 = vmatprep.mubr.bf16.mxu0 0
    %7026 = vmatmul.mubr.bf16.gmra.mrb[0].mxu0 %v6909
    %v7027 = vpop.f32.mrb[0].mxu0
    %v7028 = vadd.f32 0.0, %v7027
    %v7029 = vpop.f32.mrb[0].mxu0
    %v7030 = vpop.f32.mrb[0].mxu0
    %v7031 = vadd.f32 0.0, %v7030
    %v7032 = vpop.f32.mrb[0].mxu0
    %7033 = vmatprep.mubr.bf16.mxu0 0
    %7034 = vmatmul.mubr.bf16.gmra.mrb[0].mxu0 %v6910
    %v7035 = vpop.f32.mrb[0].mxu0
    %v7036 = vadd.f32 0.0, %v7035
    %v7037 = vpop.f32.mrb[0].mxu0
    %v7038 = vpop.f32.mrb[0].mxu0
    %v7039 = vadd.f32 0.0, %v7038
    %v7040 = vpop.f32.mrb[0].mxu0
    %7041 = vmatprep.mubr.bf16.mxu0 0
    %7042 = vmatmul.mubr.bf16.gmra.mrb[0].mxu0 %v6911
    %v7043 = vpop.f32.mrb[0].mxu0
    %v7044 = vadd.f32 0.0, %v7043
    %v7045 = vpop.f32.mrb[0].mxu0
    %v7046 = vpop.f32.mrb[0].mxu0
    %v7047 = vadd.f32 0.0, %v7046
    %v7048 = vpop.f32.mrb[0].mxu0
    %7049 = vmatprep.mubr.bf16.mxu0 0
    %7050 = vmatmul.mubr.bf16.gmra.mrb[0].mxu0 %v6912
    %v7051 = vpop.f32.mrb[0].mxu0
    %v7052 = vadd.f32 0.0, %v7051
    %v7053 = vpop.f32.mrb[0].mxu0
    %v7054 = vpop.f32.mrb[0].mxu0
    %v7055 = vpop.f32.mrb[0].mxu0
    %7056 = vdwg.mxu0
    %v7073 = vunpack.c.l.b16 %v6869
    %v7074 = vunpack.c.l.b16 %v6870
    %v7075 = vunpack.c.l.b16 %v6871
    %v7076 = vunpack.c.l.b16 %v6872
    %v7077 = vunpack.c.l.b16 %v6873
    %v7078 = vunpack.c.l.b16 %v6874
    %v7079 = vunpack.c.l.b16 %v6875
    %v7080 = vunpack.c.l.b16 %v6876
    %v7081 = vunpack.c.l.b16 %v6877
    %v7082 = vunpack.c.l.b16 %v6878
    %v7083 = vunpack.c.l.b16 %v6879
    %v7084 = vunpack.c.l.b16 %v6880
    %v7085 = vunpack.c.l.b16 %v6881
    %v7086 = vunpack.c.l.b16 %v6882
    %v7087 = vunpack.c.l.b16 %v6883
    %v7088 = vunpack.c.l.b16 %v6884
    %v7089 = vpack.c.b16 %v7074, %v7073
    %v7090 = vpack.c.b16 %v7076, %v7075
    %v7091 = vpack.c.b16 %v7078, %v7077
    %v7092 = vpack.c.b16 %v7080, %v7079
    %v7093 = vpack.c.b16 %v7082, %v7081
    %v7094 = vpack.c.b16 %v7084, %v7083
    %v7095 = vpack.c.b16 %v7086, %v7085
    %v7096 = vpack.c.b16 %v7088, %v7087
    %7105 = vmatprep.subr.bf16.mxu0 0
    %7106 = vmatpush1.bf16.msra.mxu0 %v7089
    %7107 = vmatprep.subr.bf16.mxu0 0
    %7108 = vmatpush1.bf16.msra.mxu0 %v7090
    %7109 = vmatprep.subr.bf16.mxu0 0
    %7110 = vmatpush1.bf16.msra.mxu0 %v7091
    %7111 = vmatprep.subr.bf16.mxu0 0
    %7112 = vmatpush1.bf16.msra.mxu0 %v7092
    %7113 = vmatprep.subr.bf16.mxu0 0
    %7114 = vmatpush1.bf16.msra.mxu0 %v7093
    %7115 = vmatprep.subr.bf16.mxu0 0
    %7116 = vmatpush1.bf16.msra.mxu0 %v7094
    %7117 = vmatprep.subr.bf16.mxu0 0
    %7118 = vmatpush1.bf16.msra.mxu0 %v7095
    %7119 = vmatprep.subr.bf16.mxu0 0
    %7120 = vmatpush1.bf16.msra.mxu0 %v7096
    %7121 = vmatprep.subr.bf16.mxu0 0
    %7122 = vmatpush1.bf16.msra.mxu0 0
    %7123 = vmatprep.subr.bf16.mxu0 0
    %7124 = vmatpush1.bf16.msra.mxu0 0
    %7125 = vmatprep.subr.bf16.mxu0 0
    %7126 = vmatpush1.bf16.msra.mxu0 0
    %7127 = vmatprep.subr.bf16.mxu0 0
    %7128 = vmatpush1.bf16.msra.mxu0 0
    %7129 = vmatprep.subr.bf16.mxu0 0
    %7130 = vmatpush1.bf16.msra.mxu0 0
    %7131 = vmatprep.subr.bf16.mxu0 0
    %7132 = vmatpush1.bf16.msra.mxu0 0
    %7133 = vmatprep.subr.bf16.mxu0 0
    %7134 = vmatpush1.bf16.msra.mxu0 0
    %7135 = vmatprep.subr.bf16.mxu0 0
    %7136 = vmatpush1.bf16.msra.mxu0 0
    %7137 = vmatprep.mubr.bf16.mxu0 0
    %7138 = vmatmul.mubr.bf16.gmra.mrb[0].mxu0 %v6863
    %v7139 = vpop.f32.mrb[0].mxu0
    %v7140 = vadd.f32 %v7012, %v7139
    %v7141 = vpop.f32.mrb[0].mxu0
    %v7142 = vpop.f32.mrb[0].mxu0
    %v7143 = vadd.f32 %v7015, %v7142
    %v7144 = vpop.f32.mrb[0].mxu0
    %7145 = vmatprep.mubr.bf16.mxu0 0
    %7146 = vmatmul.mubr.bf16.gmra.mrb[0].mxu0 %v6864
    %v7147 = vpop.f32.mrb[0].mxu0
    %v7148 = vadd.f32 %v7020, %v7147
    %v7149 = vpop.f32.mrb[0].mxu0
    %v7150 = vpop.f32.mrb[0].mxu0
    %v7151 = vadd.f32 %v7023, %v7150
    %v7152 = vpop.f32.mrb[0].mxu0
    %7153 = vmatprep.mubr.bf16.mxu0 0
    %7154 = vmatmul.mubr.bf16.gmra.mrb[0].mxu0 %v6865
    %v7155 = vpop.f32.mrb[0].mxu0
    %v7156 = vadd.f32 %v7028, %v7155
    %v7157 = vpop.f32.mrb[0].mxu0
    %v7158 = vpop.f32.mrb[0].mxu0
    %v7159 = vadd.f32 %v7031, %v7158
    %v7160 = vpop.f32.mrb[0].mxu0
    %7161 = vmatprep.mubr.bf16.mxu0 0
    %7162 = vmatmul.mubr.bf16.gmra.mrb[0].mxu0 %v6866
    %v7163 = vpop.f32.mrb[0].mxu0
    %v7164 = vadd.f32 %v7036, %v7163
    %v7165 = vpop.f32.mrb[0].mxu0
    %v7166 = vpop.f32.mrb[0].mxu0
    %v7167 = vadd.f32 %v7039, %v7166
    %v7168 = vpop.f32.mrb[0].mxu0
    %7169 = vmatprep.mubr.bf16.mxu0 0
    %7170 = vmatmul.mubr.bf16.gmra.mrb[0].mxu0 %v6867
    %v7171 = vpop.f32.mrb[0].mxu0
    %v7172 = vadd.f32 %v7044, %v7171
    %v7173 = vpop.f32.mrb[0].mxu0
    %v7174 = vpop.f32.mrb[0].mxu0
    %v7175 = vadd.f32 %v7047, %v7174
    %v7176 = vpop.f32.mrb[0].mxu0
    %7177 = vmatprep.mubr.bf16.mxu0 0
    %7178 = vmatmul.mubr.bf16.gmra.mrb[0].mxu0 %v6868
    %v7179 = vpop.f32.mrb[0].mxu0
    %v7180 = vadd.f32 %v7052, %v7179
    %v7181 = vpop.f32.mrb[0].mxu0
    %v7182 = vpop.f32.mrb[0].mxu0
    %v7183 = vpop.f32.mrb[0].mxu0
    %7184 = vdwg.mxu0
    %s7185 = scalar_lea.vmem [#allocation2], 226
    %v7186 = vld [vmem:[%s7185] ss:$2 sm:$0xff]
    %s7187 = scalar_lea.vmem [#allocation2], 242
    %v7188 = vld [vmem:[%s7187] ss:$2 sm:$0xff]
    %s7189 = scalar_lea.vmem [#allocation2], 258
    %v7190 = vld [vmem:[%s7189] ss:$2 sm:$0xff]
    %s7191 = scalar_lea.vmem [#allocation2], 274
    %v7192 = vld [vmem:[%s7191] ss:$2 sm:$0xff]
    %s7193 = scalar_lea.vmem [#allocation2], 290
    %v7194 = vld [vmem:[%s7193] ss:$2 sm:$0xff]
    %s7195 = scalar_lea.vmem [#allocation2], 306
    %v7196 = vld [vmem:[%s7195] ss:$2 sm:$0xff]
    %s7197 = scalar_lea.vmem [#allocation2], 322
    %v7198 = vld [vmem:[%s7197] ss:$2 sm:$0xff]
    %s7199 = scalar_lea.vmem [#allocation2], 338
    %v7200 = vld [vmem:[%s7199] ss:$2 sm:$0xff]
    %s7201 = scalar_lea.vmem [#allocation2], 354
    %v7202 = vld [vmem:[%s7201] ss:$2 sm:$0xff]
    %s7203 = scalar_lea.vmem [#allocation2], 370
    %v7204 = vld [vmem:[%s7203] ss:$2 sm:$0xff]
    %s7205 = scalar_lea.vmem [#allocation2], 386
    %v7206 = vld [vmem:[%s7205] ss:$2 sm:$0x3f]
    %v7207 = vpack.c.bf16 %v7188, %v7186
    %v7208 = vpack.c.bf16 %v7192, %v7190
    %v7209 = vpack.c.bf16 %v7196, %v7194
    %v7210 = vpack.c.bf16 %v7200, %v7198
    %v7211 = vpack.c.bf16 %v7204, %v7202
    %v7212 = vpack.c.bf16 %v7206, %v7206
    %v7213 = vld [vmem:[%s5602] sm:$0xf]
    %v7214 = vld [vmem:[%s5602 + $0x4] sm:$0xf]
    %v7215 = vld [vmem:[%s5602 + $0x8] sm:$0xf]
    %v7216 = vld [vmem:[%s5602 + $0xc] sm:$0xf]
    %v7217 = vld [vmem:[%s5602 + $0x10] sm:$0xf]
    %v7218 = vld [vmem:[%s5602 + $0x14] sm:$0xf]
    %v7219 = vld [vmem:[%s5602 + $0x18] sm:$0xf]
    %v7220 = vld [vmem:[%s5602 + $0x1c] sm:$0xf]
    %v7221 = vld [vmem:[%s5602 + $0x20] sm:$0xf]
    %v7222 = vld [vmem:[%s5602 + $0x24] sm:$0xf]
    %v7223 = vld [vmem:[%s5602 + $0x28] sm:$0xf]
    %v7224 = vld [vmem:[%s5602 + $0x2c] sm:$0xf]
    %v7225 = vld [vmem:[%s5602 + $0x30] sm:$0xf]
    %v7226 = vld [vmem:[%s5602 + $0x34] sm:$0xf]
    %v7227 = vld [vmem:[%s5602 + $0x38] sm:$0xf]
    %v7228 = vld [vmem:[%s5602 + $0x3c] sm:$0xf]
    %v7245 = vunpack.c.l.b16 %v7213
    %v7246 = vunpack.c.l.b16 %v7214
    %v7247 = vunpack.c.l.b16 %v7215
    %v7248 = vunpack.c.l.b16 %v7216
    %v7249 = vunpack.c.l.b16 %v7217
    %v7250 = vunpack.c.l.b16 %v7218
    %v7251 = vunpack.c.l.b16 %v7219
    %v7252 = vunpack.c.l.b16 %v7220
    %v7253 = vunpack.c.l.b16 %v7221
    %v7254 = vunpack.c.l.b16 %v7222
    %v7255 = vunpack.c.l.b16 %v7223
    %v7256 = vunpack.c.l.b16 %v7224
    %v7257 = vunpack.c.l.b16 %v7225
    %v7258 = vunpack.c.l.b16 %v7226
    %v7259 = vunpack.c.l.b16 %v7227
    %v7260 = vunpack.c.l.b16 %v7228
    %v7261 = vpack.c.b16 %v7246, %v7245
    %v7262 = vpack.c.b16 %v7248, %v7247
    %v7263 = vpack.c.b16 %v7250, %v7249
    %v7264 = vpack.c.b16 %v7252, %v7251
    %v7265 = vpack.c.b16 %v7254, %v7253
    %v7266 = vpack.c.b16 %v7256, %v7255
    %v7267 = vpack.c.b16 %v7258, %v7257
    %v7268 = vpack.c.b16 %v7260, %v7259
    %7277 = vmatprep.subr.bf16.mxu0 0
    %7278 = vmatpush1.bf16.msra.mxu0 %v7261
    %7279 = vmatprep.subr.bf16.mxu0 0
    %7280 = vmatpush1.bf16.msra.mxu0 %v7262
    %7281 = vmatprep.subr.bf16.mxu0 0
    %7282 = vmatpush1.bf16.msra.mxu0 %v7263
    %7283 = vmatprep.subr.bf16.mxu0 0
    %7284 = vmatpush1.bf16.msra.mxu0 %v7264
    %7285 = vmatprep.subr.bf16.mxu0 0
    %7286 = vmatpush1.bf16.msra.mxu0 %v7265
    %7287 = vmatprep.subr.bf16.mxu0 0
    %7288 = vmatpush1.bf16.msra.mxu0 %v7266
    %7289 = vmatprep.subr.bf16.mxu0 0
    %7290 = vmatpush1.bf16.msra.mxu0 %v7267
    %7291 = vmatprep.subr.bf16.mxu0 0
    %7292 = vmatpush1.bf16.msra.mxu0 %v7268
    %7293 = vmatprep.subr.bf16.mxu0 0
    %7294 = vmatpush1.bf16.msra.mxu0 0
    %7295 = vmatprep.subr.bf16.mxu0 0
    %7296 = vmatpush1.bf16.msra.mxu0 0
    %7297 = vmatprep.subr.bf16.mxu0 0
    %7298 = vmatpush1.bf16.msra.mxu0 0
    %7299 = vmatprep.subr.bf16.mxu0 0
    %7300 = vmatpush1.bf16.msra.mxu0 0
    %7301 = vmatprep.subr.bf16.mxu0 0
    %7302 = vmatpush1.bf16.msra.mxu0 0
    %7303 = vmatprep.subr.bf16.mxu0 0
    %7304 = vmatpush1.bf16.msra.mxu0 0
    %7305 = vmatprep.subr.bf16.mxu0 0
    %7306 = vmatpush1.bf16.msra.mxu0 0
    %7307 = vmatprep.subr.bf16.mxu0 0
    %7308 = vmatpush1.bf16.msra.mxu0 0
    %7309 = vmatprep.mubr.bf16.mxu0 0
    %7310 = vmatmul.mubr.bf16.gmra.mrb[0].mxu0 %v7207
    %v7311 = vpop.f32.mrb[0].mxu0
    %v7312 = vadd.f32 0.0, %v7311
    %v7313 = vpop.f32.mrb[0].mxu0
    %v7314 = vpop.f32.mrb[0].mxu0
    %v7315 = vadd.f32 0.0, %v7314
    %v7316 = vpop.f32.mrb[0].mxu0
    %7317 = vmatprep.mubr.bf16.mxu0 0
    %7318 = vmatmul.mubr.bf16.gmra.mrb[0].mxu0 %v7208
    %v7319 = vpop.f32.mrb[0].mxu0
    %v7320 = vadd.f32 0.0, %v7319
    %v7321 = vpop.f32.mrb[0].mxu0
    %v7322 = vpop.f32.mrb[0].mxu0
    %v7323 = vadd.f32 0.0, %v7322
    %v7324 = vpop.f32.mrb[0].mxu0
    %7325 = vmatprep.mubr.bf16.mxu0 0
    %7326 = vmatmul.mubr.bf16.gmra.mrb[0].mxu0 %v7209
    %v7327 = vpop.f32.mrb[0].mxu0
    %v7328 = vadd.f32 0.0, %v7327
    %v7329 = vpop.f32.mrb[0].mxu0
    %v7330 = vpop.f32.mrb[0].mxu0
    %v7331 = vadd.f32 0.0, %v7330
    %v7332 = vpop.f32.mrb[0].mxu0
    %7333 = vmatprep.mubr.bf16.mxu0 0
    %7334 = vmatmul.mubr.bf16.gmra.mrb[0].mxu0 %v7210
    %v7335 = vpop.f32.mrb[0].mxu0
    %v7336 = vadd.f32 0.0, %v7335
    %v7337 = vpop.f32.mrb[0].mxu0
    %v7338 = vpop.f32.mrb[0].mxu0
    %v7339 = vadd.f32 0.0, %v7338
    %v7340 = vpop.f32.mrb[0].mxu0
    %7341 = vmatprep.mubr.bf16.mxu0 0
    %7342 = vmatmul.mubr.bf16.gmra.mrb[0].mxu0 %v7211
    %v7343 = vpop.f32.mrb[0].mxu0
    %v7344 = vadd.f32 0.0, %v7343
    %v7345 = vpop.f32.mrb[0].mxu0
    %v7346 = vpop.f32.mrb[0].mxu0
    %v7347 = vadd.f32 0.0, %v7346
    %v7348 = vpop.f32.mrb[0].mxu0
    %7349 = vmatprep.mubr.bf16.mxu0 0
    %7350 = vmatmul.mubr.bf16.gmra.mrb[0].mxu0 %v7212
    %v7351 = vpop.f32.mrb[0].mxu0
    %v7352 = vadd.f32 0.0, %v7351
    %v7353 = vpop.f32.mrb[0].mxu0
    %v7354 = vpop.f32.mrb[0].mxu0
    %v7355 = vpop.f32.mrb[0].mxu0
    %7356 = vdwg.mxu0
    %v7357 = vadd.f32 %v7140, %v7312
    %v7358 = vadd.f32 %v7143, %v7315
    %v7359 = vadd.f32 %v7148, %v7320
    %v7360 = vadd.f32 %v7151, %v7323
    %v7361 = vadd.f32 %v7156, %v7328
    %v7362 = vadd.f32 %v7159, %v7331
    %v7363 = vadd.f32 %v7164, %v7336
    %v7364 = vadd.f32 %v7167, %v7339
    %v7365 = vadd.f32 %v7172, %v7344
    %v7366 = vadd.f32 %v7175, %v7347
    %v7367 = vadd.f32 %v7180, %v7352
    %v7368 = vld [vmem:[%s6843] ss:$2 sm:$0xff]
    %v7369 = vld [vmem:[%s6845] ss:$2 sm:$0xff]
    %v7370 = vld [vmem:[%s6847] ss:$2 sm:$0xff]
    %v7371 = vld [vmem:[%s6849] ss:$2 sm:$0xff]
    %v7372 = vld [vmem:[%s6851] ss:$2 sm:$0xff]
    %v7373 = vld [vmem:[%s6853] ss:$2 sm:$0xff]
    %v7374 = vld [vmem:[%s6855] ss:$2 sm:$0xff]
    %v7375 = vld [vmem:[%s6857] ss:$2 sm:$0xff]
    %v7376 = vld [vmem:[%s6859] ss:$2 sm:$0xff]
    %v7377 = vld [vmem:[%s6861] ss:$2 sm:$0xff]
    %s7378 = scalar_lea.vmem [#allocation2], 400
    %v7379 = vld [vmem:[%s7378] ss:$2 sm:$0x3f]
    %v7380 = vpack.c.bf16 %v7369, %v7368
    %v7381 = vpack.c.bf16 %v7371, %v7370
    %v7382 = vpack.c.bf16 %v7373, %v7372
    %v7383 = vpack.c.bf16 %v7375, %v7374
    %v7384 = vpack.c.bf16 %v7377, %v7376
    %v7385 = vpack.c.bf16 %v7379, %v7379
    %v7386 = vld [vmem:[%s5776] sm:$0xf]
    %v7387 = vld [vmem:[%s5776 + $0x4] sm:$0xf]
    %v7388 = vld [vmem:[%s5776 + $0x8] sm:$0xf]
    %v7389 = vld [vmem:[%s5776 + $0xc] sm:$0xf]
    %v7390 = vld [vmem:[%s5776 + $0x10] sm:$0xf]
    %v7391 = vld [vmem:[%s5776 + $0x14] sm:$0xf]
    %v7392 = vld [vmem:[%s5776 + $0x18] sm:$0xf]
    %v7393 = vld [vmem:[%s5776 + $0x1c] sm:$0xf]
    %v7394 = vld [vmem:[%s5776 + $0x20] sm:$0xf]
    %v7395 = vld [vmem:[%s5776 + $0x24] sm:$0xf]
    %v7396 = vld [vmem:[%s5776 + $0x28] sm:$0xf]
    %v7397 = vld [vmem:[%s5776 + $0x2c] sm:$0xf]
    %v7398 = vld [vmem:[%s5776 + $0x30] sm:$0xf]
    %v7399 = vld [vmem:[%s5776 + $0x34] sm:$0xf]
    %v7400 = vld [vmem:[%s5776 + $0x38] sm:$0xf]
    %v7401 = vld [vmem:[%s5776 + $0x3c] sm:$0xf]
    %v7418 = vunpack.c.l.b16 %v7386
    %v7419 = vunpack.c.l.b16 %v7387
    %v7420 = vunpack.c.l.b16 %v7388
    %v7421 = vunpack.c.l.b16 %v7389
    %v7422 = vunpack.c.l.b16 %v7390
    %v7423 = vunpack.c.l.b16 %v7391
    %v7424 = vunpack.c.l.b16 %v7392
    %v7425 = vunpack.c.l.b16 %v7393
    %v7426 = vunpack.c.l.b16 %v7394
    %v7427 = vunpack.c.l.b16 %v7395
    %v7428 = vunpack.c.l.b16 %v7396
    %v7429 = vunpack.c.l.b16 %v7397
    %v7430 = vunpack.c.l.b16 %v7398
    %v7431 = vunpack.c.l.b16 %v7399
    %v7432 = vunpack.c.l.b16 %v7400
    %v7433 = vunpack.c.l.b16 %v7401
    %v7434 = vpack.c.b16 %v7419, %v7418
    %v7435 = vpack.c.b16 %v7421, %v7420
    %v7436 = vpack.c.b16 %v7423, %v7422
    %v7437 = vpack.c.b16 %v7425, %v7424
    %v7438 = vpack.c.b16 %v7427, %v7426
    %v7439 = vpack.c.b16 %v7429, %v7428
    %v7440 = vpack.c.b16 %v7431, %v7430
    %v7441 = vpack.c.b16 %v7433, %v7432
    %7450 = vmatprep.subr.bf16.mxu0 0
    %7451 = vmatpush1.bf16.msra.mxu0 %v7434
    %7452 = vmatprep.subr.bf16.mxu0 0
    %7453 = vmatpush1.bf16.msra.mxu0 %v7435
    %7454 = vmatprep.subr.bf16.mxu0 0
    %7455 = vmatpush1.bf16.msra.mxu0 %v7436
    %7456 = vmatprep.subr.bf16.mxu0 0
    %7457 = vmatpush1.bf16.msra.mxu0 %v7437
    %7458 = vmatprep.subr.bf16.mxu0 0
    %7459 = vmatpush1.bf16.msra.mxu0 %v7438
    %7460 = vmatprep.subr.bf16.mxu0 0
    %7461 = vmatpush1.bf16.msra.mxu0 %v7439
    %7462 = vmatprep.subr.bf16.mxu0 0
    %7463 = vmatpush1.bf16.msra.mxu0 %v7440
    %7464 = vmatprep.subr.bf16.mxu0 0
    %7465 = vmatpush1.bf16.msra.mxu0 %v7441
    %7466 = vmatprep.subr.bf16.mxu0 0
    %7467 = vmatpush1.bf16.msra.mxu0 0
    %7468 = vmatprep.subr.bf16.mxu0 0
    %7469 = vmatpush1.bf16.msra.mxu0 0
    %7470 = vmatprep.subr.bf16.mxu0 0
    %7471 = vmatpush1.bf16.msra.mxu0 0
    %7472 = vmatprep.subr.bf16.mxu0 0
    %7473 = vmatpush1.bf16.msra.mxu0 0
    %7474 = vmatprep.subr.bf16.mxu0 0
    %7475 = vmatpush1.bf16.msra.mxu0 0
    %7476 = vmatprep.subr.bf16.mxu0 0
    %7477 = vmatpush1.bf16.msra.mxu0 0
    %7478 = vmatprep.subr.bf16.mxu0 0
    %7479 = vmatpush1.bf16.msra.mxu0 0
    %7480 = vmatprep.subr.bf16.mxu0 0
    %7481 = vmatpush1.bf16.msra.mxu0 0
    %7482 = vmatprep.mubr.bf16.mxu0 0
    %7483 = vmatmul.mubr.bf16.gmra.mrb[0].mxu0 %v7380
    %v7484 = vpop.f32.mrb[0].mxu0
    %v7485 = vadd.f32 0.0, %v7484
    %v7486 = vpop.f32.mrb[0].mxu0
    %v7487 = vpop.f32.mrb[0].mxu0
    %v7488 = vadd.f32 0.0, %v7487
    %v7489 = vpop.f32.mrb[0].mxu0
    %7490 = vmatprep.mubr.bf16.mxu0 0
    %7491 = vmatmul.mubr.bf16.gmra.mrb[0].mxu0 %v7381
    %v7492 = vpop.f32.mrb[0].mxu0
    %v7493 = vadd.f32 0.0, %v7492
    %v7494 = vpop.f32.mrb[0].mxu0
    %v7495 = vpop.f32.mrb[0].mxu0
    %v7496 = vadd.f32 0.0, %v7495
    %v7497 = vpop.f32.mrb[0].mxu0
    %7498 = vmatprep.mubr.bf16.mxu0 0
    %7499 = vmatmul.mubr.bf16.gmra.mrb[0].mxu0 %v7382
    %v7500 = vpop.f32.mrb[0].mxu0
    %v7501 = vadd.f32 0.0, %v7500
    %v7502 = vpop.f32.mrb[0].mxu0
    %v7503 = vpop.f32.mrb[0].mxu0
    %v7504 = vadd.f32 0.0, %v7503
    %v7505 = vpop.f32.mrb[0].mxu0
    %7506 = vmatprep.mubr.bf16.mxu0 0
    %7507 = vmatmul.mubr.bf16.gmra.mrb[0].mxu0 %v7383
    %v7508 = vpop.f32.mrb[0].mxu0
    %v7509 = vadd.f32 0.0, %v7508
    %v7510 = vpop.f32.mrb[0].mxu0
    %v7511 = vpop.f32.mrb[0].mxu0
    %v7512 = vadd.f32 0.0, %v7511
    %v7513 = vpop.f32.mrb[0].mxu0
    %7514 = vmatprep.mubr.bf16.mxu0 0
    %7515 = vmatmul.mubr.bf16.gmra.mrb[0].mxu0 %v7384
    %v7516 = vpop.f32.mrb[0].mxu0
    %v7517 = vadd.f32 0.0, %v7516
    %v7518 = vpop.f32.mrb[0].mxu0
    %v7519 = vpop.f32.mrb[0].mxu0
    %v7520 = vadd.f32 0.0, %v7519
    %v7521 = vpop.f32.mrb[0].mxu0
    %7522 = vmatprep.mubr.bf16.mxu0 0
    %7523 = vmatmul.mubr.bf16.gmra.mrb[0].mxu0 %v7385
    %v7524 = vpop.f32.mrb[0].mxu0
    %v7525 = vadd.f32 0.0, %v7524
    %v7526 = vpop.f32.mrb[0].mxu0
    %v7527 = vpop.f32.mrb[0].mxu0
    %v7528 = vpop.f32.mrb[0].mxu0
    %7529 = vdwg.mxu0
    %v7530 = vadd.f32 %v7357, %v7485
    %v7531 = vadd.f32 %v7358, %v7488
    %v7532 = vadd.f32 %v7359, %v7493
    %v7533 = vadd.f32 %v7360, %v7496
    %v7534 = vadd.f32 %v7361, %v7501
    %v7535 = vadd.f32 %v7362, %v7504
    %v7536 = vadd.f32 %v7363, %v7509
    %v7537 = vadd.f32 %v7364, %v7512
    %v7538 = vadd.f32 %v7365, %v7517
    %v7539 = vadd.f32 %v7366, %v7520
    %v7540 = vadd.f32 %v7367, %v7525
    %v7541 = vld [vmem:[%s6887] ss:$2 sm:$0xff]
    %v7542 = vld [vmem:[%s6889] ss:$2 sm:$0xff]
    %v7543 = vld [vmem:[%s6891] ss:$2 sm:$0xff]
    %v7544 = vld [vmem:[%s6893] ss:$2 sm:$0xff]
    %v7545 = vld [vmem:[%s6895] ss:$2 sm:$0xff]
    %v7546 = vld [vmem:[%s6897] ss:$2 sm:$0xff]
    %v7547 = vld [vmem:[%s6899] ss:$2 sm:$0xff]
    %v7548 = vld [vmem:[%s6901] ss:$2 sm:$0xff]
    %v7549 = vld [vmem:[%s6903] ss:$2 sm:$0xff]
    %v7550 = vld [vmem:[%s6905] ss:$2 sm:$0xff]
    %s7551 = scalar_lea.vmem [#allocation2], 401
    %v7552 = vld [vmem:[%s7551] ss:$2 sm:$0x3f]
    %v7553 = vpack.c.bf16 %v7542, %v7541
    %v7554 = vpack.c.bf16 %v7544, %v7543
    %v7555 = vpack.c.bf16 %v7546, %v7545
    %v7556 = vpack.c.bf16 %v7548, %v7547
    %v7557 = vpack.c.bf16 %v7550, %v7549
    %v7558 = vpack.c.bf16 %v7552, %v7552
    %v7559 = vld [vmem:[%s5950] sm:$0xf]
    %v7560 = vld [vmem:[%s5950 + $0x4] sm:$0xf]
    %v7561 = vld [vmem:[%s5950 + $0x8] sm:$0xf]
    %v7562 = vld [vmem:[%s5950 + $0xc] sm:$0xf]
    %v7563 = vld [vmem:[%s5950 + $0x10] sm:$0xf]
    %v7564 = vld [vmem:[%s5950 + $0x14] sm:$0xf]
    %v7565 = vld [vmem:[%s5950 + $0x18] sm:$0xf]
    %v7566 = vld [vmem:[%s5950 + $0x1c] sm:$0xf]
    %v7567 = vld [vmem:[%s5950 + $0x20] sm:$0xf]
    %v7568 = vld [vmem:[%s5950 + $0x24] sm:$0xf]
    %v7569 = vld [vmem:[%s5950 + $0x28] sm:$0xf]
    %v7570 = vld [vmem:[%s5950 + $0x2c] sm:$0xf]
    %v7571 = vld [vmem:[%s5950 + $0x30] sm:$0xf]
    %v7572 = vld [vmem:[%s5950 + $0x34] sm:$0xf]
    %v7573 = vld [vmem:[%s5950 + $0x38] sm:$0xf]
    %v7574 = vld [vmem:[%s5950 + $0x3c] sm:$0xf]
    %v7591 = vunpack.c.l.b16 %v7559
    %v7592 = vunpack.c.l.b16 %v7560
    %v7593 = vunpack.c.l.b16 %v7561
    %v7594 = vunpack.c.l.b16 %v7562
    %v7595 = vunpack.c.l.b16 %v7563
    %v7596 = vunpack.c.l.b16 %v7564
    %v7597 = vunpack.c.l.b16 %v7565
    %v7598 = vunpack.c.l.b16 %v7566
    %v7599 = vunpack.c.l.b16 %v7567
    %v7600 = vunpack.c.l.b16 %v7568
    %v7601 = vunpack.c.l.b16 %v7569
    %v7602 = vunpack.c.l.b16 %v7570
    %v7603 = vunpack.c.l.b16 %v7571
    %v7604 = vunpack.c.l.b16 %v7572
    %v7605 = vunpack.c.l.b16 %v7573
    %v7606 = vunpack.c.l.b16 %v7574
    %v7607 = vpack.c.b16 %v7592, %v7591
    %v7608 = vpack.c.b16 %v7594, %v7593
    %v7609 = vpack.c.b16 %v7596, %v7595
    %v7610 = vpack.c.b16 %v7598, %v7597
    %v7611 = vpack.c.b16 %v7600, %v7599
    %v7612 = vpack.c.b16 %v7602, %v7601
    %v7613 = vpack.c.b16 %v7604, %v7603
    %v7614 = vpack.c.b16 %v7606, %v7605
    %7623 = vmatprep.subr.bf16.mxu0 0
    %7624 = vmatpush1.bf16.msra.mxu0 %v7607
    %7625 = vmatprep.subr.bf16.mxu0 0
    %7626 = vmatpush1.bf16.msra.mxu0 %v7608
    %7627 = vmatprep.subr.bf16.mxu0 0
    %7628 = vmatpush1.bf16.msra.mxu0 %v7609
    %7629 = vmatprep.subr.bf16.mxu0 0
    %7630 = vmatpush1.bf16.msra.mxu0 %v7610
    %7631 = vmatprep.subr.bf16.mxu0 0
    %7632 = vmatpush1.bf16.msra.mxu0 %v7611
    %7633 = vmatprep.subr.bf16.mxu0 0
    %7634 = vmatpush1.bf16.msra.mxu0 %v7612
    %7635 = vmatprep.subr.bf16.mxu0 0
    %7636 = vmatpush1.bf16.msra.mxu0 %v7613
    %7637 = vmatprep.subr.bf16.mxu0 0
    %7638 = vmatpush1.bf16.msra.mxu0 %v7614
    %7639 = vmatprep.subr.bf16.mxu0 0
    %7640 = vmatpush1.bf16.msra.mxu0 0
    %7641 = vmatprep.subr.bf16.mxu0 0
    %7642 = vmatpush1.bf16.msra.mxu0 0
    %7643 = vmatprep.subr.bf16.mxu0 0
    %7644 = vmatpush1.bf16.msra.mxu0 0
    %7645 = vmatprep.subr.bf16.mxu0 0
    %7646 = vmatpush1.bf16.msra.mxu0 0
    %7647 = vmatprep.subr.bf16.mxu0 0
    %7648 = vmatpush1.bf16.msra.mxu0 0
    %7649 = vmatprep.subr.bf16.mxu0 0
    %7650 = vmatpush1.bf16.msra.mxu0 0
    %7651 = vmatprep.subr.bf16.mxu0 0
    %7652 = vmatpush1.bf16.msra.mxu0 0
    %7653 = vmatprep.subr.bf16.mxu0 0
    %7654 = vmatpush1.bf16.msra.mxu0 0
    %7655 = vmatprep.mubr.bf16.mxu0 0
    %7656 = vmatmul.mubr.bf16.gmra.mrb[0].mxu0 %v7553
    %v7657 = vpop.f32.mrb[0].mxu0
    %v7658 = vadd.f32 0.0, %v7657
    %v7659 = vpop.f32.mrb[0].mxu0
    %v7660 = vpop.f32.mrb[0].mxu0
    %v7661 = vadd.f32 0.0, %v7660
    %v7662 = vpop.f32.mrb[0].mxu0
    %7663 = vmatprep.mubr.bf16.mxu0 0
    %7664 = vmatmul.mubr.bf16.gmra.mrb[0].mxu0 %v7554
    %v7665 = vpop.f32.mrb[0].mxu0
    %v7666 = vadd.f32 0.0, %v7665
    %v7667 = vpop.f32.mrb[0].mxu0
    %v7668 = vpop.f32.mrb[0].mxu0
    %v7669 = vadd.f32 0.0, %v7668
    %v7670 = vpop.f32.mrb[0].mxu0
    %7671 = vmatprep.mubr.bf16.mxu0 0
    %7672 = vmatmul.mubr.bf16.gmra.mrb[0].mxu0 %v7555
    %v7673 = vpop.f32.mrb[0].mxu0
    %v7674 = vadd.f32 0.0, %v7673
    %v7675 = vpop.f32.mrb[0].mxu0
    %v7676 = vpop.f32.mrb[0].mxu0
    %v7677 = vadd.f32 0.0, %v7676
    %v7678 = vpop.f32.mrb[0].mxu0
    %7679 = vmatprep.mubr.bf16.mxu0 0
    %7680 = vmatmul.mubr.bf16.gmra.mrb[0].mxu0 %v7556
    %v7681 = vpop.f32.mrb[0].mxu0
    %v7682 = vadd.f32 0.0, %v7681
    %v7683 = vpop.f32.mrb[0].mxu0
    %v7684 = vpop.f32.mrb[0].mxu0
    %v7685 = vadd.f32 0.0, %v7684
    %v7686 = vpop.f32.mrb[0].mxu0
    %7687 = vmatprep.mubr.bf16.mxu0 0
    %7688 = vmatmul.mubr.bf16.gmra.mrb[0].mxu0 %v7557
    %v7689 = vpop.f32.mrb[0].mxu0
    %v7690 = vadd.f32 0.0, %v7689
    %v7691 = vpop.f32.mrb[0].mxu0
    %v7692 = vpop.f32.mrb[0].mxu0
    %v7693 = vadd.f32 0.0, %v7692
    %v7694 = vpop.f32.mrb[0].mxu0
    %7695 = vmatprep.mubr.bf16.mxu0 0
    %7696 = vmatmul.mubr.bf16.gmra.mrb[0].mxu0 %v7558
    %v7697 = vpop.f32.mrb[0].mxu0
    %v7698 = vadd.f32 0.0, %v7697
    %v7699 = vpop.f32.mrb[0].mxu0
    %v7700 = vpop.f32.mrb[0].mxu0
    %v7701 = vpop.f32.mrb[0].mxu0
    %7702 = vdwg.mxu0
    %v7703 = vadd.f32 %v7530, %v7658
    %v7704 = vadd.f32 %v7531, %v7661
    %v7705 = vadd.f32 %v7532, %v7666
    %v7706 = vadd.f32 %v7533, %v7669
    %v7707 = vadd.f32 %v7534, %v7674
    %v7708 = vadd.f32 %v7535, %v7677
    %v7709 = vadd.f32 %v7536, %v7682
    %v7710 = vadd.f32 %v7537, %v7685
    %v7711 = vadd.f32 %v7538, %v7690
    %v7712 = vadd.f32 %v7539, %v7693
    %v7713 = vadd.f32 %v7540, %v7698
    %v7714 = vld [vmem:[%s7187] ss:$2 sm:$0xff]
    %v7715 = vld [vmem:[%s7189] ss:$2 sm:$0xff]
    %v7716 = vld [vmem:[%s7191] ss:$2 sm:$0xff]
    %v7717 = vld [vmem:[%s7193] ss:$2 sm:$0xff]
    %v7718 = vld [vmem:[%s7195] ss:$2 sm:$0xff]
    %v7719 = vld [vmem:[%s7197] ss:$2 sm:$0xff]
    %v7720 = vld [vmem:[%s7199] ss:$2 sm:$0xff]
    %v7721 = vld [vmem:[%s7201] ss:$2 sm:$0xff]
    %v7722 = vld [vmem:[%s7203] ss:$2 sm:$0xff]
    %v7723 = vld [vmem:[%s7205] ss:$2 sm:$0xff]
    %s7724 = scalar_lea.vmem [#allocation2], 402
    %v7725 = vld [vmem:[%s7724] ss:$2 sm:$0x3f]
    %v7726 = vpack.c.bf16 %v7715, %v7714
    %v7727 = vpack.c.bf16 %v7717, %v7716
    %v7728 = vpack.c.bf16 %v7719, %v7718
    %v7729 = vpack.c.bf16 %v7721, %v7720
    %v7730 = vpack.c.bf16 %v7723, %v7722
    %v7731 = vpack.c.bf16 %v7725, %v7725
    %v7732 = vld [vmem:[%s6124] sm:$0xf]
    %v7733 = vld [vmem:[%s6124 + $0x4] sm:$0xf]
    %v7734 = vld [vmem:[%s6124 + $0x8] sm:$0xf]
    %v7735 = vld [vmem:[%s6124 + $0xc] sm:$0xf]
    %v7736 = vld [vmem:[%s6124 + $0x10] sm:$0xf]
    %v7737 = vld [vmem:[%s6124 + $0x14] sm:$0xf]
    %v7738 = vld [vmem:[%s6124 + $0x18] sm:$0xf]
    %v7739 = vld [vmem:[%s6124 + $0x1c] sm:$0xf]
    %v7740 = vld [vmem:[%s6124 + $0x20] sm:$0xf]
    %v7741 = vld [vmem:[%s6124 + $0x24] sm:$0xf]
    %v7742 = vld [vmem:[%s6124 + $0x28] sm:$0xf]
    %v7743 = vld [vmem:[%s6124 + $0x2c] sm:$0xf]
    %v7744 = vld [vmem:[%s6124 + $0x30] sm:$0xf]
    %v7745 = vld [vmem:[%s6124 + $0x34] sm:$0xf]
    %v7746 = vld [vmem:[%s6124 + $0x38] sm:$0xf]
    %v7747 = vld [vmem:[%s6124 + $0x3c] sm:$0xf]
    %v7764 = vunpack.c.l.b16 %v7732
    %v7765 = vunpack.c.l.b16 %v7733
    %v7766 = vunpack.c.l.b16 %v7734
    %v7767 = vunpack.c.l.b16 %v7735
    %v7768 = vunpack.c.l.b16 %v7736
    %v7769 = vunpack.c.l.b16 %v7737
    %v7770 = vunpack.c.l.b16 %v7738
    %v7771 = vunpack.c.l.b16 %v7739
    %v7772 = vunpack.c.l.b16 %v7740
    %v7773 = vunpack.c.l.b16 %v7741
    %v7774 = vunpack.c.l.b16 %v7742
    %v7775 = vunpack.c.l.b16 %v7743
    %v7776 = vunpack.c.l.b16 %v7744
    %v7777 = vunpack.c.l.b16 %v7745
    %v7778 = vunpack.c.l.b16 %v7746
    %v7779 = vunpack.c.l.b16 %v7747
    %v7780 = vpack.c.b16 %v7765, %v7764
    %v7781 = vpack.c.b16 %v7767, %v7766
    %v7782 = vpack.c.b16 %v7769, %v7768
    %v7783 = vpack.c.b16 %v7771, %v7770
    %v7784 = vpack.c.b16 %v7773, %v7772
    %v7785 = vpack.c.b16 %v7775, %v7774
    %v7786 = vpack.c.b16 %v7777, %v7776
    %v7787 = vpack.c.b16 %v7779, %v7778
    %7796 = vmatprep.subr.bf16.mxu0 0
    %7797 = vmatpush1.bf16.msra.mxu0 %v7780
    %7798 = vmatprep.subr.bf16.mxu0 0
    %7799 = vmatpush1.bf16.msra.mxu0 %v7781
    %7800 = vmatprep.subr.bf16.mxu0 0
    %7801 = vmatpush1.bf16.msra.mxu0 %v7782
    %7802 = vmatprep.subr.bf16.mxu0 0
    %7803 = vmatpush1.bf16.msra.mxu0 %v7783
    %7804 = vmatprep.subr.bf16.mxu0 0
    %7805 = vmatpush1.bf16.msra.mxu0 %v7784
    %7806 = vmatprep.subr.bf16.mxu0 0
    %7807 = vmatpush1.bf16.msra.mxu0 %v7785
    %7808 = vmatprep.subr.bf16.mxu0 0
    %7809 = vmatpush1.bf16.msra.mxu0 %v7786
    %7810 = vmatprep.subr.bf16.mxu0 0
    %7811 = vmatpush1.bf16.msra.mxu0 %v7787
    %7812 = vmatprep.subr.bf16.mxu0 0
    %7813 = vmatpush1.bf16.msra.mxu0 0
    %7814 = vmatprep.subr.bf16.mxu0 0
    %7815 = vmatpush1.bf16.msra.mxu0 0
    %7816 = vmatprep.subr.bf16.mxu0 0
    %7817 = vmatpush1.bf16.msra.mxu0 0
    %7818 = vmatprep.subr.bf16.mxu0 0
    %7819 = vmatpush1.bf16.msra.mxu0 0
    %7820 = vmatprep.subr.bf16.mxu0 0
    %7821 = vmatpush1.bf16.msra.mxu0 0
    %7822 = vmatprep.subr.bf16.mxu0 0
    %7823 = vmatpush1.bf16.msra.mxu0 0
    %7824 = vmatprep.subr.bf16.mxu0 0
    %7825 = vmatpush1.bf16.msra.mxu0 0
    %7826 = vmatprep.subr.bf16.mxu0 0
    %7827 = vmatpush1.bf16.msra.mxu0 0
    %7828 = vmatprep.mubr.bf16.mxu0 0
    %7829 = vmatmul.mubr.bf16.gmra.mrb[0].mxu0 %v7726
    %v7830 = vpop.f32.mrb[0].mxu0
    %v7831 = vadd.f32 0.0, %v7830
    %v7832 = vpop.f32.mrb[0].mxu0
    %v7833 = vpop.f32.mrb[0].mxu0
    %v7834 = vadd.f32 0.0, %v7833
    %v7835 = vpop.f32.mrb[0].mxu0
    %7836 = vmatprep.mubr.bf16.mxu0 0
    %7837 = vmatmul.mubr.bf16.gmra.mrb[0].mxu0 %v7727
    %v7838 = vpop.f32.mrb[0].mxu0
    %v7839 = vadd.f32 0.0, %v7838
    %v7840 = vpop.f32.mrb[0].mxu0
    %v7841 = vpop.f32.mrb[0].mxu0
    %v7842 = vadd.f32 0.0, %v7841
    %v7843 = vpop.f32.mrb[0].mxu0
    %7844 = vmatprep.mubr.bf16.mxu0 0
    %7845 = vmatmul.mubr.bf16.gmra.mrb[0].mxu0 %v7728
    %v7846 = vpop.f32.mrb[0].mxu0
    %v7847 = vadd.f32 0.0, %v7846
    %v7848 = vpop.f32.mrb[0].mxu0
    %v7849 = vpop.f32.mrb[0].mxu0
    %v7850 = vadd.f32 0.0, %v7849
    %v7851 = vpop.f32.mrb[0].mxu0
    %7852 = vmatprep.mubr.bf16.mxu0 0
    %7853 = vmatmul.mubr.bf16.gmra.mrb[0].mxu0 %v7729
    %v7854 = vpop.f32.mrb[0].mxu0
    %v7855 = vadd.f32 0.0, %v7854
    %v7856 = vpop.f32.mrb[0].mxu0
    %v7857 = vpop.f32.mrb[0].mxu0
    %v7858 = vadd.f32 0.0, %v7857
    %v7859 = vpop.f32.mrb[0].mxu0
    %7860 = vmatprep.mubr.bf16.mxu0 0
    %7861 = vmatmul.mubr.bf16.gmra.mrb[0].mxu0 %v7730
    %v7862 = vpop.f32.mrb[0].mxu0
    %v7863 = vadd.f32 0.0, %v7862
    %v7864 = vpop.f32.mrb[0].mxu0
    %v7865 = vpop.f32.mrb[0].mxu0
    %v7866 = vadd.f32 0.0, %v7865
    %v7867 = vpop.f32.mrb[0].mxu0
    %7868 = vmatprep.mubr.bf16.mxu0 0
    %7869 = vmatmul.mubr.bf16.gmra.mrb[0].mxu0 %v7731
    %v7870 = vpop.f32.mrb[0].mxu0
    %v7871 = vadd.f32 0.0, %v7870
    %v7872 = vpop.f32.mrb[0].mxu0
    %v7873 = vpop.f32.mrb[0].mxu0
    %v7874 = vpop.f32.mrb[0].mxu0
    %7875 = vdwg.mxu0
    %v7876 = vadd.f32 %v7703, %v7831
    %v7877 = vadd.f32 %v7704, %v7834
    %v7878 = vadd.f32 %v7705, %v7839
    %v7879 = vadd.f32 %v7706, %v7842
    %v7880 = vadd.f32 %v7707, %v7847
    %v7881 = vadd.f32 %v7708, %v7850
    %v7882 = vadd.f32 %v7709, %v7855
    %v7883 = vadd.f32 %v7710, %v7858
    %v7884 = vadd.f32 %v7711, %v7863
    %v7885 = vadd.f32 %v7712, %v7866
    %v7886 = vadd.f32 %v7713, %v7871
    %v7887 = vld [vmem:[%s6845] ss:$2 sm:$0xff]
    %v7888 = vld [vmem:[%s6847] ss:$2 sm:$0xff]
    %v7889 = vld [vmem:[%s6849] ss:$2 sm:$0xff]
    %v7890 = vld [vmem:[%s6851] ss:$2 sm:$0xff]
    %v7891 = vld [vmem:[%s6853] ss:$2 sm:$0xff]
    %v7892 = vld [vmem:[%s6855] ss:$2 sm:$0xff]
    %v7893 = vld [vmem:[%s6857] ss:$2 sm:$0xff]
    %v7894 = vld [vmem:[%s6859] ss:$2 sm:$0xff]
    %v7895 = vld [vmem:[%s6861] ss:$2 sm:$0xff]
    %v7896 = vld [vmem:[%s7378] ss:$2 sm:$0xff]
    %s7897 = scalar_lea.vmem [#allocation2], 416
    %v7898 = vld [vmem:[%s7897] ss:$2 sm:$0x3f]
    %v7899 = vpack.c.bf16 %v7888, %v7887
    %v7900 = vpack.c.bf16 %v7890, %v7889
    %v7901 = vpack.c.bf16 %v7892, %v7891
    %v7902 = vpack.c.bf16 %v7894, %v7893
    %v7903 = vpack.c.bf16 %v7896, %v7895
    %v7904 = vpack.c.bf16 %v7898, %v7898
    %v7905 = vld [vmem:[%s6298] sm:$0xf]
    %v7906 = vld [vmem:[%s6298 + $0x4] sm:$0xf]
    %v7907 = vld [vmem:[%s6298 + $0x8] sm:$0xf]
    %v7908 = vld [vmem:[%s6298 + $0xc] sm:$0xf]
    %v7909 = vld [vmem:[%s6298 + $0x10] sm:$0xf]
    %v7910 = vld [vmem:[%s6298 + $0x14] sm:$0xf]
    %v7911 = vld [vmem:[%s6298 + $0x18] sm:$0xf]
    %v7912 = vld [vmem:[%s6298 + $0x1c] sm:$0xf]
    %v7913 = vld [vmem:[%s6298 + $0x20] sm:$0xf]
    %v7914 = vld [vmem:[%s6298 + $0x24] sm:$0xf]
    %v7915 = vld [vmem:[%s6298 + $0x28] sm:$0xf]
    %v7916 = vld [vmem:[%s6298 + $0x2c] sm:$0xf]
    %v7917 = vld [vmem:[%s6298 + $0x30] sm:$0xf]
    %v7918 = vld [vmem:[%s6298 + $0x34] sm:$0xf]
    %v7919 = vld [vmem:[%s6298 + $0x38] sm:$0xf]
    %v7920 = vld [vmem:[%s6298 + $0x3c] sm:$0xf]
    %v7937 = vunpack.c.l.b16 %v7905
    %v7938 = vunpack.c.l.b16 %v7906
    %v7939 = vunpack.c.l.b16 %v7907
    %v7940 = vunpack.c.l.b16 %v7908
    %v7941 = vunpack.c.l.b16 %v7909
    %v7942 = vunpack.c.l.b16 %v7910
    %v7943 = vunpack.c.l.b16 %v7911
    %v7944 = vunpack.c.l.b16 %v7912
    %v7945 = vunpack.c.l.b16 %v7913
    %v7946 = vunpack.c.l.b16 %v7914
    %v7947 = vunpack.c.l.b16 %v7915
    %v7948 = vunpack.c.l.b16 %v7916
    %v7949 = vunpack.c.l.b16 %v7917
    %v7950 = vunpack.c.l.b16 %v7918
    %v7951 = vunpack.c.l.b16 %v7919
    %v7952 = vunpack.c.l.b16 %v7920
    %v7953 = vpack.c.b16 %v7938, %v7937
    %v7954 = vpack.c.b16 %v7940, %v7939
    %v7955 = vpack.c.b16 %v7942, %v7941
    %v7956 = vpack.c.b16 %v7944, %v7943
    %v7957 = vpack.c.b16 %v7946, %v7945
    %v7958 = vpack.c.b16 %v7948, %v7947
    %v7959 = vpack.c.b16 %v7950, %v7949
    %v7960 = vpack.c.b16 %v7952, %v7951
    %7969 = vmatprep.subr.bf16.mxu0 0
    %7970 = vmatpush1.bf16.msra.mxu0 %v7953
    %7971 = vmatprep.subr.bf16.mxu0 0
    %7972 = vmatpush1.bf16.msra.mxu0 %v7954
    %7973 = vmatprep.subr.bf16.mxu0 0
    %7974 = vmatpush1.bf16.msra.mxu0 %v7955
    %7975 = vmatprep.subr.bf16.mxu0 0
    %7976 = vmatpush1.bf16.msra.mxu0 %v7956
    %7977 = vmatprep.subr.bf16.mxu0 0
    %7978 = vmatpush1.bf16.msra.mxu0 %v7957
    %7979 = vmatprep.subr.bf16.mxu0 0
    %7980 = vmatpush1.bf16.msra.mxu0 %v7958
    %7981 = vmatprep.subr.bf16.mxu0 0
    %7982 = vmatpush1.bf16.msra.mxu0 %v7959
    %7983 = vmatprep.subr.bf16.mxu0 0
    %7984 = vmatpush1.bf16.msra.mxu0 %v7960
    %7985 = vmatprep.subr.bf16.mxu0 0
    %7986 = vmatpush1.bf16.msra.mxu0 0
    %7987 = vmatprep.subr.bf16.mxu0 0
    %7988 = vmatpush1.bf16.msra.mxu0 0
    %7989 = vmatprep.subr.bf16.mxu0 0
    %7990 = vmatpush1.bf16.msra.mxu0 0
    %7991 = vmatprep.subr.bf16.mxu0 0
    %7992 = vmatpush1.bf16.msra.mxu0 0
    %7993 = vmatprep.subr.bf16.mxu0 0
    %7994 = vmatpush1.bf16.msra.mxu0 0
    %7995 = vmatprep.subr.bf16.mxu0 0
    %7996 = vmatpush1.bf16.msra.mxu0 0
    %7997 = vmatprep.subr.bf16.mxu0 0
    %7998 = vmatpush1.bf16.msra.mxu0 0
    %7999 = vmatprep.subr.bf16.mxu0 0
    %8000 = vmatpush1.bf16.msra.mxu0 0
    %8001 = vmatprep.mubr.bf16.mxu0 0
    %8002 = vmatmul.mubr.bf16.gmra.mrb[0].mxu0 %v7899
    %v8003 = vpop.f32.mrb[0].mxu0
    %v8004 = vadd.f32 0.0, %v8003
    %v8005 = vpop.f32.mrb[0].mxu0
    %v8006 = vpop.f32.mrb[0].mxu0
    %v8007 = vadd.f32 0.0, %v8006
    %v8008 = vpop.f32.mrb[0].mxu0
    %8009 = vmatprep.mubr.bf16.mxu0 0
    %8010 = vmatmul.mubr.bf16.gmra.mrb[0].mxu0 %v7900
    %v8011 = vpop.f32.mrb[0].mxu0
    %v8012 = vadd.f32 0.0, %v8011
    %v8013 = vpop.f32.mrb[0].mxu0
    %v8014 = vpop.f32.mrb[0].mxu0
    %v8015 = vadd.f32 0.0, %v8014
    %v8016 = vpop.f32.mrb[0].mxu0
    %8017 = vmatprep.mubr.bf16.mxu0 0
    %8018 = vmatmul.mubr.bf16.gmra.mrb[0].mxu0 %v7901
    %v8019 = vpop.f32.mrb[0].mxu0
    %v8020 = vadd.f32 0.0, %v8019
    %v8021 = vpop.f32.mrb[0].mxu0
    %v8022 = vpop.f32.mrb[0].mxu0
    %v8023 = vadd.f32 0.0, %v8022
    %v8024 = vpop.f32.mrb[0].mxu0
    %8025 = vmatprep.mubr.bf16.mxu0 0
    %8026 = vmatmul.mubr.bf16.gmra.mrb[0].mxu0 %v7902
    %v8027 = vpop.f32.mrb[0].mxu0
    %v8028 = vadd.f32 0.0, %v8027
    %v8029 = vpop.f32.mrb[0].mxu0
    %v8030 = vpop.f32.mrb[0].mxu0
    %v8031 = vadd.f32 0.0, %v8030
    %v8032 = vpop.f32.mrb[0].mxu0
    %8033 = vmatprep.mubr.bf16.mxu0 0
    %8034 = vmatmul.mubr.bf16.gmra.mrb[0].mxu0 %v7903
    %v8035 = vpop.f32.mrb[0].mxu0
    %v8036 = vadd.f32 0.0, %v8035
    %v8037 = vpop.f32.mrb[0].mxu0
    %v8038 = vpop.f32.mrb[0].mxu0
    %v8039 = vadd.f32 0.0, %v8038
    %v8040 = vpop.f32.mrb[0].mxu0
    %8041 = vmatprep.mubr.bf16.mxu0 0
    %8042 = vmatmul.mubr.bf16.gmra.mrb[0].mxu0 %v7904
    %v8043 = vpop.f32.mrb[0].mxu0
    %v8044 = vadd.f32 0.0, %v8043
    %v8045 = vpop.f32.mrb[0].mxu0
    %v8046 = vpop.f32.mrb[0].mxu0
    %v8047 = vpop.f32.mrb[0].mxu0
    %8048 = vdwg.mxu0
    %v8049 = vadd.f32 %v7876, %v8004
    %v8050 = vadd.f32 %v7877, %v8007
    %v8051 = vadd.f32 %v7878, %v8012
    %v8052 = vadd.f32 %v7879, %v8015
    %v8053 = vadd.f32 %v7880, %v8020
    %v8054 = vadd.f32 %v7881, %v8023
    %v8055 = vadd.f32 %v7882, %v8028
    %v8056 = vadd.f32 %v7883, %v8031
    %v8057 = vadd.f32 %v7884, %v8036
    %v8058 = vadd.f32 %v7885, %v8039
    %v8059 = vadd.f32 %v7886, %v8044
    %v8060 = vld [vmem:[%s6889] ss:$2 sm:$0xff]
    %v8061 = vld [vmem:[%s6891] ss:$2 sm:$0xff]
    %v8062 = vld [vmem:[%s6893] ss:$2 sm:$0xff]
    %v8063 = vld [vmem:[%s6895] ss:$2 sm:$0xff]
    %v8064 = vld [vmem:[%s6897] ss:$2 sm:$0xff]
    %v8065 = vld [vmem:[%s6899] ss:$2 sm:$0xff]
    %v8066 = vld [vmem:[%s6901] ss:$2 sm:$0xff]
    %v8067 = vld [vmem:[%s6903] ss:$2 sm:$0xff]
    %v8068 = vld [vmem:[%s6905] ss:$2 sm:$0xff]
    %v8069 = vld [vmem:[%s7551] ss:$2 sm:$0xff]
    %s8070 = scalar_lea.vmem [#allocation2], 417
    %v8071 = vld [vmem:[%s8070] ss:$2 sm:$0x3f]
    %v8072 = vpack.c.bf16 %v8061, %v8060
    %v8073 = vpack.c.bf16 %v8063, %v8062
    %v8074 = vpack.c.bf16 %v8065, %v8064
    %v8075 = vpack.c.bf16 %v8067, %v8066
    %v8076 = vpack.c.bf16 %v8069, %v8068
    %v8077 = vpack.c.bf16 %v8071, %v8071
    %v8078 = vld [vmem:[%s6472] sm:$0xf]
    %v8079 = vld [vmem:[%s6472 + $0x4] sm:$0xf]
    %v8080 = vld [vmem:[%s6472 + $0x8] sm:$0xf]
    %v8081 = vld [vmem:[%s6472 + $0xc] sm:$0xf]
    %v8082 = vld [vmem:[%s6472 + $0x10] sm:$0xf]
    %v8083 = vld [vmem:[%s6472 + $0x14] sm:$0xf]
    %v8084 = vld [vmem:[%s6472 + $0x18] sm:$0xf]
    %v8085 = vld [vmem:[%s6472 + $0x1c] sm:$0xf]
    %v8086 = vld [vmem:[%s6472 + $0x20] sm:$0xf]
    %v8087 = vld [vmem:[%s6472 + $0x24] sm:$0xf]
    %v8088 = vld [vmem:[%s6472 + $0x28] sm:$0xf]
    %v8089 = vld [vmem:[%s6472 + $0x2c] sm:$0xf]
    %v8090 = vld [vmem:[%s6472 + $0x30] sm:$0xf]
    %v8091 = vld [vmem:[%s6472 + $0x34] sm:$0xf]
    %v8092 = vld [vmem:[%s6472 + $0x38] sm:$0xf]
    %v8093 = vld [vmem:[%s6472 + $0x3c] sm:$0xf]
    %v8110 = vunpack.c.l.b16 %v8078
    %v8111 = vunpack.c.l.b16 %v8079
    %v8112 = vunpack.c.l.b16 %v8080
    %v8113 = vunpack.c.l.b16 %v8081
    %v8114 = vunpack.c.l.b16 %v8082
    %v8115 = vunpack.c.l.b16 %v8083
    %v8116 = vunpack.c.l.b16 %v8084
    %v8117 = vunpack.c.l.b16 %v8085
    %v8118 = vunpack.c.l.b16 %v8086
    %v8119 = vunpack.c.l.b16 %v8087
    %v8120 = vunpack.c.l.b16 %v8088
    %v8121 = vunpack.c.l.b16 %v8089
    %v8122 = vunpack.c.l.b16 %v8090
    %v8123 = vunpack.c.l.b16 %v8091
    %v8124 = vunpack.c.l.b16 %v8092
    %v8125 = vunpack.c.l.b16 %v8093
    %v8126 = vpack.c.b16 %v8111, %v8110
    %v8127 = vpack.c.b16 %v8113, %v8112
    %v8128 = vpack.c.b16 %v8115, %v8114
    %v8129 = vpack.c.b16 %v8117, %v8116
    %v8130 = vpack.c.b16 %v8119, %v8118
    %v8131 = vpack.c.b16 %v8121, %v8120
    %v8132 = vpack.c.b16 %v8123, %v8122
    %v8133 = vpack.c.b16 %v8125, %v8124
    %8142 = vmatprep.subr.bf16.mxu0 0
    %8143 = vmatpush1.bf16.msra.mxu0 %v8126
    %8144 = vmatprep.subr.bf16.mxu0 0
    %8145 = vmatpush1.bf16.msra.mxu0 %v8127
    %8146 = vmatprep.subr.bf16.mxu0 0
    %8147 = vmatpush1.bf16.msra.mxu0 %v8128
    %8148 = vmatprep.subr.bf16.mxu0 0
    %8149 = vmatpush1.bf16.msra.mxu0 %v8129
    %8150 = vmatprep.subr.bf16.mxu0 0
    %8151 = vmatpush1.bf16.msra.mxu0 %v8130
    %8152 = vmatprep.subr.bf16.mxu0 0
    %8153 = vmatpush1.bf16.msra.mxu0 %v8131
    %8154 = vmatprep.subr.bf16.mxu0 0
    %8155 = vmatpush1.bf16.msra.mxu0 %v8132
    %8156 = vmatprep.subr.bf16.mxu0 0
    %8157 = vmatpush1.bf16.msra.mxu0 %v8133
    %8158 = vmatprep.subr.bf16.mxu0 0
    %8159 = vmatpush1.bf16.msra.mxu0 0
    %8160 = vmatprep.subr.bf16.mxu0 0
    %8161 = vmatpush1.bf16.msra.mxu0 0
    %8162 = vmatprep.subr.bf16.mxu0 0
    %8163 = vmatpush1.bf16.msra.mxu0 0
    %8164 = vmatprep.subr.bf16.mxu0 0
    %8165 = vmatpush1.bf16.msra.mxu0 0
    %8166 = vmatprep.subr.bf16.mxu0 0
    %8167 = vmatpush1.bf16.msra.mxu0 0
    %8168 = vmatprep.subr.bf16.mxu0 0
    %8169 = vmatpush1.bf16.msra.mxu0 0
    %8170 = vmatprep.subr.bf16.mxu0 0
    %8171 = vmatpush1.bf16.msra.mxu0 0
    %8172 = vmatprep.subr.bf16.mxu0 0
    %8173 = vmatpush1.bf16.msra.mxu0 0
    %8174 = vmatprep.mubr.bf16.mxu0 0
    %8175 = vmatmul.mubr.bf16.gmra.mrb[0].mxu0 %v8072
    %v8176 = vpop.f32.mrb[0].mxu0
    %v8177 = vadd.f32 0.0, %v8176
    %v8178 = vpop.f32.mrb[0].mxu0
    %v8179 = vpop.f32.mrb[0].mxu0
    %v8180 = vadd.f32 0.0, %v8179
    %v8181 = vpop.f32.mrb[0].mxu0
    %8182 = vmatprep.mubr.bf16.mxu0 0
    %8183 = vmatmul.mubr.bf16.gmra.mrb[0].mxu0 %v8073
    %v8184 = vpop.f32.mrb[0].mxu0
    %v8185 = vadd.f32 0.0, %v8184
    %v8186 = vpop.f32.mrb[0].mxu0
    %v8187 = vpop.f32.mrb[0].mxu0
    %v8188 = vadd.f32 0.0, %v8187
    %v8189 = vpop.f32.mrb[0].mxu0
    %8190 = vmatprep.mubr.bf16.mxu0 0
    %8191 = vmatmul.mubr.bf16.gmra.mrb[0].mxu0 %v8074
    %v8192 = vpop.f32.mrb[0].mxu0
    %v8193 = vadd.f32 0.0, %v8192
    %v8194 = vpop.f32.mrb[0].mxu0
    %v8195 = vpop.f32.mrb[0].mxu0
    %v8196 = vadd.f32 0.0, %v8195
    %v8197 = vpop.f32.mrb[0].mxu0
    %8198 = vmatprep.mubr.bf16.mxu0 0
    %8199 = vmatmul.mubr.bf16.gmra.mrb[0].mxu0 %v8075
    %v8200 = vpop.f32.mrb[0].mxu0
    %v8201 = vadd.f32 0.0, %v8200
    %v8202 = vpop.f32.mrb[0].mxu0
    %v8203 = vpop.f32.mrb[0].mxu0
    %v8204 = vadd.f32 0.0, %v8203
    %v8205 = vpop.f32.mrb[0].mxu0
    %8206 = vmatprep.mubr.bf16.mxu0 0
    %8207 = vmatmul.mubr.bf16.gmra.mrb[0].mxu0 %v8076
    %v8208 = vpop.f32.mrb[0].mxu0
    %v8209 = vadd.f32 0.0, %v8208
    %v8210 = vpop.f32.mrb[0].mxu0
    %v8211 = vpop.f32.mrb[0].mxu0
    %v8212 = vadd.f32 0.0, %v8211
    %v8213 = vpop.f32.mrb[0].mxu0
    %8214 = vmatprep.mubr.bf16.mxu0 0
    %8215 = vmatmul.mubr.bf16.gmra.mrb[0].mxu0 %v8077
    %v8216 = vpop.f32.mrb[0].mxu0
    %v8217 = vadd.f32 0.0, %v8216
    %v8218 = vpop.f32.mrb[0].mxu0
    %v8219 = vpop.f32.mrb[0].mxu0
    %v8220 = vpop.f32.mrb[0].mxu0
    %8221 = vdwg.mxu0
    %v8222 = vadd.f32 %v8049, %v8177
    %v8223 = vadd.f32 %v8050, %v8180
    %v8224 = vadd.f32 %v8051, %v8185
    %v8225 = vadd.f32 %v8052, %v8188
    %v8226 = vadd.f32 %v8053, %v8193
    %v8227 = vadd.f32 %v8054, %v8196
    %v8228 = vadd.f32 %v8055, %v8201
    %v8229 = vadd.f32 %v8056, %v8204
    %v8230 = vadd.f32 %v8057, %v8209
    %v8231 = vadd.f32 %v8058, %v8212
    %v8232 = vadd.f32 %v8059, %v8217
    %v8233 = vld [vmem:[%s7189] ss:$2 sm:$0xff]
    %v8234 = vld [vmem:[%s7191] ss:$2 sm:$0xff]
    %v8235 = vld [vmem:[%s7193] ss:$2 sm:$0xff]
    %v8236 = vld [vmem:[%s7195] ss:$2 sm:$0xff]
    %v8237 = vld [vmem:[%s7197] ss:$2 sm:$0xff]
    %v8238 = vld [vmem:[%s7199] ss:$2 sm:$0xff]
    %v8239 = vld [vmem:[%s7201] ss:$2 sm:$0xff]
    %v8240 = vld [vmem:[%s7203] ss:$2 sm:$0xff]
    %v8241 = vld [vmem:[%s7205] ss:$2 sm:$0xff]
    %v8242 = vld [vmem:[%s7724] ss:$2 sm:$0xff]
    %s8243 = scalar_lea.vmem [#allocation2], 418
    %v8244 = vld [vmem:[%s8243] ss:$2 sm:$0x3f]
    %v8245 = vpack.c.bf16 %v8234, %v8233
    %v8246 = vpack.c.bf16 %v8236, %v8235
    %v8247 = vpack.c.bf16 %v8238, %v8237
    %v8248 = vpack.c.bf16 %v8240, %v8239
    %v8249 = vpack.c.bf16 %v8242, %v8241
    %v8250 = vpack.c.bf16 %v8244, %v8244
    %v8251 = vld [vmem:[%s6646] sm:$0xf]
    %v8252 = vld [vmem:[%s6646 + $0x4] sm:$0xf]
    %v8253 = vld [vmem:[%s6646 + $0x8] sm:$0xf]
    %v8254 = vld [vmem:[%s6646 + $0xc] sm:$0xf]
    %v8255 = vld [vmem:[%s6646 + $0x10] sm:$0xf]
    %v8256 = vld [vmem:[%s6646 + $0x14] sm:$0xf]
    %v8257 = vld [vmem:[%s6646 + $0x18] sm:$0xf]
    %v8258 = vld [vmem:[%s6646 + $0x1c] sm:$0xf]
    %v8259 = vld [vmem:[%s6646 + $0x20] sm:$0xf]
    %v8260 = vld [vmem:[%s6646 + $0x24] sm:$0xf]
    %v8261 = vld [vmem:[%s6646 + $0x28] sm:$0xf]
    %v8262 = vld [vmem:[%s6646 + $0x2c] sm:$0xf]
    %v8263 = vld [vmem:[%s6646 + $0x30] sm:$0xf]
    %v8264 = vld [vmem:[%s6646 + $0x34] sm:$0xf]
    %v8265 = vld [vmem:[%s6646 + $0x38] sm:$0xf]
    %v8266 = vld [vmem:[%s6646 + $0x3c] sm:$0xf]
    %v8283 = vunpack.c.l.b16 %v8251
    %v8284 = vunpack.c.l.b16 %v8252
    %v8285 = vunpack.c.l.b16 %v8253
    %v8286 = vunpack.c.l.b16 %v8254
    %v8287 = vunpack.c.l.b16 %v8255
    %v8288 = vunpack.c.l.b16 %v8256
    %v8289 = vunpack.c.l.b16 %v8257
    %v8290 = vunpack.c.l.b16 %v8258
    %v8291 = vunpack.c.l.b16 %v8259
    %v8292 = vunpack.c.l.b16 %v8260
    %v8293 = vunpack.c.l.b16 %v8261
    %v8294 = vunpack.c.l.b16 %v8262
    %v8295 = vunpack.c.l.b16 %v8263
    %v8296 = vunpack.c.l.b16 %v8264
    %v8297 = vunpack.c.l.b16 %v8265
    %v8298 = vunpack.c.l.b16 %v8266
    %v8299 = vpack.c.b16 %v8284, %v8283
    %v8300 = vpack.c.b16 %v8286, %v8285
    %v8301 = vpack.c.b16 %v8288, %v8287
    %v8302 = vpack.c.b16 %v8290, %v8289
    %v8303 = vpack.c.b16 %v8292, %v8291
    %v8304 = vpack.c.b16 %v8294, %v8293
    %v8305 = vpack.c.b16 %v8296, %v8295
    %v8306 = vpack.c.b16 %v8298, %v8297
    %8315 = vmatprep.subr.bf16.mxu0 0
    %8316 = vmatpush1.bf16.msra.mxu0 %v8299
    %8317 = vmatprep.subr.bf16.mxu0 0
    %8318 = vmatpush1.bf16.msra.mxu0 %v8300
    %8319 = vmatprep.subr.bf16.mxu0 0
    %8320 = vmatpush1.bf16.msra.mxu0 %v8301
    %8321 = vmatprep.subr.bf16.mxu0 0
    %8322 = vmatpush1.bf16.msra.mxu0 %v8302
    %8323 = vmatprep.subr.bf16.mxu0 0
    %8324 = vmatpush1.bf16.msra.mxu0 %v8303
    %8325 = vmatprep.subr.bf16.mxu0 0
    %8326 = vmatpush1.bf16.msra.mxu0 %v8304
    %8327 = vmatprep.subr.bf16.mxu0 0
    %8328 = vmatpush1.bf16.msra.mxu0 %v8305
    %8329 = vmatprep.subr.bf16.mxu0 0
    %8330 = vmatpush1.bf16.msra.mxu0 %v8306
    %8331 = vmatprep.subr.bf16.mxu0 0
    %8332 = vmatpush1.bf16.msra.mxu0 0
    %8333 = vmatprep.subr.bf16.mxu0 0
    %8334 = vmatpush1.bf16.msra.mxu0 0
    %8335 = vmatprep.subr.bf16.mxu0 0
    %8336 = vmatpush1.bf16.msra.mxu0 0
    %8337 = vmatprep.subr.bf16.mxu0 0
    %8338 = vmatpush1.bf16.msra.mxu0 0
    %8339 = vmatprep.subr.bf16.mxu0 0
    %8340 = vmatpush1.bf16.msra.mxu0 0
    %8341 = vmatprep.subr.bf16.mxu0 0
    %8342 = vmatpush1.bf16.msra.mxu0 0
    %8343 = vmatprep.subr.bf16.mxu0 0
    %8344 = vmatpush1.bf16.msra.mxu0 0
    %8345 = vmatprep.subr.bf16.mxu0 0
    %8346 = vmatpush1.bf16.msra.mxu0 0
    %8347 = vmatprep.mubr.bf16.mxu0 0
    %8348 = vmatmul.mubr.bf16.gmra.mrb[0].mxu0 %v8245
    %v8349 = vpop.f32.mrb[0].mxu0
    %v8350 = vadd.f32 0.0, %v8349
    %v8351 = vpop.f32.mrb[0].mxu0
    %v8352 = vpop.f32.mrb[0].mxu0
    %v8353 = vadd.f32 0.0, %v8352
    %v8354 = vpop.f32.mrb[0].mxu0
    %8355 = vmatprep.mubr.bf16.mxu0 0
    %8356 = vmatmul.mubr.bf16.gmra.mrb[0].mxu0 %v8246
    %v8357 = vpop.f32.mrb[0].mxu0
    %v8358 = vadd.f32 0.0, %v8357
    %v8359 = vpop.f32.mrb[0].mxu0
    %v8360 = vpop.f32.mrb[0].mxu0
    %v8361 = vadd.f32 0.0, %v8360
    %v8362 = vpop.f32.mrb[0].mxu0
    %8363 = vmatprep.mubr.bf16.mxu0 0
    %8364 = vmatmul.mubr.bf16.gmra.mrb[0].mxu0 %v8247
    %v8365 = vpop.f32.mrb[0].mxu0
    %v8366 = vadd.f32 0.0, %v8365
    %v8367 = vpop.f32.mrb[0].mxu0
    %v8368 = vpop.f32.mrb[0].mxu0
    %v8369 = vadd.f32 0.0, %v8368
    %v8370 = vpop.f32.mrb[0].mxu0
    %8371 = vmatprep.mubr.bf16.mxu0 0
    %8372 = vmatmul.mubr.bf16.gmra.mrb[0].mxu0 %v8248
    %v8373 = vpop.f32.mrb[0].mxu0
    %v8374 = vadd.f32 0.0, %v8373
    %v8375 = vpop.f32.mrb[0].mxu0
    %v8376 = vpop.f32.mrb[0].mxu0
    %v8377 = vadd.f32 0.0, %v8376
    %v8378 = vpop.f32.mrb[0].mxu0
    %8379 = vmatprep.mubr.bf16.mxu0 0
    %8380 = vmatmul.mubr.bf16.gmra.mrb[0].mxu0 %v8249
    %v8381 = vpop.f32.mrb[0].mxu0
    %v8382 = vadd.f32 0.0, %v8381
    %v8383 = vpop.f32.mrb[0].mxu0
    %v8384 = vpop.f32.mrb[0].mxu0
    %v8385 = vadd.f32 0.0, %v8384
    %v8386 = vpop.f32.mrb[0].mxu0
    %8387 = vmatprep.mubr.bf16.mxu0 0
    %8388 = vmatmul.mubr.bf16.gmra.mrb[0].mxu0 %v8250
    %v8389 = vpop.f32.mrb[0].mxu0
    %v8390 = vadd.f32 0.0, %v8389
    %v8391 = vpop.f32.mrb[0].mxu0
    %v8392 = vpop.f32.mrb[0].mxu0
    %v8393 = vpop.f32.mrb[0].mxu0
    %8394 = vdwg.mxu0
    %v8395 = vadd.f32 %v8222, %v8350
    %v8396 = vadd.f32 %v8223, %v8353
    %v8397 = vadd.f32 %v8224, %v8358
    %v8398 = vadd.f32 %v8225, %v8361
    %v8399 = vadd.f32 %v8226, %v8366
    %v8400 = vadd.f32 %v8227, %v8369
    %v8401 = vadd.f32 %v8228, %v8374
    %v8402 = vadd.f32 %v8229, %v8377
    %v8403 = vadd.f32 %v8230, %v8382
    %v8404 = vadd.f32 %v8231, %v8385
    %v8405 = vadd.f32 %v8232, %v8390
    %v8406 = vadd.f32 %v8395, %v6806
    %v8407 = vadd.f32 %v8396, %v6806
    %v8408 = vadd.f32 %v8397, %v6806
    %v8409 = vadd.f32 %v8398, %v6806
    %v8410 = vadd.f32 %v8399, %v6806
    %v8411 = vadd.f32 %v8400, %v6806
    %v8412 = vadd.f32 %v8401, %v6806
    %v8413 = vadd.f32 %v8402, %v6806
    %v8414 = vadd.f32 %v8403, %v6806
    %v8415 = vadd.f32 %v8404, %v6806
    %v8416 = vadd.f32 %v8405, %v6806
    %v8417 = vmax.f32 %v8406, 0.0
    %v8418 = vmax.f32 %v8407, 0.0
    %v8419 = vmax.f32 %v8408, 0.0
    %v8420 = vmax.f32 %v8409, 0.0
    %v8421 = vmax.f32 %v8410, 0.0
    %v8422 = vmax.f32 %v8411, 0.0
    %v8423 = vmax.f32 %v8412, 0.0
    %v8424 = vmax.f32 %v8413, 0.0
    %v8425 = vmax.f32 %v8414, 0.0
    %v8426 = vmax.f32 %v8415, 0.0
    %v8427 = vmax.f32 %v8416, 0.0
    %8428 = vst [vmem:[#allocation3 + $0x60] sm:$0xff] %v8417
    %8429 = vst [vmem:[#allocation3 + $0x68] sm:$0xff] %v8418
    %8430 = vst [vmem:[#allocation3 + $0x70] sm:$0xff] %v8419
    %8431 = vst [vmem:[#allocation3 + $0x78] sm:$0xff] %v8420
    %8432 = vst [vmem:[#allocation3 + $0x80] sm:$0xff] %v8421
    %8433 = vst [vmem:[#allocation3 + $0x88] sm:$0xff] %v8422
    %8434 = vst [vmem:[#allocation3 + $0x90] sm:$0xff] %v8423
    %8435 = vst [vmem:[#allocation3 + $0x98] sm:$0xff] %v8424
    %8436 = vst [vmem:[#allocation3 + $0xa0] sm:$0xff] %v8425
    %8437 = vst [vmem:[#allocation3 + $0xa8] sm:$0xff] %v8426
    %8438 = vst [vmem:[#allocation3 + $0xb0] sm:$0x3f] %v8427
    %v8439 = vld [vmem:[%s6] sm:$0x1]
    %v8440 = vld [vmem:[#allocation3] ss:$2 sm:$0xff]
    %s8441 = scalar_lea.vmem [#allocation3], 16
    %v8442 = vld [vmem:[%s8441] ss:$2 sm:$0xff]
    %s8443 = scalar_lea.vmem [#allocation3], 32
    %v8444 = vld [vmem:[%s8443] ss:$2 sm:$0x3]
    %v8445 = vpack.c.bf16 %v8442, %v8440
    %v8446 = vpack.c.bf16 %v8444, %v8444
    %v8447 = vld [vmem:[#allocation5] sm:$0xf]
    %v8448 = vld [vmem:[#allocation5 + $0x4] sm:$0xf]
    %v8449 = vld [vmem:[#allocation5 + $0x8] sm:$0xf]
    %v8450 = vld [vmem:[#allocation5 + $0xc] sm:$0xf]
    %v8451 = vld [vmem:[#allocation5 + $0x10] sm:$0xf]
    %v8452 = vld [vmem:[#allocation5 + $0x14] sm:$0xf]
    %v8453 = vld [vmem:[#allocation5 + $0x18] sm:$0xf]
    %v8454 = vld [vmem:[#allocation5 + $0x1c] sm:$0xf]
    %v8455 = vld [vmem:[#allocation5 + $0x20] sm:$0xf]
    %v8456 = vld [vmem:[#allocation5 + $0x24] sm:$0xf]
    %v8457 = vld [vmem:[#allocation5 + $0x28] sm:$0xf]
    %v8458 = vld [vmem:[#allocation5 + $0x2c] sm:$0xf]
    %v8459 = vld [vmem:[#allocation5 + $0x30] sm:$0xf]
    %v8460 = vld [vmem:[#allocation5 + $0x34] sm:$0xf]
    %v8461 = vld [vmem:[#allocation5 + $0x38] sm:$0xf]
    %v8462 = vld [vmem:[#allocation5 + $0x3c] sm:$0xf]
    %s8463 = scalar_lea.vmem [#allocation3], 1
    %v8464 = vld [vmem:[%s8463] ss:$2 sm:$0xff]
    %s8465 = scalar_lea.vmem [#allocation3], 17
    %v8466 = vld [vmem:[%s8465] ss:$2 sm:$0xff]
    %s8467 = scalar_lea.vmem [#allocation3], 33
    %v8468 = vld [vmem:[%s8467] ss:$2 sm:$0x3]
    %v8469 = vpack.c.bf16 %v8466, %v8464
    %v8470 = vpack.c.bf16 %v8468, %v8468
    %s8471 = scalar_lea.vmem [#allocation5], 64
    %v8472 = vld [vmem:[%s8471] sm:$0xf]
    %v8473 = vld [vmem:[%s8471 + $0x4] sm:$0xf]
    %v8474 = vld [vmem:[%s8471 + $0x8] sm:$0xf]
    %v8475 = vld [vmem:[%s8471 + $0xc] sm:$0xf]
    %v8476 = vld [vmem:[%s8471 + $0x10] sm:$0xf]
    %v8477 = vld [vmem:[%s8471 + $0x14] sm:$0xf]
    %v8478 = vld [vmem:[%s8471 + $0x18] sm:$0xf]
    %v8479 = vld [vmem:[%s8471 + $0x1c] sm:$0xf]
    %v8480 = vld [vmem:[%s8471 + $0x20] sm:$0xf]
    %v8481 = vld [vmem:[%s8471 + $0x24] sm:$0xf]
    %v8482 = vld [vmem:[%s8471 + $0x28] sm:$0xf]
    %v8483 = vld [vmem:[%s8471 + $0x2c] sm:$0xf]
    %v8484 = vld [vmem:[%s8471 + $0x30] sm:$0xf]
    %v8485 = vld [vmem:[%s8471 + $0x34] sm:$0xf]
    %v8486 = vld [vmem:[%s8471 + $0x38] sm:$0xf]
    %v8487 = vld [vmem:[%s8471 + $0x3c] sm:$0xf]
    %v8504 = vunpack.c.l.b16 %v8472
    %v8505 = vunpack.c.l.b16 %v8473
    %v8506 = vunpack.c.l.b16 %v8474
    %v8507 = vunpack.c.l.b16 %v8475
    %v8508 = vunpack.c.l.b16 %v8476
    %v8509 = vunpack.c.l.b16 %v8477
    %v8510 = vunpack.c.l.b16 %v8478
    %v8511 = vunpack.c.l.b16 %v8479
    %v8512 = vunpack.c.l.b16 %v8480
    %v8513 = vunpack.c.l.b16 %v8481
    %v8514 = vunpack.c.l.b16 %v8482
    %v8515 = vunpack.c.l.b16 %v8483
    %v8516 = vunpack.c.l.b16 %v8484
    %v8517 = vunpack.c.l.b16 %v8485
    %v8518 = vunpack.c.l.b16 %v8486
    %v8519 = vunpack.c.l.b16 %v8487
    %v8520 = vpack.c.b16 %v8505, %v8504
    %v8521 = vpack.c.b16 %v8507, %v8506
    %v8522 = vpack.c.b16 %v8509, %v8508
    %v8523 = vpack.c.b16 %v8511, %v8510
    %v8524 = vpack.c.b16 %v8513, %v8512
    %v8525 = vpack.c.b16 %v8515, %v8514
    %v8526 = vpack.c.b16 %v8517, %v8516
    %v8527 = vpack.c.b16 %v8519, %v8518
    %8536 = vmatprep.subr.bf16.mxu0 0
    %8537 = vmatpush1.bf16.msra.mxu0 %v8520
    %8538 = vmatprep.subr.bf16.mxu0 0
    %8539 = vmatpush1.bf16.msra.mxu0 %v8521
    %8540 = vmatprep.subr.bf16.mxu0 0
    %8541 = vmatpush1.bf16.msra.mxu0 %v8522
    %8542 = vmatprep.subr.bf16.mxu0 0
    %8543 = vmatpush1.bf16.msra.mxu0 %v8523
    %8544 = vmatprep.subr.bf16.mxu0 0
    %8545 = vmatpush1.bf16.msra.mxu0 %v8524
    %8546 = vmatprep.subr.bf16.mxu0 0
    %8547 = vmatpush1.bf16.msra.mxu0 %v8525
    %8548 = vmatprep.subr.bf16.mxu0 0
    %8549 = vmatpush1.bf16.msra.mxu0 %v8526
    %8550 = vmatprep.subr.bf16.mxu0 0
    %8551 = vmatpush1.bf16.msra.mxu0 %v8527
    %8552 = vmatprep.subr.bf16.mxu0 0
    %8553 = vmatpush1.bf16.msra.mxu0 0
    %8554 = vmatprep.subr.bf16.mxu0 0
    %8555 = vmatpush1.bf16.msra.mxu0 0
    %8556 = vmatprep.subr.bf16.mxu0 0
    %8557 = vmatpush1.bf16.msra.mxu0 0
    %8558 = vmatprep.subr.bf16.mxu0 0
    %8559 = vmatpush1.bf16.msra.mxu0 0
    %8560 = vmatprep.subr.bf16.mxu0 0
    %8561 = vmatpush1.bf16.msra.mxu0 0
    %8562 = vmatprep.subr.bf16.mxu0 0
    %8563 = vmatpush1.bf16.msra.mxu0 0
    %8564 = vmatprep.subr.bf16.mxu0 0
    %8565 = vmatpush1.bf16.msra.mxu0 0
    %8566 = vmatprep.subr.bf16.mxu0 0
    %8567 = vmatpush1.bf16.msra.mxu0 0
    %8568 = vmatprep.mubr.bf16.mxu0 0
    %8569 = vmatmul.mubr.bf16.gmra.mrb[0].mxu0 %v8469
    %v8570 = vpop.f32.mrb[0].mxu0
    %v8571 = vadd.f32 0.0, %v8570
    %v8572 = vpop.f32.mrb[0].mxu0
    %v8573 = vpop.f32.mrb[0].mxu0
    %v8574 = vadd.f32 0.0, %v8573
    %v8575 = vpop.f32.mrb[0].mxu0
    %8576 = vmatprep.mubr.bf16.mxu0 0
    %8577 = vmatmul.mubr.bf16.gmra.mrb[0].mxu0 %v8470
    %v8578 = vpop.f32.mrb[0].mxu0
    %v8579 = vadd.f32 0.0, %v8578
    %v8580 = vpop.f32.mrb[0].mxu0
    %v8581 = vpop.f32.mrb[0].mxu0
    %v8582 = vpop.f32.mrb[0].mxu0
    %8583 = vdwg.mxu0
    %v8600 = vunpack.c.l.b16 %v8447
    %v8601 = vunpack.c.l.b16 %v8448
    %v8602 = vunpack.c.l.b16 %v8449
    %v8603 = vunpack.c.l.b16 %v8450
    %v8604 = vunpack.c.l.b16 %v8451
    %v8605 = vunpack.c.l.b16 %v8452
    %v8606 = vunpack.c.l.b16 %v8453
    %v8607 = vunpack.c.l.b16 %v8454
    %v8608 = vunpack.c.l.b16 %v8455
    %v8609 = vunpack.c.l.b16 %v8456
    %v8610 = vunpack.c.l.b16 %v8457
    %v8611 = vunpack.c.l.b16 %v8458
    %v8612 = vunpack.c.l.b16 %v8459
    %v8613 = vunpack.c.l.b16 %v8460
    %v8614 = vunpack.c.l.b16 %v8461
    %v8615 = vunpack.c.l.b16 %v8462
    %v8616 = vpack.c.b16 %v8601, %v8600
    %v8617 = vpack.c.b16 %v8603, %v8602
    %v8618 = vpack.c.b16 %v8605, %v8604
    %v8619 = vpack.c.b16 %v8607, %v8606
    %v8620 = vpack.c.b16 %v8609, %v8608
    %v8621 = vpack.c.b16 %v8611, %v8610
    %v8622 = vpack.c.b16 %v8613, %v8612
    %v8623 = vpack.c.b16 %v8615, %v8614
    %8632 = vmatprep.subr.bf16.mxu0 0
    %8633 = vmatpush1.bf16.msra.mxu0 %v8616
    %8634 = vmatprep.subr.bf16.mxu0 0
    %8635 = vmatpush1.bf16.msra.mxu0 %v8617
    %8636 = vmatprep.subr.bf16.mxu0 0
    %8637 = vmatpush1.bf16.msra.mxu0 %v8618
    %8638 = vmatprep.subr.bf16.mxu0 0
    %8639 = vmatpush1.bf16.msra.mxu0 %v8619
    %8640 = vmatprep.subr.bf16.mxu0 0
    %8641 = vmatpush1.bf16.msra.mxu0 %v8620
    %8642 = vmatprep.subr.bf16.mxu0 0
    %8643 = vmatpush1.bf16.msra.mxu0 %v8621
    %8644 = vmatprep.subr.bf16.mxu0 0
    %8645 = vmatpush1.bf16.msra.mxu0 %v8622
    %8646 = vmatprep.subr.bf16.mxu0 0
    %8647 = vmatpush1.bf16.msra.mxu0 %v8623
    %8648 = vmatprep.subr.bf16.mxu0 0
    %8649 = vmatpush1.bf16.msra.mxu0 0
    %8650 = vmatprep.subr.bf16.mxu0 0
    %8651 = vmatpush1.bf16.msra.mxu0 0
    %8652 = vmatprep.subr.bf16.mxu0 0
    %8653 = vmatpush1.bf16.msra.mxu0 0
    %8654 = vmatprep.subr.bf16.mxu0 0
    %8655 = vmatpush1.bf16.msra.mxu0 0
    %8656 = vmatprep.subr.bf16.mxu0 0
    %8657 = vmatpush1.bf16.msra.mxu0 0
    %8658 = vmatprep.subr.bf16.mxu0 0
    %8659 = vmatpush1.bf16.msra.mxu0 0
    %8660 = vmatprep.subr.bf16.mxu0 0
    %8661 = vmatpush1.bf16.msra.mxu0 0
    %8662 = vmatprep.subr.bf16.mxu0 0
    %8663 = vmatpush1.bf16.msra.mxu0 0
    %8664 = vmatprep.mubr.bf16.mxu0 0
    %8665 = vmatmul.mubr.bf16.gmra.mrb[0].mxu0 %v8445
    %v8666 = vpop.f32.mrb[0].mxu0
    %v8667 = vadd.f32 %v8571, %v8666
    %v8668 = vpop.f32.mrb[0].mxu0
    %v8669 = vpop.f32.mrb[0].mxu0
    %v8670 = vadd.f32 %v8574, %v8669
    %v8671 = vpop.f32.mrb[0].mxu0
    %8672 = vmatprep.mubr.bf16.mxu0 0
    %8673 = vmatmul.mubr.bf16.gmra.mrb[0].mxu0 %v8446
    %v8674 = vpop.f32.mrb[0].mxu0
    %v8675 = vadd.f32 %v8579, %v8674
    %v8676 = vpop.f32.mrb[0].mxu0
    %v8677 = vpop.f32.mrb[0].mxu0
    %v8678 = vpop.f32.mrb[0].mxu0
    %8679 = vdwg.mxu0
    %s8680 = scalar_lea.vmem [#allocation3], 2
    %v8681 = vld [vmem:[%s8680] ss:$2 sm:$0xff]
    %s8682 = scalar_lea.vmem [#allocation3], 18
    %v8683 = vld [vmem:[%s8682] ss:$2 sm:$0xff]
    %s8684 = scalar_lea.vmem [#allocation3], 34
    %v8685 = vld [vmem:[%s8684] ss:$2 sm:$0x3]
    %v8686 = vpack.c.bf16 %v8683, %v8681
    %v8687 = vpack.c.bf16 %v8685, %v8685
    %s8688 = scalar_lea.vmem [#allocation5], 128
    %v8689 = vld [vmem:[%s8688] sm:$0xf]
    %v8690 = vld [vmem:[%s8688 + $0x4] sm:$0xf]
    %v8691 = vld [vmem:[%s8688 + $0x8] sm:$0xf]
    %v8692 = vld [vmem:[%s8688 + $0xc] sm:$0xf]
    %v8693 = vld [vmem:[%s8688 + $0x10] sm:$0xf]
    %v8694 = vld [vmem:[%s8688 + $0x14] sm:$0xf]
    %v8695 = vld [vmem:[%s8688 + $0x18] sm:$0xf]
    %v8696 = vld [vmem:[%s8688 + $0x1c] sm:$0xf]
    %v8697 = vld [vmem:[%s8688 + $0x20] sm:$0xf]
    %v8698 = vld [vmem:[%s8688 + $0x24] sm:$0xf]
    %v8699 = vld [vmem:[%s8688 + $0x28] sm:$0xf]
    %v8700 = vld [vmem:[%s8688 + $0x2c] sm:$0xf]
    %v8701 = vld [vmem:[%s8688 + $0x30] sm:$0xf]
    %v8702 = vld [vmem:[%s8688 + $0x34] sm:$0xf]
    %v8703 = vld [vmem:[%s8688 + $0x38] sm:$0xf]
    %v8704 = vld [vmem:[%s8688 + $0x3c] sm:$0xf]
    %v8721 = vunpack.c.l.b16 %v8689
    %v8722 = vunpack.c.l.b16 %v8690
    %v8723 = vunpack.c.l.b16 %v8691
    %v8724 = vunpack.c.l.b16 %v8692
    %v8725 = vunpack.c.l.b16 %v8693
    %v8726 = vunpack.c.l.b16 %v8694
    %v8727 = vunpack.c.l.b16 %v8695
    %v8728 = vunpack.c.l.b16 %v8696
    %v8729 = vunpack.c.l.b16 %v8697
    %v8730 = vunpack.c.l.b16 %v8698
    %v8731 = vunpack.c.l.b16 %v8699
    %v8732 = vunpack.c.l.b16 %v8700
    %v8733 = vunpack.c.l.b16 %v8701
    %v8734 = vunpack.c.l.b16 %v8702
    %v8735 = vunpack.c.l.b16 %v8703
    %v8736 = vunpack.c.l.b16 %v8704
    %v8737 = vpack.c.b16 %v8722, %v8721
    %v8738 = vpack.c.b16 %v8724, %v8723
    %v8739 = vpack.c.b16 %v8726, %v8725
    %v8740 = vpack.c.b16 %v8728, %v8727
    %v8741 = vpack.c.b16 %v8730, %v8729
    %v8742 = vpack.c.b16 %v8732, %v8731
    %v8743 = vpack.c.b16 %v8734, %v8733
    %v8744 = vpack.c.b16 %v8736, %v8735
    %8753 = vmatprep.subr.bf16.mxu0 0
    %8754 = vmatpush1.bf16.msra.mxu0 %v8737
    %8755 = vmatprep.subr.bf16.mxu0 0
    %8756 = vmatpush1.bf16.msra.mxu0 %v8738
    %8757 = vmatprep.subr.bf16.mxu0 0
    %8758 = vmatpush1.bf16.msra.mxu0 %v8739
    %8759 = vmatprep.subr.bf16.mxu0 0
    %8760 = vmatpush1.bf16.msra.mxu0 %v8740
    %8761 = vmatprep.subr.bf16.mxu0 0
    %8762 = vmatpush1.bf16.msra.mxu0 %v8741
    %8763 = vmatprep.subr.bf16.mxu0 0
    %8764 = vmatpush1.bf16.msra.mxu0 %v8742
    %8765 = vmatprep.subr.bf16.mxu0 0
    %8766 = vmatpush1.bf16.msra.mxu0 %v8743
    %8767 = vmatprep.subr.bf16.mxu0 0
    %8768 = vmatpush1.bf16.msra.mxu0 %v8744
    %8769 = vmatprep.subr.bf16.mxu0 0
    %8770 = vmatpush1.bf16.msra.mxu0 0
    %8771 = vmatprep.subr.bf16.mxu0 0
    %8772 = vmatpush1.bf16.msra.mxu0 0
    %8773 = vmatprep.subr.bf16.mxu0 0
    %8774 = vmatpush1.bf16.msra.mxu0 0
    %8775 = vmatprep.subr.bf16.mxu0 0
    %8776 = vmatpush1.bf16.msra.mxu0 0
    %8777 = vmatprep.subr.bf16.mxu0 0
    %8778 = vmatpush1.bf16.msra.mxu0 0
    %8779 = vmatprep.subr.bf16.mxu0 0
    %8780 = vmatpush1.bf16.msra.mxu0 0
    %8781 = vmatprep.subr.bf16.mxu0 0
    %8782 = vmatpush1.bf16.msra.mxu0 0
    %8783 = vmatprep.subr.bf16.mxu0 0
    %8784 = vmatpush1.bf16.msra.mxu0 0
    %8785 = vmatprep.mubr.bf16.mxu0 0
    %8786 = vmatmul.mubr.bf16.gmra.mrb[0].mxu0 %v8686
    %v8787 = vpop.f32.mrb[0].mxu0
    %v8788 = vadd.f32 0.0, %v8787
    %v8789 = vpop.f32.mrb[0].mxu0
    %v8790 = vpop.f32.mrb[0].mxu0
    %v8791 = vadd.f32 0.0, %v8790
    %v8792 = vpop.f32.mrb[0].mxu0
    %8793 = vmatprep.mubr.bf16.mxu0 0
    %8794 = vmatmul.mubr.bf16.gmra.mrb[0].mxu0 %v8687
    %v8795 = vpop.f32.mrb[0].mxu0
    %v8796 = vadd.f32 0.0, %v8795
    %v8797 = vpop.f32.mrb[0].mxu0
    %v8798 = vpop.f32.mrb[0].mxu0
    %v8799 = vpop.f32.mrb[0].mxu0
    %8800 = vdwg.mxu0
    %v8801 = vadd.f32 %v8667, %v8788
    %v8802 = vadd.f32 %v8670, %v8791
    %v8803 = vadd.f32 %v8675, %v8796
    %v8804 = vld [vmem:[%s8441] ss:$2 sm:$0xff]
    %v8805 = vld [vmem:[%s8443] ss:$2 sm:$0xff]
    %s8806 = scalar_lea.vmem [#allocation3], 48
    %v8807 = vld [vmem:[%s8806] ss:$2 sm:$0x3]
    %v8808 = vpack.c.bf16 %v8805, %v8804
    %v8809 = vpack.c.bf16 %v8807, %v8807
    %s8810 = scalar_lea.vmem [#allocation5], 192
    %v8811 = vld [vmem:[%s8810] sm:$0xf]
    %v8812 = vld [vmem:[%s8810 + $0x4] sm:$0xf]
    %v8813 = vld [vmem:[%s8810 + $0x8] sm:$0xf]
    %v8814 = vld [vmem:[%s8810 + $0xc] sm:$0xf]
    %v8815 = vld [vmem:[%s8810 + $0x10] sm:$0xf]
    %v8816 = vld [vmem:[%s8810 + $0x14] sm:$0xf]
    %v8817 = vld [vmem:[%s8810 + $0x18] sm:$0xf]
    %v8818 = vld [vmem:[%s8810 + $0x1c] sm:$0xf]
    %v8819 = vld [vmem:[%s8810 + $0x20] sm:$0xf]
    %v8820 = vld [vmem:[%s8810 + $0x24] sm:$0xf]
    %v8821 = vld [vmem:[%s8810 + $0x28] sm:$0xf]
    %v8822 = vld [vmem:[%s8810 + $0x2c] sm:$0xf]
    %v8823 = vld [vmem:[%s8810 + $0x30] sm:$0xf]
    %v8824 = vld [vmem:[%s8810 + $0x34] sm:$0xf]
    %v8825 = vld [vmem:[%s8810 + $0x38] sm:$0xf]
    %v8826 = vld [vmem:[%s8810 + $0x3c] sm:$0xf]
    %v8843 = vunpack.c.l.b16 %v8811
    %v8844 = vunpack.c.l.b16 %v8812
    %v8845 = vunpack.c.l.b16 %v8813
    %v8846 = vunpack.c.l.b16 %v8814
    %v8847 = vunpack.c.l.b16 %v8815
    %v8848 = vunpack.c.l.b16 %v8816
    %v8849 = vunpack.c.l.b16 %v8817
    %v8850 = vunpack.c.l.b16 %v8818
    %v8851 = vunpack.c.l.b16 %v8819
    %v8852 = vunpack.c.l.b16 %v8820
    %v8853 = vunpack.c.l.b16 %v8821
    %v8854 = vunpack.c.l.b16 %v8822
    %v8855 = vunpack.c.l.b16 %v8823
    %v8856 = vunpack.c.l.b16 %v8824
    %v8857 = vunpack.c.l.b16 %v8825
    %v8858 = vunpack.c.l.b16 %v8826
    %v8859 = vpack.c.b16 %v8844, %v8843
    %v8860 = vpack.c.b16 %v8846, %v8845
    %v8861 = vpack.c.b16 %v8848, %v8847
    %v8862 = vpack.c.b16 %v8850, %v8849
    %v8863 = vpack.c.b16 %v8852, %v8851
    %v8864 = vpack.c.b16 %v8854, %v8853
    %v8865 = vpack.c.b16 %v8856, %v8855
    %v8866 = vpack.c.b16 %v8858, %v8857
    %8875 = vmatprep.subr.bf16.mxu0 0
    %8876 = vmatpush1.bf16.msra.mxu0 %v8859
    %8877 = vmatprep.subr.bf16.mxu0 0
    %8878 = vmatpush1.bf16.msra.mxu0 %v8860
    %8879 = vmatprep.subr.bf16.mxu0 0
    %8880 = vmatpush1.bf16.msra.mxu0 %v8861
    %8881 = vmatprep.subr.bf16.mxu0 0
    %8882 = vmatpush1.bf16.msra.mxu0 %v8862
    %8883 = vmatprep.subr.bf16.mxu0 0
    %8884 = vmatpush1.bf16.msra.mxu0 %v8863
    %8885 = vmatprep.subr.bf16.mxu0 0
    %8886 = vmatpush1.bf16.msra.mxu0 %v8864
    %8887 = vmatprep.subr.bf16.mxu0 0
    %8888 = vmatpush1.bf16.msra.mxu0 %v8865
    %8889 = vmatprep.subr.bf16.mxu0 0
    %8890 = vmatpush1.bf16.msra.mxu0 %v8866
    %8891 = vmatprep.subr.bf16.mxu0 0
    %8892 = vmatpush1.bf16.msra.mxu0 0
    %8893 = vmatprep.subr.bf16.mxu0 0
    %8894 = vmatpush1.bf16.msra.mxu0 0
    %8895 = vmatprep.subr.bf16.mxu0 0
    %8896 = vmatpush1.bf16.msra.mxu0 0
    %8897 = vmatprep.subr.bf16.mxu0 0
    %8898 = vmatpush1.bf16.msra.mxu0 0
    %8899 = vmatprep.subr.bf16.mxu0 0
    %8900 = vmatpush1.bf16.msra.mxu0 0
    %8901 = vmatprep.subr.bf16.mxu0 0
    %8902 = vmatpush1.bf16.msra.mxu0 0
    %8903 = vmatprep.subr.bf16.mxu0 0
    %8904 = vmatpush1.bf16.msra.mxu0 0
    %8905 = vmatprep.subr.bf16.mxu0 0
    %8906 = vmatpush1.bf16.msra.mxu0 0
    %8907 = vmatprep.mubr.bf16.mxu0 0
    %8908 = vmatmul.mubr.bf16.gmra.mrb[0].mxu0 %v8808
    %v8909 = vpop.f32.mrb[0].mxu0
    %v8910 = vadd.f32 0.0, %v8909
    %v8911 = vpop.f32.mrb[0].mxu0
    %v8912 = vpop.f32.mrb[0].mxu0
    %v8913 = vadd.f32 0.0, %v8912
    %v8914 = vpop.f32.mrb[0].mxu0
    %8915 = vmatprep.mubr.bf16.mxu0 0
    %8916 = vmatmul.mubr.bf16.gmra.mrb[0].mxu0 %v8809
    %v8917 = vpop.f32.mrb[0].mxu0
    %v8918 = vadd.f32 0.0, %v8917
    %v8919 = vpop.f32.mrb[0].mxu0
    %v8920 = vpop.f32.mrb[0].mxu0
    %v8921 = vpop.f32.mrb[0].mxu0
    %8922 = vdwg.mxu0
    %v8923 = vadd.f32 %v8801, %v8910
    %v8924 = vadd.f32 %v8802, %v8913
    %v8925 = vadd.f32 %v8803, %v8918
    %v8926 = vld [vmem:[%s8465] ss:$2 sm:$0xff]
    %v8927 = vld [vmem:[%s8467] ss:$2 sm:$0xff]
    %s8928 = scalar_lea.vmem [#allocation3], 49
    %v8929 = vld [vmem:[%s8928] ss:$2 sm:$0x3]
    %v8930 = vpack.c.bf16 %v8927, %v8926
    %v8931 = vpack.c.bf16 %v8929, %v8929
    %s8932 = scalar_lea.vmem [#allocation5], 256
    %v8933 = vld [vmem:[%s8932] sm:$0xf]
    %v8934 = vld [vmem:[%s8932 + $0x4] sm:$0xf]
    %v8935 = vld [vmem:[%s8932 + $0x8] sm:$0xf]
    %v8936 = vld [vmem:[%s8932 + $0xc] sm:$0xf]
    %v8937 = vld [vmem:[%s8932 + $0x10] sm:$0xf]
    %v8938 = vld [vmem:[%s8932 + $0x14] sm:$0xf]
    %v8939 = vld [vmem:[%s8932 + $0x18] sm:$0xf]
    %v8940 = vld [vmem:[%s8932 + $0x1c] sm:$0xf]
    %v8941 = vld [vmem:[%s8932 + $0x20] sm:$0xf]
    %v8942 = vld [vmem:[%s8932 + $0x24] sm:$0xf]
    %v8943 = vld [vmem:[%s8932 + $0x28] sm:$0xf]
    %v8944 = vld [vmem:[%s8932 + $0x2c] sm:$0xf]
    %v8945 = vld [vmem:[%s8932 + $0x30] sm:$0xf]
    %v8946 = vld [vmem:[%s8932 + $0x34] sm:$0xf]
    %v8947 = vld [vmem:[%s8932 + $0x38] sm:$0xf]
    %v8948 = vld [vmem:[%s8932 + $0x3c] sm:$0xf]
    %v8965 = vunpack.c.l.b16 %v8933
    %v8966 = vunpack.c.l.b16 %v8934
    %v8967 = vunpack.c.l.b16 %v8935
    %v8968 = vunpack.c.l.b16 %v8936
    %v8969 = vunpack.c.l.b16 %v8937
    %v8970 = vunpack.c.l.b16 %v8938
    %v8971 = vunpack.c.l.b16 %v8939
    %v8972 = vunpack.c.l.b16 %v8940
    %v8973 = vunpack.c.l.b16 %v8941
    %v8974 = vunpack.c.l.b16 %v8942
    %v8975 = vunpack.c.l.b16 %v8943
    %v8976 = vunpack.c.l.b16 %v8944
    %v8977 = vunpack.c.l.b16 %v8945
    %v8978 = vunpack.c.l.b16 %v8946
    %v8979 = vunpack.c.l.b16 %v8947
    %v8980 = vunpack.c.l.b16 %v8948
    %v8981 = vpack.c.b16 %v8966, %v8965
    %v8982 = vpack.c.b16 %v8968, %v8967
    %v8983 = vpack.c.b16 %v8970, %v8969
    %v8984 = vpack.c.b16 %v8972, %v8971
    %v8985 = vpack.c.b16 %v8974, %v8973
    %v8986 = vpack.c.b16 %v8976, %v8975
    %v8987 = vpack.c.b16 %v8978, %v8977
    %v8988 = vpack.c.b16 %v8980, %v8979
    %8997 = vmatprep.subr.bf16.mxu0 0
    %8998 = vmatpush1.bf16.msra.mxu0 %v8981
    %8999 = vmatprep.subr.bf16.mxu0 0
    %9000 = vmatpush1.bf16.msra.mxu0 %v8982
    %9001 = vmatprep.subr.bf16.mxu0 0
    %9002 = vmatpush1.bf16.msra.mxu0 %v8983
    %9003 = vmatprep.subr.bf16.mxu0 0
    %9004 = vmatpush1.bf16.msra.mxu0 %v8984
    %9005 = vmatprep.subr.bf16.mxu0 0
    %9006 = vmatpush1.bf16.msra.mxu0 %v8985
    %9007 = vmatprep.subr.bf16.mxu0 0
    %9008 = vmatpush1.bf16.msra.mxu0 %v8986
    %9009 = vmatprep.subr.bf16.mxu0 0
    %9010 = vmatpush1.bf16.msra.mxu0 %v8987
    %9011 = vmatprep.subr.bf16.mxu0 0
    %9012 = vmatpush1.bf16.msra.mxu0 %v8988
    %9013 = vmatprep.subr.bf16.mxu0 0
    %9014 = vmatpush1.bf16.msra.mxu0 0
    %9015 = vmatprep.subr.bf16.mxu0 0
    %9016 = vmatpush1.bf16.msra.mxu0 0
    %9017 = vmatprep.subr.bf16.mxu0 0
    %9018 = vmatpush1.bf16.msra.mxu0 0
    %9019 = vmatprep.subr.bf16.mxu0 0
    %9020 = vmatpush1.bf16.msra.mxu0 0
    %9021 = vmatprep.subr.bf16.mxu0 0
    %9022 = vmatpush1.bf16.msra.mxu0 0
    %9023 = vmatprep.subr.bf16.mxu0 0
    %9024 = vmatpush1.bf16.msra.mxu0 0
    %9025 = vmatprep.subr.bf16.mxu0 0
    %9026 = vmatpush1.bf16.msra.mxu0 0
    %9027 = vmatprep.subr.bf16.mxu0 0
    %9028 = vmatpush1.bf16.msra.mxu0 0
    %9029 = vmatprep.mubr.bf16.mxu0 0
    %9030 = vmatmul.mubr.bf16.gmra.mrb[0].mxu0 %v8930
    %v9031 = vpop.f32.mrb[0].mxu0
    %v9032 = vadd.f32 0.0, %v9031
    %v9033 = vpop.f32.mrb[0].mxu0
    %v9034 = vpop.f32.mrb[0].mxu0
    %v9035 = vadd.f32 0.0, %v9034
    %v9036 = vpop.f32.mrb[0].mxu0
    %9037 = vmatprep.mubr.bf16.mxu0 0
    %9038 = vmatmul.mubr.bf16.gmra.mrb[0].mxu0 %v8931
    %v9039 = vpop.f32.mrb[0].mxu0
    %v9040 = vadd.f32 0.0, %v9039
    %v9041 = vpop.f32.mrb[0].mxu0
    %v9042 = vpop.f32.mrb[0].mxu0
    %v9043 = vpop.f32.mrb[0].mxu0
    %9044 = vdwg.mxu0
    %v9045 = vadd.f32 %v8923, %v9032
    %v9046 = vadd.f32 %v8924, %v9035
    %v9047 = vadd.f32 %v8925, %v9040
    %v9048 = vld [vmem:[%s8682] ss:$2 sm:$0xff]
    %v9049 = vld [vmem:[%s8684] ss:$2 sm:$0xff]
    %s9050 = scalar_lea.vmem [#allocation3], 50
    %v9051 = vld [vmem:[%s9050] ss:$2 sm:$0x3]
    %v9052 = vpack.c.bf16 %v9049, %v9048
    %v9053 = vpack.c.bf16 %v9051, %v9051
    %s9054 = scalar_lea.vmem [#allocation5], 320
    %v9055 = vld [vmem:[%s9054] sm:$0xf]
    %v9056 = vld [vmem:[%s9054 + $0x4] sm:$0xf]
    %v9057 = vld [vmem:[%s9054 + $0x8] sm:$0xf]
    %v9058 = vld [vmem:[%s9054 + $0xc] sm:$0xf]
    %v9059 = vld [vmem:[%s9054 + $0x10] sm:$0xf]
    %v9060 = vld [vmem:[%s9054 + $0x14] sm:$0xf]
    %v9061 = vld [vmem:[%s9054 + $0x18] sm:$0xf]
    %v9062 = vld [vmem:[%s9054 + $0x1c] sm:$0xf]
    %v9063 = vld [vmem:[%s9054 + $0x20] sm:$0xf]
    %v9064 = vld [vmem:[%s9054 + $0x24] sm:$0xf]
    %v9065 = vld [vmem:[%s9054 + $0x28] sm:$0xf]
    %v9066 = vld [vmem:[%s9054 + $0x2c] sm:$0xf]
    %v9067 = vld [vmem:[%s9054 + $0x30] sm:$0xf]
    %v9068 = vld [vmem:[%s9054 + $0x34] sm:$0xf]
    %v9069 = vld [vmem:[%s9054 + $0x38] sm:$0xf]
    %v9070 = vld [vmem:[%s9054 + $0x3c] sm:$0xf]
    %v9087 = vunpack.c.l.b16 %v9055
    %v9088 = vunpack.c.l.b16 %v9056
    %v9089 = vunpack.c.l.b16 %v9057
    %v9090 = vunpack.c.l.b16 %v9058
    %v9091 = vunpack.c.l.b16 %v9059
    %v9092 = vunpack.c.l.b16 %v9060
    %v9093 = vunpack.c.l.b16 %v9061
    %v9094 = vunpack.c.l.b16 %v9062
    %v9095 = vunpack.c.l.b16 %v9063
    %v9096 = vunpack.c.l.b16 %v9064
    %v9097 = vunpack.c.l.b16 %v9065
    %v9098 = vunpack.c.l.b16 %v9066
    %v9099 = vunpack.c.l.b16 %v9067
    %v9100 = vunpack.c.l.b16 %v9068
    %v9101 = vunpack.c.l.b16 %v9069
    %v9102 = vunpack.c.l.b16 %v9070
    %v9103 = vpack.c.b16 %v9088, %v9087
    %v9104 = vpack.c.b16 %v9090, %v9089
    %v9105 = vpack.c.b16 %v9092, %v9091
    %v9106 = vpack.c.b16 %v9094, %v9093
    %v9107 = vpack.c.b16 %v9096, %v9095
    %v9108 = vpack.c.b16 %v9098, %v9097
    %v9109 = vpack.c.b16 %v9100, %v9099
    %v9110 = vpack.c.b16 %v9102, %v9101
    %9119 = vmatprep.subr.bf16.mxu0 0
    %9120 = vmatpush1.bf16.msra.mxu0 %v9103
    %9121 = vmatprep.subr.bf16.mxu0 0
    %9122 = vmatpush1.bf16.msra.mxu0 %v9104
    %9123 = vmatprep.subr.bf16.mxu0 0
    %9124 = vmatpush1.bf16.msra.mxu0 %v9105
    %9125 = vmatprep.subr.bf16.mxu0 0
    %9126 = vmatpush1.bf16.msra.mxu0 %v9106
    %9127 = vmatprep.subr.bf16.mxu0 0
    %9128 = vmatpush1.bf16.msra.mxu0 %v9107
    %9129 = vmatprep.subr.bf16.mxu0 0
    %9130 = vmatpush1.bf16.msra.mxu0 %v9108
    %9131 = vmatprep.subr.bf16.mxu0 0
    %9132 = vmatpush1.bf16.msra.mxu0 %v9109
    %9133 = vmatprep.subr.bf16.mxu0 0
    %9134 = vmatpush1.bf16.msra.mxu0 %v9110
    %9135 = vmatprep.subr.bf16.mxu0 0
    %9136 = vmatpush1.bf16.msra.mxu0 0
    %9137 = vmatprep.subr.bf16.mxu0 0
    %9138 = vmatpush1.bf16.msra.mxu0 0
    %9139 = vmatprep.subr.bf16.mxu0 0
    %9140 = vmatpush1.bf16.msra.mxu0 0
    %9141 = vmatprep.subr.bf16.mxu0 0
    %9142 = vmatpush1.bf16.msra.mxu0 0
    %9143 = vmatprep.subr.bf16.mxu0 0
    %9144 = vmatpush1.bf16.msra.mxu0 0
    %9145 = vmatprep.subr.bf16.mxu0 0
    %9146 = vmatpush1.bf16.msra.mxu0 0
    %9147 = vmatprep.subr.bf16.mxu0 0
    %9148 = vmatpush1.bf16.msra.mxu0 0
    %9149 = vmatprep.subr.bf16.mxu0 0
    %9150 = vmatpush1.bf16.msra.mxu0 0
    %9151 = vmatprep.mubr.bf16.mxu0 0
    %9152 = vmatmul.mubr.bf16.gmra.mrb[0].mxu0 %v9052
    %v9153 = vpop.f32.mrb[0].mxu0
    %v9154 = vadd.f32 0.0, %v9153
    %v9155 = vpop.f32.mrb[0].mxu0
    %v9156 = vpop.f32.mrb[0].mxu0
    %v9157 = vadd.f32 0.0, %v9156
    %v9158 = vpop.f32.mrb[0].mxu0
    %9159 = vmatprep.mubr.bf16.mxu0 0
    %9160 = vmatmul.mubr.bf16.gmra.mrb[0].mxu0 %v9053
    %v9161 = vpop.f32.mrb[0].mxu0
    %v9162 = vadd.f32 0.0, %v9161
    %v9163 = vpop.f32.mrb[0].mxu0
    %v9164 = vpop.f32.mrb[0].mxu0
    %v9165 = vpop.f32.mrb[0].mxu0
    %9166 = vdwg.mxu0
    %v9167 = vadd.f32 %v9045, %v9154
    %v9168 = vadd.f32 %v9046, %v9157
    %v9169 = vadd.f32 %v9047, %v9162
    %v9170 = vld [vmem:[%s8443] ss:$2 sm:$0xff]
    %v9171 = vld [vmem:[%s8806] ss:$2 sm:$0xff]
    %s9172 = scalar_lea.vmem [#allocation3], 64
    %v9173 = vld [vmem:[%s9172] ss:$2 sm:$0x3]
    %v9174 = vpack.c.bf16 %v9171, %v9170
    %v9175 = vpack.c.bf16 %v9173, %v9173
    %s9176 = scalar_lea.vmem [#allocation5], 384
    %v9177 = vld [vmem:[%s9176] sm:$0xf]
    %v9178 = vld [vmem:[%s9176 + $0x4] sm:$0xf]
    %v9179 = vld [vmem:[%s9176 + $0x8] sm:$0xf]
    %v9180 = vld [vmem:[%s9176 + $0xc] sm:$0xf]
    %v9181 = vld [vmem:[%s9176 + $0x10] sm:$0xf]
    %v9182 = vld [vmem:[%s9176 + $0x14] sm:$0xf]
    %v9183 = vld [vmem:[%s9176 + $0x18] sm:$0xf]
    %v9184 = vld [vmem:[%s9176 + $0x1c] sm:$0xf]
    %v9185 = vld [vmem:[%s9176 + $0x20] sm:$0xf]
    %v9186 = vld [vmem:[%s9176 + $0x24] sm:$0xf]
    %v9187 = vld [vmem:[%s9176 + $0x28] sm:$0xf]
    %v9188 = vld [vmem:[%s9176 + $0x2c] sm:$0xf]
    %v9189 = vld [vmem:[%s9176 + $0x30] sm:$0xf]
    %v9190 = vld [vmem:[%s9176 + $0x34] sm:$0xf]
    %v9191 = vld [vmem:[%s9176 + $0x38] sm:$0xf]
    %v9192 = vld [vmem:[%s9176 + $0x3c] sm:$0xf]
    %v9209 = vunpack.c.l.b16 %v9177
    %v9210 = vunpack.c.l.b16 %v9178
    %v9211 = vunpack.c.l.b16 %v9179
    %v9212 = vunpack.c.l.b16 %v9180
    %v9213 = vunpack.c.l.b16 %v9181
    %v9214 = vunpack.c.l.b16 %v9182
    %v9215 = vunpack.c.l.b16 %v9183
    %v9216 = vunpack.c.l.b16 %v9184
    %v9217 = vunpack.c.l.b16 %v9185
    %v9218 = vunpack.c.l.b16 %v9186
    %v9219 = vunpack.c.l.b16 %v9187
    %v9220 = vunpack.c.l.b16 %v9188
    %v9221 = vunpack.c.l.b16 %v9189
    %v9222 = vunpack.c.l.b16 %v9190
    %v9223 = vunpack.c.l.b16 %v9191
    %v9224 = vunpack.c.l.b16 %v9192
    %v9225 = vpack.c.b16 %v9210, %v9209
    %v9226 = vpack.c.b16 %v9212, %v9211
    %v9227 = vpack.c.b16 %v9214, %v9213
    %v9228 = vpack.c.b16 %v9216, %v9215
    %v9229 = vpack.c.b16 %v9218, %v9217
    %v9230 = vpack.c.b16 %v9220, %v9219
    %v9231 = vpack.c.b16 %v9222, %v9221
    %v9232 = vpack.c.b16 %v9224, %v9223
    %9241 = vmatprep.subr.bf16.mxu0 0
    %9242 = vmatpush1.bf16.msra.mxu0 %v9225
    %9243 = vmatprep.subr.bf16.mxu0 0
    %9244 = vmatpush1.bf16.msra.mxu0 %v9226
    %9245 = vmatprep.subr.bf16.mxu0 0
    %9246 = vmatpush1.bf16.msra.mxu0 %v9227
    %9247 = vmatprep.subr.bf16.mxu0 0
    %9248 = vmatpush1.bf16.msra.mxu0 %v9228
    %9249 = vmatprep.subr.bf16.mxu0 0
    %9250 = vmatpush1.bf16.msra.mxu0 %v9229
    %9251 = vmatprep.subr.bf16.mxu0 0
    %9252 = vmatpush1.bf16.msra.mxu0 %v9230
    %9253 = vmatprep.subr.bf16.mxu0 0
    %9254 = vmatpush1.bf16.msra.mxu0 %v9231
    %9255 = vmatprep.subr.bf16.mxu0 0
    %9256 = vmatpush1.bf16.msra.mxu0 %v9232
    %9257 = vmatprep.subr.bf16.mxu0 0
    %9258 = vmatpush1.bf16.msra.mxu0 0
    %9259 = vmatprep.subr.bf16.mxu0 0
    %9260 = vmatpush1.bf16.msra.mxu0 0
    %9261 = vmatprep.subr.bf16.mxu0 0
    %9262 = vmatpush1.bf16.msra.mxu0 0
    %9263 = vmatprep.subr.bf16.mxu0 0
    %9264 = vmatpush1.bf16.msra.mxu0 0
    %9265 = vmatprep.subr.bf16.mxu0 0
    %9266 = vmatpush1.bf16.msra.mxu0 0
    %9267 = vmatprep.subr.bf16.mxu0 0
    %9268 = vmatpush1.bf16.msra.mxu0 0
    %9269 = vmatprep.subr.bf16.mxu0 0
    %9270 = vmatpush1.bf16.msra.mxu0 0
    %9271 = vmatprep.subr.bf16.mxu0 0
    %9272 = vmatpush1.bf16.msra.mxu0 0
    %9273 = vmatprep.mubr.bf16.mxu0 0
    %9274 = vmatmul.mubr.bf16.gmra.mrb[0].mxu0 %v9174
    %v9275 = vpop.f32.mrb[0].mxu0
    %v9276 = vadd.f32 0.0, %v9275
    %v9277 = vpop.f32.mrb[0].mxu0
    %v9278 = vpop.f32.mrb[0].mxu0
    %v9279 = vadd.f32 0.0, %v9278
    %v9280 = vpop.f32.mrb[0].mxu0
    %9281 = vmatprep.mubr.bf16.mxu0 0
    %9282 = vmatmul.mubr.bf16.gmra.mrb[0].mxu0 %v9175
    %v9283 = vpop.f32.mrb[0].mxu0
    %v9284 = vadd.f32 0.0, %v9283
    %v9285 = vpop.f32.mrb[0].mxu0
    %v9286 = vpop.f32.mrb[0].mxu0
    %v9287 = vpop.f32.mrb[0].mxu0
    %9288 = vdwg.mxu0
    %v9289 = vadd.f32 %v9167, %v9276
    %v9290 = vadd.f32 %v9168, %v9279
    %v9291 = vadd.f32 %v9169, %v9284
    %v9292 = vld [vmem:[%s8467] ss:$2 sm:$0xff]
    %v9293 = vld [vmem:[%s8928] ss:$2 sm:$0xff]
    %s9294 = scalar_lea.vmem [#allocation3], 65
    %v9295 = vld [vmem:[%s9294] ss:$2 sm:$0x3]
    %v9296 = vpack.c.bf16 %v9293, %v9292
    %v9297 = vpack.c.bf16 %v9295, %v9295
    %s9298 = scalar_lea.vmem [#allocation5], 448
    %v9299 = vld [vmem:[%s9298] sm:$0xf]
    %v9300 = vld [vmem:[%s9298 + $0x4] sm:$0xf]
    %v9301 = vld [vmem:[%s9298 + $0x8] sm:$0xf]
    %v9302 = vld [vmem:[%s9298 + $0xc] sm:$0xf]
    %v9303 = vld [vmem:[%s9298 + $0x10] sm:$0xf]
    %v9304 = vld [vmem:[%s9298 + $0x14] sm:$0xf]
    %v9305 = vld [vmem:[%s9298 + $0x18] sm:$0xf]
    %v9306 = vld [vmem:[%s9298 + $0x1c] sm:$0xf]
    %v9307 = vld [vmem:[%s9298 + $0x20] sm:$0xf]
    %v9308 = vld [vmem:[%s9298 + $0x24] sm:$0xf]
    %v9309 = vld [vmem:[%s9298 + $0x28] sm:$0xf]
    %v9310 = vld [vmem:[%s9298 + $0x2c] sm:$0xf]
    %v9311 = vld [vmem:[%s9298 + $0x30] sm:$0xf]
    %v9312 = vld [vmem:[%s9298 + $0x34] sm:$0xf]
    %v9313 = vld [vmem:[%s9298 + $0x38] sm:$0xf]
    %v9314 = vld [vmem:[%s9298 + $0x3c] sm:$0xf]
    %v9331 = vunpack.c.l.b16 %v9299
    %v9332 = vunpack.c.l.b16 %v9300
    %v9333 = vunpack.c.l.b16 %v9301
    %v9334 = vunpack.c.l.b16 %v9302
    %v9335 = vunpack.c.l.b16 %v9303
    %v9336 = vunpack.c.l.b16 %v9304
    %v9337 = vunpack.c.l.b16 %v9305
    %v9338 = vunpack.c.l.b16 %v9306
    %v9339 = vunpack.c.l.b16 %v9307
    %v9340 = vunpack.c.l.b16 %v9308
    %v9341 = vunpack.c.l.b16 %v9309
    %v9342 = vunpack.c.l.b16 %v9310
    %v9343 = vunpack.c.l.b16 %v9311
    %v9344 = vunpack.c.l.b16 %v9312
    %v9345 = vunpack.c.l.b16 %v9313
    %v9346 = vunpack.c.l.b16 %v9314
    %v9347 = vpack.c.b16 %v9332, %v9331
    %v9348 = vpack.c.b16 %v9334, %v9333
    %v9349 = vpack.c.b16 %v9336, %v9335
    %v9350 = vpack.c.b16 %v9338, %v9337
    %v9351 = vpack.c.b16 %v9340, %v9339
    %v9352 = vpack.c.b16 %v9342, %v9341
    %v9353 = vpack.c.b16 %v9344, %v9343
    %v9354 = vpack.c.b16 %v9346, %v9345
    %9363 = vmatprep.subr.bf16.mxu0 0
    %9364 = vmatpush1.bf16.msra.mxu0 %v9347
    %9365 = vmatprep.subr.bf16.mxu0 0
    %9366 = vmatpush1.bf16.msra.mxu0 %v9348
    %9367 = vmatprep.subr.bf16.mxu0 0
    %9368 = vmatpush1.bf16.msra.mxu0 %v9349
    %9369 = vmatprep.subr.bf16.mxu0 0
    %9370 = vmatpush1.bf16.msra.mxu0 %v9350
    %9371 = vmatprep.subr.bf16.mxu0 0
    %9372 = vmatpush1.bf16.msra.mxu0 %v9351
    %9373 = vmatprep.subr.bf16.mxu0 0
    %9374 = vmatpush1.bf16.msra.mxu0 %v9352
    %9375 = vmatprep.subr.bf16.mxu0 0
    %9376 = vmatpush1.bf16.msra.mxu0 %v9353
    %9377 = vmatprep.subr.bf16.mxu0 0
    %9378 = vmatpush1.bf16.msra.mxu0 %v9354
    %9379 = vmatprep.subr.bf16.mxu0 0
    %9380 = vmatpush1.bf16.msra.mxu0 0
    %9381 = vmatprep.subr.bf16.mxu0 0
    %9382 = vmatpush1.bf16.msra.mxu0 0
    %9383 = vmatprep.subr.bf16.mxu0 0
    %9384 = vmatpush1.bf16.msra.mxu0 0
    %9385 = vmatprep.subr.bf16.mxu0 0
    %9386 = vmatpush1.bf16.msra.mxu0 0
    %9387 = vmatprep.subr.bf16.mxu0 0
    %9388 = vmatpush1.bf16.msra.mxu0 0
    %9389 = vmatprep.subr.bf16.mxu0 0
    %9390 = vmatpush1.bf16.msra.mxu0 0
    %9391 = vmatprep.subr.bf16.mxu0 0
    %9392 = vmatpush1.bf16.msra.mxu0 0
    %9393 = vmatprep.subr.bf16.mxu0 0
    %9394 = vmatpush1.bf16.msra.mxu0 0
    %9395 = vmatprep.mubr.bf16.mxu0 0
    %9396 = vmatmul.mubr.bf16.gmra.mrb[0].mxu0 %v9296
    %v9397 = vpop.f32.mrb[0].mxu0
    %v9398 = vadd.f32 0.0, %v9397
    %v9399 = vpop.f32.mrb[0].mxu0
    %v9400 = vpop.f32.mrb[0].mxu0
    %v9401 = vadd.f32 0.0, %v9400
    %v9402 = vpop.f32.mrb[0].mxu0
    %9403 = vmatprep.mubr.bf16.mxu0 0
    %9404 = vmatmul.mubr.bf16.gmra.mrb[0].mxu0 %v9297
    %v9405 = vpop.f32.mrb[0].mxu0
    %v9406 = vadd.f32 0.0, %v9405
    %v9407 = vpop.f32.mrb[0].mxu0
    %v9408 = vpop.f32.mrb[0].mxu0
    %v9409 = vpop.f32.mrb[0].mxu0
    %9410 = vdwg.mxu0
    %v9411 = vadd.f32 %v9289, %v9398
    %v9412 = vadd.f32 %v9290, %v9401
    %v9413 = vadd.f32 %v9291, %v9406
    %v9414 = vld [vmem:[%s8684] ss:$2 sm:$0xff]
    %v9415 = vld [vmem:[%s9050] ss:$2 sm:$0xff]
    %s9416 = scalar_lea.vmem [#allocation3], 66
    %v9417 = vld [vmem:[%s9416] ss:$2 sm:$0x3]
    %v9418 = vpack.c.bf16 %v9415, %v9414
    %v9419 = vpack.c.bf16 %v9417, %v9417
    %s9420 = scalar_lea.vmem [#allocation5], 512
    %v9421 = vld [vmem:[%s9420] sm:$0xf]
    %v9422 = vld [vmem:[%s9420 + $0x4] sm:$0xf]
    %v9423 = vld [vmem:[%s9420 + $0x8] sm:$0xf]
    %v9424 = vld [vmem:[%s9420 + $0xc] sm:$0xf]
    %v9425 = vld [vmem:[%s9420 + $0x10] sm:$0xf]
    %v9426 = vld [vmem:[%s9420 + $0x14] sm:$0xf]
    %v9427 = vld [vmem:[%s9420 + $0x18] sm:$0xf]
    %v9428 = vld [vmem:[%s9420 + $0x1c] sm:$0xf]
    %v9429 = vld [vmem:[%s9420 + $0x20] sm:$0xf]
    %v9430 = vld [vmem:[%s9420 + $0x24] sm:$0xf]
    %v9431 = vld [vmem:[%s9420 + $0x28] sm:$0xf]
    %v9432 = vld [vmem:[%s9420 + $0x2c] sm:$0xf]
    %v9433 = vld [vmem:[%s9420 + $0x30] sm:$0xf]
    %v9434 = vld [vmem:[%s9420 + $0x34] sm:$0xf]
    %v9435 = vld [vmem:[%s9420 + $0x38] sm:$0xf]
    %v9436 = vld [vmem:[%s9420 + $0x3c] sm:$0xf]
    %v9453 = vunpack.c.l.b16 %v9421
    %v9454 = vunpack.c.l.b16 %v9422
    %v9455 = vunpack.c.l.b16 %v9423
    %v9456 = vunpack.c.l.b16 %v9424
    %v9457 = vunpack.c.l.b16 %v9425
    %v9458 = vunpack.c.l.b16 %v9426
    %v9459 = vunpack.c.l.b16 %v9427
    %v9460 = vunpack.c.l.b16 %v9428
    %v9461 = vunpack.c.l.b16 %v9429
    %v9462 = vunpack.c.l.b16 %v9430
    %v9463 = vunpack.c.l.b16 %v9431
    %v9464 = vunpack.c.l.b16 %v9432
    %v9465 = vunpack.c.l.b16 %v9433
    %v9466 = vunpack.c.l.b16 %v9434
    %v9467 = vunpack.c.l.b16 %v9435
    %v9468 = vunpack.c.l.b16 %v9436
    %v9469 = vpack.c.b16 %v9454, %v9453
    %v9470 = vpack.c.b16 %v9456, %v9455
    %v9471 = vpack.c.b16 %v9458, %v9457
    %v9472 = vpack.c.b16 %v9460, %v9459
    %v9473 = vpack.c.b16 %v9462, %v9461
    %v9474 = vpack.c.b16 %v9464, %v9463
    %v9475 = vpack.c.b16 %v9466, %v9465
    %v9476 = vpack.c.b16 %v9468, %v9467
    %9485 = vmatprep.subr.bf16.mxu0 0
    %9486 = vmatpush1.bf16.msra.mxu0 %v9469
    %9487 = vmatprep.subr.bf16.mxu0 0
    %9488 = vmatpush1.bf16.msra.mxu0 %v9470
    %9489 = vmatprep.subr.bf16.mxu0 0
    %9490 = vmatpush1.bf16.msra.mxu0 %v9471
    %9491 = vmatprep.subr.bf16.mxu0 0
    %9492 = vmatpush1.bf16.msra.mxu0 %v9472
    %9493 = vmatprep.subr.bf16.mxu0 0
    %9494 = vmatpush1.bf16.msra.mxu0 %v9473
    %9495 = vmatprep.subr.bf16.mxu0 0
    %9496 = vmatpush1.bf16.msra.mxu0 %v9474
    %9497 = vmatprep.subr.bf16.mxu0 0
    %9498 = vmatpush1.bf16.msra.mxu0 %v9475
    %9499 = vmatprep.subr.bf16.mxu0 0
    %9500 = vmatpush1.bf16.msra.mxu0 %v9476
    %9501 = vmatprep.subr.bf16.mxu0 0
    %9502 = vmatpush1.bf16.msra.mxu0 0
    %9503 = vmatprep.subr.bf16.mxu0 0
    %9504 = vmatpush1.bf16.msra.mxu0 0
    %9505 = vmatprep.subr.bf16.mxu0 0
    %9506 = vmatpush1.bf16.msra.mxu0 0
    %9507 = vmatprep.subr.bf16.mxu0 0
    %9508 = vmatpush1.bf16.msra.mxu0 0
    %9509 = vmatprep.subr.bf16.mxu0 0
    %9510 = vmatpush1.bf16.msra.mxu0 0
    %9511 = vmatprep.subr.bf16.mxu0 0
    %9512 = vmatpush1.bf16.msra.mxu0 0
    %9513 = vmatprep.subr.bf16.mxu0 0
    %9514 = vmatpush1.bf16.msra.mxu0 0
    %9515 = vmatprep.subr.bf16.mxu0 0
    %9516 = vmatpush1.bf16.msra.mxu0 0
    %9517 = vmatprep.mubr.bf16.mxu0 0
    %9518 = vmatmul.mubr.bf16.gmra.mrb[0].mxu0 %v9418
    %v9519 = vpop.f32.mrb[0].mxu0
    %v9520 = vadd.f32 0.0, %v9519
    %v9521 = vpop.f32.mrb[0].mxu0
    %v9522 = vpop.f32.mrb[0].mxu0
    %v9523 = vadd.f32 0.0, %v9522
    %v9524 = vpop.f32.mrb[0].mxu0
    %9525 = vmatprep.mubr.bf16.mxu0 0
    %9526 = vmatmul.mubr.bf16.gmra.mrb[0].mxu0 %v9419
    %v9527 = vpop.f32.mrb[0].mxu0
    %v9528 = vadd.f32 0.0, %v9527
    %v9529 = vpop.f32.mrb[0].mxu0
    %v9530 = vpop.f32.mrb[0].mxu0
    %v9531 = vpop.f32.mrb[0].mxu0
    %9532 = vdwg.mxu0
    %v9533 = vadd.f32 %v9411, %v9520
    %v9534 = vadd.f32 %v9412, %v9523
    %v9535 = vadd.f32 %v9413, %v9528
    %v9537 = vlaneseq
    %v9538 = vshrl.u32 %v9537, 7
    %v9539 = vsub.s32 0, %v9538
    %v9540 = vrot.slane %v8439, %v9539
    %v9542 = vadd.f32 %v9533, %v9540
    %v9543 = vadd.f32 %v9534, %v9540
    %v9544 = vadd.f32 %v9535, %v9540
    %v9545 = vmax.f32 %v9542, 0.0
    %v9546 = vmax.f32 %v9543, 0.0
    %v9547 = vmax.f32 %v9544, 0.0
    %9548 = vst [vmem:[#allocation4] sm:$0xff] %v9545
    %9549 = vst [vmem:[#allocation4 + $0x8] sm:$0xff] %v9546
    %9550 = vst [vmem:[#allocation4 + $0x10] sm:$0x3] %v9547
    %s9551 = scalar_lea.vmem [#allocation3], 96
    %v9552 = vld [vmem:[%s9551] ss:$2 sm:$0xff]
    %s9553 = scalar_lea.vmem [#allocation3], 112
    %v9554 = vld [vmem:[%s9553] ss:$2 sm:$0xff]
    %s9555 = scalar_lea.vmem [#allocation3], 128
    %v9556 = vld [vmem:[%s9555] ss:$2 sm:$0x3]
    %v9557 = vpack.c.bf16 %v9554, %v9552
    %v9558 = vpack.c.bf16 %v9556, %v9556
    %v9559 = vld [vmem:[#allocation5] sm:$0xf]
    %v9560 = vld [vmem:[#allocation5 + $0x4] sm:$0xf]
    %v9561 = vld [vmem:[#allocation5 + $0x8] sm:$0xf]
    %v9562 = vld [vmem:[#allocation5 + $0xc] sm:$0xf]
    %v9563 = vld [vmem:[#allocation5 + $0x10] sm:$0xf]
    %v9564 = vld [vmem:[#allocation5 + $0x14] sm:$0xf]
    %v9565 = vld [vmem:[#allocation5 + $0x18] sm:$0xf]
    %v9566 = vld [vmem:[#allocation5 + $0x1c] sm:$0xf]
    %v9567 = vld [vmem:[#allocation5 + $0x20] sm:$0xf]
    %v9568 = vld [vmem:[#allocation5 + $0x24] sm:$0xf]
    %v9569 = vld [vmem:[#allocation5 + $0x28] sm:$0xf]
    %v9570 = vld [vmem:[#allocation5 + $0x2c] sm:$0xf]
    %v9571 = vld [vmem:[#allocation5 + $0x30] sm:$0xf]
    %v9572 = vld [vmem:[#allocation5 + $0x34] sm:$0xf]
    %v9573 = vld [vmem:[#allocation5 + $0x38] sm:$0xf]
    %v9574 = vld [vmem:[#allocation5 + $0x3c] sm:$0xf]
    %s9575 = scalar_lea.vmem [#allocation3], 97
    %v9576 = vld [vmem:[%s9575] ss:$2 sm:$0xff]
    %s9577 = scalar_lea.vmem [#allocation3], 113
    %v9578 = vld [vmem:[%s9577] ss:$2 sm:$0xff]
    %s9579 = scalar_lea.vmem [#allocation3], 129
    %v9580 = vld [vmem:[%s9579] ss:$2 sm:$0x3]
    %v9581 = vpack.c.bf16 %v9578, %v9576
    %v9582 = vpack.c.bf16 %v9580, %v9580
    %v9583 = vld [vmem:[%s8471] sm:$0xf]
    %v9584 = vld [vmem:[%s8471 + $0x4] sm:$0xf]
    %v9585 = vld [vmem:[%s8471 + $0x8] sm:$0xf]
    %v9586 = vld [vmem:[%s8471 + $0xc] sm:$0xf]
    %v9587 = vld [vmem:[%s8471 + $0x10] sm:$0xf]
    %v9588 = vld [vmem:[%s8471 + $0x14] sm:$0xf]
    %v9589 = vld [vmem:[%s8471 + $0x18] sm:$0xf]
    %v9590 = vld [vmem:[%s8471 + $0x1c] sm:$0xf]
    %v9591 = vld [vmem:[%s8471 + $0x20] sm:$0xf]
    %v9592 = vld [vmem:[%s8471 + $0x24] sm:$0xf]
    %v9593 = vld [vmem:[%s8471 + $0x28] sm:$0xf]
    %v9594 = vld [vmem:[%s8471 + $0x2c] sm:$0xf]
    %v9595 = vld [vmem:[%s8471 + $0x30] sm:$0xf]
    %v9596 = vld [vmem:[%s8471 + $0x34] sm:$0xf]
    %v9597 = vld [vmem:[%s8471 + $0x38] sm:$0xf]
    %v9598 = vld [vmem:[%s8471 + $0x3c] sm:$0xf]
    %v9615 = vunpack.c.l.b16 %v9583
    %v9616 = vunpack.c.l.b16 %v9584
    %v9617 = vunpack.c.l.b16 %v9585
    %v9618 = vunpack.c.l.b16 %v9586
    %v9619 = vunpack.c.l.b16 %v9587
    %v9620 = vunpack.c.l.b16 %v9588
    %v9621 = vunpack.c.l.b16 %v9589
    %v9622 = vunpack.c.l.b16 %v9590
    %v9623 = vunpack.c.l.b16 %v9591
    %v9624 = vunpack.c.l.b16 %v9592
    %v9625 = vunpack.c.l.b16 %v9593
    %v9626 = vunpack.c.l.b16 %v9594
    %v9627 = vunpack.c.l.b16 %v9595
    %v9628 = vunpack.c.l.b16 %v9596
    %v9629 = vunpack.c.l.b16 %v9597
    %v9630 = vunpack.c.l.b16 %v9598
    %v9631 = vpack.c.b16 %v9616, %v9615
    %v9632 = vpack.c.b16 %v9618, %v9617
    %v9633 = vpack.c.b16 %v9620, %v9619
    %v9634 = vpack.c.b16 %v9622, %v9621
    %v9635 = vpack.c.b16 %v9624, %v9623
    %v9636 = vpack.c.b16 %v9626, %v9625
    %v9637 = vpack.c.b16 %v9628, %v9627
    %v9638 = vpack.c.b16 %v9630, %v9629
    %9647 = vmatprep.subr.bf16.mxu0 0
    %9648 = vmatpush1.bf16.msra.mxu0 %v9631
    %9649 = vmatprep.subr.bf16.mxu0 0
    %9650 = vmatpush1.bf16.msra.mxu0 %v9632
    %9651 = vmatprep.subr.bf16.mxu0 0
    %9652 = vmatpush1.bf16.msra.mxu0 %v9633
    %9653 = vmatprep.subr.bf16.mxu0 0
    %9654 = vmatpush1.bf16.msra.mxu0 %v9634
    %9655 = vmatprep.subr.bf16.mxu0 0
    %9656 = vmatpush1.bf16.msra.mxu0 %v9635
    %9657 = vmatprep.subr.bf16.mxu0 0
    %9658 = vmatpush1.bf16.msra.mxu0 %v9636
    %9659 = vmatprep.subr.bf16.mxu0 0
    %9660 = vmatpush1.bf16.msra.mxu0 %v9637
    %9661 = vmatprep.subr.bf16.mxu0 0
    %9662 = vmatpush1.bf16.msra.mxu0 %v9638
    %9663 = vmatprep.subr.bf16.mxu0 0
    %9664 = vmatpush1.bf16.msra.mxu0 0
    %9665 = vmatprep.subr.bf16.mxu0 0
    %9666 = vmatpush1.bf16.msra.mxu0 0
    %9667 = vmatprep.subr.bf16.mxu0 0
    %9668 = vmatpush1.bf16.msra.mxu0 0
    %9669 = vmatprep.subr.bf16.mxu0 0
    %9670 = vmatpush1.bf16.msra.mxu0 0
    %9671 = vmatprep.subr.bf16.mxu0 0
    %9672 = vmatpush1.bf16.msra.mxu0 0
    %9673 = vmatprep.subr.bf16.mxu0 0
    %9674 = vmatpush1.bf16.msra.mxu0 0
    %9675 = vmatprep.subr.bf16.mxu0 0
    %9676 = vmatpush1.bf16.msra.mxu0 0
    %9677 = vmatprep.subr.bf16.mxu0 0
    %9678 = vmatpush1.bf16.msra.mxu0 0
    %9679 = vmatprep.mubr.bf16.mxu0 0
    %9680 = vmatmul.mubr.bf16.gmra.mrb[0].mxu0 %v9581
    %v9681 = vpop.f32.mrb[0].mxu0
    %v9682 = vadd.f32 0.0, %v9681
    %v9683 = vpop.f32.mrb[0].mxu0
    %v9684 = vpop.f32.mrb[0].mxu0
    %v9685 = vadd.f32 0.0, %v9684
    %v9686 = vpop.f32.mrb[0].mxu0
    %9687 = vmatprep.mubr.bf16.mxu0 0
    %9688 = vmatmul.mubr.bf16.gmra.mrb[0].mxu0 %v9582
    %v9689 = vpop.f32.mrb[0].mxu0
    %v9690 = vadd.f32 0.0, %v9689
    %v9691 = vpop.f32.mrb[0].mxu0
    %v9692 = vpop.f32.mrb[0].mxu0
    %v9693 = vpop.f32.mrb[0].mxu0
    %9694 = vdwg.mxu0
    %v9711 = vunpack.c.l.b16 %v9559
    %v9712 = vunpack.c.l.b16 %v9560
    %v9713 = vunpack.c.l.b16 %v9561
    %v9714 = vunpack.c.l.b16 %v9562
    %v9715 = vunpack.c.l.b16 %v9563
    %v9716 = vunpack.c.l.b16 %v9564
    %v9717 = vunpack.c.l.b16 %v9565
    %v9718 = vunpack.c.l.b16 %v9566
    %v9719 = vunpack.c.l.b16 %v9567
    %v9720 = vunpack.c.l.b16 %v9568
    %v9721 = vunpack.c.l.b16 %v9569
    %v9722 = vunpack.c.l.b16 %v9570
    %v9723 = vunpack.c.l.b16 %v9571
    %v9724 = vunpack.c.l.b16 %v9572
    %v9725 = vunpack.c.l.b16 %v9573
    %v9726 = vunpack.c.l.b16 %v9574
    %v9727 = vpack.c.b16 %v9712, %v9711
    %v9728 = vpack.c.b16 %v9714, %v9713
    %v9729 = vpack.c.b16 %v9716, %v9715
    %v9730 = vpack.c.b16 %v9718, %v9717
    %v9731 = vpack.c.b16 %v9720, %v9719
    %v9732 = vpack.c.b16 %v9722, %v9721
    %v9733 = vpack.c.b16 %v9724, %v9723
    %v9734 = vpack.c.b16 %v9726, %v9725
    %9743 = vmatprep.subr.bf16.mxu0 0
    %9744 = vmatpush1.bf16.msra.mxu0 %v9727
    %9745 = vmatprep.subr.bf16.mxu0 0
    %9746 = vmatpush1.bf16.msra.mxu0 %v9728
    %9747 = vmatprep.subr.bf16.mxu0 0
    %9748 = vmatpush1.bf16.msra.mxu0 %v9729
    %9749 = vmatprep.subr.bf16.mxu0 0
    %9750 = vmatpush1.bf16.msra.mxu0 %v9730
    %9751 = vmatprep.subr.bf16.mxu0 0
    %9752 = vmatpush1.bf16.msra.mxu0 %v9731
    %9753 = vmatprep.subr.bf16.mxu0 0
    %9754 = vmatpush1.bf16.msra.mxu0 %v9732
    %9755 = vmatprep.subr.bf16.mxu0 0
    %9756 = vmatpush1.bf16.msra.mxu0 %v9733
    %9757 = vmatprep.subr.bf16.mxu0 0
    %9758 = vmatpush1.bf16.msra.mxu0 %v9734
    %9759 = vmatprep.subr.bf16.mxu0 0
    %9760 = vmatpush1.bf16.msra.mxu0 0
    %9761 = vmatprep.subr.bf16.mxu0 0
    %9762 = vmatpush1.bf16.msra.mxu0 0
    %9763 = vmatprep.subr.bf16.mxu0 0
    %9764 = vmatpush1.bf16.msra.mxu0 0
    %9765 = vmatprep.subr.bf16.mxu0 0
    %9766 = vmatpush1.bf16.msra.mxu0 0
    %9767 = vmatprep.subr.bf16.mxu0 0
    %9768 = vmatpush1.bf16.msra.mxu0 0
    %9769 = vmatprep.subr.bf16.mxu0 0
    %9770 = vmatpush1.bf16.msra.mxu0 0
    %9771 = vmatprep.subr.bf16.mxu0 0
    %9772 = vmatpush1.bf16.msra.mxu0 0
    %9773 = vmatprep.subr.bf16.mxu0 0
    %9774 = vmatpush1.bf16.msra.mxu0 0
    %9775 = vmatprep.mubr.bf16.mxu0 0
    %9776 = vmatmul.mubr.bf16.gmra.mrb[0].mxu0 %v9557
    %v9777 = vpop.f32.mrb[0].mxu0
    %v9778 = vadd.f32 %v9682, %v9777
    %v9779 = vpop.f32.mrb[0].mxu0
    %v9780 = vpop.f32.mrb[0].mxu0
    %v9781 = vadd.f32 %v9685, %v9780
    %v9782 = vpop.f32.mrb[0].mxu0
    %9783 = vmatprep.mubr.bf16.mxu0 0
    %9784 = vmatmul.mubr.bf16.gmra.mrb[0].mxu0 %v9558
    %v9785 = vpop.f32.mrb[0].mxu0
    %v9786 = vadd.f32 %v9690, %v9785
    %v9787 = vpop.f32.mrb[0].mxu0
    %v9788 = vpop.f32.mrb[0].mxu0
    %v9789 = vpop.f32.mrb[0].mxu0
    %9790 = vdwg.mxu0
    %s9791 = scalar_lea.vmem [#allocation3], 98
    %v9792 = vld [vmem:[%s9791] ss:$2 sm:$0xff]
    %s9793 = scalar_lea.vmem [#allocation3], 114
    %v9794 = vld [vmem:[%s9793] ss:$2 sm:$0xff]
    %s9795 = scalar_lea.vmem [#allocation3], 130
    %v9796 = vld [vmem:[%s9795] ss:$2 sm:$0x3]
    %v9797 = vpack.c.bf16 %v9794, %v9792
    %v9798 = vpack.c.bf16 %v9796, %v9796
    %v9799 = vld [vmem:[%s8688] sm:$0xf]
    %v9800 = vld [vmem:[%s8688 + $0x4] sm:$0xf]
    %v9801 = vld [vmem:[%s8688 + $0x8] sm:$0xf]
    %v9802 = vld [vmem:[%s8688 + $0xc] sm:$0xf]
    %v9803 = vld [vmem:[%s8688 + $0x10] sm:$0xf]
    %v9804 = vld [vmem:[%s8688 + $0x14] sm:$0xf]
    %v9805 = vld [vmem:[%s8688 + $0x18] sm:$0xf]
    %v9806 = vld [vmem:[%s8688 + $0x1c] sm:$0xf]
    %v9807 = vld [vmem:[%s8688 + $0x20] sm:$0xf]
    %v9808 = vld [vmem:[%s8688 + $0x24] sm:$0xf]
    %v9809 = vld [vmem:[%s8688 + $0x28] sm:$0xf]
    %v9810 = vld [vmem:[%s8688 + $0x2c] sm:$0xf]
    %v9811 = vld [vmem:[%s8688 + $0x30] sm:$0xf]
    %v9812 = vld [vmem:[%s8688 + $0x34] sm:$0xf]
    %v9813 = vld [vmem:[%s8688 + $0x38] sm:$0xf]
    %v9814 = vld [vmem:[%s8688 + $0x3c] sm:$0xf]
    %v9831 = vunpack.c.l.b16 %v9799
    %v9832 = vunpack.c.l.b16 %v9800
    %v9833 = vunpack.c.l.b16 %v9801
    %v9834 = vunpack.c.l.b16 %v9802
    %v9835 = vunpack.c.l.b16 %v9803
    %v9836 = vunpack.c.l.b16 %v9804
    %v9837 = vunpack.c.l.b16 %v9805
    %v9838 = vunpack.c.l.b16 %v9806
    %v9839 = vunpack.c.l.b16 %v9807
    %v9840 = vunpack.c.l.b16 %v9808
    %v9841 = vunpack.c.l.b16 %v9809
    %v9842 = vunpack.c.l.b16 %v9810
    %v9843 = vunpack.c.l.b16 %v9811
    %v9844 = vunpack.c.l.b16 %v9812
    %v9845 = vunpack.c.l.b16 %v9813
    %v9846 = vunpack.c.l.b16 %v9814
    %v9847 = vpack.c.b16 %v9832, %v9831
    %v9848 = vpack.c.b16 %v9834, %v9833
    %v9849 = vpack.c.b16 %v9836, %v9835
    %v9850 = vpack.c.b16 %v9838, %v9837
    %v9851 = vpack.c.b16 %v9840, %v9839
    %v9852 = vpack.c.b16 %v9842, %v9841
    %v9853 = vpack.c.b16 %v9844, %v9843
    %v9854 = vpack.c.b16 %v9846, %v9845
    %9863 = vmatprep.subr.bf16.mxu0 0
    %9864 = vmatpush1.bf16.msra.mxu0 %v9847
    %9865 = vmatprep.subr.bf16.mxu0 0
    %9866 = vmatpush1.bf16.msra.mxu0 %v9848
    %9867 = vmatprep.subr.bf16.mxu0 0
    %9868 = vmatpush1.bf16.msra.mxu0 %v9849
    %9869 = vmatprep.subr.bf16.mxu0 0
    %9870 = vmatpush1.bf16.msra.mxu0 %v9850
    %9871 = vmatprep.subr.bf16.mxu0 0
    %9872 = vmatpush1.bf16.msra.mxu0 %v9851
    %9873 = vmatprep.subr.bf16.mxu0 0
    %9874 = vmatpush1.bf16.msra.mxu0 %v9852
    %9875 = vmatprep.subr.bf16.mxu0 0
    %9876 = vmatpush1.bf16.msra.mxu0 %v9853
    %9877 = vmatprep.subr.bf16.mxu0 0
    %9878 = vmatpush1.bf16.msra.mxu0 %v9854
    %9879 = vmatprep.subr.bf16.mxu0 0
    %9880 = vmatpush1.bf16.msra.mxu0 0
    %9881 = vmatprep.subr.bf16.mxu0 0
    %9882 = vmatpush1.bf16.msra.mxu0 0
    %9883 = vmatprep.subr.bf16.mxu0 0
    %9884 = vmatpush1.bf16.msra.mxu0 0
    %9885 = vmatprep.subr.bf16.mxu0 0
    %9886 = vmatpush1.bf16.msra.mxu0 0
    %9887 = vmatprep.subr.bf16.mxu0 0
    %9888 = vmatpush1.bf16.msra.mxu0 0
    %9889 = vmatprep.subr.bf16.mxu0 0
    %9890 = vmatpush1.bf16.msra.mxu0 0
    %9891 = vmatprep.subr.bf16.mxu0 0
    %9892 = vmatpush1.bf16.msra.mxu0 0
    %9893 = vmatprep.subr.bf16.mxu0 0
    %9894 = vmatpush1.bf16.msra.mxu0 0
    %9895 = vmatprep.mubr.bf16.mxu0 0
    %9896 = vmatmul.mubr.bf16.gmra.mrb[0].mxu0 %v9797
    %v9897 = vpop.f32.mrb[0].mxu0
    %v9898 = vadd.f32 0.0, %v9897
    %v9899 = vpop.f32.mrb[0].mxu0
    %v9900 = vpop.f32.mrb[0].mxu0
    %v9901 = vadd.f32 0.0, %v9900
    %v9902 = vpop.f32.mrb[0].mxu0
    %9903 = vmatprep.mubr.bf16.mxu0 0
    %9904 = vmatmul.mubr.bf16.gmra.mrb[0].mxu0 %v9798
    %v9905 = vpop.f32.mrb[0].mxu0
    %v9906 = vadd.f32 0.0, %v9905
    %v9907 = vpop.f32.mrb[0].mxu0
    %v9908 = vpop.f32.mrb[0].mxu0
    %v9909 = vpop.f32.mrb[0].mxu0
    %9910 = vdwg.mxu0
    %v9911 = vadd.f32 %v9778, %v9898
    %v9912 = vadd.f32 %v9781, %v9901
    %v9913 = vadd.f32 %v9786, %v9906
    %v9914 = vld [vmem:[%s9553] ss:$2 sm:$0xff]
    %v9915 = vld [vmem:[%s9555] ss:$2 sm:$0xff]
    %s9916 = scalar_lea.vmem [#allocation3], 144
    %v9917 = vld [vmem:[%s9916] ss:$2 sm:$0x3]
    %v9918 = vpack.c.bf16 %v9915, %v9914
    %v9919 = vpack.c.bf16 %v9917, %v9917
    %v9920 = vld [vmem:[%s8810] sm:$0xf]
    %v9921 = vld [vmem:[%s8810 + $0x4] sm:$0xf]
    %v9922 = vld [vmem:[%s8810 + $0x8] sm:$0xf]
    %v9923 = vld [vmem:[%s8810 + $0xc] sm:$0xf]
    %v9924 = vld [vmem:[%s8810 + $0x10] sm:$0xf]
    %v9925 = vld [vmem:[%s8810 + $0x14] sm:$0xf]
    %v9926 = vld [vmem:[%s8810 + $0x18] sm:$0xf]
    %v9927 = vld [vmem:[%s8810 + $0x1c] sm:$0xf]
    %v9928 = vld [vmem:[%s8810 + $0x20] sm:$0xf]
    %v9929 = vld [vmem:[%s8810 + $0x24] sm:$0xf]
    %v9930 = vld [vmem:[%s8810 + $0x28] sm:$0xf]
    %v9931 = vld [vmem:[%s8810 + $0x2c] sm:$0xf]
    %v9932 = vld [vmem:[%s8810 + $0x30] sm:$0xf]
    %v9933 = vld [vmem:[%s8810 + $0x34] sm:$0xf]
    %v9934 = vld [vmem:[%s8810 + $0x38] sm:$0xf]
    %v9935 = vld [vmem:[%s8810 + $0x3c] sm:$0xf]
    %v9952 = vunpack.c.l.b16 %v9920
    %v9953 = vunpack.c.l.b16 %v9921
    %v9954 = vunpack.c.l.b16 %v9922
    %v9955 = vunpack.c.l.b16 %v9923
    %v9956 = vunpack.c.l.b16 %v9924
    %v9957 = vunpack.c.l.b16 %v9925
    %v9958 = vunpack.c.l.b16 %v9926
    %v9959 = vunpack.c.l.b16 %v9927
    %v9960 = vunpack.c.l.b16 %v9928
    %v9961 = vunpack.c.l.b16 %v9929
    %v9962 = vunpack.c.l.b16 %v9930
    %v9963 = vunpack.c.l.b16 %v9931
    %v9964 = vunpack.c.l.b16 %v9932
    %v9965 = vunpack.c.l.b16 %v9933
    %v9966 = vunpack.c.l.b16 %v9934
    %v9967 = vunpack.c.l.b16 %v9935
    %v9968 = vpack.c.b16 %v9953, %v9952
    %v9969 = vpack.c.b16 %v9955, %v9954
    %v9970 = vpack.c.b16 %v9957, %v9956
    %v9971 = vpack.c.b16 %v9959, %v9958
    %v9972 = vpack.c.b16 %v9961, %v9960
    %v9973 = vpack.c.b16 %v9963, %v9962
    %v9974 = vpack.c.b16 %v9965, %v9964
    %v9975 = vpack.c.b16 %v9967, %v9966
    %9984 = vmatprep.subr.bf16.mxu0 0
    %9985 = vmatpush1.bf16.msra.mxu0 %v9968
    %9986 = vmatprep.subr.bf16.mxu0 0
    %9987 = vmatpush1.bf16.msra.mxu0 %v9969
    %9988 = vmatprep.subr.bf16.mxu0 0
    %9989 = vmatpush1.bf16.msra.mxu0 %v9970
    %9990 = vmatprep.subr.bf16.mxu0 0
    %9991 = vmatpush1.bf16.msra.mxu0 %v9971
    %9992 = vmatprep.subr.bf16.mxu0 0
    %9993 = vmatpush1.bf16.msra.mxu0 %v9972
    %9994 = vmatprep.subr.bf16.mxu0 0
    %9995 = vmatpush1.bf16.msra.mxu0 %v9973
    %9996 = vmatprep.subr.bf16.mxu0 0
    %9997 = vmatpush1.bf16.msra.mxu0 %v9974
    %9998 = vmatprep.subr.bf16.mxu0 0
    %9999 = vmatpush1.bf16.msra.mxu0 %v9975
    %10000 = vmatprep.subr.bf16.mxu0 0
    %10001 = vmatpush1.bf16.msra.mxu0 0
    %10002 = vmatprep.subr.bf16.mxu0 0
    %10003 = vmatpush1.bf16.msra.mxu0 0
    %10004 = vmatprep.subr.bf16.mxu0 0
    %10005 = vmatpush1.bf16.msra.mxu0 0
    %10006 = vmatprep.subr.bf16.mxu0 0
    %10007 = vmatpush1.bf16.msra.mxu0 0
    %10008 = vmatprep.subr.bf16.mxu0 0
    %10009 = vmatpush1.bf16.msra.mxu0 0
    %10010 = vmatprep.subr.bf16.mxu0 0
    %10011 = vmatpush1.bf16.msra.mxu0 0
    %10012 = vmatprep.subr.bf16.mxu0 0
    %10013 = vmatpush1.bf16.msra.mxu0 0
    %10014 = vmatprep.subr.bf16.mxu0 0
    %10015 = vmatpush1.bf16.msra.mxu0 0
    %10016 = vmatprep.mubr.bf16.mxu0 0
    %10017 = vmatmul.mubr.bf16.gmra.mrb[0].mxu0 %v9918
    %v10018 = vpop.f32.mrb[0].mxu0
    %v10019 = vadd.f32 0.0, %v10018
    %v10020 = vpop.f32.mrb[0].mxu0
    %v10021 = vpop.f32.mrb[0].mxu0
    %v10022 = vadd.f32 0.0, %v10021
    %v10023 = vpop.f32.mrb[0].mxu0
    %10024 = vmatprep.mubr.bf16.mxu0 0
    %10025 = vmatmul.mubr.bf16.gmra.mrb[0].mxu0 %v9919
    %v10026 = vpop.f32.mrb[0].mxu0
    %v10027 = vadd.f32 0.0, %v10026
    %v10028 = vpop.f32.mrb[0].mxu0
    %v10029 = vpop.f32.mrb[0].mxu0
    %v10030 = vpop.f32.mrb[0].mxu0
    %10031 = vdwg.mxu0
    %v10032 = vadd.f32 %v9911, %v10019
    %v10033 = vadd.f32 %v9912, %v10022
    %v10034 = vadd.f32 %v9913, %v10027
    %v10035 = vld [vmem:[%s9577] ss:$2 sm:$0xff]
    %v10036 = vld [vmem:[%s9579] ss:$2 sm:$0xff]
    %s10037 = scalar_lea.vmem [#allocation3], 145
    %v10038 = vld [vmem:[%s10037] ss:$2 sm:$0x3]
    %v10039 = vpack.c.bf16 %v10036, %v10035
    %v10040 = vpack.c.bf16 %v10038, %v10038
    %v10041 = vld [vmem:[%s8932] sm:$0xf]
    %v10042 = vld [vmem:[%s8932 + $0x4] sm:$0xf]
    %v10043 = vld [vmem:[%s8932 + $0x8] sm:$0xf]
    %v10044 = vld [vmem:[%s8932 + $0xc] sm:$0xf]
    %v10045 = vld [vmem:[%s8932 + $0x10] sm:$0xf]
    %v10046 = vld [vmem:[%s8932 + $0x14] sm:$0xf]
    %v10047 = vld [vmem:[%s8932 + $0x18] sm:$0xf]
    %v10048 = vld [vmem:[%s8932 + $0x1c] sm:$0xf]
    %v10049 = vld [vmem:[%s8932 + $0x20] sm:$0xf]
    %v10050 = vld [vmem:[%s8932 + $0x24] sm:$0xf]
    %v10051 = vld [vmem:[%s8932 + $0x28] sm:$0xf]
    %v10052 = vld [vmem:[%s8932 + $0x2c] sm:$0xf]
    %v10053 = vld [vmem:[%s8932 + $0x30] sm:$0xf]
    %v10054 = vld [vmem:[%s8932 + $0x34] sm:$0xf]
    %v10055 = vld [vmem:[%s8932 + $0x38] sm:$0xf]
    %v10056 = vld [vmem:[%s8932 + $0x3c] sm:$0xf]
    %v10073 = vunpack.c.l.b16 %v10041
    %v10074 = vunpack.c.l.b16 %v10042
    %v10075 = vunpack.c.l.b16 %v10043
    %v10076 = vunpack.c.l.b16 %v10044
    %v10077 = vunpack.c.l.b16 %v10045
    %v10078 = vunpack.c.l.b16 %v10046
    %v10079 = vunpack.c.l.b16 %v10047
    %v10080 = vunpack.c.l.b16 %v10048
    %v10081 = vunpack.c.l.b16 %v10049
    %v10082 = vunpack.c.l.b16 %v10050
    %v10083 = vunpack.c.l.b16 %v10051
    %v10084 = vunpack.c.l.b16 %v10052
    %v10085 = vunpack.c.l.b16 %v10053
    %v10086 = vunpack.c.l.b16 %v10054
    %v10087 = vunpack.c.l.b16 %v10055
    %v10088 = vunpack.c.l.b16 %v10056
    %v10089 = vpack.c.b16 %v10074, %v10073
    %v10090 = vpack.c.b16 %v10076, %v10075
    %v10091 = vpack.c.b16 %v10078, %v10077
    %v10092 = vpack.c.b16 %v10080, %v10079
    %v10093 = vpack.c.b16 %v10082, %v10081
    %v10094 = vpack.c.b16 %v10084, %v10083
    %v10095 = vpack.c.b16 %v10086, %v10085
    %v10096 = vpack.c.b16 %v10088, %v10087
    %10105 = vmatprep.subr.bf16.mxu0 0
    %10106 = vmatpush1.bf16.msra.mxu0 %v10089
    %10107 = vmatprep.subr.bf16.mxu0 0
    %10108 = vmatpush1.bf16.msra.mxu0 %v10090
    %10109 = vmatprep.subr.bf16.mxu0 0
    %10110 = vmatpush1.bf16.msra.mxu0 %v10091
    %10111 = vmatprep.subr.bf16.mxu0 0
    %10112 = vmatpush1.bf16.msra.mxu0 %v10092
    %10113 = vmatprep.subr.bf16.mxu0 0
    %10114 = vmatpush1.bf16.msra.mxu0 %v10093
    %10115 = vmatprep.subr.bf16.mxu0 0
    %10116 = vmatpush1.bf16.msra.mxu0 %v10094
    %10117 = vmatprep.subr.bf16.mxu0 0
    %10118 = vmatpush1.bf16.msra.mxu0 %v10095
    %10119 = vmatprep.subr.bf16.mxu0 0
    %10120 = vmatpush1.bf16.msra.mxu0 %v10096
    %10121 = vmatprep.subr.bf16.mxu0 0
    %10122 = vmatpush1.bf16.msra.mxu0 0
    %10123 = vmatprep.subr.bf16.mxu0 0
    %10124 = vmatpush1.bf16.msra.mxu0 0
    %10125 = vmatprep.subr.bf16.mxu0 0
    %10126 = vmatpush1.bf16.msra.mxu0 0
    %10127 = vmatprep.subr.bf16.mxu0 0
    %10128 = vmatpush1.bf16.msra.mxu0 0
    %10129 = vmatprep.subr.bf16.mxu0 0
    %10130 = vmatpush1.bf16.msra.mxu0 0
    %10131 = vmatprep.subr.bf16.mxu0 0
    %10132 = vmatpush1.bf16.msra.mxu0 0
    %10133 = vmatprep.subr.bf16.mxu0 0
    %10134 = vmatpush1.bf16.msra.mxu0 0
    %10135 = vmatprep.subr.bf16.mxu0 0
    %10136 = vmatpush1.bf16.msra.mxu0 0
    %10137 = vmatprep.mubr.bf16.mxu0 0
    %10138 = vmatmul.mubr.bf16.gmra.mrb[0].mxu0 %v10039
    %v10139 = vpop.f32.mrb[0].mxu0
    %v10140 = vadd.f32 0.0, %v10139
    %v10141 = vpop.f32.mrb[0].mxu0
    %v10142 = vpop.f32.mrb[0].mxu0
    %v10143 = vadd.f32 0.0, %v10142
    %v10144 = vpop.f32.mrb[0].mxu0
    %10145 = vmatprep.mubr.bf16.mxu0 0
    %10146 = vmatmul.mubr.bf16.gmra.mrb[0].mxu0 %v10040
    %v10147 = vpop.f32.mrb[0].mxu0
    %v10148 = vadd.f32 0.0, %v10147
    %v10149 = vpop.f32.mrb[0].mxu0
    %v10150 = vpop.f32.mrb[0].mxu0
    %v10151 = vpop.f32.mrb[0].mxu0
    %10152 = vdwg.mxu0
    %v10153 = vadd.f32 %v10032, %v10140
    %v10154 = vadd.f32 %v10033, %v10143
    %v10155 = vadd.f32 %v10034, %v10148
    %v10156 = vld [vmem:[%s9793] ss:$2 sm:$0xff]
    %v10157 = vld [vmem:[%s9795] ss:$2 sm:$0xff]
    %s10158 = scalar_lea.vmem [#allocation3], 146
    %v10159 = vld [vmem:[%s10158] ss:$2 sm:$0x3]
    %v10160 = vpack.c.bf16 %v10157, %v10156
    %v10161 = vpack.c.bf16 %v10159, %v10159
    %v10162 = vld [vmem:[%s9054] sm:$0xf]
    %v10163 = vld [vmem:[%s9054 + $0x4] sm:$0xf]
    %v10164 = vld [vmem:[%s9054 + $0x8] sm:$0xf]
    %v10165 = vld [vmem:[%s9054 + $0xc] sm:$0xf]
    %v10166 = vld [vmem:[%s9054 + $0x10] sm:$0xf]
    %v10167 = vld [vmem:[%s9054 + $0x14] sm:$0xf]
    %v10168 = vld [vmem:[%s9054 + $0x18] sm:$0xf]
    %v10169 = vld [vmem:[%s9054 + $0x1c] sm:$0xf]
    %v10170 = vld [vmem:[%s9054 + $0x20] sm:$0xf]
    %v10171 = vld [vmem:[%s9054 + $0x24] sm:$0xf]
    %v10172 = vld [vmem:[%s9054 + $0x28] sm:$0xf]
    %v10173 = vld [vmem:[%s9054 + $0x2c] sm:$0xf]
    %v10174 = vld [vmem:[%s9054 + $0x30] sm:$0xf]
    %v10175 = vld [vmem:[%s9054 + $0x34] sm:$0xf]
    %v10176 = vld [vmem:[%s9054 + $0x38] sm:$0xf]
    %v10177 = vld [vmem:[%s9054 + $0x3c] sm:$0xf]
    %v10194 = vunpack.c.l.b16 %v10162
    %v10195 = vunpack.c.l.b16 %v10163
    %v10196 = vunpack.c.l.b16 %v10164
    %v10197 = vunpack.c.l.b16 %v10165
    %v10198 = vunpack.c.l.b16 %v10166
    %v10199 = vunpack.c.l.b16 %v10167
    %v10200 = vunpack.c.l.b16 %v10168
    %v10201 = vunpack.c.l.b16 %v10169
    %v10202 = vunpack.c.l.b16 %v10170
    %v10203 = vunpack.c.l.b16 %v10171
    %v10204 = vunpack.c.l.b16 %v10172
    %v10205 = vunpack.c.l.b16 %v10173
    %v10206 = vunpack.c.l.b16 %v10174
    %v10207 = vunpack.c.l.b16 %v10175
    %v10208 = vunpack.c.l.b16 %v10176
    %v10209 = vunpack.c.l.b16 %v10177
    %v10210 = vpack.c.b16 %v10195, %v10194
    %v10211 = vpack.c.b16 %v10197, %v10196
    %v10212 = vpack.c.b16 %v10199, %v10198
    %v10213 = vpack.c.b16 %v10201, %v10200
    %v10214 = vpack.c.b16 %v10203, %v10202
    %v10215 = vpack.c.b16 %v10205, %v10204
    %v10216 = vpack.c.b16 %v10207, %v10206
    %v10217 = vpack.c.b16 %v10209, %v10208
    %10226 = vmatprep.subr.bf16.mxu0 0
    %10227 = vmatpush1.bf16.msra.mxu0 %v10210
    %10228 = vmatprep.subr.bf16.mxu0 0
    %10229 = vmatpush1.bf16.msra.mxu0 %v10211
    %10230 = vmatprep.subr.bf16.mxu0 0
    %10231 = vmatpush1.bf16.msra.mxu0 %v10212
    %10232 = vmatprep.subr.bf16.mxu0 0
    %10233 = vmatpush1.bf16.msra.mxu0 %v10213
    %10234 = vmatprep.subr.bf16.mxu0 0
    %10235 = vmatpush1.bf16.msra.mxu0 %v10214
    %10236 = vmatprep.subr.bf16.mxu0 0
    %10237 = vmatpush1.bf16.msra.mxu0 %v10215
    %10238 = vmatprep.subr.bf16.mxu0 0
    %10239 = vmatpush1.bf16.msra.mxu0 %v10216
    %10240 = vmatprep.subr.bf16.mxu0 0
    %10241 = vmatpush1.bf16.msra.mxu0 %v10217
    %10242 = vmatprep.subr.bf16.mxu0 0
    %10243 = vmatpush1.bf16.msra.mxu0 0
    %10244 = vmatprep.subr.bf16.mxu0 0
    %10245 = vmatpush1.bf16.msra.mxu0 0
    %10246 = vmatprep.subr.bf16.mxu0 0
    %10247 = vmatpush1.bf16.msra.mxu0 0
    %10248 = vmatprep.subr.bf16.mxu0 0
    %10249 = vmatpush1.bf16.msra.mxu0 0
    %10250 = vmatprep.subr.bf16.mxu0 0
    %10251 = vmatpush1.bf16.msra.mxu0 0
    %10252 = vmatprep.subr.bf16.mxu0 0
    %10253 = vmatpush1.bf16.msra.mxu0 0
    %10254 = vmatprep.subr.bf16.mxu0 0
    %10255 = vmatpush1.bf16.msra.mxu0 0
    %10256 = vmatprep.subr.bf16.mxu0 0
    %10257 = vmatpush1.bf16.msra.mxu0 0
    %10258 = vmatprep.mubr.bf16.mxu0 0
    %10259 = vmatmul.mubr.bf16.gmra.mrb[0].mxu0 %v10160
    %v10260 = vpop.f32.mrb[0].mxu0
    %v10261 = vadd.f32 0.0, %v10260
    %v10262 = vpop.f32.mrb[0].mxu0
    %v10263 = vpop.f32.mrb[0].mxu0
    %v10264 = vadd.f32 0.0, %v10263
    %v10265 = vpop.f32.mrb[0].mxu0
    %10266 = vmatprep.mubr.bf16.mxu0 0
    %10267 = vmatmul.mubr.bf16.gmra.mrb[0].mxu0 %v10161
    %v10268 = vpop.f32.mrb[0].mxu0
    %v10269 = vadd.f32 0.0, %v10268
    %v10270 = vpop.f32.mrb[0].mxu0
    %v10271 = vpop.f32.mrb[0].mxu0
    %v10272 = vpop.f32.mrb[0].mxu0
    %10273 = vdwg.mxu0
    %v10274 = vadd.f32 %v10153, %v10261
    %v10275 = vadd.f32 %v10154, %v10264
    %v10276 = vadd.f32 %v10155, %v10269
    %v10277 = vld [vmem:[%s9555] ss:$2 sm:$0xff]
    %v10278 = vld [vmem:[%s9916] ss:$2 sm:$0xff]
    %s10279 = scalar_lea.vmem [#allocation3], 160
    %v10280 = vld [vmem:[%s10279] ss:$2 sm:$0x3]
    %v10281 = vpack.c.bf16 %v10278, %v10277
    %v10282 = vpack.c.bf16 %v10280, %v10280
    %v10283 = vld [vmem:[%s9176] sm:$0xf]
    %v10284 = vld [vmem:[%s9176 + $0x4] sm:$0xf]
    %v10285 = vld [vmem:[%s9176 + $0x8] sm:$0xf]
    %v10286 = vld [vmem:[%s9176 + $0xc] sm:$0xf]
    %v10287 = vld [vmem:[%s9176 + $0x10] sm:$0xf]
    %v10288 = vld [vmem:[%s9176 + $0x14] sm:$0xf]
    %v10289 = vld [vmem:[%s9176 + $0x18] sm:$0xf]
    %v10290 = vld [vmem:[%s9176 + $0x1c] sm:$0xf]
    %v10291 = vld [vmem:[%s9176 + $0x20] sm:$0xf]
    %v10292 = vld [vmem:[%s9176 + $0x24] sm:$0xf]
    %v10293 = vld [vmem:[%s9176 + $0x28] sm:$0xf]
    %v10294 = vld [vmem:[%s9176 + $0x2c] sm:$0xf]
    %v10295 = vld [vmem:[%s9176 + $0x30] sm:$0xf]
    %v10296 = vld [vmem:[%s9176 + $0x34] sm:$0xf]
    %v10297 = vld [vmem:[%s9176 + $0x38] sm:$0xf]
    %v10298 = vld [vmem:[%s9176 + $0x3c] sm:$0xf]
    %v10315 = vunpack.c.l.b16 %v10283
    %v10316 = vunpack.c.l.b16 %v10284
    %v10317 = vunpack.c.l.b16 %v10285
    %v10318 = vunpack.c.l.b16 %v10286
    %v10319 = vunpack.c.l.b16 %v10287
    %v10320 = vunpack.c.l.b16 %v10288
    %v10321 = vunpack.c.l.b16 %v10289
    %v10322 = vunpack.c.l.b16 %v10290
    %v10323 = vunpack.c.l.b16 %v10291
    %v10324 = vunpack.c.l.b16 %v10292
    %v10325 = vunpack.c.l.b16 %v10293
    %v10326 = vunpack.c.l.b16 %v10294
    %v10327 = vunpack.c.l.b16 %v10295
    %v10328 = vunpack.c.l.b16 %v10296
    %v10329 = vunpack.c.l.b16 %v10297
    %v10330 = vunpack.c.l.b16 %v10298
    %v10331 = vpack.c.b16 %v10316, %v10315
    %v10332 = vpack.c.b16 %v10318, %v10317
    %v10333 = vpack.c.b16 %v10320, %v10319
    %v10334 = vpack.c.b16 %v10322, %v10321
    %v10335 = vpack.c.b16 %v10324, %v10323
    %v10336 = vpack.c.b16 %v10326, %v10325
    %v10337 = vpack.c.b16 %v10328, %v10327
    %v10338 = vpack.c.b16 %v10330, %v10329
    %10347 = vmatprep.subr.bf16.mxu0 0
    %10348 = vmatpush1.bf16.msra.mxu0 %v10331
    %10349 = vmatprep.subr.bf16.mxu0 0
    %10350 = vmatpush1.bf16.msra.mxu0 %v10332
    %10351 = vmatprep.subr.bf16.mxu0 0
    %10352 = vmatpush1.bf16.msra.mxu0 %v10333
    %10353 = vmatprep.subr.bf16.mxu0 0
    %10354 = vmatpush1.bf16.msra.mxu0 %v10334
    %10355 = vmatprep.subr.bf16.mxu0 0
    %10356 = vmatpush1.bf16.msra.mxu0 %v10335
    %10357 = vmatprep.subr.bf16.mxu0 0
    %10358 = vmatpush1.bf16.msra.mxu0 %v10336
    %10359 = vmatprep.subr.bf16.mxu0 0
    %10360 = vmatpush1.bf16.msra.mxu0 %v10337
    %10361 = vmatprep.subr.bf16.mxu0 0
    %10362 = vmatpush1.bf16.msra.mxu0 %v10338
    %10363 = vmatprep.subr.bf16.mxu0 0
    %10364 = vmatpush1.bf16.msra.mxu0 0
    %10365 = vmatprep.subr.bf16.mxu0 0
    %10366 = vmatpush1.bf16.msra.mxu0 0
    %10367 = vmatprep.subr.bf16.mxu0 0
    %10368 = vmatpush1.bf16.msra.mxu0 0
    %10369 = vmatprep.subr.bf16.mxu0 0
    %10370 = vmatpush1.bf16.msra.mxu0 0
    %10371 = vmatprep.subr.bf16.mxu0 0
    %10372 = vmatpush1.bf16.msra.mxu0 0
    %10373 = vmatprep.subr.bf16.mxu0 0
    %10374 = vmatpush1.bf16.msra.mxu0 0
    %10375 = vmatprep.subr.bf16.mxu0 0
    %10376 = vmatpush1.bf16.msra.mxu0 0
    %10377 = vmatprep.subr.bf16.mxu0 0
    %10378 = vmatpush1.bf16.msra.mxu0 0
    %10379 = vmatprep.mubr.bf16.mxu0 0
    %10380 = vmatmul.mubr.bf16.gmra.mrb[0].mxu0 %v10281
    %v10381 = vpop.f32.mrb[0].mxu0
    %v10382 = vadd.f32 0.0, %v10381
    %v10383 = vpop.f32.mrb[0].mxu0
    %v10384 = vpop.f32.mrb[0].mxu0
    %v10385 = vadd.f32 0.0, %v10384
    %v10386 = vpop.f32.mrb[0].mxu0
    %10387 = vmatprep.mubr.bf16.mxu0 0
    %10388 = vmatmul.mubr.bf16.gmra.mrb[0].mxu0 %v10282
    %v10389 = vpop.f32.mrb[0].mxu0
    %v10390 = vadd.f32 0.0, %v10389
    %v10391 = vpop.f32.mrb[0].mxu0
    %v10392 = vpop.f32.mrb[0].mxu0
    %v10393 = vpop.f32.mrb[0].mxu0
    %10394 = vdwg.mxu0
    %v10395 = vadd.f32 %v10274, %v10382
    %v10396 = vadd.f32 %v10275, %v10385
    %v10397 = vadd.f32 %v10276, %v10390
    %v10398 = vld [vmem:[%s9579] ss:$2 sm:$0xff]
    %v10399 = vld [vmem:[%s10037] ss:$2 sm:$0xff]
    %s10400 = scalar_lea.vmem [#allocation3], 161
    %v10401 = vld [vmem:[%s10400] ss:$2 sm:$0x3]
    %v10402 = vpack.c.bf16 %v10399, %v10398
    %v10403 = vpack.c.bf16 %v10401, %v10401
    %v10404 = vld [vmem:[%s9298] sm:$0xf]
    %v10405 = vld [vmem:[%s9298 + $0x4] sm:$0xf]
    %v10406 = vld [vmem:[%s9298 + $0x8] sm:$0xf]
    %v10407 = vld [vmem:[%s9298 + $0xc] sm:$0xf]
    %v10408 = vld [vmem:[%s9298 + $0x10] sm:$0xf]
    %v10409 = vld [vmem:[%s9298 + $0x14] sm:$0xf]
    %v10410 = vld [vmem:[%s9298 + $0x18] sm:$0xf]
    %v10411 = vld [vmem:[%s9298 + $0x1c] sm:$0xf]
    %v10412 = vld [vmem:[%s9298 + $0x20] sm:$0xf]
    %v10413 = vld [vmem:[%s9298 + $0x24] sm:$0xf]
    %v10414 = vld [vmem:[%s9298 + $0x28] sm:$0xf]
    %v10415 = vld [vmem:[%s9298 + $0x2c] sm:$0xf]
    %v10416 = vld [vmem:[%s9298 + $0x30] sm:$0xf]
    %v10417 = vld [vmem:[%s9298 + $0x34] sm:$0xf]
    %v10418 = vld [vmem:[%s9298 + $0x38] sm:$0xf]
    %v10419 = vld [vmem:[%s9298 + $0x3c] sm:$0xf]
    %v10436 = vunpack.c.l.b16 %v10404
    %v10437 = vunpack.c.l.b16 %v10405
    %v10438 = vunpack.c.l.b16 %v10406
    %v10439 = vunpack.c.l.b16 %v10407
    %v10440 = vunpack.c.l.b16 %v10408
    %v10441 = vunpack.c.l.b16 %v10409
    %v10442 = vunpack.c.l.b16 %v10410
    %v10443 = vunpack.c.l.b16 %v10411
    %v10444 = vunpack.c.l.b16 %v10412
    %v10445 = vunpack.c.l.b16 %v10413
    %v10446 = vunpack.c.l.b16 %v10414
    %v10447 = vunpack.c.l.b16 %v10415
    %v10448 = vunpack.c.l.b16 %v10416
    %v10449 = vunpack.c.l.b16 %v10417
    %v10450 = vunpack.c.l.b16 %v10418
    %v10451 = vunpack.c.l.b16 %v10419
    %v10452 = vpack.c.b16 %v10437, %v10436
    %v10453 = vpack.c.b16 %v10439, %v10438
    %v10454 = vpack.c.b16 %v10441, %v10440
    %v10455 = vpack.c.b16 %v10443, %v10442
    %v10456 = vpack.c.b16 %v10445, %v10444
    %v10457 = vpack.c.b16 %v10447, %v10446
    %v10458 = vpack.c.b16 %v10449, %v10448
    %v10459 = vpack.c.b16 %v10451, %v10450
    %10468 = vmatprep.subr.bf16.mxu0 0
    %10469 = vmatpush1.bf16.msra.mxu0 %v10452
    %10470 = vmatprep.subr.bf16.mxu0 0
    %10471 = vmatpush1.bf16.msra.mxu0 %v10453
    %10472 = vmatprep.subr.bf16.mxu0 0
    %10473 = vmatpush1.bf16.msra.mxu0 %v10454
    %10474 = vmatprep.subr.bf16.mxu0 0
    %10475 = vmatpush1.bf16.msra.mxu0 %v10455
    %10476 = vmatprep.subr.bf16.mxu0 0
    %10477 = vmatpush1.bf16.msra.mxu0 %v10456
    %10478 = vmatprep.subr.bf16.mxu0 0
    %10479 = vmatpush1.bf16.msra.mxu0 %v10457
    %10480 = vmatprep.subr.bf16.mxu0 0
    %10481 = vmatpush1.bf16.msra.mxu0 %v10458
    %10482 = vmatprep.subr.bf16.mxu0 0
    %10483 = vmatpush1.bf16.msra.mxu0 %v10459
    %10484 = vmatprep.subr.bf16.mxu0 0
    %10485 = vmatpush1.bf16.msra.mxu0 0
    %10486 = vmatprep.subr.bf16.mxu0 0
    %10487 = vmatpush1.bf16.msra.mxu0 0
    %10488 = vmatprep.subr.bf16.mxu0 0
    %10489 = vmatpush1.bf16.msra.mxu0 0
    %10490 = vmatprep.subr.bf16.mxu0 0
    %10491 = vmatpush1.bf16.msra.mxu0 0
    %10492 = vmatprep.subr.bf16.mxu0 0
    %10493 = vmatpush1.bf16.msra.mxu0 0
    %10494 = vmatprep.subr.bf16.mxu0 0
    %10495 = vmatpush1.bf16.msra.mxu0 0
    %10496 = vmatprep.subr.bf16.mxu0 0
    %10497 = vmatpush1.bf16.msra.mxu0 0
    %10498 = vmatprep.subr.bf16.mxu0 0
    %10499 = vmatpush1.bf16.msra.mxu0 0
    %10500 = vmatprep.mubr.bf16.mxu0 0
    %10501 = vmatmul.mubr.bf16.gmra.mrb[0].mxu0 %v10402
    %v10502 = vpop.f32.mrb[0].mxu0
    %v10503 = vadd.f32 0.0, %v10502
    %v10504 = vpop.f32.mrb[0].mxu0
    %v10505 = vpop.f32.mrb[0].mxu0
    %v10506 = vadd.f32 0.0, %v10505
    %v10507 = vpop.f32.mrb[0].mxu0
    %10508 = vmatprep.mubr.bf16.mxu0 0
    %10509 = vmatmul.mubr.bf16.gmra.mrb[0].mxu0 %v10403
    %v10510 = vpop.f32.mrb[0].mxu0
    %v10511 = vadd.f32 0.0, %v10510
    %v10512 = vpop.f32.mrb[0].mxu0
    %v10513 = vpop.f32.mrb[0].mxu0
    %v10514 = vpop.f32.mrb[0].mxu0
    %10515 = vdwg.mxu0
    %v10516 = vadd.f32 %v10395, %v10503
    %v10517 = vadd.f32 %v10396, %v10506
    %v10518 = vadd.f32 %v10397, %v10511
    %v10519 = vld [vmem:[%s9795] ss:$2 sm:$0xff]
    %v10520 = vld [vmem:[%s10158] ss:$2 sm:$0xff]
    %s10521 = scalar_lea.vmem [#allocation3], 162
    %v10522 = vld [vmem:[%s10521] ss:$2 sm:$0x3]
    %v10523 = vpack.c.bf16 %v10520, %v10519
    %v10524 = vpack.c.bf16 %v10522, %v10522
    %v10525 = vld [vmem:[%s9420] sm:$0xf]
    %v10526 = vld [vmem:[%s9420 + $0x4] sm:$0xf]
    %v10527 = vld [vmem:[%s9420 + $0x8] sm:$0xf]
    %v10528 = vld [vmem:[%s9420 + $0xc] sm:$0xf]
    %v10529 = vld [vmem:[%s9420 + $0x10] sm:$0xf]
    %v10530 = vld [vmem:[%s9420 + $0x14] sm:$0xf]
    %v10531 = vld [vmem:[%s9420 + $0x18] sm:$0xf]
    %v10532 = vld [vmem:[%s9420 + $0x1c] sm:$0xf]
    %v10533 = vld [vmem:[%s9420 + $0x20] sm:$0xf]
    %v10534 = vld [vmem:[%s9420 + $0x24] sm:$0xf]
    %v10535 = vld [vmem:[%s9420 + $0x28] sm:$0xf]
    %v10536 = vld [vmem:[%s9420 + $0x2c] sm:$0xf]
    %v10537 = vld [vmem:[%s9420 + $0x30] sm:$0xf]
    %v10538 = vld [vmem:[%s9420 + $0x34] sm:$0xf]
    %v10539 = vld [vmem:[%s9420 + $0x38] sm:$0xf]
    %v10540 = vld [vmem:[%s9420 + $0x3c] sm:$0xf]
    %v10557 = vunpack.c.l.b16 %v10525
    %v10558 = vunpack.c.l.b16 %v10526
    %v10559 = vunpack.c.l.b16 %v10527
    %v10560 = vunpack.c.l.b16 %v10528
    %v10561 = vunpack.c.l.b16 %v10529
    %v10562 = vunpack.c.l.b16 %v10530
    %v10563 = vunpack.c.l.b16 %v10531
    %v10564 = vunpack.c.l.b16 %v10532
    %v10565 = vunpack.c.l.b16 %v10533
    %v10566 = vunpack.c.l.b16 %v10534
    %v10567 = vunpack.c.l.b16 %v10535
    %v10568 = vunpack.c.l.b16 %v10536
    %v10569 = vunpack.c.l.b16 %v10537
    %v10570 = vunpack.c.l.b16 %v10538
    %v10571 = vunpack.c.l.b16 %v10539
    %v10572 = vunpack.c.l.b16 %v10540
    %v10573 = vpack.c.b16 %v10558, %v10557
    %v10574 = vpack.c.b16 %v10560, %v10559
    %v10575 = vpack.c.b16 %v10562, %v10561
    %v10576 = vpack.c.b16 %v10564, %v10563
    %v10577 = vpack.c.b16 %v10566, %v10565
    %v10578 = vpack.c.b16 %v10568, %v10567
    %v10579 = vpack.c.b16 %v10570, %v10569
    %v10580 = vpack.c.b16 %v10572, %v10571
    %10589 = vmatprep.subr.bf16.mxu0 0
    %10590 = vmatpush1.bf16.msra.mxu0 %v10573
    %10591 = vmatprep.subr.bf16.mxu0 0
    %10592 = vmatpush1.bf16.msra.mxu0 %v10574
    %10593 = vmatprep.subr.bf16.mxu0 0
    %10594 = vmatpush1.bf16.msra.mxu0 %v10575
    %10595 = vmatprep.subr.bf16.mxu0 0
    %10596 = vmatpush1.bf16.msra.mxu0 %v10576
    %10597 = vmatprep.subr.bf16.mxu0 0
    %10598 = vmatpush1.bf16.msra.mxu0 %v10577
    %10599 = vmatprep.subr.bf16.mxu0 0
    %10600 = vmatpush1.bf16.msra.mxu0 %v10578
    %10601 = vmatprep.subr.bf16.mxu0 0
    %10602 = vmatpush1.bf16.msra.mxu0 %v10579
    %10603 = vmatprep.subr.bf16.mxu0 0
    %10604 = vmatpush1.bf16.msra.mxu0 %v10580
    %10605 = vmatprep.subr.bf16.mxu0 0
    %10606 = vmatpush1.bf16.msra.mxu0 0
    %10607 = vmatprep.subr.bf16.mxu0 0
    %10608 = vmatpush1.bf16.msra.mxu0 0
    %10609 = vmatprep.subr.bf16.mxu0 0
    %10610 = vmatpush1.bf16.msra.mxu0 0
    %10611 = vmatprep.subr.bf16.mxu0 0
    %10612 = vmatpush1.bf16.msra.mxu0 0
    %10613 = vmatprep.subr.bf16.mxu0 0
    %10614 = vmatpush1.bf16.msra.mxu0 0
    %10615 = vmatprep.subr.bf16.mxu0 0
    %10616 = vmatpush1.bf16.msra.mxu0 0
    %10617 = vmatprep.subr.bf16.mxu0 0
    %10618 = vmatpush1.bf16.msra.mxu0 0
    %10619 = vmatprep.subr.bf16.mxu0 0
    %10620 = vmatpush1.bf16.msra.mxu0 0
    %10621 = vmatprep.mubr.bf16.mxu0 0
    %10622 = vmatmul.mubr.bf16.gmra.mrb[0].mxu0 %v10523
    %v10623 = vpop.f32.mrb[0].mxu0
    %v10624 = vadd.f32 0.0, %v10623
    %v10625 = vpop.f32.mrb[0].mxu0
    %v10626 = vpop.f32.mrb[0].mxu0
    %v10627 = vadd.f32 0.0, %v10626
    %v10628 = vpop.f32.mrb[0].mxu0
    %10629 = vmatprep.mubr.bf16.mxu0 0
    %10630 = vmatmul.mubr.bf16.gmra.mrb[0].mxu0 %v10524
    %v10631 = vpop.f32.mrb[0].mxu0
    %v10632 = vadd.f32 0.0, %v10631
    %v10633 = vpop.f32.mrb[0].mxu0
    %v10634 = vpop.f32.mrb[0].mxu0
    %v10635 = vpop.f32.mrb[0].mxu0
    %10636 = vdwg.mxu0
    %v10637 = vadd.f32 %v10516, %v10624
    %v10638 = vadd.f32 %v10517, %v10627
    %v10639 = vadd.f32 %v10518, %v10632
    %v10640 = vadd.f32 %v10637, %v9540
    %v10641 = vadd.f32 %v10638, %v9540
    %v10642 = vadd.f32 %v10639, %v9540
    %v10643 = vmax.f32 %v10640, 0.0
    %v10644 = vmax.f32 %v10641, 0.0
    %v10645 = vmax.f32 %v10642, 0.0
    %10646 = vst [vmem:[#allocation4 + $0x20] sm:$0xff] %v10643
    %10647 = vst [vmem:[#allocation4 + $0x28] sm:$0xff] %v10644
    %10648 = vst [vmem:[#allocation4 + $0x30] sm:$0x3] %v10645
    %v10649 = vld [vmem:[#allocation4] ss:$32 sm:$0x1]
    %v10650 = vld [vmem:[#allocation4] ss:$32 sm:$0x2]
    %v10651 = vor.u32 %v10649, %v10650
    %v10652 = vpack.c.bf16 %v10651, %v10651
    %v10653 = vld [vmem:[%s7] sm:$0xf]
    %v10654 = vld [vmem:[%s7 + $0x4] sm:$0xf]
    %v10655 = vld [vmem:[%s7 + $0x8] sm:$0xf]
    %v10656 = vld [vmem:[%s7 + $0xc] sm:$0xf]
    %v10657 = vld [vmem:[%s7 + $0x10] sm:$0xf]
    %v10658 = vld [vmem:[%s7 + $0x14] sm:$0xf]
    %v10659 = vld [vmem:[%s7 + $0x18] sm:$0xf]
    %v10660 = vld [vmem:[%s7 + $0x1c] sm:$0xf]
    %v10661 = vld [vmem:[%s7 + $0x20] sm:$0xf]
    %v10662 = vld [vmem:[%s7 + $0x24] sm:$0xf]
    %v10663 = vld [vmem:[%s7 + $0x28] sm:$0xf]
    %v10664 = vld [vmem:[%s7 + $0x2c] sm:$0xf]
    %v10665 = vld [vmem:[%s7 + $0x30] sm:$0xf]
    %v10666 = vld [vmem:[%s7 + $0x34] sm:$0xf]
    %v10667 = vld [vmem:[%s7 + $0x38] sm:$0xf]
    %v10668 = vld [vmem:[%s7 + $0x3c] sm:$0xf]
    %s10669 = scalar_lea.vmem [#allocation4], 1
    %v10670 = vld [vmem:[%s10669] ss:$32 sm:$0x1]
    %v10671 = vld [vmem:[%s10669] ss:$32 sm:$0x2]
    %v10672 = vor.u32 %v10670, %v10671
    %v10673 = vpack.c.bf16 %v10672, %v10672
    %s10674 = scalar_lea.vmem %s7, 64
    %v10675 = vld [vmem:[%s10674] sm:$0xf]
    %v10676 = vld [vmem:[%s10674 + $0x4] sm:$0xf]
    %v10677 = vld [vmem:[%s10674 + $0x8] sm:$0xf]
    %v10678 = vld [vmem:[%s10674 + $0xc] sm:$0xf]
    %v10679 = vld [vmem:[%s10674 + $0x10] sm:$0xf]
    %v10680 = vld [vmem:[%s10674 + $0x14] sm:$0xf]
    %v10681 = vld [vmem:[%s10674 + $0x18] sm:$0xf]
    %v10682 = vld [vmem:[%s10674 + $0x1c] sm:$0xf]
    %v10683 = vld [vmem:[%s10674 + $0x20] sm:$0xf]
    %v10684 = vld [vmem:[%s10674 + $0x24] sm:$0xf]
    %v10685 = vld [vmem:[%s10674 + $0x28] sm:$0xf]
    %v10686 = vld [vmem:[%s10674 + $0x2c] sm:$0xf]
    %v10687 = vld [vmem:[%s10674 + $0x30] sm:$0xf]
    %v10688 = vld [vmem:[%s10674 + $0x34] sm:$0xf]
    %v10689 = vld [vmem:[%s10674 + $0x38] sm:$0xf]
    %v10690 = vld [vmem:[%s10674 + $0x3c] sm:$0xf]
    %v10707 = vunpack.c.l.b16 %v10675
    %v10708 = vunpack.c.l.b16 %v10676
    %v10709 = vunpack.c.l.b16 %v10677
    %v10710 = vunpack.c.l.b16 %v10678
    %v10711 = vunpack.c.l.b16 %v10679
    %v10712 = vunpack.c.l.b16 %v10680
    %v10713 = vunpack.c.l.b16 %v10681
    %v10714 = vunpack.c.l.b16 %v10682
    %v10715 = vunpack.c.l.b16 %v10683
    %v10716 = vunpack.c.l.b16 %v10684
    %v10717 = vunpack.c.l.b16 %v10685
    %v10718 = vunpack.c.l.b16 %v10686
    %v10719 = vunpack.c.l.b16 %v10687
    %v10720 = vunpack.c.l.b16 %v10688
    %v10721 = vunpack.c.l.b16 %v10689
    %v10722 = vunpack.c.l.b16 %v10690
    %v10723 = vpack.c.b16 %v10708, %v10707
    %v10724 = vpack.c.b16 %v10710, %v10709
    %v10725 = vpack.c.b16 %v10712, %v10711
    %v10726 = vpack.c.b16 %v10714, %v10713
    %v10727 = vpack.c.b16 %v10716, %v10715
    %v10728 = vpack.c.b16 %v10718, %v10717
    %v10729 = vpack.c.b16 %v10720, %v10719
    %v10730 = vpack.c.b16 %v10722, %v10721
    %10739 = vmatprep.subr.bf16.mxu0 0
    %10740 = vmatpush1.bf16.msra.mxu0 %v10723
    %10741 = vmatprep.subr.bf16.mxu0 0
    %10742 = vmatpush1.bf16.msra.mxu0 %v10724
    %10743 = vmatprep.subr.bf16.mxu0 0
    %10744 = vmatpush1.bf16.msra.mxu0 %v10725
    %10745 = vmatprep.subr.bf16.mxu0 0
    %10746 = vmatpush1.bf16.msra.mxu0 %v10726
    %10747 = vmatprep.subr.bf16.mxu0 0
    %10748 = vmatpush1.bf16.msra.mxu0 %v10727
    %10749 = vmatprep.subr.bf16.mxu0 0
    %10750 = vmatpush1.bf16.msra.mxu0 %v10728
    %10751 = vmatprep.subr.bf16.mxu0 0
    %10752 = vmatpush1.bf16.msra.mxu0 %v10729
    %10753 = vmatprep.subr.bf16.mxu0 0
    %10754 = vmatpush1.bf16.msra.mxu0 %v10730
    %10755 = vmatprep.subr.bf16.mxu0 0
    %10756 = vmatpush1.bf16.msra.mxu0 0
    %10757 = vmatprep.subr.bf16.mxu0 0
    %10758 = vmatpush1.bf16.msra.mxu0 0
    %10759 = vmatprep.subr.bf16.mxu0 0
    %10760 = vmatpush1.bf16.msra.mxu0 0
    %10761 = vmatprep.subr.bf16.mxu0 0
    %10762 = vmatpush1.bf16.msra.mxu0 0
    %10763 = vmatprep.subr.bf16.mxu0 0
    %10764 = vmatpush1.bf16.msra.mxu0 0
    %10765 = vmatprep.subr.bf16.mxu0 0
    %10766 = vmatpush1.bf16.msra.mxu0 0
    %10767 = vmatprep.subr.bf16.mxu0 0
    %10768 = vmatpush1.bf16.msra.mxu0 0
    %10769 = vmatprep.subr.bf16.mxu0 0
    %10770 = vmatpush1.bf16.msra.mxu0 0
    %10771 = vmatprep.mubr.bf16.mxu0 0
    %10772 = vmatmul.mubr.bf16.gmra.mrb[0].mxu0 %v10673
    %v10773 = vpop.f32.mrb[0].mxu0
    %v10774 = vadd.f32 0.0, %v10773
    %v10775 = vpop.f32.mrb[0].mxu0
    %v10776 = vpop.f32.mrb[0].mxu0
    %v10777 = vpop.f32.mrb[0].mxu0
    %10778 = vdwg.mxu0
    %v10795 = vunpack.c.l.b16 %v10653
    %v10796 = vunpack.c.l.b16 %v10654
    %v10797 = vunpack.c.l.b16 %v10655
    %v10798 = vunpack.c.l.b16 %v10656
    %v10799 = vunpack.c.l.b16 %v10657
    %v10800 = vunpack.c.l.b16 %v10658
    %v10801 = vunpack.c.l.b16 %v10659
    %v10802 = vunpack.c.l.b16 %v10660
    %v10803 = vunpack.c.l.b16 %v10661
    %v10804 = vunpack.c.l.b16 %v10662
    %v10805 = vunpack.c.l.b16 %v10663
    %v10806 = vunpack.c.l.b16 %v10664
    %v10807 = vunpack.c.l.b16 %v10665
    %v10808 = vunpack.c.l.b16 %v10666
    %v10809 = vunpack.c.l.b16 %v10667
    %v10810 = vunpack.c.l.b16 %v10668
    %v10811 = vpack.c.b16 %v10796, %v10795
    %v10812 = vpack.c.b16 %v10798, %v10797
    %v10813 = vpack.c.b16 %v10800, %v10799
    %v10814 = vpack.c.b16 %v10802, %v10801
    %v10815 = vpack.c.b16 %v10804, %v10803
    %v10816 = vpack.c.b16 %v10806, %v10805
    %v10817 = vpack.c.b16 %v10808, %v10807
    %v10818 = vpack.c.b16 %v10810, %v10809
    %10827 = vmatprep.subr.bf16.mxu0 0
    %10828 = vmatpush1.bf16.msra.mxu0 %v10811
    %10829 = vmatprep.subr.bf16.mxu0 0
    %10830 = vmatpush1.bf16.msra.mxu0 %v10812
    %10831 = vmatprep.subr.bf16.mxu0 0
    %10832 = vmatpush1.bf16.msra.mxu0 %v10813
    %10833 = vmatprep.subr.bf16.mxu0 0
    %10834 = vmatpush1.bf16.msra.mxu0 %v10814
    %10835 = vmatprep.subr.bf16.mxu0 0
    %10836 = vmatpush1.bf16.msra.mxu0 %v10815
    %10837 = vmatprep.subr.bf16.mxu0 0
    %10838 = vmatpush1.bf16.msra.mxu0 %v10816
    %10839 = vmatprep.subr.bf16.mxu0 0
    %10840 = vmatpush1.bf16.msra.mxu0 %v10817
    %10841 = vmatprep.subr.bf16.mxu0 0
    %10842 = vmatpush1.bf16.msra.mxu0 %v10818
    %10843 = vmatprep.subr.bf16.mxu0 0
    %10844 = vmatpush1.bf16.msra.mxu0 0
    %10845 = vmatprep.subr.bf16.mxu0 0
    %10846 = vmatpush1.bf16.msra.mxu0 0
    %10847 = vmatprep.subr.bf16.mxu0 0
    %10848 = vmatpush1.bf16.msra.mxu0 0
    %10849 = vmatprep.subr.bf16.mxu0 0
    %10850 = vmatpush1.bf16.msra.mxu0 0
    %10851 = vmatprep.subr.bf16.mxu0 0
    %10852 = vmatpush1.bf16.msra.mxu0 0
    %10853 = vmatprep.subr.bf16.mxu0 0
    %10854 = vmatpush1.bf16.msra.mxu0 0
    %10855 = vmatprep.subr.bf16.mxu0 0
    %10856 = vmatpush1.bf16.msra.mxu0 0
    %10857 = vmatprep.subr.bf16.mxu0 0
    %10858 = vmatpush1.bf16.msra.mxu0 0
    %10859 = vmatprep.mubr.bf16.mxu0 0
    %10860 = vmatmul.mubr.bf16.gmra.mrb[0].mxu0 %v10652
    %v10861 = vpop.f32.mrb[0].mxu0
    %v10862 = vadd.f32 %v10774, %v10861
    %v10863 = vpop.f32.mrb[0].mxu0
    %v10864 = vpop.f32.mrb[0].mxu0
    %v10865 = vpop.f32.mrb[0].mxu0
    %10866 = vdwg.mxu0
    %s10867 = scalar_lea.vmem [#allocation4], 16
    %v10868 = vld [vmem:[%s10867] ss:$32 sm:$0x1]
    %v10869 = vld [vmem:[%s10867] ss:$32 sm:$0x2]
    %v10870 = vor.u32 %v10868, %v10869
    %v10871 = vpack.c.bf16 %v10870, %v10870
    %s10872 = scalar_lea.vmem %s7, 128
    %v10873 = vld [vmem:[%s10872] sm:$0xf]
    %v10874 = vld [vmem:[%s10872 + $0x4] sm:$0xf]
    %v10875 = vld [vmem:[%s10872 + $0x8] sm:$0xf]
    %v10876 = vld [vmem:[%s10872 + $0xc] sm:$0xf]
    %v10877 = vld [vmem:[%s10872 + $0x10] sm:$0xf]
    %v10878 = vld [vmem:[%s10872 + $0x14] sm:$0xf]
    %v10879 = vld [vmem:[%s10872 + $0x18] sm:$0xf]
    %v10880 = vld [vmem:[%s10872 + $0x1c] sm:$0xf]
    %v10881 = vld [vmem:[%s10872 + $0x20] sm:$0xf]
    %v10882 = vld [vmem:[%s10872 + $0x24] sm:$0xf]
    %v10883 = vld [vmem:[%s10872 + $0x28] sm:$0xf]
    %v10884 = vld [vmem:[%s10872 + $0x2c] sm:$0xf]
    %v10885 = vld [vmem:[%s10872 + $0x30] sm:$0xf]
    %v10886 = vld [vmem:[%s10872 + $0x34] sm:$0xf]
    %v10887 = vld [vmem:[%s10872 + $0x38] sm:$0xf]
    %v10888 = vld [vmem:[%s10872 + $0x3c] sm:$0xf]
    %v10905 = vunpack.c.l.b16 %v10873
    %v10906 = vunpack.c.l.b16 %v10874
    %v10907 = vunpack.c.l.b16 %v10875
    %v10908 = vunpack.c.l.b16 %v10876
    %v10909 = vunpack.c.l.b16 %v10877
    %v10910 = vunpack.c.l.b16 %v10878
    %v10911 = vunpack.c.l.b16 %v10879
    %v10912 = vunpack.c.l.b16 %v10880
    %v10913 = vunpack.c.l.b16 %v10881
    %v10914 = vunpack.c.l.b16 %v10882
    %v10915 = vunpack.c.l.b16 %v10883
    %v10916 = vunpack.c.l.b16 %v10884
    %v10917 = vunpack.c.l.b16 %v10885
    %v10918 = vunpack.c.l.b16 %v10886
    %v10919 = vunpack.c.l.b16 %v10887
    %v10920 = vunpack.c.l.b16 %v10888
    %v10921 = vpack.c.b16 %v10906, %v10905
    %v10922 = vpack.c.b16 %v10908, %v10907
    %v10923 = vpack.c.b16 %v10910, %v10909
    %v10924 = vpack.c.b16 %v10912, %v10911
    %v10925 = vpack.c.b16 %v10914, %v10913
    %v10926 = vpack.c.b16 %v10916, %v10915
    %v10927 = vpack.c.b16 %v10918, %v10917
    %v10928 = vpack.c.b16 %v10920, %v10919
    %10937 = vmatprep.subr.bf16.mxu0 0
    %10938 = vmatpush1.bf16.msra.mxu0 %v10921
    %10939 = vmatprep.subr.bf16.mxu0 0
    %10940 = vmatpush1.bf16.msra.mxu0 %v10922
    %10941 = vmatprep.subr.bf16.mxu0 0
    %10942 = vmatpush1.bf16.msra.mxu0 %v10923
    %10943 = vmatprep.subr.bf16.mxu0 0
    %10944 = vmatpush1.bf16.msra.mxu0 %v10924
    %10945 = vmatprep.subr.bf16.mxu0 0
    %10946 = vmatpush1.bf16.msra.mxu0 %v10925
    %10947 = vmatprep.subr.bf16.mxu0 0
    %10948 = vmatpush1.bf16.msra.mxu0 %v10926
    %10949 = vmatprep.subr.bf16.mxu0 0
    %10950 = vmatpush1.bf16.msra.mxu0 %v10927
    %10951 = vmatprep.subr.bf16.mxu0 0
    %10952 = vmatpush1.bf16.msra.mxu0 %v10928
    %10953 = vmatprep.subr.bf16.mxu0 0
    %10954 = vmatpush1.bf16.msra.mxu0 0
    %10955 = vmatprep.subr.bf16.mxu0 0
    %10956 = vmatpush1.bf16.msra.mxu0 0
    %10957 = vmatprep.subr.bf16.mxu0 0
    %10958 = vmatpush1.bf16.msra.mxu0 0
    %10959 = vmatprep.subr.bf16.mxu0 0
    %10960 = vmatpush1.bf16.msra.mxu0 0
    %10961 = vmatprep.subr.bf16.mxu0 0
    %10962 = vmatpush1.bf16.msra.mxu0 0
    %10963 = vmatprep.subr.bf16.mxu0 0
    %10964 = vmatpush1.bf16.msra.mxu0 0
    %10965 = vmatprep.subr.bf16.mxu0 0
    %10966 = vmatpush1.bf16.msra.mxu0 0
    %10967 = vmatprep.subr.bf16.mxu0 0
    %10968 = vmatpush1.bf16.msra.mxu0 0
    %10969 = vmatprep.mubr.bf16.mxu0 0
    %10970 = vmatmul.mubr.bf16.gmra.mrb[0].mxu0 %v10871
    %v10971 = vpop.f32.mrb[0].mxu0
    %v10972 = vadd.f32 0.0, %v10971
    %v10973 = vpop.f32.mrb[0].mxu0
    %v10974 = vpop.f32.mrb[0].mxu0
    %v10975 = vpop.f32.mrb[0].mxu0
    %10976 = vdwg.mxu0
    %v10977 = vadd.f32 %v10862, %v10972
    %s10978 = scalar_lea.vmem [#allocation4], 17
    %v10979 = vld [vmem:[%s10978] ss:$32 sm:$0x1]
    %v10980 = vld [vmem:[%s10978] ss:$32 sm:$0x2]
    %v10981 = vor.u32 %v10979, %v10980
    %v10982 = vpack.c.bf16 %v10981, %v10981
    %s10983 = scalar_lea.vmem %s7, 192
    %v10984 = vld [vmem:[%s10983] sm:$0xf]
    %v10985 = vld [vmem:[%s10983 + $0x4] sm:$0xf]
    %v10986 = vld [vmem:[%s10983 + $0x8] sm:$0xf]
    %v10987 = vld [vmem:[%s10983 + $0xc] sm:$0xf]
    %v10988 = vld [vmem:[%s10983 + $0x10] sm:$0xf]
    %v10989 = vld [vmem:[%s10983 + $0x14] sm:$0xf]
    %v10990 = vld [vmem:[%s10983 + $0x18] sm:$0xf]
    %v10991 = vld [vmem:[%s10983 + $0x1c] sm:$0xf]
    %v10992 = vld [vmem:[%s10983 + $0x20] sm:$0xf]
    %v10993 = vld [vmem:[%s10983 + $0x24] sm:$0xf]
    %v10994 = vld [vmem:[%s10983 + $0x28] sm:$0xf]
    %v10995 = vld [vmem:[%s10983 + $0x2c] sm:$0xf]
    %v10996 = vld [vmem:[%s10983 + $0x30] sm:$0xf]
    %v10997 = vld [vmem:[%s10983 + $0x34] sm:$0xf]
    %v10998 = vld [vmem:[%s10983 + $0x38] sm:$0xf]
    %v10999 = vld [vmem:[%s10983 + $0x3c] sm:$0xf]
    %v11016 = vunpack.c.l.b16 %v10984
    %v11017 = vunpack.c.l.b16 %v10985
    %v11018 = vunpack.c.l.b16 %v10986
    %v11019 = vunpack.c.l.b16 %v10987
    %v11020 = vunpack.c.l.b16 %v10988
    %v11021 = vunpack.c.l.b16 %v10989
    %v11022 = vunpack.c.l.b16 %v10990
    %v11023 = vunpack.c.l.b16 %v10991
    %v11024 = vunpack.c.l.b16 %v10992
    %v11025 = vunpack.c.l.b16 %v10993
    %v11026 = vunpack.c.l.b16 %v10994
    %v11027 = vunpack.c.l.b16 %v10995
    %v11028 = vunpack.c.l.b16 %v10996
    %v11029 = vunpack.c.l.b16 %v10997
    %v11030 = vunpack.c.l.b16 %v10998
    %v11031 = vunpack.c.l.b16 %v10999
    %v11032 = vpack.c.b16 %v11017, %v11016
    %v11033 = vpack.c.b16 %v11019, %v11018
    %v11034 = vpack.c.b16 %v11021, %v11020
    %v11035 = vpack.c.b16 %v11023, %v11022
    %v11036 = vpack.c.b16 %v11025, %v11024
    %v11037 = vpack.c.b16 %v11027, %v11026
    %v11038 = vpack.c.b16 %v11029, %v11028
    %v11039 = vpack.c.b16 %v11031, %v11030
    %11048 = vmatprep.subr.bf16.mxu0 0
    %11049 = vmatpush1.bf16.msra.mxu0 %v11032
    %11050 = vmatprep.subr.bf16.mxu0 0
    %11051 = vmatpush1.bf16.msra.mxu0 %v11033
    %11052 = vmatprep.subr.bf16.mxu0 0
    %11053 = vmatpush1.bf16.msra.mxu0 %v11034
    %11054 = vmatprep.subr.bf16.mxu0 0
    %11055 = vmatpush1.bf16.msra.mxu0 %v11035
    %11056 = vmatprep.subr.bf16.mxu0 0
    %11057 = vmatpush1.bf16.msra.mxu0 %v11036
    %11058 = vmatprep.subr.bf16.mxu0 0
    %11059 = vmatpush1.bf16.msra.mxu0 %v11037
    %11060 = vmatprep.subr.bf16.mxu0 0
    %11061 = vmatpush1.bf16.msra.mxu0 %v11038
    %11062 = vmatprep.subr.bf16.mxu0 0
    %11063 = vmatpush1.bf16.msra.mxu0 %v11039
    %11064 = vmatprep.subr.bf16.mxu0 0
    %11065 = vmatpush1.bf16.msra.mxu0 0
    %11066 = vmatprep.subr.bf16.mxu0 0
    %11067 = vmatpush1.bf16.msra.mxu0 0
    %11068 = vmatprep.subr.bf16.mxu0 0
    %11069 = vmatpush1.bf16.msra.mxu0 0
    %11070 = vmatprep.subr.bf16.mxu0 0
    %11071 = vmatpush1.bf16.msra.mxu0 0
    %11072 = vmatprep.subr.bf16.mxu0 0
    %11073 = vmatpush1.bf16.msra.mxu0 0
    %11074 = vmatprep.subr.bf16.mxu0 0
    %11075 = vmatpush1.bf16.msra.mxu0 0
    %11076 = vmatprep.subr.bf16.mxu0 0
    %11077 = vmatpush1.bf16.msra.mxu0 0
    %11078 = vmatprep.subr.bf16.mxu0 0
    %11079 = vmatpush1.bf16.msra.mxu0 0
    %11080 = vmatprep.mubr.bf16.mxu0 0
    %11081 = vmatmul.mubr.bf16.gmra.mrb[0].mxu0 %v10982
    %v11082 = vpop.f32.mrb[0].mxu0
    %v11083 = vadd.f32 0.0, %v11082
    %v11084 = vpop.f32.mrb[0].mxu0
    %v11085 = vpop.f32.mrb[0].mxu0
    %v11086 = vpop.f32.mrb[0].mxu0
    %11087 = vdwg.mxu0
    %v11088 = vadd.f32 %v10977, %v11083
    %v11089 = vld [vmem:[%s8] sm:$0x1]
    %v11091 = vlaneseq
    %v11092 = vshrl.u32 %v11091, 7
    %v11093 = vsub.s32 0, %v11092
    %v11094 = vrot.slane %v11089, %v11093
    %v11096 = vadd.f32 %v11088, %v11094
    %vm11097 = vcmask 1041408
    %v11098 = vsel %vm11097, %v11096, -inf
    %11099 = vmax.xlane.f32.xlu0 %v11098
    %v11100 = vpop.xlane.xlu0 %11099
    %v11101 = vsub.f32 %v11096, %v11100
    %v11102 = vmul.f32 %v11101, 1.442695
    %v11103 = vpow.pop %v11102
    %v11104 = vsel %vm11097, %v11103, 0.0
    %11105 = vadd.xlane.f32.xlu0 %v11104
    %v11106 = vpop.xlane.xlu0 %11105
    %v11107 = vrcp.pop %v11106
    %v11108 = vmul.f32 %v11106, %v11107
    %v11109 = vsub.f32 2.0, %v11108
    %v11110 = vmul.f32 %v11107, %v11109
    %v11111 = vmul.f32 %v11103, %v11110
    %11112 = vst [vmem:[#allocation8] sm:$0x3] %v11111
    // Predicated region
    $region42: #{forward.1} parent=1 // pred_check
      _
    $region43: #{forward.1} parent=1 // pred_check_branch
      %11114 = sbr.rel (0) target = $region45
    $region44: #{forward.1} parent=1 // pred_region
      %s11116 = ssub.s32 32, 32
      %11117 = vsyncadd [#allocation7], %s11116
      %s11119 = sshll.u32 [#allocation8], 4
      %s11120 = int_to_ptr.vmem [resolvable:$true] %s11119
      %11122 = dma.vmem_to_hbm [thread:$0]  %s11120, 32, %s9, [#allocation7]
    $region45: #{forward.1} parent=1 // pred_fallthru
      _
    // Predicated region
    $region46: #{forward.1} parent=1 // pred_check
      _
    $region47: #{forward.1} parent=1 // pred_check_branch
      %11124 = sbr.rel (0) target = $region49
    $region48: #{forward.1} parent=1 // pred_region
      %11125 = dma.done [#allocation7], 32
    $region49: #{forward.1} parent=1 // pred_fallthru
      _
    %11126 = vsyncpa [#allocation6], 1
    %11127 = vsyncpa [#allocation7], 1

</llo_original>
